<compile_context>
chip_gen: v7x
topology: tpu7x:2x2x1
jax: 0.10.0
libtpu: 0.0.40
codegen_flags: <defaults>
</compile_context>

<pallas_src>
import jax
import jax.numpy as jnp
from jax.experimental import pallas as pl
from jax.experimental.pallas import tpu as pltpu

_EPS = 1e-5


# ---------------------------------------------------------------------------
# In-kernel building blocks
# ---------------------------------------------------------------------------
def _apply_activation(x, activation):
    if activation == 'relu':
        return jnp.maximum(x, 0.0)
    if activation == 'lrelu':
        return jnp.where(x >= 0.0, x, 0.2 * x)
    if activation == 'tanh':
        return jnp.tanh(x)
    return x  # 'none'


def _instance_norm(acc, hw):
    """InstanceNorm2d (affine=False, eps=1e-5) on (HW, C) f32, one-pass statistics."""
    inv_hw = 1.0 / float(hw)
    mean = jnp.sum(acc, axis=0, keepdims=True) * inv_hw
    ex2 = jnp.sum(acc * acc, axis=0, keepdims=True) * inv_hw
    var = jnp.maximum(ex2 - mean * mean, 0.0)
    return (acc - mean) * jax.lax.rsqrt(var + _EPS)


def _tap_loader(w_ref, conv_idx=None):
    """Returns get(t) -> (Cin, Cout) bf16 weight for kernel tap t."""
    if conv_idx is None:
        def get(t):
            return w_ref[t]
    else:
        def get(t):
            return w_ref[conv_idx, t]
    return get


def _conv_same(pad_ref, act2d, get_w, *, K, H, W, Cin, Cout):
    """Same-padded, stride-1 KxK conv as K*K shifted matmuls.

    pad_ref: (H+K-1, W+K-1, Cin) f32 VMEM scratch whose border is already zero.
    act2d:   (H*W, Cin) f32 value.
    get_w:   tap -> (Cin, Cout) bf16 weight.
    Returns  (H*W, Cout) f32 accumulator.
    """
    p = (K - 1) // 2
    pad_ref[p:p + H, p:p + W, :] = act2d.reshape(H, W, Cin)
    acc = None
    for dy in range(K):
        for dx in range(K):
            lhs = pad_ref[dy:dy + H, dx:dx + W, :].reshape(H * W, Cin)
            contrib = jnp.dot(lhs.astype(jnp.bfloat16), get_w(dy * K + dx),
                              preferred_element_type=jnp.float32)
            acc = contrib if acc is None else acc + contrib
    return acc


# ---------------------------------------------------------------------------
# Kernel factories
# ---------------------------------------------------------------------------
def _make_res_stage_kernel(H, W, C, n_res, norm, activation):
    """All ResBlocks fused: conv-IN-act, conv-IN, +identity, act (x n_res)."""
    K = 3
    HW = H * W

    def kernel(x_ref, w_ref, o_ref, pad_ref):
        pad_ref[...] = jnp.zeros(pad_ref.shape, pad_ref.dtype)   # zero border once
        act = x_ref[0].reshape(HW, C)
        for r in range(n_res):
            identity = act
            h = _conv_same(pad_ref, act, _tap_loader(w_ref, 2 * r),
                           K=K, H=H, W=W, Cin=C, Cout=C)
            if norm == 'in':
                h = _instance_norm(h, HW)
            h = _apply_activation(h, activation)
            h = _conv_same(pad_ref, h, _tap_loader(w_ref, 2 * r + 1),
                           K=K, H=H, W=W, Cin=C, Cout=C)
            if norm == 'in':
                h = _instance_norm(h, HW)
            act = _apply_activation(h + identity, activation)
        o_ref[0] = act.reshape(H, W, C).astype(o_ref.dtype)

    return kernel


def _make_conv_chain_kernel(H, W, convs):
    """A chain of ConvBlocks at the same (H, W): conv [+bias] [+IN] + activation, fused."""
    HW = H * W
    n_conv = len(convs)
    n_bias = sum(1 for c in convs if c['bias'])

    def kernel(*refs):
        x_ref = refs[0]
        w_refs = refs[1:1 + n_conv]
        b_refs = refs[1 + n_conv:1 + n_conv + n_bias]
        o_ref = refs[1 + n_conv + n_bias]
        pad_refs = refs[2 + n_conv + n_bias:]

        act = x_ref[0].reshape(HW, convs[0]['Cin'])
        bi = 0
        for ci, c in enumerate(convs):
            pad_refs[ci][...] = jnp.zeros(pad_refs[ci].shape, pad_refs[ci].dtype)
            acc = _conv_same(pad_refs[ci], act, _tap_loader(w_refs[ci]),
                             K=c['K'], H=H, W=W, Cin=c['Cin'], Cout=c['Cout'])
            if c['bias']:
                acc = acc + b_refs[bi][...]
                bi += 1
            if c['norm'] == 'in':
                acc = _instance_norm(acc, HW)
            act = _apply_activation(acc, c['act'])
        o_ref[0] = act.reshape(H, W, convs[-1]['Cout']).astype(o_ref.dtype)

    return kernel


# ---------------------------------------------------------------------------
# pallas_call wrappers
# ---------------------------------------------------------------------------
def res_stage_pallas(x, w_stack, *, norm, activation):
    """x: (N, H, W, C) f32.  w_stack: (2*n_res, 9, C, C) bf16 (tap-major (dy,dx))."""
    N, H, W, C = x.shape
    n_res = w_stack.shape[0] // 2
    K = 3
    Hp, Wp = H + K - 1, W + K - 1

    kernel = _make_res_stage_kernel(H, W, C, n_res, norm, activation)
    flops = 2 * N * H * W * K * K * C * C * (2 * n_res)
    bytes_accessed = 2 * x.size * x.dtype.itemsize + N * w_stack.size * w_stack.dtype.itemsize

    return pl.pallas_call(
        kernel,
        out_shape=jax.ShapeDtypeStruct((N, H, W, C), jnp.float32),
        grid_spec=pltpu.PrefetchScalarGridSpec(
            num_scalar_prefetch=0,
            grid=(N,),
            in_specs=[
                pl.BlockSpec((1, H, W, C), lambda n: (n, 0, 0, 0)),
                pl.BlockSpec(tuple(w_stack.shape), lambda n: (0, 0, 0, 0)),
            ],
            out_specs=pl.BlockSpec((1, H, W, C), lambda n: (n, 0, 0, 0)),
            scratch_shapes=[pltpu.VMEM((Hp, Wp, C), jnp.float32)],
        ),
        compiler_params=pltpu.CompilerParams(dimension_semantics=("parallel",)),
        cost_estimate=pl.CostEstimate(flops=int(flops), transcendentals=0,
                                      bytes_accessed=int(bytes_accessed)),
    )(x, w_stack)


def conv_chain_pallas(x, convs, weights, biases):
    """x: (N, H, W, Cin0) f32.  weights[i]: (K*K, Cin, Cout) bf16.  biases: present (1, Cout) f32."""
    N, H, W, Cin0 = x.shape
    assert Cin0 == convs[0]['Cin']
    Cout = convs[-1]['Cout']

    kernel = _make_conv_chain_kernel(H, W, convs)

    in_specs = [pl.BlockSpec((1, H, W, Cin0), lambda n: (n, 0, 0, 0))]
    args = [x]
    for w2 in weights:
        in_specs.append(pl.BlockSpec(tuple(w2.shape), lambda n: (0, 0, 0)))
        args.append(w2)
    for b2 in biases:
        in_specs.append(pl.BlockSpec(tuple(b2.shape), lambda n: (0, 0)))
        args.append(b2)

    scratch = [pltpu.VMEM((H + c['K'] - 1, W + c['K'] - 1, c['Cin']), jnp.float32)
               for c in convs]

    flops = sum(2 * N * H * W * c['K'] * c['K'] * c['Cin'] * c['Cout'] for c in convs)
    trans = sum(N * H * W * c['Cout'] for c in convs if c['act'] == 'tanh')
    bytes_accessed = (x.size * x.dtype.itemsize + N * H * W * Cout * 4
                      + N * sum(int(w.size) * 2 for w in weights)
                      + N * sum(int(b.size) * 4 for b in biases))

    return pl.pallas_call(
        kernel,
        out_shape=jax.ShapeDtypeStruct((N, H, W, Cout), jnp.float32),
        grid_spec=pltpu.PrefetchScalarGridSpec(
            num_scalar_prefetch=0,
            grid=(N,),
            in_specs=in_specs,
            out_specs=pl.BlockSpec((1, H, W, Cout), lambda n: (n, 0, 0, 0)),
            scratch_shapes=scratch,
        ),
        compiler_params=pltpu.CompilerParams(dimension_semantics=("parallel",)),
        cost_estimate=pl.CostEstimate(flops=int(flops), transcendentals=int(trans),
                                      bytes_accessed=int(bytes_accessed)),
    )(*args)


# ---------------------------------------------------------------------------
# Decoder: parameters + forward
# ---------------------------------------------------------------------------
def init_decoder_params(key, initial_c=32, output_channels=3, n_res=4, n_conv=3):
    def conv_w(k, ksize, cin, cout):
        fan_in = cin * ksize * ksize
        bound = 1.0 / jnp.sqrt(float(fan_in))
        return jax.random.uniform(k, (ksize, ksize, cin, cout), jnp.float32, -bound, bound)

    keys = iter(jax.random.split(key, 4 * n_res + 2 * n_conv + 4))
    params = {'res': [], 'up': [], 'final': None}
    c = initial_c
    for _ in range(n_res):
        params['res'].append((conv_w(next(keys), 3, c, c), conv_w(next(keys), 3, c, c)))
    for _ in range(n_conv - 1):
        params['up'].append(conv_w(next(keys), 5, c, c // 2))
        c = c // 2
    wf = conv_w(next(keys), 7, c, output_channels)
    bf = jax.random.uniform(next(keys), (output_channels,), jnp.float32, -0.1, 0.1)
    params['final'] = (wf, bf)
    return params


def decoder_forward_pallas(x_nchw, params, norm='in', activation='relu'):
    # TODO(synk): 'bn' (BatchNorm) and transposed-conv ConvBlock variants are not implemented
    #             (the Decoder module only uses 'in' / 'none' norms and regular convs).
    if norm not in ('in', 'none'):
        raise NotImplementedError("norm='%s' not supported in the Pallas decoder" % norm)

    # Layout glue: PyTorch NCHW -> NHWC for the TPU kernels.
    x = jnp.transpose(x_nchw, (0, 2, 3, 1)).astype(jnp.float32)

    # ---- stage 1: all ResBlocks fused into one kernel ----
    if params['res']:
        C = params['res'][0][0].shape[2]
        w_list = []
        for (w1, w2) in params['res']:
            w_list.append(w1.reshape(9, C, C))
            w_list.append(w2.reshape(9, C, C))
        w_stack = jnp.stack(w_list).astype(jnp.bfloat16)
        x = res_stage_pallas(x, w_stack, norm=norm, activation=activation)

    # ---- stage 2: upsample + 5x5 ConvBlocks; the last one is fused with the final conv ----
    wf, bf = params['final']
    Kf, Cin_f, Cout_f = wf.shape[0], wf.shape[2], wf.shape[3]
    final_desc = dict(K=Kf, Cin=Cin_f, Cout=Cout_f, norm='none', act='tanh', bias=True)
    wf2 = wf.reshape(Kf * Kf, Cin_f, Cout_f).astype(jnp.bfloat16)
    bf2 = bf.reshape(1, Cout_f).astype(jnp.float32)

    ups = params['up']
    n_up = len(ups)
    for i, w in enumerate(ups):
        # 2x nearest-neighbour upsample (layout glue between fused kernels).
        x = jnp.repeat(jnp.repeat(x, 2, axis=1), 2, axis=2)
        K, cin, cout = w.shape[0], w.shape[2], w.shape[3]
        desc = dict(K=K, Cin=cin, Cout=cout, norm=norm, act=activation, bias=False)
        w2 = w.reshape(K * K, cin, cout).astype(jnp.bfloat16)
        if i < n_up - 1:
            x = conv_chain_pallas(x, [desc], [w2], [])
        else:
            x = conv_chain_pallas(x, [desc, final_desc], [w2, wf2], [bf2])
    if n_up == 0:
        x = conv_chain_pallas(x, [final_desc], [wf2], [bf2])

    # Layout glue back to PyTorch NCHW.
    return jnp.transpose(x, (0, 3, 1, 2))


# ---------------------------------------------------------------------------
# Pure-JAX reference (for correctness check)
# ---------------------------------------------------------------------------
def _conv_ref(x, w, b=None):
    out = jax.lax.conv_general_dilated(x, w, (1, 1), 'SAME',
                                       dimension_numbers=('NHWC', 'HWIO', 'NHWC'))
    return out if b is None else out + b


def _in_ref(x):
    mean = jnp.mean(x, axis=(1, 2), keepdims=True)
    var = jnp.mean((x - mean) ** 2, axis=(1, 2), keepdims=True)
    return (x - mean) * jax.lax.rsqrt(var + _EPS)


def decoder_forward_ref(x_nchw, params):
    x = jnp.transpose(x_nchw, (0, 2, 3, 1))
    for (w1, w2) in params['res']:
        identity = x
        h = jnp.maximum(_in_ref(_conv_ref(x, w1)), 0.0)
        h = _in_ref(_conv_ref(h, w2))
        x = jnp.maximum(h + identity, 0.0)
    for w in params['up']:
        x = jnp.repeat(jnp.repeat(x, 2, axis=1), 2, axis=2)
        x = jnp.maximum(_in_ref(_conv_ref(x, w)), 0.0)
    wf, bf = params['final']
    x = jnp.tanh(_conv_ref(x, wf, bf))
    return jnp.transpose(x, (0, 3, 1, 2))


# ---------------------------------------------------------------------------
if __name__ == "__main__":
    # Small, module-consistent shapes: Decoder(initial_c=32, output_channels=3, n_res=4, n_conv=3)
    N, C, H, W = 2, 32, 8, 8
    key = jax.random.PRNGKey(0)
    k_in, k_par = jax.random.split(key)
    x_nchw = jax.random.normal(k_in, (N, C, H, W), jnp.float32)

    params = init_decoder_params(k_par, initial_c=C, output_channels=3, n_res=4, n_conv=3)

    out = decoder_forward_pallas(x_nchw, params)
    out = jax.block_until_ready(out)
    assert out.shape == (N, 3, H * 4, W * 4), out.shape

    ref = jax.block_until_ready(decoder_forward_ref(x_nchw, params))
    err = float(jnp.max(jnp.abs(out - ref)))
    assert err < 5e-2, err

    print("KERNEL_OK")
</pallas_src>

<mosaic_0001>
module attributes {stable_mosaic.version = 11 : i64} {
  func.func @kernel(%arg0: i32, %arg1: memref<1x8x8x32xf32, #tpu.memory_space<vmem>>, %arg2: memref<8x9x32x32xbf16, #tpu.memory_space<vmem>>, %arg3: memref<1x8x8x32xf32, #tpu.memory_space<vmem>>, %arg4: memref<10x10x32xf32, #tpu.memory_space<vmem>>) attributes {dimension_semantics = [#tpu.dimension_semantics<parallel>], iteration_bounds = array<i64: 2>, scalar_prefetch = 0 : i64, scratch_operands = 1 : i64, tpu.core_type = #tpu.core_type<tc>, window_params = [{transform_indices = @transform_0, window_bounds = array<i64: 1, 8, 8, 32>}, {pipeline_mode = #tpu.pipeline_mode<synchronous>, transform_indices = @transform_1, window_bounds = array<i64: 8, 9, 32, 32>}, {transform_indices = @transform_2, window_bounds = array<i64: 1, 8, 8, 32>}]} {
    %cst = arith.constant 0.000000e+00 : f32
    %0 = vector.broadcast %cst : f32 to vector<10x10x32xf32>
    %c0 = arith.constant 0 : index
    %c0_0 = arith.constant 0 : index
    %c0_1 = arith.constant 0 : index
    %1 = vector.load %arg4[%c0, %c0_0, %c0_1] : memref<10x10x32xf32, #tpu.memory_space<vmem>>, vector<10x10x32xf32>
    tpu.vector_store %arg4[%c0, %c0_0, %c0_1], %0 {strides = array<i32>} : memref<10x10x32xf32, #tpu.memory_space<vmem>>, vector<10x10x32xf32>,
    %c0_2 = arith.constant 0 : index
    %c0_3 = arith.constant 0 : index
    %c0_4 = arith.constant 0 : index
    %c0_5 = arith.constant 0 : index
    %2 = vector.load %arg1[%c0_2, %c0_3, %c0_4, %c0_5] : memref<1x8x8x32xf32, #tpu.memory_space<vmem>>, vector<1x8x8x32xf32>
    %3 = vector.shape_cast %2 : vector<1x8x8x32xf32> to vector<8x8x32xf32>
    %4 = vector.shape_cast %3 : vector<8x8x32xf32> to vector<64x32xf32>
    %5 = vector.shape_cast %4 : vector<64x32xf32> to vector<8x8x32xf32>
    %c1 = arith.constant 1 : index
    %c1_6 = arith.constant 1 : index
    %c0_7 = arith.constant 0 : index
    %6 = vector.load %arg4[%c1, %c1_6, %c0_7] : memref<10x10x32xf32, #tpu.memory_space<vmem>>, vector<8x8x32xf32>
    tpu.vector_store %arg4[%c1, %c1_6, %c0_7], %5 {strides = array<i32>} : memref<10x10x32xf32, #tpu.memory_space<vmem>>, vector<8x8x32xf32>,
    %c0_8 = arith.constant 0 : index
    %c0_9 = arith.constant 0 : index
    %c0_10 = arith.constant 0 : index
    %7 = vector.load %arg4[%c0_8, %c0_9, %c0_10] : memref<10x10x32xf32, #tpu.memory_space<vmem>>, vector<8x8x32xf32>
    %8 = vector.shape_cast %7 : vector<8x8x32xf32> to vector<64x32xf32>
    %9 = arith.truncf %8 : vector<64x32xf32> to vector<64x32xbf16>
    %c0_11 = arith.constant 0 : index
    %c0_12 = arith.constant 0 : index
    %c0_13 = arith.constant 0 : index
    %c0_14 = arith.constant 0 : index
    %10 = vector.load %arg2[%c0_11, %c0_12, %c0_13, %c0_14] : memref<8x9x32x32xbf16, #tpu.memory_space<vmem>>, vector<1x1x32x32xbf16>
    %11 = vector.shape_cast %10 : vector<1x1x32x32xbf16> to vector<32x32xbf16>
    %cst_15 = arith.constant dense<0.000000e+00> : vector<64x32xf32>
    %12 = tpu.matmul %9, %11, %cst_15 {dimension_numbers = #tpu.dot_dimension_numbers<[1], [0], [0], [1], [0, 0, 1, 1], [], []>} : vector<64x32xbf16>, vector<32x32xbf16>, vector<64x32xf32> -> vector<64x32xf32>
    %c0_16 = arith.constant 0 : index
    %c1_17 = arith.constant 1 : index
    %c0_18 = arith.constant 0 : index
    %13 = vector.load %arg4[%c0_16, %c1_17, %c0_18] : memref<10x10x32xf32, #tpu.memory_space<vmem>>, vector<8x8x32xf32>
    %14 = vector.shape_cast %13 : vector<8x8x32xf32> to vector<64x32xf32>
    %15 = arith.truncf %14 : vector<64x32xf32> to vector<64x32xbf16>
    %c0_19 = arith.constant 0 : index
    %c1_20 = arith.constant 1 : index
    %c0_21 = arith.constant 0 : index
    %c0_22 = arith.constant 0 : index
    %16 = vector.load %arg2[%c0_19, %c1_20, %c0_21, %c0_22] : memref<8x9x32x32xbf16, #tpu.memory_space<vmem>>, vector<1x1x32x32xbf16>
    %17 = vector.shape_cast %16 : vector<1x1x32x32xbf16> to vector<32x32xbf16>
    %cst_23 = arith.constant dense<0.000000e+00> : vector<64x32xf32>
    %18 = tpu.matmul %15, %17, %cst_23 {dimension_numbers = #tpu.dot_dimension_numbers<[1], [0], [0], [1], [0, 0, 1, 1], [], []>} : vector<64x32xbf16>, vector<32x32xbf16>, vector<64x32xf32> -> vector<64x32xf32>
    %19 = arith.addf %12, %18 : vector<64x32xf32>
    %c0_24 = arith.constant 0 : index
    %c2 = arith.constant 2 : index
    %c0_25 = arith.constant 0 : index
    %20 = vector.load %arg4[%c0_24, %c2, %c0_25] : memref<10x10x32xf32, #tpu.memory_space<vmem>>, vector<8x8x32xf32>
    %21 = vector.shape_cast %20 : vector<8x8x32xf32> to vector<64x32xf32>
    %22 = arith.truncf %21 : vector<64x32xf32> to vector<64x32xbf16>
    %c0_26 = arith.constant 0 : index
    %c2_27 = arith.constant 2 : index
    %c0_28 = arith.constant 0 : index
    %c0_29 = arith.constant 0 : index
    %23 = vector.load %arg2[%c0_26, %c2_27, %c0_28, %c0_29] : memref<8x9x32x32xbf16, #tpu.memory_space<vmem>>, vector<1x1x32x32xbf16>
    %24 = vector.shape_cast %23 : vector<1x1x32x32xbf16> to vector<32x32xbf16>
    %cst_30 = arith.constant dense<0.000000e+00> : vector<64x32xf32>
    %25 = tpu.matmul %22, %24, %cst_30 {dimension_numbers = #tpu.dot_dimension_numbers<[1], [0], [0], [1], [0, 0, 1, 1], [], []>} : vector<64x32xbf16>, vector<32x32xbf16>, vector<64x32xf32> -> vector<64x32xf32>
    %26 = arith.addf %19, %25 : vector<64x32xf32>
    %c1_31 = arith.constant 1 : index
    %c0_32 = arith.constant 0 : index
    %c0_33 = arith.constant 0 : index
    %27 = vector.load %arg4[%c1_31, %c0_32, %c0_33] : memref<10x10x32xf32, #tpu.memory_space<vmem>>, vector<8x8x32xf32>
    %28 = vector.shape_cast %27 : vector<8x8x32xf32> to vector<64x32xf32>
    %29 = arith.truncf %28 : vector<64x32xf32> to vector<64x32xbf16>
    %c0_34 = arith.constant 0 : index
    %c3 = arith.constant 3 : index
    %c0_35 = arith.constant 0 : index
    %c0_36 = arith.constant 0 : index
    %30 = vector.load %arg2[%c0_34, %c3, %c0_35, %c0_36] : memref<8x9x32x32xbf16, #tpu.memory_space<vmem>>, vector<1x1x32x32xbf16>
    %31 = vector.shape_cast %30 : vector<1x1x32x32xbf16> to vector<32x32xbf16>
    %cst_37 = arith.constant dense<0.000000e+00> : vector<64x32xf32>
    %32 = tpu.matmul %29, %31, %cst_37 {dimension_numbers = #tpu.dot_dimension_numbers<[1], [0], [0], [1], [0, 0, 1, 1], [], []>} : vector<64x32xbf16>, vector<32x32xbf16>, vector<64x32xf32> -> vector<64x32xf32>
    %33 = arith.addf %26, %32 : vector<64x32xf32>
    %c1_38 = arith.constant 1 : index
    %c1_39 = arith.constant 1 : index
    %c0_40 = arith.constant 0 : index
    %34 = vector.load %arg4[%c1_38, %c1_39, %c0_40] : memref<10x10x32xf32, #tpu.memory_space<vmem>>, vector<8x8x32xf32>
    %35 = vector.shape_cast %34 : vector<8x8x32xf32> to vector<64x32xf32>
    %36 = arith.truncf %35 : vector<64x32xf32> to vector<64x32xbf16>
    %c0_41 = arith.constant 0 : index
    %c4 = arith.constant 4 : index
    %c0_42 = arith.constant 0 : index
    %c0_43 = arith.constant 0 : index
    %37 = vector.load %arg2[%c0_41, %c4, %c0_42, %c0_43] : memref<8x9x32x32xbf16, #tpu.memory_space<vmem>>, vector<1x1x32x32xbf16>
    %38 = vector.shape_cast %37 : vector<1x1x32x32xbf16> to vector<32x32xbf16>
    %cst_44 = arith.constant dense<0.000000e+00> : vector<64x32xf32>
    %39 = tpu.matmul %36, %38, %cst_44 {dimension_numbers = #tpu.dot_dimension_numbers<[1], [0], [0], [1], [0, 0, 1, 1], [], []>} : vector<64x32xbf16>, vector<32x32xbf16>, vector<64x32xf32> -> vector<64x32xf32>
    %40 = arith.addf %33, %39 : vector<64x32xf32>
    %c1_45 = arith.constant 1 : index
    %c2_46 = arith.constant 2 : index
    %c0_47 = arith.constant 0 : index
    %41 = vector.load %arg4[%c1_45, %c2_46, %c0_47] : memref<10x10x32xf32, #tpu.memory_space<vmem>>, vector<8x8x32xf32>
    %42 = vector.shape_cast %41 : vector<8x8x32xf32> to vector<64x32xf32>
    %43 = arith.truncf %42 : vector<64x32xf32> to vector<64x32xbf16>
    %c0_48 = arith.constant 0 : index
    %c5 = arith.constant 5 : index
    %c0_49 = arith.constant 0 : index
    %c0_50 = arith.constant 0 : index
    %44 = vector.load %arg2[%c0_48, %c5, %c0_49, %c0_50] : memref<8x9x32x32xbf16, #tpu.memory_space<vmem>>, vector<1x1x32x32xbf16>
    %45 = vector.shape_cast %44 : vector<1x1x32x32xbf16> to vector<32x32xbf16>
    %cst_51 = arith.constant dense<0.000000e+00> : vector<64x32xf32>
    %46 = tpu.matmul %43, %45, %cst_51 {dimension_numbers = #tpu.dot_dimension_numbers<[1], [0], [0], [1], [0, 0, 1, 1], [], []>} : vector<64x32xbf16>, vector<32x32xbf16>, vector<64x32xf32> -> vector<64x32xf32>
    %47 = arith.addf %40, %46 : vector<64x32xf32>
    %c2_52 = arith.constant 2 : index
    %c0_53 = arith.constant 0 : index
    %c0_54 = arith.constant 0 : index
    %48 = vector.load %arg4[%c2_52, %c0_53, %c0_54] : memref<10x10x32xf32, #tpu.memory_space<vmem>>, vector<8x8x32xf32>
    %49 = vector.shape_cast %48 : vector<8x8x32xf32> to vector<64x32xf32>
    %50 = arith.truncf %49 : vector<64x32xf32> to vector<64x32xbf16>
    %c0_55 = arith.constant 0 : index
    %c6 = arith.constant 6 : index
    %c0_56 = arith.constant 0 : index
    %c0_57 = arith.constant 0 : index
    %51 = vector.load %arg2[%c0_55, %c6, %c0_56, %c0_57] : memref<8x9x32x32xbf16, #tpu.memory_space<vmem>>, vector<1x1x32x32xbf16>
    %52 = vector.shape_cast %51 : vector<1x1x32x32xbf16> to vector<32x32xbf16>
    %cst_58 = arith.constant dense<0.000000e+00> : vector<64x32xf32>
    %53 = tpu.matmul %50, %52, %cst_58 {dimension_numbers = #tpu.dot_dimension_numbers<[1], [0], [0], [1], [0, 0, 1, 1], [], []>} : vector<64x32xbf16>, vector<32x32xbf16>, vector<64x32xf32> -> vector<64x32xf32>
    %54 = arith.addf %47, %53 : vector<64x32xf32>
    %c2_59 = arith.constant 2 : index
    %c1_60 = arith.constant 1 : index
    %c0_61 = arith.constant 0 : index
    %55 = vector.load %arg4[%c2_59, %c1_60, %c0_61] : memref<10x10x32xf32, #tpu.memory_space<vmem>>, vector<8x8x32xf32>
    %56 = vector.shape_cast %55 : vector<8x8x32xf32> to vector<64x32xf32>
    %57 = arith.truncf %56 : vector<64x32xf32> to vector<64x32xbf16>
    %c0_62 = arith.constant 0 : index
    %c7 = arith.constant 7 : index
    %c0_63 = arith.constant 0 : index
    %c0_64 = arith.constant 0 : index
    %58 = vector.load %arg2[%c0_62, %c7, %c0_63, %c0_64] : memref<8x9x32x32xbf16, #tpu.memory_space<vmem>>, vector<1x1x32x32xbf16>
    %59 = vector.shape_cast %58 : vector<1x1x32x32xbf16> to vector<32x32xbf16>
    %cst_65 = arith.constant dense<0.000000e+00> : vector<64x32xf32>
    %60 = tpu.matmul %57, %59, %cst_65 {dimension_numbers = #tpu.dot_dimension_numbers<[1], [0], [0], [1], [0, 0, 1, 1], [], []>} : vector<64x32xbf16>, vector<32x32xbf16>, vector<64x32xf32> -> vector<64x32xf32>
    %61 = arith.addf %54, %60 : vector<64x32xf32>
    %c2_66 = arith.constant 2 : index
    %c2_67 = arith.constant 2 : index
    %c0_68 = arith.constant 0 : index
    %62 = vector.load %arg4[%c2_66, %c2_67, %c0_68] : memref<10x10x32xf32, #tpu.memory_space<vmem>>, vector<8x8x32xf32>
    %63 = vector.shape_cast %62 : vector<8x8x32xf32> to vector<64x32xf32>
    %64 = arith.truncf %63 : vector<64x32xf32> to vector<64x32xbf16>
    %c0_69 = arith.constant 0 : index
    %c8 = arith.constant 8 : index
    %c0_70 = arith.constant 0 : index
    %c0_71 = arith.constant 0 : index
    %65 = vector.load %arg2[%c0_69, %c8, %c0_70, %c0_71] : memref<8x9x32x32xbf16, #tpu.memory_space<vmem>>, vector<1x1x32x32xbf16>
    %66 = vector.shape_cast %65 : vector<1x1x32x32xbf16> to vector<32x32xbf16>
    %cst_72 = arith.constant dense<0.000000e+00> : vector<64x32xf32>
    %67 = tpu.matmul %64, %66, %cst_72 {dimension_numbers = #tpu.dot_dimension_numbers<[1], [0], [0], [1], [0, 0, 1, 1], [], []>} : vector<64x32xbf16>, vector<32x32xbf16>, vector<64x32xf32> -> vector<64x32xf32>
    %68 = arith.addf %61, %67 : vector<64x32xf32>
    %cst_73 = arith.constant dense<0.000000e+00> : vector<32xf32>
    %69 = vector.multi_reduction <add>, %68, %cst_73 [0] : vector<64x32xf32> to vector<32xf32>
    %70 = vector.shape_cast %69 : vector<32xf32> to vector<1x32xf32>
    %cst_74 = arith.constant 1.562500e-02 : f32
    %71 = vector.broadcast %cst_74 : f32 to vector<1x32xf32>
    %72 = arith.mulf %70, %71 : vector<1x32xf32>
    %73 = arith.mulf %68, %68 : vector<64x32xf32>
    %cst_75 = arith.constant dense<0.000000e+00> : vector<32xf32>
    %74 = vector.multi_reduction <add>, %73, %cst_75 [0] : vector<64x32xf32> to vector<32xf32>
    %75 = vector.shape_cast %74 : vector<32xf32> to vector<1x32xf32>
    %cst_76 = arith.constant 1.562500e-02 : f32
    %76 = vector.broadcast %cst_76 : f32 to vector<1x32xf32>
    %77 = arith.mulf %75, %76 : vector<1x32xf32>
    %78 = arith.mulf %72, %72 : vector<1x32xf32>
    %79 = arith.subf %77, %78 : vector<1x32xf32>
    %cst_77 = arith.constant 0.000000e+00 : f32
    %80 = vector.broadcast %cst_77 : f32 to vector<1x32xf32>
    %81 = arith.maximumf %79, %80 : vector<1x32xf32>
    %82 = vector.broadcast %72 : vector<1x32xf32> to vector<64x32xf32>
    %83 = arith.subf %68, %82 : vector<64x32xf32>
    %cst_78 = arith.constant 9.99999974E-6 : f32
    %84 = vector.broadcast %cst_78 : f32 to vector<1x32xf32>
    %85 = arith.addf %81, %84 : vector<1x32xf32>
    %86 = math.rsqrt %85 : vector<1x32xf32>
    %87 = vector.broadcast %86 : vector<1x32xf32> to vector<64x32xf32>
    %88 = arith.mulf %83, %87 : vector<64x32xf32>
    %cst_79 = arith.constant 0.000000e+00 : f32
    %89 = vector.broadcast %cst_79 : f32 to vector<64x32xf32>
    %90 = arith.maximumf %88, %89 : vector<64x32xf32>
    %91 = vector.shape_cast %90 : vector<64x32xf32> to vector<8x8x32xf32>
    %c1_80 = arith.constant 1 : index
    %c1_81 = arith.constant 1 : index
    %c0_82 = arith.constant 0 : index
    %92 = vector.load %arg4[%c1_80, %c1_81, %c0_82] : memref<10x10x32xf32, #tpu.memory_space<vmem>>, vector<8x8x32xf32>
    tpu.vector_store %arg4[%c1_80, %c1_81, %c0_82], %91 {strides = array<i32>} : memref<10x10x32xf32, #tpu.memory_space<vmem>>, vector<8x8x32xf32>,
    %c0_83 = arith.constant 0 : index
    %c0_84 = arith.constant 0 : index
    %c0_85 = arith.constant 0 : index
    %93 = vector.load %arg4[%c0_83, %c0_84, %c0_85] : memref<10x10x32xf32, #tpu.memory_space<vmem>>, vector<8x8x32xf32>
    %94 = vector.shape_cast %93 : vector<8x8x32xf32> to vector<64x32xf32>
    %95 = arith.truncf %94 : vector<64x32xf32> to vector<64x32xbf16>
    %c1_86 = arith.constant 1 : index
    %c0_87 = arith.constant 0 : index
    %c0_88 = arith.constant 0 : index
    %c0_89 = arith.constant 0 : index
    %96 = vector.load %arg2[%c1_86, %c0_87, %c0_88, %c0_89] : memref<8x9x32x32xbf16, #tpu.memory_space<vmem>>, vector<1x1x32x32xbf16>
    %97 = vector.shape_cast %96 : vector<1x1x32x32xbf16> to vector<32x32xbf16>
    %cst_90 = arith.constant dense<0.000000e+00> : vector<64x32xf32>
    %98 = tpu.matmul %95, %97, %cst_90 {dimension_numbers = #tpu.dot_dimension_numbers<[1], [0], [0], [1], [0, 0, 1, 1], [], []>} : vector<64x32xbf16>, vector<32x32xbf16>, vector<64x32xf32> -> vector<64x32xf32>
    %c0_91 = arith.constant 0 : index
    %c1_92 = arith.constant 1 : index
    %c0_93 = arith.constant 0 : index
    %99 = vector.load %arg4[%c0_91, %c1_92, %c0_93] : memref<10x10x32xf32, #tpu.memory_space<vmem>>, vector<8x8x32xf32>
    %100 = vector.shape_cast %99 : vector<8x8x32xf32> to vector<64x32xf32>
    %101 = arith.truncf %100 : vector<64x32xf32> to vector<64x32xbf16>
    %c1_94 = arith.constant 1 : index
    %c1_95 = arith.constant 1 : index
    %c0_96 = arith.constant 0 : index
    %c0_97 = arith.constant 0 : index
    %102 = vector.load %arg2[%c1_94, %c1_95, %c0_96, %c0_97] : memref<8x9x32x32xbf16, #tpu.memory_space<vmem>>, vector<1x1x32x32xbf16>
    %103 = vector.shape_cast %102 : vector<1x1x32x32xbf16> to vector<32x32xbf16>
    %cst_98 = arith.constant dense<0.000000e+00> : vector<64x32xf32>
    %104 = tpu.matmul %101, %103, %cst_98 {dimension_numbers = #tpu.dot_dimension_numbers<[1], [0], [0], [1], [0, 0, 1, 1], [], []>} : vector<64x32xbf16>, vector<32x32xbf16>, vector<64x32xf32> -> vector<64x32xf32>
    %105 = arith.addf %98, %104 : vector<64x32xf32>
    %c0_99 = arith.constant 0 : index
    %c2_100 = arith.constant 2 : index
    %c0_101 = arith.constant 0 : index
    %106 = vector.load %arg4[%c0_99, %c2_100, %c0_101] : memref<10x10x32xf32, #tpu.memory_space<vmem>>, vector<8x8x32xf32>
    %107 = vector.shape_cast %106 : vector<8x8x32xf32> to vector<64x32xf32>
    %108 = arith.truncf %107 : vector<64x32xf32> to vector<64x32xbf16>
    %c1_102 = arith.constant 1 : index
    %c2_103 = arith.constant 2 : index
    %c0_104 = arith.constant 0 : index
    %c0_105 = arith.constant 0 : index
    %109 = vector.load %arg2[%c1_102, %c2_103, %c0_104, %c0_105] : memref<8x9x32x32xbf16, #tpu.memory_space<vmem>>, vector<1x1x32x32xbf16>
    %110 = vector.shape_cast %109 : vector<1x1x32x32xbf16> to vector<32x32xbf16>
    %cst_106 = arith.constant dense<0.000000e+00> : vector<64x32xf32>
    %111 = tpu.matmul %108, %110, %cst_106 {dimension_numbers = #tpu.dot_dimension_numbers<[1], [0], [0], [1], [0, 0, 1, 1], [], []>} : vector<64x32xbf16>, vector<32x32xbf16>, vector<64x32xf32> -> vector<64x32xf32>
    %112 = arith.addf %105, %111 : vector<64x32xf32>
    %c1_107 = arith.constant 1 : index
    %c0_108 = arith.constant 0 : index
    %c0_109 = arith.constant 0 : index
    %113 = vector.load %arg4[%c1_107, %c0_108, %c0_109] : memref<10x10x32xf32, #tpu.memory_space<vmem>>, vector<8x8x32xf32>
    %114 = vector.shape_cast %113 : vector<8x8x32xf32> to vector<64x32xf32>
    %115 = arith.truncf %114 : vector<64x32xf32> to vector<64x32xbf16>
    %c1_110 = arith.constant 1 : index
    %c3_111 = arith.constant 3 : index
    %c0_112 = arith.constant 0 : index
    %c0_113 = arith.constant 0 : index
    %116 = vector.load %arg2[%c1_110, %c3_111, %c0_112, %c0_113] : memref<8x9x32x32xbf16, #tpu.memory_space<vmem>>, vector<1x1x32x32xbf16>
    %117 = vector.shape_cast %116 : vector<1x1x32x32xbf16> to vector<32x32xbf16>
    %cst_114 = arith.constant dense<0.000000e+00> : vector<64x32xf32>
    %118 = tpu.matmul %115, %117, %cst_114 {dimension_numbers = #tpu.dot_dimension_numbers<[1], [0], [0], [1], [0, 0, 1, 1], [], []>} : vector<64x32xbf16>, vector<32x32xbf16>, vector<64x32xf32> -> vector<64x32xf32>
    %119 = arith.addf %112, %118 : vector<64x32xf32>
    %c1_115 = arith.constant 1 : index
    %c1_116 = arith.constant 1 : index
    %c0_117 = arith.constant 0 : index
    %120 = vector.load %arg4[%c1_115, %c1_116, %c0_117] : memref<10x10x32xf32, #tpu.memory_space<vmem>>, vector<8x8x32xf32>
    %121 = vector.shape_cast %120 : vector<8x8x32xf32> to vector<64x32xf32>
    %122 = arith.truncf %121 : vector<64x32xf32> to vector<64x32xbf16>
    %c1_118 = arith.constant 1 : index
    %c4_119 = arith.constant 4 : index
    %c0_120 = arith.constant 0 : index
    %c0_121 = arith.constant 0 : index
    %123 = vector.load %arg2[%c1_118, %c4_119, %c0_120, %c0_121] : memref<8x9x32x32xbf16, #tpu.memory_space<vmem>>, vector<1x1x32x32xbf16>
    %124 = vector.shape_cast %123 : vector<1x1x32x32xbf16> to vector<32x32xbf16>
    %cst_122 = arith.constant dense<0.000000e+00> : vector<64x32xf32>
    %125 = tpu.matmul %122, %124, %cst_122 {dimension_numbers = #tpu.dot_dimension_numbers<[1], [0], [0], [1], [0, 0, 1, 1], [], []>} : vector<64x32xbf16>, vector<32x32xbf16>, vector<64x32xf32> -> vector<64x32xf32>
    %126 = arith.addf %119, %125 : vector<64x32xf32>
    %c1_123 = arith.constant 1 : index
    %c2_124 = arith.constant 2 : index
    %c0_125 = arith.constant 0 : index
    %127 = vector.load %arg4[%c1_123, %c2_124, %c0_125] : memref<10x10x32xf32, #tpu.memory_space<vmem>>, vector<8x8x32xf32>
    %128 = vector.shape_cast %127 : vector<8x8x32xf32> to vector<64x32xf32>
    %129 = arith.truncf %128 : vector<64x32xf32> to vector<64x32xbf16>
    %c1_126 = arith.constant 1 : index
    %c5_127 = arith.constant 5 : index
    %c0_128 = arith.constant 0 : index
    %c0_129 = arith.constant 0 : index
    %130 = vector.load %arg2[%c1_126, %c5_127, %c0_128, %c0_129] : memref<8x9x32x32xbf16, #tpu.memory_space<vmem>>, vector<1x1x32x32xbf16>
    %131 = vector.shape_cast %130 : vector<1x1x32x32xbf16> to vector<32x32xbf16>
    %cst_130 = arith.constant dense<0.000000e+00> : vector<64x32xf32>
    %132 = tpu.matmul %129, %131, %cst_130 {dimension_numbers = #tpu.dot_dimension_numbers<[1], [0], [0], [1], [0, 0, 1, 1], [], []>} : vector<64x32xbf16>, vector<32x32xbf16>, vector<64x32xf32> -> vector<64x32xf32>
    %133 = arith.addf %126, %132 : vector<64x32xf32>
    %c2_131 = arith.constant 2 : index
    %c0_132 = arith.constant 0 : index
    %c0_133 = arith.constant 0 : index
    %134 = vector.load %arg4[%c2_131, %c0_132, %c0_133] : memref<10x10x32xf32, #tpu.memory_space<vmem>>, vector<8x8x32xf32>
    %135 = vector.shape_cast %134 : vector<8x8x32xf32> to vector<64x32xf32>
    %136 = arith.truncf %135 : vector<64x32xf32> to vector<64x32xbf16>
    %c1_134 = arith.constant 1 : index
    %c6_135 = arith.constant 6 : index
    %c0_136 = arith.constant 0 : index
    %c0_137 = arith.constant 0 : index
    %137 = vector.load %arg2[%c1_134, %c6_135, %c0_136, %c0_137] : memref<8x9x32x32xbf16, #tpu.memory_space<vmem>>, vector<1x1x32x32xbf16>
    %138 = vector.shape_cast %137 : vector<1x1x32x32xbf16> to vector<32x32xbf16>
    %cst_138 = arith.constant dense<0.000000e+00> : vector<64x32xf32>
    %139 = tpu.matmul %136, %138, %cst_138 {dimension_numbers = #tpu.dot_dimension_numbers<[1], [0], [0], [1], [0, 0, 1, 1], [], []>} : vector<64x32xbf16>, vector<32x32xbf16>, vector<64x32xf32> -> vector<64x32xf32>
    %140 = arith.addf %133, %139 : vector<64x32xf32>
    %c2_139 = arith.constant 2 : index
    %c1_140 = arith.constant 1 : index
    %c0_141 = arith.constant 0 : index
    %141 = vector.load %arg4[%c2_139, %c1_140, %c0_141] : memref<10x10x32xf32, #tpu.memory_space<vmem>>, vector<8x8x32xf32>
    %142 = vector.shape_cast %141 : vector<8x8x32xf32> to vector<64x32xf32>
    %143 = arith.truncf %142 : vector<64x32xf32> to vector<64x32xbf16>
    %c1_142 = arith.constant 1 : index
    %c7_143 = arith.constant 7 : index
    %c0_144 = arith.constant 0 : index
    %c0_145 = arith.constant 0 : index
    %144 = vector.load %arg2[%c1_142, %c7_143, %c0_144, %c0_145] : memref<8x9x32x32xbf16, #tpu.memory_space<vmem>>, vector<1x1x32x32xbf16>
    %145 = vector.shape_cast %144 : vector<1x1x32x32xbf16> to vector<32x32xbf16>
    %cst_146 = arith.constant dense<0.000000e+00> : vector<64x32xf32>
    %146 = tpu.matmul %143, %145, %cst_146 {dimension_numbers = #tpu.dot_dimension_numbers<[1], [0], [0], [1], [0, 0, 1, 1], [], []>} : vector<64x32xbf16>, vector<32x32xbf16>, vector<64x32xf32> -> vector<64x32xf32>
    %147 = arith.addf %140, %146 : vector<64x32xf32>
    %c2_147 = arith.constant 2 : index
    %c2_148 = arith.constant 2 : index
    %c0_149 = arith.constant 0 : index
    %148 = vector.load %arg4[%c2_147, %c2_148, %c0_149] : memref<10x10x32xf32, #tpu.memory_space<vmem>>, vector<8x8x32xf32>
    %149 = vector.shape_cast %148 : vector<8x8x32xf32> to vector<64x32xf32>
    %150 = arith.truncf %149 : vector<64x32xf32> to vector<64x32xbf16>
    %c1_150 = arith.constant 1 : index
    %c8_151 = arith.constant 8 : index
    %c0_152 = arith.constant 0 : index
    %c0_153 = arith.constant 0 : index
    %151 = vector.load %arg2[%c1_150, %c8_151, %c0_152, %c0_153] : memref<8x9x32x32xbf16, #tpu.memory_space<vmem>>, vector<1x1x32x32xbf16>
    %152 = vector.shape_cast %151 : vector<1x1x32x32xbf16> to vector<32x32xbf16>
    %cst_154 = arith.constant dense<0.000000e+00> : vector<64x32xf32>
    %153 = tpu.matmul %150, %152, %cst_154 {dimension_numbers = #tpu.dot_dimension_numbers<[1], [0], [0], [1], [0, 0, 1, 1], [], []>} : vector<64x32xbf16>, vector<32x32xbf16>, vector<64x32xf32> -> vector<64x32xf32>
    %154 = arith.addf %147, %153 : vector<64x32xf32>
    %cst_155 = arith.constant dense<0.000000e+00> : vector<32xf32>
    %155 = vector.multi_reduction <add>, %154, %cst_155 [0] : vector<64x32xf32> to vector<32xf32>
    %156 = vector.shape_cast %155 : vector<32xf32> to vector<1x32xf32>
    %cst_156 = arith.constant 1.562500e-02 : f32
    %157 = vector.broadcast %cst_156 : f32 to vector<1x32xf32>
    %158 = arith.mulf %156, %157 : vector<1x32xf32>
    %159 = arith.mulf %154, %154 : vector<64x32xf32>
    %cst_157 = arith.constant dense<0.000000e+00> : vector<32xf32>
    %160 = vector.multi_reduction <add>, %159, %cst_157 [0] : vector<64x32xf32> to vector<32xf32>
    %161 = vector.shape_cast %160 : vector<32xf32> to vector<1x32xf32>
    %cst_158 = arith.constant 1.562500e-02 : f32
    %162 = vector.broadcast %cst_158 : f32 to vector<1x32xf32>
    %163 = arith.mulf %161, %162 : vector<1x32xf32>
    %164 = arith.mulf %158, %158 : vector<1x32xf32>
    %165 = arith.subf %163, %164 : vector<1x32xf32>
    %cst_159 = arith.constant 0.000000e+00 : f32
    %166 = vector.broadcast %cst_159 : f32 to vector<1x32xf32>
    %167 = arith.maximumf %165, %166 : vector<1x32xf32>
    %168 = vector.broadcast %158 : vector<1x32xf32> to vector<64x32xf32>
    %169 = arith.subf %154, %168 : vector<64x32xf32>
    %cst_160 = arith.constant 9.99999974E-6 : f32
    %170 = vector.broadcast %cst_160 : f32 to vector<1x32xf32>
    %171 = arith.addf %167, %170 : vector<1x32xf32>
    %172 = math.rsqrt %171 : vector<1x32xf32>
    %173 = vector.broadcast %172 : vector<1x32xf32> to vector<64x32xf32>
    %174 = arith.mulf %169, %173 : vector<64x32xf32>
    %175 = arith.addf %174, %4 : vector<64x32xf32>
    %cst_161 = arith.constant 0.000000e+00 : f32
    %176 = vector.broadcast %cst_161 : f32 to vector<64x32xf32>
    %177 = arith.maximumf %175, %176 : vector<64x32xf32>
    %178 = vector.shape_cast %177 : vector<64x32xf32> to vector<8x8x32xf32>
    %c1_162 = arith.constant 1 : index
    %c1_163 = arith.constant 1 : index
    %c0_164 = arith.constant 0 : index
    %179 = vector.load %arg4[%c1_162, %c1_163, %c0_164] : memref<10x10x32xf32, #tpu.memory_space<vmem>>, vector<8x8x32xf32>
    tpu.vector_store %arg4[%c1_162, %c1_163, %c0_164], %178 {strides = array<i32>} : memref<10x10x32xf32, #tpu.memory_space<vmem>>, vector<8x8x32xf32>,
    %c0_165 = arith.constant 0 : index
    %c0_166 = arith.constant 0 : index
    %c0_167 = arith.constant 0 : index
    %180 = vector.load %arg4[%c0_165, %c0_166, %c0_167] : memref<10x10x32xf32, #tpu.memory_space<vmem>>, vector<8x8x32xf32>
    %181 = vector.shape_cast %180 : vector<8x8x32xf32> to vector<64x32xf32>
    %182 = arith.truncf %181 : vector<64x32xf32> to vector<64x32xbf16>
    %c2_168 = arith.constant 2 : index
    %c0_169 = arith.constant 0 : index
    %c0_170 = arith.constant 0 : index
    %c0_171 = arith.constant 0 : index
    %183 = vector.load %arg2[%c2_168, %c0_169, %c0_170, %c0_171] : memref<8x9x32x32xbf16, #tpu.memory_space<vmem>>, vector<1x1x32x32xbf16>
    %184 = vector.shape_cast %183 : vector<1x1x32x32xbf16> to vector<32x32xbf16>
    %cst_172 = arith.constant dense<0.000000e+00> : vector<64x32xf32>
    %185 = tpu.matmul %182, %184, %cst_172 {dimension_numbers = #tpu.dot_dimension_numbers<[1], [0], [0], [1], [0, 0, 1, 1], [], []>} : vector<64x32xbf16>, vector<32x32xbf16>, vector<64x32xf32> -> vector<64x32xf32>
    %c0_173 = arith.constant 0 : index
    %c1_174 = arith.constant 1 : index
    %c0_175 = arith.constant 0 : index
    %186 = vector.load %arg4[%c0_173, %c1_174, %c0_175] : memref<10x10x32xf32, #tpu.memory_space<vmem>>, vector<8x8x32xf32>
    %187 = vector.shape_cast %186 : vector<8x8x32xf32> to vector<64x32xf32>
    %188 = arith.truncf %187 : vector<64x32xf32> to vector<64x32xbf16>
    %c2_176 = arith.constant 2 : index
    %c1_177 = arith.constant 1 : index
    %c0_178 = arith.constant 0 : index
    %c0_179 = arith.constant 0 : index
    %189 = vector.load %arg2[%c2_176, %c1_177, %c0_178, %c0_179] : memref<8x9x32x32xbf16, #tpu.memory_space<vmem>>, vector<1x1x32x32xbf16>
    %190 = vector.shape_cast %189 : vector<1x1x32x32xbf16> to vector<32x32xbf16>
    %cst_180 = arith.constant dense<0.000000e+00> : vector<64x32xf32>
    %191 = tpu.matmul %188, %190, %cst_180 {dimension_numbers = #tpu.dot_dimension_numbers<[1], [0], [0], [1], [0, 0, 1, 1], [], []>} : vector<64x32xbf16>, vector<32x32xbf16>, vector<64x32xf32> -> vector<64x32xf32>
    %192 = arith.addf %185, %191 : vector<64x32xf32>
    %c0_181 = arith.constant 0 : index
    %c2_182 = arith.constant 2 : index
    %c0_183 = arith.constant 0 : index
    %193 = vector.load %arg4[%c0_181, %c2_182, %c0_183] : memref<10x10x32xf32, #tpu.memory_space<vmem>>, vector<8x8x32xf32>
    %194 = vector.shape_cast %193 : vector<8x8x32xf32> to vector<64x32xf32>
    %195 = arith.truncf %194 : vector<64x32xf32> to vector<64x32xbf16>
    %c2_184 = arith.constant 2 : index
    %c2_185 = arith.constant 2 : index
    %c0_186 = arith.constant 0 : index
    %c0_187 = arith.constant 0 : index
    %196 = vector.load %arg2[%c2_184, %c2_185, %c0_186, %c0_187] : memref<8x9x32x32xbf16, #tpu.memory_space<vmem>>, vector<1x1x32x32xbf16>
    %197 = vector.shape_cast %196 : vector<1x1x32x32xbf16> to vector<32x32xbf16>
    %cst_188 = arith.constant dense<0.000000e+00> : vector<64x32xf32>
    %198 = tpu.matmul %195, %197, %cst_188 {dimension_numbers = #tpu.dot_dimension_numbers<[1], [0], [0], [1], [0, 0, 1, 1], [], []>} : vector<64x32xbf16>, vector<32x32xbf16>, vector<64x32xf32> -> vector<64x32xf32>
    %199 = arith.addf %192, %198 : vector<64x32xf32>
    %c1_189 = arith.constant 1 : index
    %c0_190 = arith.constant 0 : index
    %c0_191 = arith.constant 0 : index
    %200 = vector.load %arg4[%c1_189, %c0_190, %c0_191] : memref<10x10x32xf32, #tpu.memory_space<vmem>>, vector<8x8x32xf32>
    %201 = vector.shape_cast %200 : vector<8x8x32xf32> to vector<64x32xf32>
    %202 = arith.truncf %201 : vector<64x32xf32> to vector<64x32xbf16>
    %c2_192 = arith.constant 2 : index
    %c3_193 = arith.constant 3 : index
    %c0_194 = arith.constant 0 : index
    %c0_195 = arith.constant 0 : index
    %203 = vector.load %arg2[%c2_192, %c3_193, %c0_194, %c0_195] : memref<8x9x32x32xbf16, #tpu.memory_space<vmem>>, vector<1x1x32x32xbf16>
    %204 = vector.shape_cast %203 : vector<1x1x32x32xbf16> to vector<32x32xbf16>
    %cst_196 = arith.constant dense<0.000000e+00> : vector<64x32xf32>
    %205 = tpu.matmul %202, %204, %cst_196 {dimension_numbers = #tpu.dot_dimension_numbers<[1], [0], [0], [1], [0, 0, 1, 1], [], []>} : vector<64x32xbf16>, vector<32x32xbf16>, vector<64x32xf32> -> vector<64x32xf32>
    %206 = arith.addf %199, %205 : vector<64x32xf32>
    %c1_197 = arith.constant 1 : index
    %c1_198 = arith.constant 1 : index
    %c0_199 = arith.constant 0 : index
    %207 = vector.load %arg4[%c1_197, %c1_198, %c0_199] : memref<10x10x32xf32, #tpu.memory_space<vmem>>, vector<8x8x32xf32>
    %208 = vector.shape_cast %207 : vector<8x8x32xf32> to vector<64x32xf32>
    %209 = arith.truncf %208 : vector<64x32xf32> to vector<64x32xbf16>
    %c2_200 = arith.constant 2 : index
    %c4_201 = arith.constant 4 : index
    %c0_202 = arith.constant 0 : index
    %c0_203 = arith.constant 0 : index
    %210 = vector.load %arg2[%c2_200, %c4_201, %c0_202, %c0_203] : memref<8x9x32x32xbf16, #tpu.memory_space<vmem>>, vector<1x1x32x32xbf16>
    %211 = vector.shape_cast %210 : vector<1x1x32x32xbf16> to vector<32x32xbf16>
    %cst_204 = arith.constant dense<0.000000e+00> : vector<64x32xf32>
    %212 = tpu.matmul %209, %211, %cst_204 {dimension_numbers = #tpu.dot_dimension_numbers<[1], [0], [0], [1], [0, 0, 1, 1], [], []>} : vector<64x32xbf16>, vector<32x32xbf16>, vector<64x32xf32> -> vector<64x32xf32>
    %213 = arith.addf %206, %212 : vector<64x32xf32>
    %c1_205 = arith.constant 1 : index
    %c2_206 = arith.constant 2 : index
    %c0_207 = arith.constant 0 : index
    %214 = vector.load %arg4[%c1_205, %c2_206, %c0_207] : memref<10x10x32xf32, #tpu.memory_space<vmem>>, vector<8x8x32xf32>
    %215 = vector.shape_cast %214 : vector<8x8x32xf32> to vector<64x32xf32>
    %216 = arith.truncf %215 : vector<64x32xf32> to vector<64x32xbf16>
    %c2_208 = arith.constant 2 : index
    %c5_209 = arith.constant 5 : index
    %c0_210 = arith.constant 0 : index
    %c0_211 = arith.constant 0 : index
    %217 = vector.load %arg2[%c2_208, %c5_209, %c0_210, %c0_211] : memref<8x9x32x32xbf16, #tpu.memory_space<vmem>>, vector<1x1x32x32xbf16>
    %218 = vector.shape_cast %217 : vector<1x1x32x32xbf16> to vector<32x32xbf16>
    %cst_212 = arith.constant dense<0.000000e+00> : vector<64x32xf32>
    %219 = tpu.matmul %216, %218, %cst_212 {dimension_numbers = #tpu.dot_dimension_numbers<[1], [0], [0], [1], [0, 0, 1, 1], [], []>} : vector<64x32xbf16>, vector<32x32xbf16>, vector<64x32xf32> -> vector<64x32xf32>
    %220 = arith.addf %213, %219 : vector<64x32xf32>
    %c2_213 = arith.constant 2 : index
    %c0_214 = arith.constant 0 : index
    %c0_215 = arith.constant 0 : index
    %221 = vector.load %arg4[%c2_213, %c0_214, %c0_215] : memref<10x10x32xf32, #tpu.memory_space<vmem>>, vector<8x8x32xf32>
    %222 = vector.shape_cast %221 : vector<8x8x32xf32> to vector<64x32xf32>
    %223 = arith.truncf %222 : vector<64x32xf32> to vector<64x32xbf16>
    %c2_216 = arith.constant 2 : index
    %c6_217 = arith.constant 6 : index
    %c0_218 = arith.constant 0 : index
    %c0_219 = arith.constant 0 : index
    %224 = vector.load %arg2[%c2_216, %c6_217, %c0_218, %c0_219] : memref<8x9x32x32xbf16, #tpu.memory_space<vmem>>, vector<1x1x32x32xbf16>
    %225 = vector.shape_cast %224 : vector<1x1x32x32xbf16> to vector<32x32xbf16>
    %cst_220 = arith.constant dense<0.000000e+00> : vector<64x32xf32>
    %226 = tpu.matmul %223, %225, %cst_220 {dimension_numbers = #tpu.dot_dimension_numbers<[1], [0], [0], [1], [0, 0, 1, 1], [], []>} : vector<64x32xbf16>, vector<32x32xbf16>, vector<64x32xf32> -> vector<64x32xf32>
    %227 = arith.addf %220, %226 : vector<64x32xf32>
    %c2_221 = arith.constant 2 : index
    %c1_222 = arith.constant 1 : index
    %c0_223 = arith.constant 0 : index
    %228 = vector.load %arg4[%c2_221, %c1_222, %c0_223] : memref<10x10x32xf32, #tpu.memory_space<vmem>>, vector<8x8x32xf32>
    %229 = vector.shape_cast %228 : vector<8x8x32xf32> to vector<64x32xf32>
    %230 = arith.truncf %229 : vector<64x32xf32> to vector<64x32xbf16>
    %c2_224 = arith.constant 2 : index
    %c7_225 = arith.constant 7 : index
    %c0_226 = arith.constant 0 : index
    %c0_227 = arith.constant 0 : index
    %231 = vector.load %arg2[%c2_224, %c7_225, %c0_226, %c0_227] : memref<8x9x32x32xbf16, #tpu.memory_space<vmem>>, vector<1x1x32x32xbf16>
    %232 = vector.shape_cast %231 : vector<1x1x32x32xbf16> to vector<32x32xbf16>
    %cst_228 = arith.constant dense<0.000000e+00> : vector<64x32xf32>
    %233 = tpu.matmul %230, %232, %cst_228 {dimension_numbers = #tpu.dot_dimension_numbers<[1], [0], [0], [1], [0, 0, 1, 1], [], []>} : vector<64x32xbf16>, vector<32x32xbf16>, vector<64x32xf32> -> vector<64x32xf32>
    %234 = arith.addf %227, %233 : vector<64x32xf32>
    %c2_229 = arith.constant 2 : index
    %c2_230 = arith.constant 2 : index
    %c0_231 = arith.constant 0 : index
    %235 = vector.load %arg4[%c2_229, %c2_230, %c0_231] : memref<10x10x32xf32, #tpu.memory_space<vmem>>, vector<8x8x32xf32>
    %236 = vector.shape_cast %235 : vector<8x8x32xf32> to vector<64x32xf32>
    %237 = arith.truncf %236 : vector<64x32xf32> to vector<64x32xbf16>
    %c2_232 = arith.constant 2 : index
    %c8_233 = arith.constant 8 : index
    %c0_234 = arith.constant 0 : index
    %c0_235 = arith.constant 0 : index
    %238 = vector.load %arg2[%c2_232, %c8_233, %c0_234, %c0_235] : memref<8x9x32x32xbf16, #tpu.memory_space<vmem>>, vector<1x1x32x32xbf16>
    %239 = vector.shape_cast %238 : vector<1x1x32x32xbf16> to vector<32x32xbf16>
    %cst_236 = arith.constant dense<0.000000e+00> : vector<64x32xf32>
    %240 = tpu.matmul %237, %239, %cst_236 {dimension_numbers = #tpu.dot_dimension_numbers<[1], [0], [0], [1], [0, 0, 1, 1], [], []>} : vector<64x32xbf16>, vector<32x32xbf16>, vector<64x32xf32> -> vector<64x32xf32>
    %241 = arith.addf %234, %240 : vector<64x32xf32>
    %cst_237 = arith.constant dense<0.000000e+00> : vector<32xf32>
    %242 = vector.multi_reduction <add>, %241, %cst_237 [0] : vector<64x32xf32> to vector<32xf32>
    %243 = vector.shape_cast %242 : vector<32xf32> to vector<1x32xf32>
    %cst_238 = arith.constant 1.562500e-02 : f32
    %244 = vector.broadcast %cst_238 : f32 to vector<1x32xf32>
    %245 = arith.mulf %243, %244 : vector<1x32xf32>
    %246 = arith.mulf %241, %241 : vector<64x32xf32>
    %cst_239 = arith.constant dense<0.000000e+00> : vector<32xf32>
    %247 = vector.multi_reduction <add>, %246, %cst_239 [0] : vector<64x32xf32> to vector<32xf32>
    %248 = vector.shape_cast %247 : vector<32xf32> to vector<1x32xf32>
    %cst_240 = arith.constant 1.562500e-02 : f32
    %249 = vector.broadcast %cst_240 : f32 to vector<1x32xf32>
    %250 = arith.mulf %248, %249 : vector<1x32xf32>
    %251 = arith.mulf %245, %245 : vector<1x32xf32>
    %252 = arith.subf %250, %251 : vector<1x32xf32>
    %cst_241 = arith.constant 0.000000e+00 : f32
    %253 = vector.broadcast %cst_241 : f32 to vector<1x32xf32>
    %254 = arith.maximumf %252, %253 : vector<1x32xf32>
    %255 = vector.broadcast %245 : vector<1x32xf32> to vector<64x32xf32>
    %256 = arith.subf %241, %255 : vector<64x32xf32>
    %cst_242 = arith.constant 9.99999974E-6 : f32
    %257 = vector.broadcast %cst_242 : f32 to vector<1x32xf32>
    %258 = arith.addf %254, %257 : vector<1x32xf32>
    %259 = math.rsqrt %258 : vector<1x32xf32>
    %260 = vector.broadcast %259 : vector<1x32xf32> to vector<64x32xf32>
    %261 = arith.mulf %256, %260 : vector<64x32xf32>
    %cst_243 = arith.constant 0.000000e+00 : f32
    %262 = vector.broadcast %cst_243 : f32 to vector<64x32xf32>
    %263 = arith.maximumf %261, %262 : vector<64x32xf32>
    %264 = vector.shape_cast %263 : vector<64x32xf32> to vector<8x8x32xf32>
    %c1_244 = arith.constant 1 : index
    %c1_245 = arith.constant 1 : index
    %c0_246 = arith.constant 0 : index
    %265 = vector.load %arg4[%c1_244, %c1_245, %c0_246] : memref<10x10x32xf32, #tpu.memory_space<vmem>>, vector<8x8x32xf32>
    tpu.vector_store %arg4[%c1_244, %c1_245, %c0_246], %264 {strides = array<i32>} : memref<10x10x32xf32, #tpu.memory_space<vmem>>, vector<8x8x32xf32>,
    %c0_247 = arith.constant 0 : index
    %c0_248 = arith.constant 0 : index
    %c0_249 = arith.constant 0 : index
    %266 = vector.load %arg4[%c0_247, %c0_248, %c0_249] : memref<10x10x32xf32, #tpu.memory_space<vmem>>, vector<8x8x32xf32>
    %267 = vector.shape_cast %266 : vector<8x8x32xf32> to vector<64x32xf32>
    %268 = arith.truncf %267 : vector<64x32xf32> to vector<64x32xbf16>
    %c3_250 = arith.constant 3 : index
    %c0_251 = arith.constant 0 : index
    %c0_252 = arith.constant 0 : index
    %c0_253 = arith.constant 0 : index
    %269 = vector.load %arg2[%c3_250, %c0_251, %c0_252, %c0_253] : memref<8x9x32x32xbf16, #tpu.memory_space<vmem>>, vector<1x1x32x32xbf16>
    %270 = vector.shape_cast %269 : vector<1x1x32x32xbf16> to vector<32x32xbf16>
    %cst_254 = arith.constant dense<0.000000e+00> : vector<64x32xf32>
    %271 = tpu.matmul %268, %270, %cst_254 {dimension_numbers = #tpu.dot_dimension_numbers<[1], [0], [0], [1], [0, 0, 1, 1], [], []>} : vector<64x32xbf16>, vector<32x32xbf16>, vector<64x32xf32> -> vector<64x32xf32>
    %c0_255 = arith.constant 0 : index
    %c1_256 = arith.constant 1 : index
    %c0_257 = arith.constant 0 : index
    %272 = vector.load %arg4[%c0_255, %c1_256, %c0_257] : memref<10x10x32xf32, #tpu.memory_space<vmem>>, vector<8x8x32xf32>
    %273 = vector.shape_cast %272 : vector<8x8x32xf32> to vector<64x32xf32>
    %274 = arith.truncf %273 : vector<64x32xf32> to vector<64x32xbf16>
    %c3_258 = arith.constant 3 : index
    %c1_259 = arith.constant 1 : index
    %c0_260 = arith.constant 0 : index
    %c0_261 = arith.constant 0 : index
    %275 = vector.load %arg2[%c3_258, %c1_259, %c0_260, %c0_261] : memref<8x9x32x32xbf16, #tpu.memory_space<vmem>>, vector<1x1x32x32xbf16>
    %276 = vector.shape_cast %275 : vector<1x1x32x32xbf16> to vector<32x32xbf16>
    %cst_262 = arith.constant dense<0.000000e+00> : vector<64x32xf32>
    %277 = tpu.matmul %274, %276, %cst_262 {dimension_numbers = #tpu.dot_dimension_numbers<[1], [0], [0], [1], [0, 0, 1, 1], [], []>} : vector<64x32xbf16>, vector<32x32xbf16>, vector<64x32xf32> -> vector<64x32xf32>
    %278 = arith.addf %271, %277 : vector<64x32xf32>
    %c0_263 = arith.constant 0 : index
    %c2_264 = arith.constant 2 : index
    %c0_265 = arith.constant 0 : index
    %279 = vector.load %arg4[%c0_263, %c2_264, %c0_265] : memref<10x10x32xf32, #tpu.memory_space<vmem>>, vector<8x8x32xf32>
    %280 = vector.shape_cast %279 : vector<8x8x32xf32> to vector<64x32xf32>
    %281 = arith.truncf %280 : vector<64x32xf32> to vector<64x32xbf16>
    %c3_266 = arith.constant 3 : index
    %c2_267 = arith.constant 2 : index
    %c0_268 = arith.constant 0 : index
    %c0_269 = arith.constant 0 : index
    %282 = vector.load %arg2[%c3_266, %c2_267, %c0_268, %c0_269] : memref<8x9x32x32xbf16, #tpu.memory_space<vmem>>, vector<1x1x32x32xbf16>
    %283 = vector.shape_cast %282 : vector<1x1x32x32xbf16> to vector<32x32xbf16>
    %cst_270 = arith.constant dense<0.000000e+00> : vector<64x32xf32>
    %284 = tpu.matmul %281, %283, %cst_270 {dimension_numbers = #tpu.dot_dimension_numbers<[1], [0], [0], [1], [0, 0, 1, 1], [], []>} : vector<64x32xbf16>, vector<32x32xbf16>, vector<64x32xf32> -> vector<64x32xf32>
    %285 = arith.addf %278, %284 : vector<64x32xf32>
    %c1_271 = arith.constant 1 : index
    %c0_272 = arith.constant 0 : index
    %c0_273 = arith.constant 0 : index
    %286 = vector.load %arg4[%c1_271, %c0_272, %c0_273] : memref<10x10x32xf32, #tpu.memory_space<vmem>>, vector<8x8x32xf32>
    %287 = vector.shape_cast %286 : vector<8x8x32xf32> to vector<64x32xf32>
    %288 = arith.truncf %287 : vector<64x32xf32> to vector<64x32xbf16>
    %c3_274 = arith.constant 3 : index
    %c3_275 = arith.constant 3 : index
    %c0_276 = arith.constant 0 : index
    %c0_277 = arith.constant 0 : index
    %289 = vector.load %arg2[%c3_274, %c3_275, %c0_276, %c0_277] : memref<8x9x32x32xbf16, #tpu.memory_space<vmem>>, vector<1x1x32x32xbf16>
    %290 = vector.shape_cast %289 : vector<1x1x32x32xbf16> to vector<32x32xbf16>
    %cst_278 = arith.constant dense<0.000000e+00> : vector<64x32xf32>
    %291 = tpu.matmul %288, %290, %cst_278 {dimension_numbers = #tpu.dot_dimension_numbers<[1], [0], [0], [1], [0, 0, 1, 1], [], []>} : vector<64x32xbf16>, vector<32x32xbf16>, vector<64x32xf32> -> vector<64x32xf32>
    %292 = arith.addf %285, %291 : vector<64x32xf32>
    %c1_279 = arith.constant 1 : index
    %c1_280 = arith.constant 1 : index
    %c0_281 = arith.constant 0 : index
    %293 = vector.load %arg4[%c1_279, %c1_280, %c0_281] : memref<10x10x32xf32, #tpu.memory_space<vmem>>, vector<8x8x32xf32>
    %294 = vector.shape_cast %293 : vector<8x8x32xf32> to vector<64x32xf32>
    %295 = arith.truncf %294 : vector<64x32xf32> to vector<64x32xbf16>
    %c3_282 = arith.constant 3 : index
    %c4_283 = arith.constant 4 : index
    %c0_284 = arith.constant 0 : index
    %c0_285 = arith.constant 0 : index
    %296 = vector.load %arg2[%c3_282, %c4_283, %c0_284, %c0_285] : memref<8x9x32x32xbf16, #tpu.memory_space<vmem>>, vector<1x1x32x32xbf16>
    %297 = vector.shape_cast %296 : vector<1x1x32x32xbf16> to vector<32x32xbf16>
    %cst_286 = arith.constant dense<0.000000e+00> : vector<64x32xf32>
    %298 = tpu.matmul %295, %297, %cst_286 {dimension_numbers = #tpu.dot_dimension_numbers<[1], [0], [0], [1], [0, 0, 1, 1], [], []>} : vector<64x32xbf16>, vector<32x32xbf16>, vector<64x32xf32> -> vector<64x32xf32>
    %299 = arith.addf %292, %298 : vector<64x32xf32>
    %c1_287 = arith.constant 1 : index
    %c2_288 = arith.constant 2 : index
    %c0_289 = arith.constant 0 : index
    %300 = vector.load %arg4[%c1_287, %c2_288, %c0_289] : memref<10x10x32xf32, #tpu.memory_space<vmem>>, vector<8x8x32xf32>
    %301 = vector.shape_cast %300 : vector<8x8x32xf32> to vector<64x32xf32>
    %302 = arith.truncf %301 : vector<64x32xf32> to vector<64x32xbf16>
    %c3_290 = arith.constant 3 : index
    %c5_291 = arith.constant 5 : index
    %c0_292 = arith.constant 0 : index
    %c0_293 = arith.constant 0 : index
    %303 = vector.load %arg2[%c3_290, %c5_291, %c0_292, %c0_293] : memref<8x9x32x32xbf16, #tpu.memory_space<vmem>>, vector<1x1x32x32xbf16>
    %304 = vector.shape_cast %303 : vector<1x1x32x32xbf16> to vector<32x32xbf16>
    %cst_294 = arith.constant dense<0.000000e+00> : vector<64x32xf32>
    %305 = tpu.matmul %302, %304, %cst_294 {dimension_numbers = #tpu.dot_dimension_numbers<[1], [0], [0], [1], [0, 0, 1, 1], [], []>} : vector<64x32xbf16>, vector<32x32xbf16>, vector<64x32xf32> -> vector<64x32xf32>
    %306 = arith.addf %299, %305 : vector<64x32xf32>
    %c2_295 = arith.constant 2 : index
    %c0_296 = arith.constant 0 : index
    %c0_297 = arith.constant 0 : index
    %307 = vector.load %arg4[%c2_295, %c0_296, %c0_297] : memref<10x10x32xf32, #tpu.memory_space<vmem>>, vector<8x8x32xf32>
    %308 = vector.shape_cast %307 : vector<8x8x32xf32> to vector<64x32xf32>
    %309 = arith.truncf %308 : vector<64x32xf32> to vector<64x32xbf16>
    %c3_298 = arith.constant 3 : index
    %c6_299 = arith.constant 6 : index
    %c0_300 = arith.constant 0 : index
    %c0_301 = arith.constant 0 : index
    %310 = vector.load %arg2[%c3_298, %c6_299, %c0_300, %c0_301] : memref<8x9x32x32xbf16, #tpu.memory_space<vmem>>, vector<1x1x32x32xbf16>
    %311 = vector.shape_cast %310 : vector<1x1x32x32xbf16> to vector<32x32xbf16>
    %cst_302 = arith.constant dense<0.000000e+00> : vector<64x32xf32>
    %312 = tpu.matmul %309, %311, %cst_302 {dimension_numbers = #tpu.dot_dimension_numbers<[1], [0], [0], [1], [0, 0, 1, 1], [], []>} : vector<64x32xbf16>, vector<32x32xbf16>, vector<64x32xf32> -> vector<64x32xf32>
    %313 = arith.addf %306, %312 : vector<64x32xf32>
    %c2_303 = arith.constant 2 : index
    %c1_304 = arith.constant 1 : index
    %c0_305 = arith.constant 0 : index
    %314 = vector.load %arg4[%c2_303, %c1_304, %c0_305] : memref<10x10x32xf32, #tpu.memory_space<vmem>>, vector<8x8x32xf32>
    %315 = vector.shape_cast %314 : vector<8x8x32xf32> to vector<64x32xf32>
    %316 = arith.truncf %315 : vector<64x32xf32> to vector<64x32xbf16>
    %c3_306 = arith.constant 3 : index
    %c7_307 = arith.constant 7 : index
    %c0_308 = arith.constant 0 : index
    %c0_309 = arith.constant 0 : index
    %317 = vector.load %arg2[%c3_306, %c7_307, %c0_308, %c0_309] : memref<8x9x32x32xbf16, #tpu.memory_space<vmem>>, vector<1x1x32x32xbf16>
    %318 = vector.shape_cast %317 : vector<1x1x32x32xbf16> to vector<32x32xbf16>
    %cst_310 = arith.constant dense<0.000000e+00> : vector<64x32xf32>
    %319 = tpu.matmul %316, %318, %cst_310 {dimension_numbers = #tpu.dot_dimension_numbers<[1], [0], [0], [1], [0, 0, 1, 1], [], []>} : vector<64x32xbf16>, vector<32x32xbf16>, vector<64x32xf32> -> vector<64x32xf32>
    %320 = arith.addf %313, %319 : vector<64x32xf32>
    %c2_311 = arith.constant 2 : index
    %c2_312 = arith.constant 2 : index
    %c0_313 = arith.constant 0 : index
    %321 = vector.load %arg4[%c2_311, %c2_312, %c0_313] : memref<10x10x32xf32, #tpu.memory_space<vmem>>, vector<8x8x32xf32>
    %322 = vector.shape_cast %321 : vector<8x8x32xf32> to vector<64x32xf32>
    %323 = arith.truncf %322 : vector<64x32xf32> to vector<64x32xbf16>
    %c3_314 = arith.constant 3 : index
    %c8_315 = arith.constant 8 : index
    %c0_316 = arith.constant 0 : index
    %c0_317 = arith.constant 0 : index
    %324 = vector.load %arg2[%c3_314, %c8_315, %c0_316, %c0_317] : memref<8x9x32x32xbf16, #tpu.memory_space<vmem>>, vector<1x1x32x32xbf16>
    %325 = vector.shape_cast %324 : vector<1x1x32x32xbf16> to vector<32x32xbf16>
    %cst_318 = arith.constant dense<0.000000e+00> : vector<64x32xf32>
    %326 = tpu.matmul %323, %325, %cst_318 {dimension_numbers = #tpu.dot_dimension_numbers<[1], [0], [0], [1], [0, 0, 1, 1], [], []>} : vector<64x32xbf16>, vector<32x32xbf16>, vector<64x32xf32> -> vector<64x32xf32>
    %327 = arith.addf %320, %326 : vector<64x32xf32>
    %cst_319 = arith.constant dense<0.000000e+00> : vector<32xf32>
    %328 = vector.multi_reduction <add>, %327, %cst_319 [0] : vector<64x32xf32> to vector<32xf32>
    %329 = vector.shape_cast %328 : vector<32xf32> to vector<1x32xf32>
    %cst_320 = arith.constant 1.562500e-02 : f32
    %330 = vector.broadcast %cst_320 : f32 to vector<1x32xf32>
    %331 = arith.mulf %329, %330 : vector<1x32xf32>
    %332 = arith.mulf %327, %327 : vector<64x32xf32>
    %cst_321 = arith.constant dense<0.000000e+00> : vector<32xf32>
    %333 = vector.multi_reduction <add>, %332, %cst_321 [0] : vector<64x32xf32> to vector<32xf32>
    %334 = vector.shape_cast %333 : vector<32xf32> to vector<1x32xf32>
    %cst_322 = arith.constant 1.562500e-02 : f32
    %335 = vector.broadcast %cst_322 : f32 to vector<1x32xf32>
    %336 = arith.mulf %334, %335 : vector<1x32xf32>
    %337 = arith.mulf %331, %331 : vector<1x32xf32>
    %338 = arith.subf %336, %337 : vector<1x32xf32>
    %cst_323 = arith.constant 0.000000e+00 : f32
    %339 = vector.broadcast %cst_323 : f32 to vector<1x32xf32>
    %340 = arith.maximumf %338, %339 : vector<1x32xf32>
    %341 = vector.broadcast %331 : vector<1x32xf32> to vector<64x32xf32>
    %342 = arith.subf %327, %341 : vector<64x32xf32>
    %cst_324 = arith.constant 9.99999974E-6 : f32
    %343 = vector.broadcast %cst_324 : f32 to vector<1x32xf32>
    %344 = arith.addf %340, %343 : vector<1x32xf32>
    %345 = math.rsqrt %344 : vector<1x32xf32>
    %346 = vector.broadcast %345 : vector<1x32xf32> to vector<64x32xf32>
    %347 = arith.mulf %342, %346 : vector<64x32xf32>
    %348 = arith.addf %347, %177 : vector<64x32xf32>
    %cst_325 = arith.constant 0.000000e+00 : f32
    %349 = vector.broadcast %cst_325 : f32 to vector<64x32xf32>
    %350 = arith.maximumf %348, %349 : vector<64x32xf32>
    %351 = vector.shape_cast %350 : vector<64x32xf32> to vector<8x8x32xf32>
    %c1_326 = arith.constant 1 : index
    %c1_327 = arith.constant 1 : index
    %c0_328 = arith.constant 0 : index
    %352 = vector.load %arg4[%c1_326, %c1_327, %c0_328] : memref<10x10x32xf32, #tpu.memory_space<vmem>>, vector<8x8x32xf32>
    tpu.vector_store %arg4[%c1_326, %c1_327, %c0_328], %351 {strides = array<i32>} : memref<10x10x32xf32, #tpu.memory_space<vmem>>, vector<8x8x32xf32>,
    %c0_329 = arith.constant 0 : index
    %c0_330 = arith.constant 0 : index
    %c0_331 = arith.constant 0 : index
    %353 = vector.load %arg4[%c0_329, %c0_330, %c0_331] : memref<10x10x32xf32, #tpu.memory_space<vmem>>, vector<8x8x32xf32>
    %354 = vector.shape_cast %353 : vector<8x8x32xf32> to vector<64x32xf32>
    %355 = arith.truncf %354 : vector<64x32xf32> to vector<64x32xbf16>
    %c4_332 = arith.constant 4 : index
    %c0_333 = arith.constant 0 : index
    %c0_334 = arith.constant 0 : index
    %c0_335 = arith.constant 0 : index
    %356 = vector.load %arg2[%c4_332, %c0_333, %c0_334, %c0_335] : memref<8x9x32x32xbf16, #tpu.memory_space<vmem>>, vector<1x1x32x32xbf16>
    %357 = vector.shape_cast %356 : vector<1x1x32x32xbf16> to vector<32x32xbf16>
    %cst_336 = arith.constant dense<0.000000e+00> : vector<64x32xf32>
    %358 = tpu.matmul %355, %357, %cst_336 {dimension_numbers = #tpu.dot_dimension_numbers<[1], [0], [0], [1], [0, 0, 1, 1], [], []>} : vector<64x32xbf16>, vector<32x32xbf16>, vector<64x32xf32> -> vector<64x32xf32>
    %c0_337 = arith.constant 0 : index
    %c1_338 = arith.constant 1 : index
    %c0_339 = arith.constant 0 : index
    %359 = vector.load %arg4[%c0_337, %c1_338, %c0_339] : memref<10x10x32xf32, #tpu.memory_space<vmem>>, vector<8x8x32xf32>
    %360 = vector.shape_cast %359 : vector<8x8x32xf32> to vector<64x32xf32>
    %361 = arith.truncf %360 : vector<64x32xf32> to vector<64x32xbf16>
    %c4_340 = arith.constant 4 : index
    %c1_341 = arith.constant 1 : index
    %c0_342 = arith.constant 0 : index
    %c0_343 = arith.constant 0 : index
    %362 = vector.load %arg2[%c4_340, %c1_341, %c0_342, %c0_343] : memref<8x9x32x32xbf16, #tpu.memory_space<vmem>>, vector<1x1x32x32xbf16>
    %363 = vector.shape_cast %362 : vector<1x1x32x32xbf16> to vector<32x32xbf16>
    %cst_344 = arith.constant dense<0.000000e+00> : vector<64x32xf32>
    %364 = tpu.matmul %361, %363, %cst_344 {dimension_numbers = #tpu.dot_dimension_numbers<[1], [0], [0], [1], [0, 0, 1, 1], [], []>} : vector<64x32xbf16>, vector<32x32xbf16>, vector<64x32xf32> -> vector<64x32xf32>
    %365 = arith.addf %358, %364 : vector<64x32xf32>
    %c0_345 = arith.constant 0 : index
    %c2_346 = arith.constant 2 : index
    %c0_347 = arith.constant 0 : index
    %366 = vector.load %arg4[%c0_345, %c2_346, %c0_347] : memref<10x10x32xf32, #tpu.memory_space<vmem>>, vector<8x8x32xf32>
    %367 = vector.shape_cast %366 : vector<8x8x32xf32> to vector<64x32xf32>
    %368 = arith.truncf %367 : vector<64x32xf32> to vector<64x32xbf16>
    %c4_348 = arith.constant 4 : index
    %c2_349 = arith.constant 2 : index
    %c0_350 = arith.constant 0 : index
    %c0_351 = arith.constant 0 : index
    %369 = vector.load %arg2[%c4_348, %c2_349, %c0_350, %c0_351] : memref<8x9x32x32xbf16, #tpu.memory_space<vmem>>, vector<1x1x32x32xbf16>
    %370 = vector.shape_cast %369 : vector<1x1x32x32xbf16> to vector<32x32xbf16>
    %cst_352 = arith.constant dense<0.000000e+00> : vector<64x32xf32>
    %371 = tpu.matmul %368, %370, %cst_352 {dimension_numbers = #tpu.dot_dimension_numbers<[1], [0], [0], [1], [0, 0, 1, 1], [], []>} : vector<64x32xbf16>, vector<32x32xbf16>, vector<64x32xf32> -> vector<64x32xf32>
    %372 = arith.addf %365, %371 : vector<64x32xf32>
    %c1_353 = arith.constant 1 : index
    %c0_354 = arith.constant 0 : index
    %c0_355 = arith.constant 0 : index
    %373 = vector.load %arg4[%c1_353, %c0_354, %c0_355] : memref<10x10x32xf32, #tpu.memory_space<vmem>>, vector<8x8x32xf32>
    %374 = vector.shape_cast %373 : vector<8x8x32xf32> to vector<64x32xf32>
    %375 = arith.truncf %374 : vector<64x32xf32> to vector<64x32xbf16>
    %c4_356 = arith.constant 4 : index
    %c3_357 = arith.constant 3 : index
    %c0_358 = arith.constant 0 : index
    %c0_359 = arith.constant 0 : index
    %376 = vector.load %arg2[%c4_356, %c3_357, %c0_358, %c0_359] : memref<8x9x32x32xbf16, #tpu.memory_space<vmem>>, vector<1x1x32x32xbf16>
    %377 = vector.shape_cast %376 : vector<1x1x32x32xbf16> to vector<32x32xbf16>
    %cst_360 = arith.constant dense<0.000000e+00> : vector<64x32xf32>
    %378 = tpu.matmul %375, %377, %cst_360 {dimension_numbers = #tpu.dot_dimension_numbers<[1], [0], [0], [1], [0, 0, 1, 1], [], []>} : vector<64x32xbf16>, vector<32x32xbf16>, vector<64x32xf32> -> vector<64x32xf32>
    %379 = arith.addf %372, %378 : vector<64x32xf32>
    %c1_361 = arith.constant 1 : index
    %c1_362 = arith.constant 1 : index
    %c0_363 = arith.constant 0 : index
    %380 = vector.load %arg4[%c1_361, %c1_362, %c0_363] : memref<10x10x32xf32, #tpu.memory_space<vmem>>, vector<8x8x32xf32>
    %381 = vector.shape_cast %380 : vector<8x8x32xf32> to vector<64x32xf32>
    %382 = arith.truncf %381 : vector<64x32xf32> to vector<64x32xbf16>
    %c4_364 = arith.constant 4 : index
    %c4_365 = arith.constant 4 : index
    %c0_366 = arith.constant 0 : index
    %c0_367 = arith.constant 0 : index
    %383 = vector.load %arg2[%c4_364, %c4_365, %c0_366, %c0_367] : memref<8x9x32x32xbf16, #tpu.memory_space<vmem>>, vector<1x1x32x32xbf16>
    %384 = vector.shape_cast %383 : vector<1x1x32x32xbf16> to vector<32x32xbf16>
    %cst_368 = arith.constant dense<0.000000e+00> : vector<64x32xf32>
    %385 = tpu.matmul %382, %384, %cst_368 {dimension_numbers = #tpu.dot_dimension_numbers<[1], [0], [0], [1], [0, 0, 1, 1], [], []>} : vector<64x32xbf16>, vector<32x32xbf16>, vector<64x32xf32> -> vector<64x32xf32>
    %386 = arith.addf %379, %385 : vector<64x32xf32>
    %c1_369 = arith.constant 1 : index
    %c2_370 = arith.constant 2 : index
    %c0_371 = arith.constant 0 : index
    %387 = vector.load %arg4[%c1_369, %c2_370, %c0_371] : memref<10x10x32xf32, #tpu.memory_space<vmem>>, vector<8x8x32xf32>
    %388 = vector.shape_cast %387 : vector<8x8x32xf32> to vector<64x32xf32>
    %389 = arith.truncf %388 : vector<64x32xf32> to vector<64x32xbf16>
    %c4_372 = arith.constant 4 : index
    %c5_373 = arith.constant 5 : index
    %c0_374 = arith.constant 0 : index
    %c0_375 = arith.constant 0 : index
    %390 = vector.load %arg2[%c4_372, %c5_373, %c0_374, %c0_375] : memref<8x9x32x32xbf16, #tpu.memory_space<vmem>>, vector<1x1x32x32xbf16>
    %391 = vector.shape_cast %390 : vector<1x1x32x32xbf16> to vector<32x32xbf16>
    %cst_376 = arith.constant dense<0.000000e+00> : vector<64x32xf32>
    %392 = tpu.matmul %389, %391, %cst_376 {dimension_numbers = #tpu.dot_dimension_numbers<[1], [0], [0], [1], [0, 0, 1, 1], [], []>} : vector<64x32xbf16>, vector<32x32xbf16>, vector<64x32xf32> -> vector<64x32xf32>
    %393 = arith.addf %386, %392 : vector<64x32xf32>
    %c2_377 = arith.constant 2 : index
    %c0_378 = arith.constant 0 : index
    %c0_379 = arith.constant 0 : index
    %394 = vector.load %arg4[%c2_377, %c0_378, %c0_379] : memref<10x10x32xf32, #tpu.memory_space<vmem>>, vector<8x8x32xf32>
    %395 = vector.shape_cast %394 : vector<8x8x32xf32> to vector<64x32xf32>
    %396 = arith.truncf %395 : vector<64x32xf32> to vector<64x32xbf16>
    %c4_380 = arith.constant 4 : index
    %c6_381 = arith.constant 6 : index
    %c0_382 = arith.constant 0 : index
    %c0_383 = arith.constant 0 : index
    %397 = vector.load %arg2[%c4_380, %c6_381, %c0_382, %c0_383] : memref<8x9x32x32xbf16, #tpu.memory_space<vmem>>, vector<1x1x32x32xbf16>
    %398 = vector.shape_cast %397 : vector<1x1x32x32xbf16> to vector<32x32xbf16>
    %cst_384 = arith.constant dense<0.000000e+00> : vector<64x32xf32>
    %399 = tpu.matmul %396, %398, %cst_384 {dimension_numbers = #tpu.dot_dimension_numbers<[1], [0], [0], [1], [0, 0, 1, 1], [], []>} : vector<64x32xbf16>, vector<32x32xbf16>, vector<64x32xf32> -> vector<64x32xf32>
    %400 = arith.addf %393, %399 : vector<64x32xf32>
    %c2_385 = arith.constant 2 : index
    %c1_386 = arith.constant 1 : index
    %c0_387 = arith.constant 0 : index
    %401 = vector.load %arg4[%c2_385, %c1_386, %c0_387] : memref<10x10x32xf32, #tpu.memory_space<vmem>>, vector<8x8x32xf32>
    %402 = vector.shape_cast %401 : vector<8x8x32xf32> to vector<64x32xf32>
    %403 = arith.truncf %402 : vector<64x32xf32> to vector<64x32xbf16>
    %c4_388 = arith.constant 4 : index
    %c7_389 = arith.constant 7 : index
    %c0_390 = arith.constant 0 : index
    %c0_391 = arith.constant 0 : index
    %404 = vector.load %arg2[%c4_388, %c7_389, %c0_390, %c0_391] : memref<8x9x32x32xbf16, #tpu.memory_space<vmem>>, vector<1x1x32x32xbf16>
    %405 = vector.shape_cast %404 : vector<1x1x32x32xbf16> to vector<32x32xbf16>
    %cst_392 = arith.constant dense<0.000000e+00> : vector<64x32xf32>
    %406 = tpu.matmul %403, %405, %cst_392 {dimension_numbers = #tpu.dot_dimension_numbers<[1], [0], [0], [1], [0, 0, 1, 1], [], []>} : vector<64x32xbf16>, vector<32x32xbf16>, vector<64x32xf32> -> vector<64x32xf32>
    %407 = arith.addf %400, %406 : vector<64x32xf32>
    %c2_393 = arith.constant 2 : index
    %c2_394 = arith.constant 2 : index
    %c0_395 = arith.constant 0 : index
    %408 = vector.load %arg4[%c2_393, %c2_394, %c0_395] : memref<10x10x32xf32, #tpu.memory_space<vmem>>, vector<8x8x32xf32>
    %409 = vector.shape_cast %408 : vector<8x8x32xf32> to vector<64x32xf32>
    %410 = arith.truncf %409 : vector<64x32xf32> to vector<64x32xbf16>
    %c4_396 = arith.constant 4 : index
    %c8_397 = arith.constant 8 : index
    %c0_398 = arith.constant 0 : index
    %c0_399 = arith.constant 0 : index
    %411 = vector.load %arg2[%c4_396, %c8_397, %c0_398, %c0_399] : memref<8x9x32x32xbf16, #tpu.memory_space<vmem>>, vector<1x1x32x32xbf16>
    %412 = vector.shape_cast %411 : vector<1x1x32x32xbf16> to vector<32x32xbf16>
    %cst_400 = arith.constant dense<0.000000e+00> : vector<64x32xf32>
    %413 = tpu.matmul %410, %412, %cst_400 {dimension_numbers = #tpu.dot_dimension_numbers<[1], [0], [0], [1], [0, 0, 1, 1], [], []>} : vector<64x32xbf16>, vector<32x32xbf16>, vector<64x32xf32> -> vector<64x32xf32>
    %414 = arith.addf %407, %413 : vector<64x32xf32>
    %cst_401 = arith.constant dense<0.000000e+00> : vector<32xf32>
    %415 = vector.multi_reduction <add>, %414, %cst_401 [0] : vector<64x32xf32> to vector<32xf32>
    %416 = vector.shape_cast %415 : vector<32xf32> to vector<1x32xf32>
    %cst_402 = arith.constant 1.562500e-02 : f32
    %417 = vector.broadcast %cst_402 : f32 to vector<1x32xf32>
    %418 = arith.mulf %416, %417 : vector<1x32xf32>
    %419 = arith.mulf %414, %414 : vector<64x32xf32>
    %cst_403 = arith.constant dense<0.000000e+00> : vector<32xf32>
    %420 = vector.multi_reduction <add>, %419, %cst_403 [0] : vector<64x32xf32> to vector<32xf32>
    %421 = vector.shape_cast %420 : vector<32xf32> to vector<1x32xf32>
    %cst_404 = arith.constant 1.562500e-02 : f32
    %422 = vector.broadcast %cst_404 : f32 to vector<1x32xf32>
    %423 = arith.mulf %421, %422 : vector<1x32xf32>
    %424 = arith.mulf %418, %418 : vector<1x32xf32>
    %425 = arith.subf %423, %424 : vector<1x32xf32>
    %cst_405 = arith.constant 0.000000e+00 : f32
    %426 = vector.broadcast %cst_405 : f32 to vector<1x32xf32>
    %427 = arith.maximumf %425, %426 : vector<1x32xf32>
    %428 = vector.broadcast %418 : vector<1x32xf32> to vector<64x32xf32>
    %429 = arith.subf %414, %428 : vector<64x32xf32>
    %cst_406 = arith.constant 9.99999974E-6 : f32
    %430 = vector.broadcast %cst_406 : f32 to vector<1x32xf32>
    %431 = arith.addf %427, %430 : vector<1x32xf32>
    %432 = math.rsqrt %431 : vector<1x32xf32>
    %433 = vector.broadcast %432 : vector<1x32xf32> to vector<64x32xf32>
    %434 = arith.mulf %429, %433 : vector<64x32xf32>
    %cst_407 = arith.constant 0.000000e+00 : f32
    %435 = vector.broadcast %cst_407 : f32 to vector<64x32xf32>
    %436 = arith.maximumf %434, %435 : vector<64x32xf32>
    %437 = vector.shape_cast %436 : vector<64x32xf32> to vector<8x8x32xf32>
    %c1_408 = arith.constant 1 : index
    %c1_409 = arith.constant 1 : index
    %c0_410 = arith.constant 0 : index
    %438 = vector.load %arg4[%c1_408, %c1_409, %c0_410] : memref<10x10x32xf32, #tpu.memory_space<vmem>>, vector<8x8x32xf32>
    tpu.vector_store %arg4[%c1_408, %c1_409, %c0_410], %437 {strides = array<i32>} : memref<10x10x32xf32, #tpu.memory_space<vmem>>, vector<8x8x32xf32>,
    %c0_411 = arith.constant 0 : index
    %c0_412 = arith.constant 0 : index
    %c0_413 = arith.constant 0 : index
    %439 = vector.load %arg4[%c0_411, %c0_412, %c0_413] : memref<10x10x32xf32, #tpu.memory_space<vmem>>, vector<8x8x32xf32>
    %440 = vector.shape_cast %439 : vector<8x8x32xf32> to vector<64x32xf32>
    %441 = arith.truncf %440 : vector<64x32xf32> to vector<64x32xbf16>
    %c5_414 = arith.constant 5 : index
    %c0_415 = arith.constant 0 : index
    %c0_416 = arith.constant 0 : index
    %c0_417 = arith.constant 0 : index
    %442 = vector.load %arg2[%c5_414, %c0_415, %c0_416, %c0_417] : memref<8x9x32x32xbf16, #tpu.memory_space<vmem>>, vector<1x1x32x32xbf16>
    %443 = vector.shape_cast %442 : vector<1x1x32x32xbf16> to vector<32x32xbf16>
    %cst_418 = arith.constant dense<0.000000e+00> : vector<64x32xf32>
    %444 = tpu.matmul %441, %443, %cst_418 {dimension_numbers = #tpu.dot_dimension_numbers<[1], [0], [0], [1], [0, 0, 1, 1], [], []>} : vector<64x32xbf16>, vector<32x32xbf16>, vector<64x32xf32> -> vector<64x32xf32>
    %c0_419 = arith.constant 0 : index
    %c1_420 = arith.constant 1 : index
    %c0_421 = arith.constant 0 : index
    %445 = vector.load %arg4[%c0_419, %c1_420, %c0_421] : memref<10x10x32xf32, #tpu.memory_space<vmem>>, vector<8x8x32xf32>
    %446 = vector.shape_cast %445 : vector<8x8x32xf32> to vector<64x32xf32>
    %447 = arith.truncf %446 : vector<64x32xf32> to vector<64x32xbf16>
    %c5_422 = arith.constant 5 : index
    %c1_423 = arith.constant 1 : index
    %c0_424 = arith.constant 0 : index
    %c0_425 = arith.constant 0 : index
    %448 = vector.load %arg2[%c5_422, %c1_423, %c0_424, %c0_425] : memref<8x9x32x32xbf16, #tpu.memory_space<vmem>>, vector<1x1x32x32xbf16>
    %449 = vector.shape_cast %448 : vector<1x1x32x32xbf16> to vector<32x32xbf16>
    %cst_426 = arith.constant dense<0.000000e+00> : vector<64x32xf32>
    %450 = tpu.matmul %447, %449, %cst_426 {dimension_numbers = #tpu.dot_dimension_numbers<[1], [0], [0], [1], [0, 0, 1, 1], [], []>} : vector<64x32xbf16>, vector<32x32xbf16>, vector<64x32xf32> -> vector<64x32xf32>
    %451 = arith.addf %444, %450 : vector<64x32xf32>
    %c0_427 = arith.constant 0 : index
    %c2_428 = arith.constant 2 : index
    %c0_429 = arith.constant 0 : index
    %452 = vector.load %arg4[%c0_427, %c2_428, %c0_429] : memref<10x10x32xf32, #tpu.memory_space<vmem>>, vector<8x8x32xf32>
    %453 = vector.shape_cast %452 : vector<8x8x32xf32> to vector<64x32xf32>
    %454 = arith.truncf %453 : vector<64x32xf32> to vector<64x32xbf16>
    %c5_430 = arith.constant 5 : index
    %c2_431 = arith.constant 2 : index
    %c0_432 = arith.constant 0 : index
    %c0_433 = arith.constant 0 : index
    %455 = vector.load %arg2[%c5_430, %c2_431, %c0_432, %c0_433] : memref<8x9x32x32xbf16, #tpu.memory_space<vmem>>, vector<1x1x32x32xbf16>
    %456 = vector.shape_cast %455 : vector<1x1x32x32xbf16> to vector<32x32xbf16>
    %cst_434 = arith.constant dense<0.000000e+00> : vector<64x32xf32>
    %457 = tpu.matmul %454, %456, %cst_434 {dimension_numbers = #tpu.dot_dimension_numbers<[1], [0], [0], [1], [0, 0, 1, 1], [], []>} : vector<64x32xbf16>, vector<32x32xbf16>, vector<64x32xf32> -> vector<64x32xf32>
    %458 = arith.addf %451, %457 : vector<64x32xf32>
    %c1_435 = arith.constant 1 : index
    %c0_436 = arith.constant 0 : index
    %c0_437 = arith.constant 0 : index
    %459 = vector.load %arg4[%c1_435, %c0_436, %c0_437] : memref<10x10x32xf32, #tpu.memory_space<vmem>>, vector<8x8x32xf32>
    %460 = vector.shape_cast %459 : vector<8x8x32xf32> to vector<64x32xf32>
    %461 = arith.truncf %460 : vector<64x32xf32> to vector<64x32xbf16>
    %c5_438 = arith.constant 5 : index
    %c3_439 = arith.constant 3 : index
    %c0_440 = arith.constant 0 : index
    %c0_441 = arith.constant 0 : index
    %462 = vector.load %arg2[%c5_438, %c3_439, %c0_440, %c0_441] : memref<8x9x32x32xbf16, #tpu.memory_space<vmem>>, vector<1x1x32x32xbf16>
    %463 = vector.shape_cast %462 : vector<1x1x32x32xbf16> to vector<32x32xbf16>
    %cst_442 = arith.constant dense<0.000000e+00> : vector<64x32xf32>
    %464 = tpu.matmul %461, %463, %cst_442 {dimension_numbers = #tpu.dot_dimension_numbers<[1], [0], [0], [1], [0, 0, 1, 1], [], []>} : vector<64x32xbf16>, vector<32x32xbf16>, vector<64x32xf32> -> vector<64x32xf32>
    %465 = arith.addf %458, %464 : vector<64x32xf32>
    %c1_443 = arith.constant 1 : index
    %c1_444 = arith.constant 1 : index
    %c0_445 = arith.constant 0 : index
    %466 = vector.load %arg4[%c1_443, %c1_444, %c0_445] : memref<10x10x32xf32, #tpu.memory_space<vmem>>, vector<8x8x32xf32>
    %467 = vector.shape_cast %466 : vector<8x8x32xf32> to vector<64x32xf32>
    %468 = arith.truncf %467 : vector<64x32xf32> to vector<64x32xbf16>
    %c5_446 = arith.constant 5 : index
    %c4_447 = arith.constant 4 : index
    %c0_448 = arith.constant 0 : index
    %c0_449 = arith.constant 0 : index
    %469 = vector.load %arg2[%c5_446, %c4_447, %c0_448, %c0_449] : memref<8x9x32x32xbf16, #tpu.memory_space<vmem>>, vector<1x1x32x32xbf16>
    %470 = vector.shape_cast %469 : vector<1x1x32x32xbf16> to vector<32x32xbf16>
    %cst_450 = arith.constant dense<0.000000e+00> : vector<64x32xf32>
    %471 = tpu.matmul %468, %470, %cst_450 {dimension_numbers = #tpu.dot_dimension_numbers<[1], [0], [0], [1], [0, 0, 1, 1], [], []>} : vector<64x32xbf16>, vector<32x32xbf16>, vector<64x32xf32> -> vector<64x32xf32>
    %472 = arith.addf %465, %471 : vector<64x32xf32>
    %c1_451 = arith.constant 1 : index
    %c2_452 = arith.constant 2 : index
    %c0_453 = arith.constant 0 : index
    %473 = vector.load %arg4[%c1_451, %c2_452, %c0_453] : memref<10x10x32xf32, #tpu.memory_space<vmem>>, vector<8x8x32xf32>
    %474 = vector.shape_cast %473 : vector<8x8x32xf32> to vector<64x32xf32>
    %475 = arith.truncf %474 : vector<64x32xf32> to vector<64x32xbf16>
    %c5_454 = arith.constant 5 : index
    %c5_455 = arith.constant 5 : index
    %c0_456 = arith.constant 0 : index
    %c0_457 = arith.constant 0 : index
    %476 = vector.load %arg2[%c5_454, %c5_455, %c0_456, %c0_457] : memref<8x9x32x32xbf16, #tpu.memory_space<vmem>>, vector<1x1x32x32xbf16>
    %477 = vector.shape_cast %476 : vector<1x1x32x32xbf16> to vector<32x32xbf16>
    %cst_458 = arith.constant dense<0.000000e+00> : vector<64x32xf32>
    %478 = tpu.matmul %475, %477, %cst_458 {dimension_numbers = #tpu.dot_dimension_numbers<[1], [0], [0], [1], [0, 0, 1, 1], [], []>} : vector<64x32xbf16>, vector<32x32xbf16>, vector<64x32xf32> -> vector<64x32xf32>
    %479 = arith.addf %472, %478 : vector<64x32xf32>
    %c2_459 = arith.constant 2 : index
    %c0_460 = arith.constant 0 : index
    %c0_461 = arith.constant 0 : index
    %480 = vector.load %arg4[%c2_459, %c0_460, %c0_461] : memref<10x10x32xf32, #tpu.memory_space<vmem>>, vector<8x8x32xf32>
    %481 = vector.shape_cast %480 : vector<8x8x32xf32> to vector<64x32xf32>
    %482 = arith.truncf %481 : vector<64x32xf32> to vector<64x32xbf16>
    %c5_462 = arith.constant 5 : index
    %c6_463 = arith.constant 6 : index
    %c0_464 = arith.constant 0 : index
    %c0_465 = arith.constant 0 : index
    %483 = vector.load %arg2[%c5_462, %c6_463, %c0_464, %c0_465] : memref<8x9x32x32xbf16, #tpu.memory_space<vmem>>, vector<1x1x32x32xbf16>
    %484 = vector.shape_cast %483 : vector<1x1x32x32xbf16> to vector<32x32xbf16>
    %cst_466 = arith.constant dense<0.000000e+00> : vector<64x32xf32>
    %485 = tpu.matmul %482, %484, %cst_466 {dimension_numbers = #tpu.dot_dimension_numbers<[1], [0], [0], [1], [0, 0, 1, 1], [], []>} : vector<64x32xbf16>, vector<32x32xbf16>, vector<64x32xf32> -> vector<64x32xf32>
    %486 = arith.addf %479, %485 : vector<64x32xf32>
    %c2_467 = arith.constant 2 : index
    %c1_468 = arith.constant 1 : index
    %c0_469 = arith.constant 0 : index
    %487 = vector.load %arg4[%c2_467, %c1_468, %c0_469] : memref<10x10x32xf32, #tpu.memory_space<vmem>>, vector<8x8x32xf32>
    %488 = vector.shape_cast %487 : vector<8x8x32xf32> to vector<64x32xf32>
    %489 = arith.truncf %488 : vector<64x32xf32> to vector<64x32xbf16>
    %c5_470 = arith.constant 5 : index
    %c7_471 = arith.constant 7 : index
    %c0_472 = arith.constant 0 : index
    %c0_473 = arith.constant 0 : index
    %490 = vector.load %arg2[%c5_470, %c7_471, %c0_472, %c0_473] : memref<8x9x32x32xbf16, #tpu.memory_space<vmem>>, vector<1x1x32x32xbf16>
    %491 = vector.shape_cast %490 : vector<1x1x32x32xbf16> to vector<32x32xbf16>
    %cst_474 = arith.constant dense<0.000000e+00> : vector<64x32xf32>
    %492 = tpu.matmul %489, %491, %cst_474 {dimension_numbers = #tpu.dot_dimension_numbers<[1], [0], [0], [1], [0, 0, 1, 1], [], []>} : vector<64x32xbf16>, vector<32x32xbf16>, vector<64x32xf32> -> vector<64x32xf32>
    %493 = arith.addf %486, %492 : vector<64x32xf32>
    %c2_475 = arith.constant 2 : index
    %c2_476 = arith.constant 2 : index
    %c0_477 = arith.constant 0 : index
    %494 = vector.load %arg4[%c2_475, %c2_476, %c0_477] : memref<10x10x32xf32, #tpu.memory_space<vmem>>, vector<8x8x32xf32>
    %495 = vector.shape_cast %494 : vector<8x8x32xf32> to vector<64x32xf32>
    %496 = arith.truncf %495 : vector<64x32xf32> to vector<64x32xbf16>
    %c5_478 = arith.constant 5 : index
    %c8_479 = arith.constant 8 : index
    %c0_480 = arith.constant 0 : index
    %c0_481 = arith.constant 0 : index
    %497 = vector.load %arg2[%c5_478, %c8_479, %c0_480, %c0_481] : memref<8x9x32x32xbf16, #tpu.memory_space<vmem>>, vector<1x1x32x32xbf16>
    %498 = vector.shape_cast %497 : vector<1x1x32x32xbf16> to vector<32x32xbf16>
    %cst_482 = arith.constant dense<0.000000e+00> : vector<64x32xf32>
    %499 = tpu.matmul %496, %498, %cst_482 {dimension_numbers = #tpu.dot_dimension_numbers<[1], [0], [0], [1], [0, 0, 1, 1], [], []>} : vector<64x32xbf16>, vector<32x32xbf16>, vector<64x32xf32> -> vector<64x32xf32>
    %500 = arith.addf %493, %499 : vector<64x32xf32>
    %cst_483 = arith.constant dense<0.000000e+00> : vector<32xf32>
    %501 = vector.multi_reduction <add>, %500, %cst_483 [0] : vector<64x32xf32> to vector<32xf32>
    %502 = vector.shape_cast %501 : vector<32xf32> to vector<1x32xf32>
    %cst_484 = arith.constant 1.562500e-02 : f32
    %503 = vector.broadcast %cst_484 : f32 to vector<1x32xf32>
    %504 = arith.mulf %502, %503 : vector<1x32xf32>
    %505 = arith.mulf %500, %500 : vector<64x32xf32>
    %cst_485 = arith.constant dense<0.000000e+00> : vector<32xf32>
    %506 = vector.multi_reduction <add>, %505, %cst_485 [0] : vector<64x32xf32> to vector<32xf32>
    %507 = vector.shape_cast %506 : vector<32xf32> to vector<1x32xf32>
    %cst_486 = arith.constant 1.562500e-02 : f32
    %508 = vector.broadcast %cst_486 : f32 to vector<1x32xf32>
    %509 = arith.mulf %507, %508 : vector<1x32xf32>
    %510 = arith.mulf %504, %504 : vector<1x32xf32>
    %511 = arith.subf %509, %510 : vector<1x32xf32>
    %cst_487 = arith.constant 0.000000e+00 : f32
    %512 = vector.broadcast %cst_487 : f32 to vector<1x32xf32>
    %513 = arith.maximumf %511, %512 : vector<1x32xf32>
    %514 = vector.broadcast %504 : vector<1x32xf32> to vector<64x32xf32>
    %515 = arith.subf %500, %514 : vector<64x32xf32>
    %cst_488 = arith.constant 9.99999974E-6 : f32
    %516 = vector.broadcast %cst_488 : f32 to vector<1x32xf32>
    %517 = arith.addf %513, %516 : vector<1x32xf32>
    %518 = math.rsqrt %517 : vector<1x32xf32>
    %519 = vector.broadcast %518 : vector<1x32xf32> to vector<64x32xf32>
    %520 = arith.mulf %515, %519 : vector<64x32xf32>
    %521 = arith.addf %520, %350 : vector<64x32xf32>
    %cst_489 = arith.constant 0.000000e+00 : f32
    %522 = vector.broadcast %cst_489 : f32 to vector<64x32xf32>
    %523 = arith.maximumf %521, %522 : vector<64x32xf32>
    %524 = vector.shape_cast %523 : vector<64x32xf32> to vector<8x8x32xf32>
    %c1_490 = arith.constant 1 : index
    %c1_491 = arith.constant 1 : index
    %c0_492 = arith.constant 0 : index
    %525 = vector.load %arg4[%c1_490, %c1_491, %c0_492] : memref<10x10x32xf32, #tpu.memory_space<vmem>>, vector<8x8x32xf32>
    tpu.vector_store %arg4[%c1_490, %c1_491, %c0_492], %524 {strides = array<i32>} : memref<10x10x32xf32, #tpu.memory_space<vmem>>, vector<8x8x32xf32>,
    %c0_493 = arith.constant 0 : index
    %c0_494 = arith.constant 0 : index
    %c0_495 = arith.constant 0 : index
    %526 = vector.load %arg4[%c0_493, %c0_494, %c0_495] : memref<10x10x32xf32, #tpu.memory_space<vmem>>, vector<8x8x32xf32>
    %527 = vector.shape_cast %526 : vector<8x8x32xf32> to vector<64x32xf32>
    %528 = arith.truncf %527 : vector<64x32xf32> to vector<64x32xbf16>
    %c6_496 = arith.constant 6 : index
    %c0_497 = arith.constant 0 : index
    %c0_498 = arith.constant 0 : index
    %c0_499 = arith.constant 0 : index
    %529 = vector.load %arg2[%c6_496, %c0_497, %c0_498, %c0_499] : memref<8x9x32x32xbf16, #tpu.memory_space<vmem>>, vector<1x1x32x32xbf16>
    %530 = vector.shape_cast %529 : vector<1x1x32x32xbf16> to vector<32x32xbf16>
    %cst_500 = arith.constant dense<0.000000e+00> : vector<64x32xf32>
    %531 = tpu.matmul %528, %530, %cst_500 {dimension_numbers = #tpu.dot_dimension_numbers<[1], [0], [0], [1], [0, 0, 1, 1], [], []>} : vector<64x32xbf16>, vector<32x32xbf16>, vector<64x32xf32> -> vector<64x32xf32>
    %c0_501 = arith.constant 0 : index
    %c1_502 = arith.constant 1 : index
    %c0_503 = arith.constant 0 : index
    %532 = vector.load %arg4[%c0_501, %c1_502, %c0_503] : memref<10x10x32xf32, #tpu.memory_space<vmem>>, vector<8x8x32xf32>
    %533 = vector.shape_cast %532 : vector<8x8x32xf32> to vector<64x32xf32>
    %534 = arith.truncf %533 : vector<64x32xf32> to vector<64x32xbf16>
    %c6_504 = arith.constant 6 : index
    %c1_505 = arith.constant 1 : index
    %c0_506 = arith.constant 0 : index
    %c0_507 = arith.constant 0 : index
    %535 = vector.load %arg2[%c6_504, %c1_505, %c0_506, %c0_507] : memref<8x9x32x32xbf16, #tpu.memory_space<vmem>>, vector<1x1x32x32xbf16>
    %536 = vector.shape_cast %535 : vector<1x1x32x32xbf16> to vector<32x32xbf16>
    %cst_508 = arith.constant dense<0.000000e+00> : vector<64x32xf32>
    %537 = tpu.matmul %534, %536, %cst_508 {dimension_numbers = #tpu.dot_dimension_numbers<[1], [0], [0], [1], [0, 0, 1, 1], [], []>} : vector<64x32xbf16>, vector<32x32xbf16>, vector<64x32xf32> -> vector<64x32xf32>
    %538 = arith.addf %531, %537 : vector<64x32xf32>
    %c0_509 = arith.constant 0 : index
    %c2_510 = arith.constant 2 : index
    %c0_511 = arith.constant 0 : index
    %539 = vector.load %arg4[%c0_509, %c2_510, %c0_511] : memref<10x10x32xf32, #tpu.memory_space<vmem>>, vector<8x8x32xf32>
    %540 = vector.shape_cast %539 : vector<8x8x32xf32> to vector<64x32xf32>
    %541 = arith.truncf %540 : vector<64x32xf32> to vector<64x32xbf16>
    %c6_512 = arith.constant 6 : index
    %c2_513 = arith.constant 2 : index
    %c0_514 = arith.constant 0 : index
    %c0_515 = arith.constant 0 : index
    %542 = vector.load %arg2[%c6_512, %c2_513, %c0_514, %c0_515] : memref<8x9x32x32xbf16, #tpu.memory_space<vmem>>, vector<1x1x32x32xbf16>
    %543 = vector.shape_cast %542 : vector<1x1x32x32xbf16> to vector<32x32xbf16>
    %cst_516 = arith.constant dense<0.000000e+00> : vector<64x32xf32>
    %544 = tpu.matmul %541, %543, %cst_516 {dimension_numbers = #tpu.dot_dimension_numbers<[1], [0], [0], [1], [0, 0, 1, 1], [], []>} : vector<64x32xbf16>, vector<32x32xbf16>, vector<64x32xf32> -> vector<64x32xf32>
    %545 = arith.addf %538, %544 : vector<64x32xf32>
    %c1_517 = arith.constant 1 : index
    %c0_518 = arith.constant 0 : index
    %c0_519 = arith.constant 0 : index
    %546 = vector.load %arg4[%c1_517, %c0_518, %c0_519] : memref<10x10x32xf32, #tpu.memory_space<vmem>>, vector<8x8x32xf32>
    %547 = vector.shape_cast %546 : vector<8x8x32xf32> to vector<64x32xf32>
    %548 = arith.truncf %547 : vector<64x32xf32> to vector<64x32xbf16>
    %c6_520 = arith.constant 6 : index
    %c3_521 = arith.constant 3 : index
    %c0_522 = arith.constant 0 : index
    %c0_523 = arith.constant 0 : index
    %549 = vector.load %arg2[%c6_520, %c3_521, %c0_522, %c0_523] : memref<8x9x32x32xbf16, #tpu.memory_space<vmem>>, vector<1x1x32x32xbf16>
    %550 = vector.shape_cast %549 : vector<1x1x32x32xbf16> to vector<32x32xbf16>
    %cst_524 = arith.constant dense<0.000000e+00> : vector<64x32xf32>
    %551 = tpu.matmul %548, %550, %cst_524 {dimension_numbers = #tpu.dot_dimension_numbers<[1], [0], [0], [1], [0, 0, 1, 1], [], []>} : vector<64x32xbf16>, vector<32x32xbf16>, vector<64x32xf32> -> vector<64x32xf32>
    %552 = arith.addf %545, %551 : vector<64x32xf32>
    %c1_525 = arith.constant 1 : index
    %c1_526 = arith.constant 1 : index
    %c0_527 = arith.constant 0 : index
    %553 = vector.load %arg4[%c1_525, %c1_526, %c0_527] : memref<10x10x32xf32, #tpu.memory_space<vmem>>, vector<8x8x32xf32>
    %554 = vector.shape_cast %553 : vector<8x8x32xf32> to vector<64x32xf32>
    %555 = arith.truncf %554 : vector<64x32xf32> to vector<64x32xbf16>
    %c6_528 = arith.constant 6 : index
    %c4_529 = arith.constant 4 : index
    %c0_530 = arith.constant 0 : index
    %c0_531 = arith.constant 0 : index
    %556 = vector.load %arg2[%c6_528, %c4_529, %c0_530, %c0_531] : memref<8x9x32x32xbf16, #tpu.memory_space<vmem>>, vector<1x1x32x32xbf16>
    %557 = vector.shape_cast %556 : vector<1x1x32x32xbf16> to vector<32x32xbf16>
    %cst_532 = arith.constant dense<0.000000e+00> : vector<64x32xf32>
    %558 = tpu.matmul %555, %557, %cst_532 {dimension_numbers = #tpu.dot_dimension_numbers<[1], [0], [0], [1], [0, 0, 1, 1], [], []>} : vector<64x32xbf16>, vector<32x32xbf16>, vector<64x32xf32> -> vector<64x32xf32>
    %559 = arith.addf %552, %558 : vector<64x32xf32>
    %c1_533 = arith.constant 1 : index
    %c2_534 = arith.constant 2 : index
    %c0_535 = arith.constant 0 : index
    %560 = vector.load %arg4[%c1_533, %c2_534, %c0_535] : memref<10x10x32xf32, #tpu.memory_space<vmem>>, vector<8x8x32xf32>
    %561 = vector.shape_cast %560 : vector<8x8x32xf32> to vector<64x32xf32>
    %562 = arith.truncf %561 : vector<64x32xf32> to vector<64x32xbf16>
    %c6_536 = arith.constant 6 : index
    %c5_537 = arith.constant 5 : index
    %c0_538 = arith.constant 0 : index
    %c0_539 = arith.constant 0 : index
    %563 = vector.load %arg2[%c6_536, %c5_537, %c0_538, %c0_539] : memref<8x9x32x32xbf16, #tpu.memory_space<vmem>>, vector<1x1x32x32xbf16>
    %564 = vector.shape_cast %563 : vector<1x1x32x32xbf16> to vector<32x32xbf16>
    %cst_540 = arith.constant dense<0.000000e+00> : vector<64x32xf32>
    %565 = tpu.matmul %562, %564, %cst_540 {dimension_numbers = #tpu.dot_dimension_numbers<[1], [0], [0], [1], [0, 0, 1, 1], [], []>} : vector<64x32xbf16>, vector<32x32xbf16>, vector<64x32xf32> -> vector<64x32xf32>
    %566 = arith.addf %559, %565 : vector<64x32xf32>
    %c2_541 = arith.constant 2 : index
    %c0_542 = arith.constant 0 : index
    %c0_543 = arith.constant 0 : index
    %567 = vector.load %arg4[%c2_541, %c0_542, %c0_543] : memref<10x10x32xf32, #tpu.memory_space<vmem>>, vector<8x8x32xf32>
    %568 = vector.shape_cast %567 : vector<8x8x32xf32> to vector<64x32xf32>
    %569 = arith.truncf %568 : vector<64x32xf32> to vector<64x32xbf16>
    %c6_544 = arith.constant 6 : index
    %c6_545 = arith.constant 6 : index
    %c0_546 = arith.constant 0 : index
    %c0_547 = arith.constant 0 : index
    %570 = vector.load %arg2[%c6_544, %c6_545, %c0_546, %c0_547] : memref<8x9x32x32xbf16, #tpu.memory_space<vmem>>, vector<1x1x32x32xbf16>
    %571 = vector.shape_cast %570 : vector<1x1x32x32xbf16> to vector<32x32xbf16>
    %cst_548 = arith.constant dense<0.000000e+00> : vector<64x32xf32>
    %572 = tpu.matmul %569, %571, %cst_548 {dimension_numbers = #tpu.dot_dimension_numbers<[1], [0], [0], [1], [0, 0, 1, 1], [], []>} : vector<64x32xbf16>, vector<32x32xbf16>, vector<64x32xf32> -> vector<64x32xf32>
    %573 = arith.addf %566, %572 : vector<64x32xf32>
    %c2_549 = arith.constant 2 : index
    %c1_550 = arith.constant 1 : index
    %c0_551 = arith.constant 0 : index
    %574 = vector.load %arg4[%c2_549, %c1_550, %c0_551] : memref<10x10x32xf32, #tpu.memory_space<vmem>>, vector<8x8x32xf32>
    %575 = vector.shape_cast %574 : vector<8x8x32xf32> to vector<64x32xf32>
    %576 = arith.truncf %575 : vector<64x32xf32> to vector<64x32xbf16>
    %c6_552 = arith.constant 6 : index
    %c7_553 = arith.constant 7 : index
    %c0_554 = arith.constant 0 : index
    %c0_555 = arith.constant 0 : index
    %577 = vector.load %arg2[%c6_552, %c7_553, %c0_554, %c0_555] : memref<8x9x32x32xbf16, #tpu.memory_space<vmem>>, vector<1x1x32x32xbf16>
    %578 = vector.shape_cast %577 : vector<1x1x32x32xbf16> to vector<32x32xbf16>
    %cst_556 = arith.constant dense<0.000000e+00> : vector<64x32xf32>
    %579 = tpu.matmul %576, %578, %cst_556 {dimension_numbers = #tpu.dot_dimension_numbers<[1], [0], [0], [1], [0, 0, 1, 1], [], []>} : vector<64x32xbf16>, vector<32x32xbf16>, vector<64x32xf32> -> vector<64x32xf32>
    %580 = arith.addf %573, %579 : vector<64x32xf32>
    %c2_557 = arith.constant 2 : index
    %c2_558 = arith.constant 2 : index
    %c0_559 = arith.constant 0 : index
    %581 = vector.load %arg4[%c2_557, %c2_558, %c0_559] : memref<10x10x32xf32, #tpu.memory_space<vmem>>, vector<8x8x32xf32>
    %582 = vector.shape_cast %581 : vector<8x8x32xf32> to vector<64x32xf32>
    %583 = arith.truncf %582 : vector<64x32xf32> to vector<64x32xbf16>
    %c6_560 = arith.constant 6 : index
    %c8_561 = arith.constant 8 : index
    %c0_562 = arith.constant 0 : index
    %c0_563 = arith.constant 0 : index
    %584 = vector.load %arg2[%c6_560, %c8_561, %c0_562, %c0_563] : memref<8x9x32x32xbf16, #tpu.memory_space<vmem>>, vector<1x1x32x32xbf16>
    %585 = vector.shape_cast %584 : vector<1x1x32x32xbf16> to vector<32x32xbf16>
    %cst_564 = arith.constant dense<0.000000e+00> : vector<64x32xf32>
    %586 = tpu.matmul %583, %585, %cst_564 {dimension_numbers = #tpu.dot_dimension_numbers<[1], [0], [0], [1], [0, 0, 1, 1], [], []>} : vector<64x32xbf16>, vector<32x32xbf16>, vector<64x32xf32> -> vector<64x32xf32>
    %587 = arith.addf %580, %586 : vector<64x32xf32>
    %cst_565 = arith.constant dense<0.000000e+00> : vector<32xf32>
    %588 = vector.multi_reduction <add>, %587, %cst_565 [0] : vector<64x32xf32> to vector<32xf32>
    %589 = vector.shape_cast %588 : vector<32xf32> to vector<1x32xf32>
    %cst_566 = arith.constant 1.562500e-02 : f32
    %590 = vector.broadcast %cst_566 : f32 to vector<1x32xf32>
    %591 = arith.mulf %589, %590 : vector<1x32xf32>
    %592 = arith.mulf %587, %587 : vector<64x32xf32>
    %cst_567 = arith.constant dense<0.000000e+00> : vector<32xf32>
    %593 = vector.multi_reduction <add>, %592, %cst_567 [0] : vector<64x32xf32> to vector<32xf32>
    %594 = vector.shape_cast %593 : vector<32xf32> to vector<1x32xf32>
    %cst_568 = arith.constant 1.562500e-02 : f32
    %595 = vector.broadcast %cst_568 : f32 to vector<1x32xf32>
    %596 = arith.mulf %594, %595 : vector<1x32xf32>
    %597 = arith.mulf %591, %591 : vector<1x32xf32>
    %598 = arith.subf %596, %597 : vector<1x32xf32>
    %cst_569 = arith.constant 0.000000e+00 : f32
    %599 = vector.broadcast %cst_569 : f32 to vector<1x32xf32>
    %600 = arith.maximumf %598, %599 : vector<1x32xf32>
    %601 = vector.broadcast %591 : vector<1x32xf32> to vector<64x32xf32>
    %602 = arith.subf %587, %601 : vector<64x32xf32>
    %cst_570 = arith.constant 9.99999974E-6 : f32
    %603 = vector.broadcast %cst_570 : f32 to vector<1x32xf32>
    %604 = arith.addf %600, %603 : vector<1x32xf32>
    %605 = math.rsqrt %604 : vector<1x32xf32>
    %606 = vector.broadcast %605 : vector<1x32xf32> to vector<64x32xf32>
    %607 = arith.mulf %602, %606 : vector<64x32xf32>
    %cst_571 = arith.constant 0.000000e+00 : f32
    %608 = vector.broadcast %cst_571 : f32 to vector<64x32xf32>
    %609 = arith.maximumf %607, %608 : vector<64x32xf32>
    %610 = vector.shape_cast %609 : vector<64x32xf32> to vector<8x8x32xf32>
    %c1_572 = arith.constant 1 : index
    %c1_573 = arith.constant 1 : index
    %c0_574 = arith.constant 0 : index
    %611 = vector.load %arg4[%c1_572, %c1_573, %c0_574] : memref<10x10x32xf32, #tpu.memory_space<vmem>>, vector<8x8x32xf32>
    tpu.vector_store %arg4[%c1_572, %c1_573, %c0_574], %610 {strides = array<i32>} : memref<10x10x32xf32, #tpu.memory_space<vmem>>, vector<8x8x32xf32>,
    %c0_575 = arith.constant 0 : index
    %c0_576 = arith.constant 0 : index
    %c0_577 = arith.constant 0 : index
    %612 = vector.load %arg4[%c0_575, %c0_576, %c0_577] : memref<10x10x32xf32, #tpu.memory_space<vmem>>, vector<8x8x32xf32>
    %613 = vector.shape_cast %612 : vector<8x8x32xf32> to vector<64x32xf32>
    %614 = arith.truncf %613 : vector<64x32xf32> to vector<64x32xbf16>
    %c7_578 = arith.constant 7 : index
    %c0_579 = arith.constant 0 : index
    %c0_580 = arith.constant 0 : index
    %c0_581 = arith.constant 0 : index
    %615 = vector.load %arg2[%c7_578, %c0_579, %c0_580, %c0_581] : memref<8x9x32x32xbf16, #tpu.memory_space<vmem>>, vector<1x1x32x32xbf16>
    %616 = vector.shape_cast %615 : vector<1x1x32x32xbf16> to vector<32x32xbf16>
    %cst_582 = arith.constant dense<0.000000e+00> : vector<64x32xf32>
    %617 = tpu.matmul %614, %616, %cst_582 {dimension_numbers = #tpu.dot_dimension_numbers<[1], [0], [0], [1], [0, 0, 1, 1], [], []>} : vector<64x32xbf16>, vector<32x32xbf16>, vector<64x32xf32> -> vector<64x32xf32>
    %c0_583 = arith.constant 0 : index
    %c1_584 = arith.constant 1 : index
    %c0_585 = arith.constant 0 : index
    %618 = vector.load %arg4[%c0_583, %c1_584, %c0_585] : memref<10x10x32xf32, #tpu.memory_space<vmem>>, vector<8x8x32xf32>
    %619 = vector.shape_cast %618 : vector<8x8x32xf32> to vector<64x32xf32>
    %620 = arith.truncf %619 : vector<64x32xf32> to vector<64x32xbf16>
    %c7_586 = arith.constant 7 : index
    %c1_587 = arith.constant 1 : index
    %c0_588 = arith.constant 0 : index
    %c0_589 = arith.constant 0 : index
    %621 = vector.load %arg2[%c7_586, %c1_587, %c0_588, %c0_589] : memref<8x9x32x32xbf16, #tpu.memory_space<vmem>>, vector<1x1x32x32xbf16>
    %622 = vector.shape_cast %621 : vector<1x1x32x32xbf16> to vector<32x32xbf16>
    %cst_590 = arith.constant dense<0.000000e+00> : vector<64x32xf32>
    %623 = tpu.matmul %620, %622, %cst_590 {dimension_numbers = #tpu.dot_dimension_numbers<[1], [0], [0], [1], [0, 0, 1, 1], [], []>} : vector<64x32xbf16>, vector<32x32xbf16>, vector<64x32xf32> -> vector<64x32xf32>
    %624 = arith.addf %617, %623 : vector<64x32xf32>
    %c0_591 = arith.constant 0 : index
    %c2_592 = arith.constant 2 : index
    %c0_593 = arith.constant 0 : index
    %625 = vector.load %arg4[%c0_591, %c2_592, %c0_593] : memref<10x10x32xf32, #tpu.memory_space<vmem>>, vector<8x8x32xf32>
    %626 = vector.shape_cast %625 : vector<8x8x32xf32> to vector<64x32xf32>
    %627 = arith.truncf %626 : vector<64x32xf32> to vector<64x32xbf16>
    %c7_594 = arith.constant 7 : index
    %c2_595 = arith.constant 2 : index
    %c0_596 = arith.constant 0 : index
    %c0_597 = arith.constant 0 : index
    %628 = vector.load %arg2[%c7_594, %c2_595, %c0_596, %c0_597] : memref<8x9x32x32xbf16, #tpu.memory_space<vmem>>, vector<1x1x32x32xbf16>
    %629 = vector.shape_cast %628 : vector<1x1x32x32xbf16> to vector<32x32xbf16>
    %cst_598 = arith.constant dense<0.000000e+00> : vector<64x32xf32>
    %630 = tpu.matmul %627, %629, %cst_598 {dimension_numbers = #tpu.dot_dimension_numbers<[1], [0], [0], [1], [0, 0, 1, 1], [], []>} : vector<64x32xbf16>, vector<32x32xbf16>, vector<64x32xf32> -> vector<64x32xf32>
    %631 = arith.addf %624, %630 : vector<64x32xf32>
    %c1_599 = arith.constant 1 : index
    %c0_600 = arith.constant 0 : index
    %c0_601 = arith.constant 0 : index
    %632 = vector.load %arg4[%c1_599, %c0_600, %c0_601] : memref<10x10x32xf32, #tpu.memory_space<vmem>>, vector<8x8x32xf32>
    %633 = vector.shape_cast %632 : vector<8x8x32xf32> to vector<64x32xf32>
    %634 = arith.truncf %633 : vector<64x32xf32> to vector<64x32xbf16>
    %c7_602 = arith.constant 7 : index
    %c3_603 = arith.constant 3 : index
    %c0_604 = arith.constant 0 : index
    %c0_605 = arith.constant 0 : index
    %635 = vector.load %arg2[%c7_602, %c3_603, %c0_604, %c0_605] : memref<8x9x32x32xbf16, #tpu.memory_space<vmem>>, vector<1x1x32x32xbf16>
    %636 = vector.shape_cast %635 : vector<1x1x32x32xbf16> to vector<32x32xbf16>
    %cst_606 = arith.constant dense<0.000000e+00> : vector<64x32xf32>
    %637 = tpu.matmul %634, %636, %cst_606 {dimension_numbers = #tpu.dot_dimension_numbers<[1], [0], [0], [1], [0, 0, 1, 1], [], []>} : vector<64x32xbf16>, vector<32x32xbf16>, vector<64x32xf32> -> vector<64x32xf32>
    %638 = arith.addf %631, %637 : vector<64x32xf32>
    %c1_607 = arith.constant 1 : index
    %c1_608 = arith.constant 1 : index
    %c0_609 = arith.constant 0 : index
    %639 = vector.load %arg4[%c1_607, %c1_608, %c0_609] : memref<10x10x32xf32, #tpu.memory_space<vmem>>, vector<8x8x32xf32>
    %640 = vector.shape_cast %639 : vector<8x8x32xf32> to vector<64x32xf32>
    %641 = arith.truncf %640 : vector<64x32xf32> to vector<64x32xbf16>
    %c7_610 = arith.constant 7 : index
    %c4_611 = arith.constant 4 : index
    %c0_612 = arith.constant 0 : index
    %c0_613 = arith.constant 0 : index
    %642 = vector.load %arg2[%c7_610, %c4_611, %c0_612, %c0_613] : memref<8x9x32x32xbf16, #tpu.memory_space<vmem>>, vector<1x1x32x32xbf16>
    %643 = vector.shape_cast %642 : vector<1x1x32x32xbf16> to vector<32x32xbf16>
    %cst_614 = arith.constant dense<0.000000e+00> : vector<64x32xf32>
    %644 = tpu.matmul %641, %643, %cst_614 {dimension_numbers = #tpu.dot_dimension_numbers<[1], [0], [0], [1], [0, 0, 1, 1], [], []>} : vector<64x32xbf16>, vector<32x32xbf16>, vector<64x32xf32> -> vector<64x32xf32>
    %645 = arith.addf %638, %644 : vector<64x32xf32>
    %c1_615 = arith.constant 1 : index
    %c2_616 = arith.constant 2 : index
    %c0_617 = arith.constant 0 : index
    %646 = vector.load %arg4[%c1_615, %c2_616, %c0_617] : memref<10x10x32xf32, #tpu.memory_space<vmem>>, vector<8x8x32xf32>
    %647 = vector.shape_cast %646 : vector<8x8x32xf32> to vector<64x32xf32>
    %648 = arith.truncf %647 : vector<64x32xf32> to vector<64x32xbf16>
    %c7_618 = arith.constant 7 : index
    %c5_619 = arith.constant 5 : index
    %c0_620 = arith.constant 0 : index
    %c0_621 = arith.constant 0 : index
    %649 = vector.load %arg2[%c7_618, %c5_619, %c0_620, %c0_621] : memref<8x9x32x32xbf16, #tpu.memory_space<vmem>>, vector<1x1x32x32xbf16>
    %650 = vector.shape_cast %649 : vector<1x1x32x32xbf16> to vector<32x32xbf16>
    %cst_622 = arith.constant dense<0.000000e+00> : vector<64x32xf32>
    %651 = tpu.matmul %648, %650, %cst_622 {dimension_numbers = #tpu.dot_dimension_numbers<[1], [0], [0], [1], [0, 0, 1, 1], [], []>} : vector<64x32xbf16>, vector<32x32xbf16>, vector<64x32xf32> -> vector<64x32xf32>
    %652 = arith.addf %645, %651 : vector<64x32xf32>
    %c2_623 = arith.constant 2 : index
    %c0_624 = arith.constant 0 : index
    %c0_625 = arith.constant 0 : index
    %653 = vector.load %arg4[%c2_623, %c0_624, %c0_625] : memref<10x10x32xf32, #tpu.memory_space<vmem>>, vector<8x8x32xf32>
    %654 = vector.shape_cast %653 : vector<8x8x32xf32> to vector<64x32xf32>
    %655 = arith.truncf %654 : vector<64x32xf32> to vector<64x32xbf16>
    %c7_626 = arith.constant 7 : index
    %c6_627 = arith.constant 6 : index
    %c0_628 = arith.constant 0 : index
    %c0_629 = arith.constant 0 : index
    %656 = vector.load %arg2[%c7_626, %c6_627, %c0_628, %c0_629] : memref<8x9x32x32xbf16, #tpu.memory_space<vmem>>, vector<1x1x32x32xbf16>
    %657 = vector.shape_cast %656 : vector<1x1x32x32xbf16> to vector<32x32xbf16>
    %cst_630 = arith.constant dense<0.000000e+00> : vector<64x32xf32>
    %658 = tpu.matmul %655, %657, %cst_630 {dimension_numbers = #tpu.dot_dimension_numbers<[1], [0], [0], [1], [0, 0, 1, 1], [], []>} : vector<64x32xbf16>, vector<32x32xbf16>, vector<64x32xf32> -> vector<64x32xf32>
    %659 = arith.addf %652, %658 : vector<64x32xf32>
    %c2_631 = arith.constant 2 : index
    %c1_632 = arith.constant 1 : index
    %c0_633 = arith.constant 0 : index
    %660 = vector.load %arg4[%c2_631, %c1_632, %c0_633] : memref<10x10x32xf32, #tpu.memory_space<vmem>>, vector<8x8x32xf32>
    %661 = vector.shape_cast %660 : vector<8x8x32xf32> to vector<64x32xf32>
    %662 = arith.truncf %661 : vector<64x32xf32> to vector<64x32xbf16>
    %c7_634 = arith.constant 7 : index
    %c7_635 = arith.constant 7 : index
    %c0_636 = arith.constant 0 : index
    %c0_637 = arith.constant 0 : index
    %663 = vector.load %arg2[%c7_634, %c7_635, %c0_636, %c0_637] : memref<8x9x32x32xbf16, #tpu.memory_space<vmem>>, vector<1x1x32x32xbf16>
    %664 = vector.shape_cast %663 : vector<1x1x32x32xbf16> to vector<32x32xbf16>
    %cst_638 = arith.constant dense<0.000000e+00> : vector<64x32xf32>
    %665 = tpu.matmul %662, %664, %cst_638 {dimension_numbers = #tpu.dot_dimension_numbers<[1], [0], [0], [1], [0, 0, 1, 1], [], []>} : vector<64x32xbf16>, vector<32x32xbf16>, vector<64x32xf32> -> vector<64x32xf32>
    %666 = arith.addf %659, %665 : vector<64x32xf32>
    %c2_639 = arith.constant 2 : index
    %c2_640 = arith.constant 2 : index
    %c0_641 = arith.constant 0 : index
    %667 = vector.load %arg4[%c2_639, %c2_640, %c0_641] : memref<10x10x32xf32, #tpu.memory_space<vmem>>, vector<8x8x32xf32>
    %668 = vector.shape_cast %667 : vector<8x8x32xf32> to vector<64x32xf32>
    %669 = arith.truncf %668 : vector<64x32xf32> to vector<64x32xbf16>
    %c7_642 = arith.constant 7 : index
    %c8_643 = arith.constant 8 : index
    %c0_644 = arith.constant 0 : index
    %c0_645 = arith.constant 0 : index
    %670 = vector.load %arg2[%c7_642, %c8_643, %c0_644, %c0_645] : memref<8x9x32x32xbf16, #tpu.memory_space<vmem>>, vector<1x1x32x32xbf16>
    %671 = vector.shape_cast %670 : vector<1x1x32x32xbf16> to vector<32x32xbf16>
    %cst_646 = arith.constant dense<0.000000e+00> : vector<64x32xf32>
    %672 = tpu.matmul %669, %671, %cst_646 {dimension_numbers = #tpu.dot_dimension_numbers<[1], [0], [0], [1], [0, 0, 1, 1], [], []>} : vector<64x32xbf16>, vector<32x32xbf16>, vector<64x32xf32> -> vector<64x32xf32>
    %673 = arith.addf %666, %672 : vector<64x32xf32>
    %cst_647 = arith.constant dense<0.000000e+00> : vector<32xf32>
    %674 = vector.multi_reduction <add>, %673, %cst_647 [0] : vector<64x32xf32> to vector<32xf32>
    %675 = vector.shape_cast %674 : vector<32xf32> to vector<1x32xf32>
    %cst_648 = arith.constant 1.562500e-02 : f32
    %676 = vector.broadcast %cst_648 : f32 to vector<1x32xf32>
    %677 = arith.mulf %675, %676 : vector<1x32xf32>
    %678 = arith.mulf %673, %673 : vector<64x32xf32>
    %cst_649 = arith.constant dense<0.000000e+00> : vector<32xf32>
    %679 = vector.multi_reduction <add>, %678, %cst_649 [0] : vector<64x32xf32> to vector<32xf32>
    %680 = vector.shape_cast %679 : vector<32xf32> to vector<1x32xf32>
    %cst_650 = arith.constant 1.562500e-02 : f32
    %681 = vector.broadcast %cst_650 : f32 to vector<1x32xf32>
    %682 = arith.mulf %680, %681 : vector<1x32xf32>
    %683 = arith.mulf %677, %677 : vector<1x32xf32>
    %684 = arith.subf %682, %683 : vector<1x32xf32>
    %cst_651 = arith.constant 0.000000e+00 : f32
    %685 = vector.broadcast %cst_651 : f32 to vector<1x32xf32>
    %686 = arith.maximumf %684, %685 : vector<1x32xf32>
    %687 = vector.broadcast %677 : vector<1x32xf32> to vector<64x32xf32>
    %688 = arith.subf %673, %687 : vector<64x32xf32>
    %cst_652 = arith.constant 9.99999974E-6 : f32
    %689 = vector.broadcast %cst_652 : f32 to vector<1x32xf32>
    %690 = arith.addf %686, %689 : vector<1x32xf32>
    %691 = math.rsqrt %690 : vector<1x32xf32>
    %692 = vector.broadcast %691 : vector<1x32xf32> to vector<64x32xf32>
    %693 = arith.mulf %688, %692 : vector<64x32xf32>
    %694 = arith.addf %693, %523 : vector<64x32xf32>
    %cst_653 = arith.constant 0.000000e+00 : f32
    %695 = vector.broadcast %cst_653 : f32 to vector<64x32xf32>
    %696 = arith.maximumf %694, %695 : vector<64x32xf32>
    %697 = vector.shape_cast %696 : vector<64x32xf32> to vector<8x8x32xf32>
    %c0_654 = arith.constant 0 : index
    %c0_655 = arith.constant 0 : index
    %c0_656 = arith.constant 0 : index
    %c0_657 = arith.constant 0 : index
    %698 = vector.load %arg3[%c0_654, %c0_655, %c0_656, %c0_657] : memref<1x8x8x32xf32, #tpu.memory_space<vmem>>, vector<1x8x8x32xf32>
    %699 = vector.shape_cast %698 : vector<1x8x8x32xf32> to vector<8x8x32xf32>
    %700 = vector.shape_cast %697 : vector<8x8x32xf32> to vector<1x8x8x32xf32>
    tpu.vector_store %arg3[%c0_654, %c0_655, %c0_656, %c0_657], %700 {strides = array<i32>} : memref<1x8x8x32xf32, #tpu.memory_space<vmem>>, vector<1x8x8x32xf32>,
    return
  }
  func.func @transform_0(%arg0: i32) -> (i32, i32, i32, i32) {
    %c0_i32 = arith.constant 0 : i32
    %c0_i32_0 = arith.constant 0 : i32
    %c0_i32_1 = arith.constant 0 : i32
    %c0_i32_2 = arith.constant 0 : i32
    return %arg0, %c0_i32, %c0_i32_0, %c0_i32_1 : i32, i32, i32, i32
  }
  func.func @transform_1(%arg0: i32) -> (i32, i32, i32, i32) {
    %c0_i32 = arith.constant 0 : i32
    %c0_i32_0 = arith.constant 0 : i32
    %c0_i32_1 = arith.constant 0 : i32
    %c0_i32_2 = arith.constant 0 : i32
    %c0_i32_3 = arith.constant 0 : i32
    return %c0_i32, %c0_i32_0, %c0_i32_1, %c0_i32_2 : i32, i32, i32, i32
  }
  func.func @transform_2(%arg0: i32) -> (i32, i32, i32, i32) {
    %c0_i32 = arith.constant 0 : i32
    %c0_i32_0 = arith.constant 0 : i32
    %c0_i32_1 = arith.constant 0 : i32
    %c0_i32_2 = arith.constant 0 : i32
    return %arg0, %c0_i32, %c0_i32_0, %c0_i32_1 : i32, i32, i32, i32
  }
}

</mosaic_0001>

<llo_original>
// kernel: tpu_custom_call.1
$region0: #{tpu_custom_call.1}
  #allocation0 [shape = 'u32[]', space=smem, size = 0x4, offset = 0x4, fixed_abs, tag = 'smem constant byte address 0x4 - core index']
  #allocation1 [shape = 'u32[144,128]{1,0:T(1,128)}', space=vmem, size = 0x12000, scoped, tag = 'internal scratch']
  #allocation2 [shape = 'f32[10,10,32]{2,1,0:T(8,128)}', space=vmem, size = 0x14000, scoped, tag = 'scratch operand']
  %s0 = inlined_call_operand.hbm [shape: f32[2,8,8,32], index: 0, kind: input, shape index: {}]
  %s1 = inlined_call_operand.hbm [shape: bf16[8,9,32,32], index: 1, kind: input, shape index: {}]
  %s2 = inlined_call_operand.hbm [shape: f32[2,8,8,32], index: 2, kind: output, shape index: {}]
  %s3 = sld [smem:[#allocation0]]
  $region49: #{tpu_custom_call.1} parent=0
    _
  %s5 = ssub.s32 1, %s3
  %s6 = scalar_select 0, %s5, %s3
  $region1: #{tpu_custom_call.1} parent=0
    #allocation3 [shape = 'u8[65536]{0}', space=vmem, size = 0x10000, scoped, tag = 'input window, operand 0']
    #allocation4 [shape = 's32[2]{0}', space=sflag, size = 0x8, scoped, tag = 'scoped memory for tpu_custom_call.1']
    #allocation5 [shape = 's32[2]{0}', space=sflag, size = 0x8, scoped, tag = 'scoped memory for tpu_custom_call.1']
    #allocation6 [shape = 'u8[589824]{0}', space=vmem, size = 0x90000, scoped, tag = 'input window, operand 1, single buffered']
    #allocation7 [shape = 's32[1]{0}', space=sflag, size = 0x4, scoped, tag = 'scoped memory for tpu_custom_call.1']
    #allocation8 [shape = 'u8[65536]{0}', space=vmem, size = 0x10000, scoped, tag = 'output window, operand 0']
    %7 = vsyncpa [#allocation4], 0
    %s8 = scalar_lea.sflag [#allocation4], 1
    %9 = vsyncpa %s8, 0
    %10 = vsyncpa [#allocation7], 0
    %11 = vsyncpa [#allocation5], 0
    %s12 = scalar_lea.sflag [#allocation5], 1
    %13 = vsyncpa %s12, 0
    loop: start=0, step=1, limit=4
    $region2: #{tpu_custom_call.1} parent=1 // loop_pre_header
      _
    $region3: #{tpu_custom_call.1} parent=1 // loop_header
      %s15 = sphi 0, %s19
      %p16 = scmp.ge.s32.totalorder %s15, 4
      %s25 = sphi 0, %s27
      %s28 = sphi 0, %s25
      %s29 = sphi 0, %s28
      %s45 = sphi 0, %s29
      %s49 = sphi 0, %s49
      %s51 = sphi 0, %s49
      %s52 = sphi 0, %s51
      %s66 = sphi 0, %s52
      %s72 = sphi 0, %s74
      %s75 = sphi 0, %s72
      %s76 = sphi 0, %s75
      %s92 = sphi 0, %s76
    $region4: #{tpu_custom_call.1} parent=1 // loop_header_branch
      %18 = sbr.rel (%p16) target = $region8
    $region5: #{tpu_custom_call.1} parent=1 // loop_body
      %s20 = ssub.s32 %s15, 1
      %s21 = ssub.s32 %s15, 2
      %s22 = sadd.s32 %s15, 1
      %s23 = ssub.s32 %s15, %s22
      %p24 = scmp.eq.s32.totalorder %s23, 0
      %s26 = sadd.s32 %s25, 1
      %s27 = scalar_select %p24, %s25, %s26
      %p30 = pneg %p24
      %p31 = scmp.eq.s32.totalorder %s15, 1
      %p32 = por %p30, %p31
      %p33 = scmp.ne.s32.totalorder %s25, %s28
      %p34 = scmp.eq.s32.totalorder %s15, 0
      %p35 = por %p33, %p34
      %p36 = scmp.ne.s32.totalorder %s25, %s28
      %p37 = scmp.eq.s32.totalorder %s20, 1
      %p38 = por %p36, %p37
      %p39 = scmp.ne.s32.totalorder %s28, %s29
      %p40 = scmp.eq.s32.totalorder %s20, 0
      %p41 = por %p39, %p40
      %p42 = scmp.ne.s32.totalorder %s28, %s29
      %p43 = scmp.eq.s32.totalorder %s21, 1
      %p44 = por %p42, %p43
      %p46 = scmp.ne.s32.totalorder %s29, %s45
      %p47 = scmp.eq.s32.totalorder %s21, 0
      %p48 = por %p46, %p47
      %s50 = sadd.s32 %s49, 1
      %p53 = scmp.eq.s32.totalorder %s15, 1
      %p54 = scmp.ne.s32.totalorder %s49, %s51
      %p55 = scmp.eq.s32.totalorder %s15, 0
      %p56 = por %p54, %p55
      %p57 = scmp.ne.s32.totalorder %s49, %s51
      %p58 = scmp.eq.s32.totalorder %s20, 1
      %p59 = por %p57, %p58
      %p60 = scmp.ne.s32.totalorder %s51, %s52
      %p61 = scmp.eq.s32.totalorder %s20, 0
      %p62 = por %p60, %p61
      %p63 = scmp.ne.s32.totalorder %s51, %s52
      %p64 = scmp.eq.s32.totalorder %s21, 1
      %p65 = por %p63, %p64
      %p67 = scmp.ne.s32.totalorder %s52, %s66
      %p68 = scmp.eq.s32.totalorder %s21, 0
      %p69 = por %p67, %p68
      %s70 = ssub.s32 %s15, %s22
      %p71 = scmp.eq.s32.totalorder %s70, 0
      %s73 = sadd.s32 %s72, 1
      %s74 = scalar_select %p71, %s72, %s73
      %p77 = pneg %p71
      %p78 = scmp.eq.s32.totalorder %s15, 1
      %p79 = por %p77, %p78
      %p80 = scmp.ne.s32.totalorder %s72, %s75
      %p81 = scmp.eq.s32.totalorder %s15, 0
      %p82 = por %p80, %p81
      %p83 = scmp.ne.s32.totalorder %s72, %s75
      %p84 = scmp.eq.s32.totalorder %s20, 1
      %p85 = por %p83, %p84
      %p86 = scmp.ne.s32.totalorder %s75, %s76
      %p87 = scmp.eq.s32.totalorder %s20, 0
      %p88 = por %p86, %p87
      %p89 = scmp.ne.s32.totalorder %s75, %s76
      %p90 = scmp.eq.s32.totalorder %s21, 1
      %p91 = por %p89, %p90
      %p93 = scmp.ne.s32.totalorder %s76, %s92
      %p94 = scmp.eq.s32.totalorder %s21, 0
      %p95 = por %p93, %p94
      %p96 = scmp.le.s32.totalorder 1, %s15
      %p97 = scmp.lt.s32.totalorder %s15, 3
      %p98 = pnand %p96, %p97
      %p99 = pneg %p98
      // Predicated region
      $region9: #{tpu_custom_call.1} parent=5 // pred_check
        _
      $region10: #{tpu_custom_call.1} parent=5 // pred_check_branch
        %101 = sbr.rel (%p98) target = $region12
      $region11: #{tpu_custom_call.1} parent=5 // pred_region
        %s102 = ssub.s32 %s15, 1
        // Predicated region
        $region13: #{tpu_custom_call.1} parent=11 // pred_check
          %p103 = pneg %p62
        $region14: #{tpu_custom_call.1} parent=11 // pred_check_branch
          %105 = sbr.rel (%p103) target = $region16
        $region15: #{tpu_custom_call.1} parent=11 // pred_region
          %s107 = ssub.s32 18432, 18432
          %108 = vsyncadd [#allocation7], %s107
          %s109 = sshll.u32 [#allocation6], 4
          %s110 = int_to_ptr.vmem [resolvable:$true] %s109
          %115 = dma.hbm_to_vmem [thread:$0]  %s1, 18432, %s110, [#allocation7], 64, 64, 4
        $region16: #{tpu_custom_call.1} parent=11 // pred_fallthru
          _
      $region12: #{tpu_custom_call.1} parent=5 // pred_fallthru
        _
      %p116 = scmp.lt.s32.totalorder %s15, 2
      // Predicated region
      $region17: #{tpu_custom_call.1} parent=5 // pred_check
        %p117 = pneg %p116
      $region18: #{tpu_custom_call.1} parent=5 // pred_check_branch
        %119 = sbr.rel (%p117) target = $region20
      $region19: #{tpu_custom_call.1} parent=5 // pred_region
        // Predicated region
        $region21: #{tpu_custom_call.1} parent=19 // pred_check
          %p120 = pneg %p35
        $region22: #{tpu_custom_call.1} parent=19 // pred_check_branch
          %122 = sbr.rel (%p120) target = $region24
        $region23: #{tpu_custom_call.1} parent=19 // pred_region
          %s123 = sand.u32 %s25, 1
          %s124 = scalar_lea.sflag [#allocation4], %s123
          %s125 = sand.u32 %s25, 1
          %s126 = smul.addr %s125, 64
          %s127 = scalar_lea.vmem [#allocation3], %s126
          %s129 = ssub.s32 1024, 1024
          %130 = vsyncadd %s124, %s129
          %s131 = smul.addr %s15, 8
          %s132 = smul.addr %s131, 128
          %s133 = scalar_lea.hbm %s0, %s132
          %s134 = sshll.u32 %s127, 4
          %s135 = int_to_ptr.vmem [resolvable:$true] %s134
          %140 = dma.hbm_to_vmem [thread:$0]  %s133, 1024, %s135, %s124, 128, 128, 8
        $region24: #{tpu_custom_call.1} parent=19 // pred_fallthru
          _
      $region20: #{tpu_custom_call.1} parent=5 // pred_fallthru
        _
      %p141 = scmp.le.s32.totalorder 1, %s15
      %p142 = scmp.lt.s32.totalorder %s15, 3
      %p143 = pnand %p141, %p142
      %p144 = pneg %p143
      // Predicated region
      $region25: #{tpu_custom_call.1} parent=5 // pred_check
        _
      $region26: #{tpu_custom_call.1} parent=5 // pred_check_branch
        %146 = sbr.rel (%p143) target = $region28
      $region27: #{tpu_custom_call.1} parent=5 // pred_region
        %s147 = ssub.s32 %s15, 1
        %s148 = sand.u32 %s28, 1
        %s149 = scalar_lea.sflag [#allocation4], %s148
        %s150 = sand.u32 %s28, 1
        %s151 = smul.addr %s150, 64
        %s152 = scalar_lea.vmem [#allocation3], %s151
        // Predicated region
        $region29: #{tpu_custom_call.1} parent=27 // pred_check
          %p153 = pneg %p41
        $region30: #{tpu_custom_call.1} parent=27 // pred_check_branch
          %155 = sbr.rel (%p153) target = $region32
        $region31: #{tpu_custom_call.1} parent=27 // pred_region
          %156 = dma.done %s149, 1024
        $region32: #{tpu_custom_call.1} parent=27 // pred_fallthru
          _
        // Predicated region
        $region33: #{tpu_custom_call.1} parent=27 // pred_check
          %p157 = pneg %p62
        $region34: #{tpu_custom_call.1} parent=27 // pred_check_branch
          %159 = sbr.rel (%p157) target = $region36
        $region35: #{tpu_custom_call.1} parent=27 // pred_region
          %160 = dma.done [#allocation7], 18432
        $region36: #{tpu_custom_call.1} parent=27 // pred_fallthru
          _
        %s161 = sand.u32 %s28, 1
        %s162 = scalar_lea.sflag [#allocation4], %s161
        %s163 = sand.u32 %s28, 1
        %s164 = smul.addr %s163, 64
        %s165 = scalar_lea.vmem [#allocation3], %s164
        %p166 = pneg %p41
        %p167 = pneg %p38
        %p168 = pneg %p62
        %p169 = pneg %p59
        %p170 = pneg %p88
        %p171 = pneg %p85
        %s172 = sand.u32 %s75, 1
        %s173 = scalar_lea.sflag [#allocation5], %s172
        %s174 = sand.u32 %s75, 1
        %s175 = smul.addr %s174, 64
        %s176 = scalar_lea.vmem [#allocation8], %s175
        %vm178 = vcmask 261120
        %179 = vst.msk [vmem:[#allocation2] sm:$0xff] %vm178, 0.0
        %vm180 = vcmask 254976
        %181 = vst.msk [vmem:[#allocation2 + $0x8] sm:$0x3] %vm180, 0.0
        %182 = vst.msk [vmem:[#allocation2 + $0x10] sm:$0xff] %vm178, 0.0
        %183 = vst.msk [vmem:[#allocation2 + $0x18] sm:$0x3] %vm180, 0.0
        %184 = vst.msk [vmem:[#allocation2 + $0x20] sm:$0xff] %vm178, 0.0
        %185 = vst.msk [vmem:[#allocation2 + $0x28] sm:$0x3] %vm180, 0.0
        %186 = vst.msk [vmem:[#allocation2 + $0x30] sm:$0xff] %vm178, 0.0
        %187 = vst.msk [vmem:[#allocation2 + $0x38] sm:$0x3] %vm180, 0.0
        %188 = vst.msk [vmem:[#allocation2 + $0x40] sm:$0xff] %vm178, 0.0
        %189 = vst.msk [vmem:[#allocation2 + $0x48] sm:$0x3] %vm180, 0.0
        %190 = vst.msk [vmem:[#allocation2 + $0x50] sm:$0xff] %vm178, 0.0
        %191 = vst.msk [vmem:[#allocation2 + $0x58] sm:$0x3] %vm180, 0.0
        %192 = vst.msk [vmem:[#allocation2 + $0x60] sm:$0xff] %vm178, 0.0
        %193 = vst.msk [vmem:[#allocation2 + $0x68] sm:$0x3] %vm180, 0.0
        %194 = vst.msk [vmem:[#allocation2 + $0x70] sm:$0xff] %vm178, 0.0
        %195 = vst.msk [vmem:[#allocation2 + $0x78] sm:$0x3] %vm180, 0.0
        %196 = vst.msk [vmem:[#allocation2 + $0x80] sm:$0xff] %vm178, 0.0
        %197 = vst.msk [vmem:[#allocation2 + $0x88] sm:$0x3] %vm180, 0.0
        %198 = vst.msk [vmem:[#allocation2 + $0x90] sm:$0xff] %vm178, 0.0
        %199 = vst.msk [vmem:[#allocation2 + $0x98] sm:$0x3] %vm180, 0.0
        %v200 = vld [vmem:[%s152] sm:$0xff]
        %v201 = vld [vmem:[%s152 + $0x8] sm:$0xff]
        %v202 = vld [vmem:[%s152 + $0x10] sm:$0xff]
        %v203 = vld [vmem:[%s152 + $0x18] sm:$0xff]
        %v204 = vld [vmem:[%s152 + $0x20] sm:$0xff]
        %v205 = vld [vmem:[%s152 + $0x28] sm:$0xff]
        %v206 = vld [vmem:[%s152 + $0x30] sm:$0xff]
        %v207 = vld [vmem:[%s152 + $0x38] sm:$0xff]
        %s208 = scalar_lea.vmem [#allocation2], 16
        %209 = vst.msk [vmem:[%s208 + $0x1] sm:$0xff] %vm178, %v200
        %210 = vst.msk [vmem:[%s208 + $0x11] sm:$0xff] %vm178, %v201
        %211 = vst.msk [vmem:[%s208 + $0x21] sm:$0xff] %vm178, %v202
        %212 = vst.msk [vmem:[%s208 + $0x31] sm:$0xff] %vm178, %v203
        %213 = vst.msk [vmem:[%s208 + $0x41] sm:$0xff] %vm178, %v204
        %214 = vst.msk [vmem:[%s208 + $0x51] sm:$0xff] %vm178, %v205
        %215 = vst.msk [vmem:[%s208 + $0x61] sm:$0xff] %vm178, %v206
        %216 = vst.msk [vmem:[%s208 + $0x71] sm:$0xff] %vm178, %v207
        %v217 = vld [vmem:[#allocation2] sm:$0xff]
        %v218 = vld [vmem:[#allocation2 + $0x10] sm:$0xff]
        %v219 = vld [vmem:[#allocation2 + $0x20] sm:$0xff]
        %v220 = vld [vmem:[#allocation2 + $0x30] sm:$0xff]
        %v221 = vld [vmem:[#allocation2 + $0x40] sm:$0xff]
        %v222 = vld [vmem:[#allocation2 + $0x50] sm:$0xff]
        %v223 = vld [vmem:[#allocation2 + $0x60] sm:$0xff]
        %v224 = vld [vmem:[#allocation2 + $0x70] sm:$0xff]
        %v225 = vpack.c.bf16 %v218, %v217
        %v226 = vpack.c.bf16 %v220, %v219
        %v227 = vpack.c.bf16 %v222, %v221
        %v228 = vpack.c.bf16 %v224, %v223
        %v229 = vld [vmem:[#allocation6] sm:$0xf]
        %v230 = vld [vmem:[#allocation6 + $0x4] sm:$0xf]
        %v231 = vld [vmem:[#allocation6 + $0x8] sm:$0xf]
        %v232 = vld [vmem:[#allocation6 + $0xc] sm:$0xf]
        %v233 = vld [vmem:[#allocation2 + $0x1] sm:$0xff]
        %v234 = vld [vmem:[#allocation2 + $0x11] sm:$0xff]
        %v235 = vld [vmem:[#allocation2 + $0x21] sm:$0xff]
        %v236 = vld [vmem:[#allocation2 + $0x31] sm:$0xff]
        %v237 = vld [vmem:[#allocation2 + $0x41] sm:$0xff]
        %v238 = vld [vmem:[#allocation2 + $0x51] sm:$0xff]
        %v239 = vld [vmem:[#allocation2 + $0x61] sm:$0xff]
        %v240 = vld [vmem:[#allocation2 + $0x71] sm:$0xff]
        %v241 = vpack.c.bf16 %v234, %v233
        %v242 = vpack.c.bf16 %v236, %v235
        %v243 = vpack.c.bf16 %v238, %v237
        %v244 = vpack.c.bf16 %v240, %v239
        %s245 = scalar_lea.vmem [#allocation6], 16
        %v246 = vld [vmem:[%s245] sm:$0xf]
        %v247 = vld [vmem:[%s245 + $0x4] sm:$0xf]
        %v248 = vld [vmem:[%s245 + $0x8] sm:$0xf]
        %v249 = vld [vmem:[%s245 + $0xc] sm:$0xf]
        %v254 = vunpack.c.l.b16 %v246
        %v255 = vunpack.c.l.b16 %v247
        %v256 = vunpack.c.l.b16 %v248
        %v257 = vunpack.c.l.b16 %v249
        %v258 = vpack.c.b16 %v255, %v254
        %v259 = vpack.c.b16 %v257, %v256
        %v263 = vsel %vm178, %v241, 0
        %v266 = vsel %vm178, %v242, 0
        %v269 = vsel %vm178, %v243, 0
        %v272 = vsel %vm178, %v244, 0
        %274 = vmatprep.subr.bf16.mxu0 0
        %275 = vmatpush1.bf16.msra.mxu0 %v258
        %276 = vmatprep.subr.bf16.mxu0 0
        %277 = vmatpush1.bf16.msra.mxu0 %v259
        %278 = vmatprep.subr.bf16.mxu0 0
        %279 = vmatpush1.bf16.msra.mxu0 0
        %280 = vmatprep.subr.bf16.mxu0 0
        %281 = vmatpush1.bf16.msra.mxu0 0
        %282 = vmatprep.subr.bf16.mxu0 0
        %283 = vmatpush1.bf16.msra.mxu0 0
        %284 = vmatprep.subr.bf16.mxu0 0
        %285 = vmatpush1.bf16.msra.mxu0 0
        %286 = vmatprep.subr.bf16.mxu0 0
        %287 = vmatpush1.bf16.msra.mxu0 0
        %288 = vmatprep.subr.bf16.mxu0 0
        %289 = vmatpush1.bf16.msra.mxu0 0
        %290 = vmatprep.subr.bf16.mxu0 0
        %291 = vmatpush1.bf16.msra.mxu0 0
        %292 = vmatprep.subr.bf16.mxu0 0
        %293 = vmatpush1.bf16.msra.mxu0 0
        %294 = vmatprep.subr.bf16.mxu0 0
        %295 = vmatpush1.bf16.msra.mxu0 0
        %296 = vmatprep.subr.bf16.mxu0 0
        %297 = vmatpush1.bf16.msra.mxu0 0
        %298 = vmatprep.subr.bf16.mxu0 0
        %299 = vmatpush1.bf16.msra.mxu0 0
        %300 = vmatprep.subr.bf16.mxu0 0
        %301 = vmatpush1.bf16.msra.mxu0 0
        %302 = vmatprep.subr.bf16.mxu0 0
        %303 = vmatpush1.bf16.msra.mxu0 0
        %304 = vmatprep.subr.bf16.mxu0 0
        %305 = vmatpush1.bf16.msra.mxu0 0
        %306 = vmatprep.mubr.bf16.mxu0 0
        %307 = vmatmul.mubr.bf16.gmra.mrb[0].mxu0 %v263
        %v308 = vpop.f32.mrb[0].mxu0
        %v309 = vadd.f32 0.0, %v308
        %v310 = vpop.f32.mrb[0].mxu0
        %v311 = vpop.f32.mrb[0].mxu0
        %v312 = vadd.f32 0.0, %v311
        %v313 = vpop.f32.mrb[0].mxu0
        %314 = vmatprep.mubr.bf16.mxu0 0
        %315 = vmatmul.mubr.bf16.gmra.mrb[0].mxu0 %v266
        %v316 = vpop.f32.mrb[0].mxu0
        %v317 = vadd.f32 0.0, %v316
        %v318 = vpop.f32.mrb[0].mxu0
        %v319 = vpop.f32.mrb[0].mxu0
        %v320 = vadd.f32 0.0, %v319
        %v321 = vpop.f32.mrb[0].mxu0
        %322 = vmatprep.mubr.bf16.mxu0 0
        %323 = vmatmul.mubr.bf16.gmra.mrb[0].mxu0 %v269
        %v324 = vpop.f32.mrb[0].mxu0
        %v325 = vadd.f32 0.0, %v324
        %v326 = vpop.f32.mrb[0].mxu0
        %v327 = vpop.f32.mrb[0].mxu0
        %v328 = vadd.f32 0.0, %v327
        %v329 = vpop.f32.mrb[0].mxu0
        %330 = vmatprep.mubr.bf16.mxu0 0
        %331 = vmatmul.mubr.bf16.gmra.mrb[0].mxu0 %v272
        %v332 = vpop.f32.mrb[0].mxu0
        %v333 = vadd.f32 0.0, %v332
        %v334 = vpop.f32.mrb[0].mxu0
        %v335 = vpop.f32.mrb[0].mxu0
        %v336 = vadd.f32 0.0, %v335
        %v337 = vpop.f32.mrb[0].mxu0
        %338 = vdwg.mxu0
        %v343 = vunpack.c.l.b16 %v229
        %v344 = vunpack.c.l.b16 %v230
        %v345 = vunpack.c.l.b16 %v231
        %v346 = vunpack.c.l.b16 %v232
        %v347 = vpack.c.b16 %v344, %v343
        %v348 = vpack.c.b16 %v346, %v345
        %v352 = vsel %vm178, %v225, 0
        %v355 = vsel %vm178, %v226, 0
        %v358 = vsel %vm178, %v227, 0
        %v361 = vsel %vm178, %v228, 0
        %363 = vmatprep.subr.bf16.mxu0 0
        %364 = vmatpush1.bf16.msra.mxu0 %v347
        %365 = vmatprep.subr.bf16.mxu0 0
        %366 = vmatpush1.bf16.msra.mxu0 %v348
        %367 = vmatprep.subr.bf16.mxu0 0
        %368 = vmatpush1.bf16.msra.mxu0 0
        %369 = vmatprep.subr.bf16.mxu0 0
        %370 = vmatpush1.bf16.msra.mxu0 0
        %371 = vmatprep.subr.bf16.mxu0 0
        %372 = vmatpush1.bf16.msra.mxu0 0
        %373 = vmatprep.subr.bf16.mxu0 0
        %374 = vmatpush1.bf16.msra.mxu0 0
        %375 = vmatprep.subr.bf16.mxu0 0
        %376 = vmatpush1.bf16.msra.mxu0 0
        %377 = vmatprep.subr.bf16.mxu0 0
        %378 = vmatpush1.bf16.msra.mxu0 0
        %379 = vmatprep.subr.bf16.mxu0 0
        %380 = vmatpush1.bf16.msra.mxu0 0
        %381 = vmatprep.subr.bf16.mxu0 0
        %382 = vmatpush1.bf16.msra.mxu0 0
        %383 = vmatprep.subr.bf16.mxu0 0
        %384 = vmatpush1.bf16.msra.mxu0 0
        %385 = vmatprep.subr.bf16.mxu0 0
        %386 = vmatpush1.bf16.msra.mxu0 0
        %387 = vmatprep.subr.bf16.mxu0 0
        %388 = vmatpush1.bf16.msra.mxu0 0
        %389 = vmatprep.subr.bf16.mxu0 0
        %390 = vmatpush1.bf16.msra.mxu0 0
        %391 = vmatprep.subr.bf16.mxu0 0
        %392 = vmatpush1.bf16.msra.mxu0 0
        %393 = vmatprep.subr.bf16.mxu0 0
        %394 = vmatpush1.bf16.msra.mxu0 0
        %395 = vmatprep.mubr.bf16.mxu0 0
        %396 = vmatmul.mubr.bf16.gmra.mrb[0].mxu0 %v352
        %v397 = vpop.f32.mrb[0].mxu0
        %v398 = vadd.f32 %v309, %v397
        %v399 = vpop.f32.mrb[0].mxu0
        %v400 = vpop.f32.mrb[0].mxu0
        %v401 = vadd.f32 %v312, %v400
        %v402 = vpop.f32.mrb[0].mxu0
        %403 = vmatprep.mubr.bf16.mxu0 0
        %404 = vmatmul.mubr.bf16.gmra.mrb[0].mxu0 %v355
        %v405 = vpop.f32.mrb[0].mxu0
        %v406 = vadd.f32 %v317, %v405
        %v407 = vpop.f32.mrb[0].mxu0
        %v408 = vpop.f32.mrb[0].mxu0
        %v409 = vadd.f32 %v320, %v408
        %v410 = vpop.f32.mrb[0].mxu0
        %411 = vmatprep.mubr.bf16.mxu0 0
        %412 = vmatmul.mubr.bf16.gmra.mrb[0].mxu0 %v358
        %v413 = vpop.f32.mrb[0].mxu0
        %v414 = vadd.f32 %v325, %v413
        %v415 = vpop.f32.mrb[0].mxu0
        %v416 = vpop.f32.mrb[0].mxu0
        %v417 = vadd.f32 %v328, %v416
        %v418 = vpop.f32.mrb[0].mxu0
        %419 = vmatprep.mubr.bf16.mxu0 0
        %420 = vmatmul.mubr.bf16.gmra.mrb[0].mxu0 %v361
        %v421 = vpop.f32.mrb[0].mxu0
        %v422 = vadd.f32 %v333, %v421
        %v423 = vpop.f32.mrb[0].mxu0
        %v424 = vpop.f32.mrb[0].mxu0
        %v425 = vadd.f32 %v336, %v424
        %v426 = vpop.f32.mrb[0].mxu0
        %427 = vdwg.mxu0
        %v428 = vld [vmem:[#allocation2 + $0x2] sm:$0xff]
        %v429 = vld [vmem:[#allocation2 + $0x12] sm:$0xff]
        %v430 = vld [vmem:[#allocation2 + $0x22] sm:$0xff]
        %v431 = vld [vmem:[#allocation2 + $0x32] sm:$0xff]
        %v432 = vld [vmem:[#allocation2 + $0x42] sm:$0xff]
        %v433 = vld [vmem:[#allocation2 + $0x52] sm:$0xff]
        %v434 = vld [vmem:[#allocation2 + $0x62] sm:$0xff]
        %v435 = vld [vmem:[#allocation2 + $0x72] sm:$0xff]
        %v436 = vpack.c.bf16 %v429, %v428
        %v437 = vpack.c.bf16 %v431, %v430
        %v438 = vpack.c.bf16 %v433, %v432
        %v439 = vpack.c.bf16 %v435, %v434
        %s440 = scalar_lea.vmem [#allocation6], 32
        %v441 = vld [vmem:[%s440] sm:$0xf]
        %v442 = vld [vmem:[%s440 + $0x4] sm:$0xf]
        %v443 = vld [vmem:[%s440 + $0x8] sm:$0xf]
        %v444 = vld [vmem:[%s440 + $0xc] sm:$0xf]
        %v449 = vunpack.c.l.b16 %v441
        %v450 = vunpack.c.l.b16 %v442
        %v451 = vunpack.c.l.b16 %v443
        %v452 = vunpack.c.l.b16 %v444
        %v453 = vpack.c.b16 %v450, %v449
        %v454 = vpack.c.b16 %v452, %v451
        %v458 = vsel %vm178, %v436, 0
        %v461 = vsel %vm178, %v437, 0
        %v464 = vsel %vm178, %v438, 0
        %v467 = vsel %vm178, %v439, 0
        %469 = vmatprep.subr.bf16.mxu0 0
        %470 = vmatpush1.bf16.msra.mxu0 %v453
        %471 = vmatprep.subr.bf16.mxu0 0
        %472 = vmatpush1.bf16.msra.mxu0 %v454
        %473 = vmatprep.subr.bf16.mxu0 0
        %474 = vmatpush1.bf16.msra.mxu0 0
        %475 = vmatprep.subr.bf16.mxu0 0
        %476 = vmatpush1.bf16.msra.mxu0 0
        %477 = vmatprep.subr.bf16.mxu0 0
        %478 = vmatpush1.bf16.msra.mxu0 0
        %479 = vmatprep.subr.bf16.mxu0 0
        %480 = vmatpush1.bf16.msra.mxu0 0
        %481 = vmatprep.subr.bf16.mxu0 0
        %482 = vmatpush1.bf16.msra.mxu0 0
        %483 = vmatprep.subr.bf16.mxu0 0
        %484 = vmatpush1.bf16.msra.mxu0 0
        %485 = vmatprep.subr.bf16.mxu0 0
        %486 = vmatpush1.bf16.msra.mxu0 0
        %487 = vmatprep.subr.bf16.mxu0 0
        %488 = vmatpush1.bf16.msra.mxu0 0
        %489 = vmatprep.subr.bf16.mxu0 0
        %490 = vmatpush1.bf16.msra.mxu0 0
        %491 = vmatprep.subr.bf16.mxu0 0
        %492 = vmatpush1.bf16.msra.mxu0 0
        %493 = vmatprep.subr.bf16.mxu0 0
        %494 = vmatpush1.bf16.msra.mxu0 0
        %495 = vmatprep.subr.bf16.mxu0 0
        %496 = vmatpush1.bf16.msra.mxu0 0
        %497 = vmatprep.subr.bf16.mxu0 0
        %498 = vmatpush1.bf16.msra.mxu0 0
        %499 = vmatprep.subr.bf16.mxu0 0
        %500 = vmatpush1.bf16.msra.mxu0 0
        %501 = vmatprep.mubr.bf16.mxu0 0
        %502 = vmatmul.mubr.bf16.gmra.mrb[0].mxu0 %v458
        %v503 = vpop.f32.mrb[0].mxu0
        %v504 = vadd.f32 0.0, %v503
        %v505 = vpop.f32.mrb[0].mxu0
        %v506 = vpop.f32.mrb[0].mxu0
        %v507 = vadd.f32 0.0, %v506
        %v508 = vpop.f32.mrb[0].mxu0
        %509 = vmatprep.mubr.bf16.mxu0 0
        %510 = vmatmul.mubr.bf16.gmra.mrb[0].mxu0 %v461
        %v511 = vpop.f32.mrb[0].mxu0
        %v512 = vadd.f32 0.0, %v511
        %v513 = vpop.f32.mrb[0].mxu0
        %v514 = vpop.f32.mrb[0].mxu0
        %v515 = vadd.f32 0.0, %v514
        %v516 = vpop.f32.mrb[0].mxu0
        %517 = vmatprep.mubr.bf16.mxu0 0
        %518 = vmatmul.mubr.bf16.gmra.mrb[0].mxu0 %v464
        %v519 = vpop.f32.mrb[0].mxu0
        %v520 = vadd.f32 0.0, %v519
        %v521 = vpop.f32.mrb[0].mxu0
        %v522 = vpop.f32.mrb[0].mxu0
        %v523 = vadd.f32 0.0, %v522
        %v524 = vpop.f32.mrb[0].mxu0
        %525 = vmatprep.mubr.bf16.mxu0 0
        %526 = vmatmul.mubr.bf16.gmra.mrb[0].mxu0 %v467
        %v527 = vpop.f32.mrb[0].mxu0
        %v528 = vadd.f32 0.0, %v527
        %v529 = vpop.f32.mrb[0].mxu0
        %v530 = vpop.f32.mrb[0].mxu0
        %v531 = vadd.f32 0.0, %v530
        %v532 = vpop.f32.mrb[0].mxu0
        %533 = vdwg.mxu0
        %v534 = vadd.f32 %v398, %v504
        %v535 = vadd.f32 %v401, %v507
        %v536 = vadd.f32 %v406, %v512
        %v537 = vadd.f32 %v409, %v515
        %v538 = vadd.f32 %v414, %v520
        %v539 = vadd.f32 %v417, %v523
        %v540 = vadd.f32 %v422, %v528
        %v541 = vadd.f32 %v425, %v531
        %v542 = vld [vmem:[%s208] sm:$0xff]
        %v543 = vld [vmem:[%s208 + $0x10] sm:$0xff]
        %v544 = vld [vmem:[%s208 + $0x20] sm:$0xff]
        %v545 = vld [vmem:[%s208 + $0x30] sm:$0xff]
        %v546 = vld [vmem:[%s208 + $0x40] sm:$0xff]
        %v547 = vld [vmem:[%s208 + $0x50] sm:$0xff]
        %v548 = vld [vmem:[%s208 + $0x60] sm:$0xff]
        %v549 = vld [vmem:[%s208 + $0x70] sm:$0xff]
        %v550 = vpack.c.bf16 %v543, %v542
        %v551 = vpack.c.bf16 %v545, %v544
        %v552 = vpack.c.bf16 %v547, %v546
        %v553 = vpack.c.bf16 %v549, %v548
        %s554 = scalar_lea.vmem [#allocation6], 48
        %v555 = vld [vmem:[%s554] sm:$0xf]
        %v556 = vld [vmem:[%s554 + $0x4] sm:$0xf]
        %v557 = vld [vmem:[%s554 + $0x8] sm:$0xf]
        %v558 = vld [vmem:[%s554 + $0xc] sm:$0xf]
        %v563 = vunpack.c.l.b16 %v555
        %v564 = vunpack.c.l.b16 %v556
        %v565 = vunpack.c.l.b16 %v557
        %v566 = vunpack.c.l.b16 %v558
        %v567 = vpack.c.b16 %v564, %v563
        %v568 = vpack.c.b16 %v566, %v565
        %v572 = vsel %vm178, %v550, 0
        %v575 = vsel %vm178, %v551, 0
        %v578 = vsel %vm178, %v552, 0
        %v581 = vsel %vm178, %v553, 0
        %583 = vmatprep.subr.bf16.mxu0 0
        %584 = vmatpush1.bf16.msra.mxu0 %v567
        %585 = vmatprep.subr.bf16.mxu0 0
        %586 = vmatpush1.bf16.msra.mxu0 %v568
        %587 = vmatprep.subr.bf16.mxu0 0
        %588 = vmatpush1.bf16.msra.mxu0 0
        %589 = vmatprep.subr.bf16.mxu0 0
        %590 = vmatpush1.bf16.msra.mxu0 0
        %591 = vmatprep.subr.bf16.mxu0 0
        %592 = vmatpush1.bf16.msra.mxu0 0
        %593 = vmatprep.subr.bf16.mxu0 0
        %594 = vmatpush1.bf16.msra.mxu0 0
        %595 = vmatprep.subr.bf16.mxu0 0
        %596 = vmatpush1.bf16.msra.mxu0 0
        %597 = vmatprep.subr.bf16.mxu0 0
        %598 = vmatpush1.bf16.msra.mxu0 0
        %599 = vmatprep.subr.bf16.mxu0 0
        %600 = vmatpush1.bf16.msra.mxu0 0
        %601 = vmatprep.subr.bf16.mxu0 0
        %602 = vmatpush1.bf16.msra.mxu0 0
        %603 = vmatprep.subr.bf16.mxu0 0
        %604 = vmatpush1.bf16.msra.mxu0 0
        %605 = vmatprep.subr.bf16.mxu0 0
        %606 = vmatpush1.bf16.msra.mxu0 0
        %607 = vmatprep.subr.bf16.mxu0 0
        %608 = vmatpush1.bf16.msra.mxu0 0
        %609 = vmatprep.subr.bf16.mxu0 0
        %610 = vmatpush1.bf16.msra.mxu0 0
        %611 = vmatprep.subr.bf16.mxu0 0
        %612 = vmatpush1.bf16.msra.mxu0 0
        %613 = vmatprep.subr.bf16.mxu0 0
        %614 = vmatpush1.bf16.msra.mxu0 0
        %615 = vmatprep.mubr.bf16.mxu0 0
        %616 = vmatmul.mubr.bf16.gmra.mrb[0].mxu0 %v572
        %v617 = vpop.f32.mrb[0].mxu0
        %v618 = vadd.f32 0.0, %v617
        %v619 = vpop.f32.mrb[0].mxu0
        %v620 = vpop.f32.mrb[0].mxu0
        %v621 = vadd.f32 0.0, %v620
        %v622 = vpop.f32.mrb[0].mxu0
        %623 = vmatprep.mubr.bf16.mxu0 0
        %624 = vmatmul.mubr.bf16.gmra.mrb[0].mxu0 %v575
        %v625 = vpop.f32.mrb[0].mxu0
        %v626 = vadd.f32 0.0, %v625
        %v627 = vpop.f32.mrb[0].mxu0
        %v628 = vpop.f32.mrb[0].mxu0
        %v629 = vadd.f32 0.0, %v628
        %v630 = vpop.f32.mrb[0].mxu0
        %631 = vmatprep.mubr.bf16.mxu0 0
        %632 = vmatmul.mubr.bf16.gmra.mrb[0].mxu0 %v578
        %v633 = vpop.f32.mrb[0].mxu0
        %v634 = vadd.f32 0.0, %v633
        %v635 = vpop.f32.mrb[0].mxu0
        %v636 = vpop.f32.mrb[0].mxu0
        %v637 = vadd.f32 0.0, %v636
        %v638 = vpop.f32.mrb[0].mxu0
        %639 = vmatprep.mubr.bf16.mxu0 0
        %640 = vmatmul.mubr.bf16.gmra.mrb[0].mxu0 %v581
        %v641 = vpop.f32.mrb[0].mxu0
        %v642 = vadd.f32 0.0, %v641
        %v643 = vpop.f32.mrb[0].mxu0
        %v644 = vpop.f32.mrb[0].mxu0
        %v645 = vadd.f32 0.0, %v644
        %v646 = vpop.f32.mrb[0].mxu0
        %647 = vdwg.mxu0
        %v648 = vadd.f32 %v534, %v618
        %v649 = vadd.f32 %v535, %v621
        %v650 = vadd.f32 %v536, %v626
        %v651 = vadd.f32 %v537, %v629
        %v652 = vadd.f32 %v538, %v634
        %v653 = vadd.f32 %v539, %v637
        %v654 = vadd.f32 %v540, %v642
        %v655 = vadd.f32 %v541, %v645
        %v656 = vld [vmem:[%s208 + $0x1] sm:$0xff]
        %v657 = vld [vmem:[%s208 + $0x11] sm:$0xff]
        %v658 = vld [vmem:[%s208 + $0x21] sm:$0xff]
        %v659 = vld [vmem:[%s208 + $0x31] sm:$0xff]
        %v660 = vld [vmem:[%s208 + $0x41] sm:$0xff]
        %v661 = vld [vmem:[%s208 + $0x51] sm:$0xff]
        %v662 = vld [vmem:[%s208 + $0x61] sm:$0xff]
        %v663 = vld [vmem:[%s208 + $0x71] sm:$0xff]
        %v664 = vpack.c.bf16 %v657, %v656
        %v665 = vpack.c.bf16 %v659, %v658
        %v666 = vpack.c.bf16 %v661, %v660
        %v667 = vpack.c.bf16 %v663, %v662
        %s668 = scalar_lea.vmem [#allocation6], 64
        %v669 = vld [vmem:[%s668] sm:$0xf]
        %v670 = vld [vmem:[%s668 + $0x4] sm:$0xf]
        %v671 = vld [vmem:[%s668 + $0x8] sm:$0xf]
        %v672 = vld [vmem:[%s668 + $0xc] sm:$0xf]
        %v677 = vunpack.c.l.b16 %v669
        %v678 = vunpack.c.l.b16 %v670
        %v679 = vunpack.c.l.b16 %v671
        %v680 = vunpack.c.l.b16 %v672
        %v681 = vpack.c.b16 %v678, %v677
        %v682 = vpack.c.b16 %v680, %v679
        %v686 = vsel %vm178, %v664, 0
        %v689 = vsel %vm178, %v665, 0
        %v692 = vsel %vm178, %v666, 0
        %v695 = vsel %vm178, %v667, 0
        %697 = vmatprep.subr.bf16.mxu0 0
        %698 = vmatpush1.bf16.msra.mxu0 %v681
        %699 = vmatprep.subr.bf16.mxu0 0
        %700 = vmatpush1.bf16.msra.mxu0 %v682
        %701 = vmatprep.subr.bf16.mxu0 0
        %702 = vmatpush1.bf16.msra.mxu0 0
        %703 = vmatprep.subr.bf16.mxu0 0
        %704 = vmatpush1.bf16.msra.mxu0 0
        %705 = vmatprep.subr.bf16.mxu0 0
        %706 = vmatpush1.bf16.msra.mxu0 0
        %707 = vmatprep.subr.bf16.mxu0 0
        %708 = vmatpush1.bf16.msra.mxu0 0
        %709 = vmatprep.subr.bf16.mxu0 0
        %710 = vmatpush1.bf16.msra.mxu0 0
        %711 = vmatprep.subr.bf16.mxu0 0
        %712 = vmatpush1.bf16.msra.mxu0 0
        %713 = vmatprep.subr.bf16.mxu0 0
        %714 = vmatpush1.bf16.msra.mxu0 0
        %715 = vmatprep.subr.bf16.mxu0 0
        %716 = vmatpush1.bf16.msra.mxu0 0
        %717 = vmatprep.subr.bf16.mxu0 0
        %718 = vmatpush1.bf16.msra.mxu0 0
        %719 = vmatprep.subr.bf16.mxu0 0
        %720 = vmatpush1.bf16.msra.mxu0 0
        %721 = vmatprep.subr.bf16.mxu0 0
        %722 = vmatpush1.bf16.msra.mxu0 0
        %723 = vmatprep.subr.bf16.mxu0 0
        %724 = vmatpush1.bf16.msra.mxu0 0
        %725 = vmatprep.subr.bf16.mxu0 0
        %726 = vmatpush1.bf16.msra.mxu0 0
        %727 = vmatprep.subr.bf16.mxu0 0
        %728 = vmatpush1.bf16.msra.mxu0 0
        %729 = vmatprep.mubr.bf16.mxu0 0
        %730 = vmatmul.mubr.bf16.gmra.mrb[0].mxu0 %v686
        %v731 = vpop.f32.mrb[0].mxu0
        %v732 = vadd.f32 0.0, %v731
        %v733 = vpop.f32.mrb[0].mxu0
        %v734 = vpop.f32.mrb[0].mxu0
        %v735 = vadd.f32 0.0, %v734
        %v736 = vpop.f32.mrb[0].mxu0
        %737 = vmatprep.mubr.bf16.mxu0 0
        %738 = vmatmul.mubr.bf16.gmra.mrb[0].mxu0 %v689
        %v739 = vpop.f32.mrb[0].mxu0
        %v740 = vadd.f32 0.0, %v739
        %v741 = vpop.f32.mrb[0].mxu0
        %v742 = vpop.f32.mrb[0].mxu0
        %v743 = vadd.f32 0.0, %v742
        %v744 = vpop.f32.mrb[0].mxu0
        %745 = vmatprep.mubr.bf16.mxu0 0
        %746 = vmatmul.mubr.bf16.gmra.mrb[0].mxu0 %v692
        %v747 = vpop.f32.mrb[0].mxu0
        %v748 = vadd.f32 0.0, %v747
        %v749 = vpop.f32.mrb[0].mxu0
        %v750 = vpop.f32.mrb[0].mxu0
        %v751 = vadd.f32 0.0, %v750
        %v752 = vpop.f32.mrb[0].mxu0
        %753 = vmatprep.mubr.bf16.mxu0 0
        %754 = vmatmul.mubr.bf16.gmra.mrb[0].mxu0 %v695
        %v755 = vpop.f32.mrb[0].mxu0
        %v756 = vadd.f32 0.0, %v755
        %v757 = vpop.f32.mrb[0].mxu0
        %v758 = vpop.f32.mrb[0].mxu0
        %v759 = vadd.f32 0.0, %v758
        %v760 = vpop.f32.mrb[0].mxu0
        %761 = vdwg.mxu0
        %v762 = vadd.f32 %v648, %v732
        %v763 = vadd.f32 %v649, %v735
        %v764 = vadd.f32 %v650, %v740
        %v765 = vadd.f32 %v651, %v743
        %v766 = vadd.f32 %v652, %v748
        %v767 = vadd.f32 %v653, %v751
        %v768 = vadd.f32 %v654, %v756
        %v769 = vadd.f32 %v655, %v759
        %v770 = vld [vmem:[%s208 + $0x2] sm:$0xff]
        %v771 = vld [vmem:[%s208 + $0x12] sm:$0xff]
        %v772 = vld [vmem:[%s208 + $0x22] sm:$0xff]
        %v773 = vld [vmem:[%s208 + $0x32] sm:$0xff]
        %v774 = vld [vmem:[%s208 + $0x42] sm:$0xff]
        %v775 = vld [vmem:[%s208 + $0x52] sm:$0xff]
        %v776 = vld [vmem:[%s208 + $0x62] sm:$0xff]
        %v777 = vld [vmem:[%s208 + $0x72] sm:$0xff]
        %v778 = vpack.c.bf16 %v771, %v770
        %v779 = vpack.c.bf16 %v773, %v772
        %v780 = vpack.c.bf16 %v775, %v774
        %v781 = vpack.c.bf16 %v777, %v776
        %s782 = scalar_lea.vmem [#allocation6], 80
        %v783 = vld [vmem:[%s782] sm:$0xf]
        %v784 = vld [vmem:[%s782 + $0x4] sm:$0xf]
        %v785 = vld [vmem:[%s782 + $0x8] sm:$0xf]
        %v786 = vld [vmem:[%s782 + $0xc] sm:$0xf]
        %v791 = vunpack.c.l.b16 %v783
        %v792 = vunpack.c.l.b16 %v784
        %v793 = vunpack.c.l.b16 %v785
        %v794 = vunpack.c.l.b16 %v786
        %v795 = vpack.c.b16 %v792, %v791
        %v796 = vpack.c.b16 %v794, %v793
        %v800 = vsel %vm178, %v778, 0
        %v803 = vsel %vm178, %v779, 0
        %v806 = vsel %vm178, %v780, 0
        %v809 = vsel %vm178, %v781, 0
        %811 = vmatprep.subr.bf16.mxu0 0
        %812 = vmatpush1.bf16.msra.mxu0 %v795
        %813 = vmatprep.subr.bf16.mxu0 0
        %814 = vmatpush1.bf16.msra.mxu0 %v796
        %815 = vmatprep.subr.bf16.mxu0 0
        %816 = vmatpush1.bf16.msra.mxu0 0
        %817 = vmatprep.subr.bf16.mxu0 0
        %818 = vmatpush1.bf16.msra.mxu0 0
        %819 = vmatprep.subr.bf16.mxu0 0
        %820 = vmatpush1.bf16.msra.mxu0 0
        %821 = vmatprep.subr.bf16.mxu0 0
        %822 = vmatpush1.bf16.msra.mxu0 0
        %823 = vmatprep.subr.bf16.mxu0 0
        %824 = vmatpush1.bf16.msra.mxu0 0
        %825 = vmatprep.subr.bf16.mxu0 0
        %826 = vmatpush1.bf16.msra.mxu0 0
        %827 = vmatprep.subr.bf16.mxu0 0
        %828 = vmatpush1.bf16.msra.mxu0 0
        %829 = vmatprep.subr.bf16.mxu0 0
        %830 = vmatpush1.bf16.msra.mxu0 0
        %831 = vmatprep.subr.bf16.mxu0 0
        %832 = vmatpush1.bf16.msra.mxu0 0
        %833 = vmatprep.subr.bf16.mxu0 0
        %834 = vmatpush1.bf16.msra.mxu0 0
        %835 = vmatprep.subr.bf16.mxu0 0
        %836 = vmatpush1.bf16.msra.mxu0 0
        %837 = vmatprep.subr.bf16.mxu0 0
        %838 = vmatpush1.bf16.msra.mxu0 0
        %839 = vmatprep.subr.bf16.mxu0 0
        %840 = vmatpush1.bf16.msra.mxu0 0
        %841 = vmatprep.subr.bf16.mxu0 0
        %842 = vmatpush1.bf16.msra.mxu0 0
        %843 = vmatprep.mubr.bf16.mxu0 0
        %844 = vmatmul.mubr.bf16.gmra.mrb[0].mxu0 %v800
        %v845 = vpop.f32.mrb[0].mxu0
        %v846 = vadd.f32 0.0, %v845
        %v847 = vpop.f32.mrb[0].mxu0
        %v848 = vpop.f32.mrb[0].mxu0
        %v849 = vadd.f32 0.0, %v848
        %v850 = vpop.f32.mrb[0].mxu0
        %851 = vmatprep.mubr.bf16.mxu0 0
        %852 = vmatmul.mubr.bf16.gmra.mrb[0].mxu0 %v803
        %v853 = vpop.f32.mrb[0].mxu0
        %v854 = vadd.f32 0.0, %v853
        %v855 = vpop.f32.mrb[0].mxu0
        %v856 = vpop.f32.mrb[0].mxu0
        %v857 = vadd.f32 0.0, %v856
        %v858 = vpop.f32.mrb[0].mxu0
        %859 = vmatprep.mubr.bf16.mxu0 0
        %860 = vmatmul.mubr.bf16.gmra.mrb[0].mxu0 %v806
        %v861 = vpop.f32.mrb[0].mxu0
        %v862 = vadd.f32 0.0, %v861
        %v863 = vpop.f32.mrb[0].mxu0
        %v864 = vpop.f32.mrb[0].mxu0
        %v865 = vadd.f32 0.0, %v864
        %v866 = vpop.f32.mrb[0].mxu0
        %867 = vmatprep.mubr.bf16.mxu0 0
        %868 = vmatmul.mubr.bf16.gmra.mrb[0].mxu0 %v809
        %v869 = vpop.f32.mrb[0].mxu0
        %v870 = vadd.f32 0.0, %v869
        %v871 = vpop.f32.mrb[0].mxu0
        %v872 = vpop.f32.mrb[0].mxu0
        %v873 = vadd.f32 0.0, %v872
        %v874 = vpop.f32.mrb[0].mxu0
        %875 = vdwg.mxu0
        %v876 = vadd.f32 %v762, %v846
        %v877 = vadd.f32 %v763, %v849
        %v878 = vadd.f32 %v764, %v854
        %v879 = vadd.f32 %v765, %v857
        %v880 = vadd.f32 %v766, %v862
        %v881 = vadd.f32 %v767, %v865
        %v882 = vadd.f32 %v768, %v870
        %v883 = vadd.f32 %v769, %v873
        %s884 = scalar_lea.vmem [#allocation2], 32
        %v885 = vld [vmem:[%s884] sm:$0xff]
        %v886 = vld [vmem:[%s884 + $0x10] sm:$0xff]
        %v887 = vld [vmem:[%s884 + $0x20] sm:$0xff]
        %v888 = vld [vmem:[%s884 + $0x30] sm:$0xff]
        %v889 = vld [vmem:[%s884 + $0x40] sm:$0xff]
        %v890 = vld [vmem:[%s884 + $0x50] sm:$0xff]
        %v891 = vld [vmem:[%s884 + $0x60] sm:$0xff]
        %v892 = vld [vmem:[%s884 + $0x70] sm:$0xff]
        %v893 = vpack.c.bf16 %v886, %v885
        %v894 = vpack.c.bf16 %v888, %v887
        %v895 = vpack.c.bf16 %v890, %v889
        %v896 = vpack.c.bf16 %v892, %v891
        %s897 = scalar_lea.vmem [#allocation6], 96
        %v898 = vld [vmem:[%s897] sm:$0xf]
        %v899 = vld [vmem:[%s897 + $0x4] sm:$0xf]
        %v900 = vld [vmem:[%s897 + $0x8] sm:$0xf]
        %v901 = vld [vmem:[%s897 + $0xc] sm:$0xf]
        %v906 = vunpack.c.l.b16 %v898
        %v907 = vunpack.c.l.b16 %v899
        %v908 = vunpack.c.l.b16 %v900
        %v909 = vunpack.c.l.b16 %v901
        %v910 = vpack.c.b16 %v907, %v906
        %v911 = vpack.c.b16 %v909, %v908
        %v915 = vsel %vm178, %v893, 0
        %v918 = vsel %vm178, %v894, 0
        %v921 = vsel %vm178, %v895, 0
        %v924 = vsel %vm178, %v896, 0
        %926 = vmatprep.subr.bf16.mxu0 0
        %927 = vmatpush1.bf16.msra.mxu0 %v910
        %928 = vmatprep.subr.bf16.mxu0 0
        %929 = vmatpush1.bf16.msra.mxu0 %v911
        %930 = vmatprep.subr.bf16.mxu0 0
        %931 = vmatpush1.bf16.msra.mxu0 0
        %932 = vmatprep.subr.bf16.mxu0 0
        %933 = vmatpush1.bf16.msra.mxu0 0
        %934 = vmatprep.subr.bf16.mxu0 0
        %935 = vmatpush1.bf16.msra.mxu0 0
        %936 = vmatprep.subr.bf16.mxu0 0
        %937 = vmatpush1.bf16.msra.mxu0 0
        %938 = vmatprep.subr.bf16.mxu0 0
        %939 = vmatpush1.bf16.msra.mxu0 0
        %940 = vmatprep.subr.bf16.mxu0 0
        %941 = vmatpush1.bf16.msra.mxu0 0
        %942 = vmatprep.subr.bf16.mxu0 0
        %943 = vmatpush1.bf16.msra.mxu0 0
        %944 = vmatprep.subr.bf16.mxu0 0
        %945 = vmatpush1.bf16.msra.mxu0 0
        %946 = vmatprep.subr.bf16.mxu0 0
        %947 = vmatpush1.bf16.msra.mxu0 0
        %948 = vmatprep.subr.bf16.mxu0 0
        %949 = vmatpush1.bf16.msra.mxu0 0
        %950 = vmatprep.subr.bf16.mxu0 0
        %951 = vmatpush1.bf16.msra.mxu0 0
        %952 = vmatprep.subr.bf16.mxu0 0
        %953 = vmatpush1.bf16.msra.mxu0 0
        %954 = vmatprep.subr.bf16.mxu0 0
        %955 = vmatpush1.bf16.msra.mxu0 0
        %956 = vmatprep.subr.bf16.mxu0 0
        %957 = vmatpush1.bf16.msra.mxu0 0
        %958 = vmatprep.mubr.bf16.mxu0 0
        %959 = vmatmul.mubr.bf16.gmra.mrb[0].mxu0 %v915
        %v960 = vpop.f32.mrb[0].mxu0
        %v961 = vadd.f32 0.0, %v960
        %v962 = vpop.f32.mrb[0].mxu0
        %v963 = vpop.f32.mrb[0].mxu0
        %v964 = vadd.f32 0.0, %v963
        %v965 = vpop.f32.mrb[0].mxu0
        %966 = vmatprep.mubr.bf16.mxu0 0
        %967 = vmatmul.mubr.bf16.gmra.mrb[0].mxu0 %v918
        %v968 = vpop.f32.mrb[0].mxu0
        %v969 = vadd.f32 0.0, %v968
        %v970 = vpop.f32.mrb[0].mxu0
        %v971 = vpop.f32.mrb[0].mxu0
        %v972 = vadd.f32 0.0, %v971
        %v973 = vpop.f32.mrb[0].mxu0
        %974 = vmatprep.mubr.bf16.mxu0 0
        %975 = vmatmul.mubr.bf16.gmra.mrb[0].mxu0 %v921
        %v976 = vpop.f32.mrb[0].mxu0
        %v977 = vadd.f32 0.0, %v976
        %v978 = vpop.f32.mrb[0].mxu0
        %v979 = vpop.f32.mrb[0].mxu0
        %v980 = vadd.f32 0.0, %v979
        %v981 = vpop.f32.mrb[0].mxu0
        %982 = vmatprep.mubr.bf16.mxu0 0
        %983 = vmatmul.mubr.bf16.gmra.mrb[0].mxu0 %v924
        %v984 = vpop.f32.mrb[0].mxu0
        %v985 = vadd.f32 0.0, %v984
        %v986 = vpop.f32.mrb[0].mxu0
        %v987 = vpop.f32.mrb[0].mxu0
        %v988 = vadd.f32 0.0, %v987
        %v989 = vpop.f32.mrb[0].mxu0
        %990 = vdwg.mxu0
        %v991 = vadd.f32 %v876, %v961
        %v992 = vadd.f32 %v877, %v964
        %v993 = vadd.f32 %v878, %v969
        %v994 = vadd.f32 %v879, %v972
        %v995 = vadd.f32 %v880, %v977
        %v996 = vadd.f32 %v881, %v980
        %v997 = vadd.f32 %v882, %v985
        %v998 = vadd.f32 %v883, %v988
        %v999 = vld [vmem:[%s884 + $0x1] sm:$0xff]
        %v1000 = vld [vmem:[%s884 + $0x11] sm:$0xff]
        %v1001 = vld [vmem:[%s884 + $0x21] sm:$0xff]
        %v1002 = vld [vmem:[%s884 + $0x31] sm:$0xff]
        %v1003 = vld [vmem:[%s884 + $0x41] sm:$0xff]
        %v1004 = vld [vmem:[%s884 + $0x51] sm:$0xff]
        %v1005 = vld [vmem:[%s884 + $0x61] sm:$0xff]
        %v1006 = vld [vmem:[%s884 + $0x71] sm:$0xff]
        %v1007 = vpack.c.bf16 %v1000, %v999
        %v1008 = vpack.c.bf16 %v1002, %v1001
        %v1009 = vpack.c.bf16 %v1004, %v1003
        %v1010 = vpack.c.bf16 %v1006, %v1005
        %s1011 = scalar_lea.vmem [#allocation6], 112
        %v1012 = vld [vmem:[%s1011] sm:$0xf]
        %v1013 = vld [vmem:[%s1011 + $0x4] sm:$0xf]
        %v1014 = vld [vmem:[%s1011 + $0x8] sm:$0xf]
        %v1015 = vld [vmem:[%s1011 + $0xc] sm:$0xf]
        %v1020 = vunpack.c.l.b16 %v1012
        %v1021 = vunpack.c.l.b16 %v1013
        %v1022 = vunpack.c.l.b16 %v1014
        %v1023 = vunpack.c.l.b16 %v1015
        %v1024 = vpack.c.b16 %v1021, %v1020
        %v1025 = vpack.c.b16 %v1023, %v1022
        %v1029 = vsel %vm178, %v1007, 0
        %v1032 = vsel %vm178, %v1008, 0
        %v1035 = vsel %vm178, %v1009, 0
        %v1038 = vsel %vm178, %v1010, 0
        %1040 = vmatprep.subr.bf16.mxu0 0
        %1041 = vmatpush1.bf16.msra.mxu0 %v1024
        %1042 = vmatprep.subr.bf16.mxu0 0
        %1043 = vmatpush1.bf16.msra.mxu0 %v1025
        %1044 = vmatprep.subr.bf16.mxu0 0
        %1045 = vmatpush1.bf16.msra.mxu0 0
        %1046 = vmatprep.subr.bf16.mxu0 0
        %1047 = vmatpush1.bf16.msra.mxu0 0
        %1048 = vmatprep.subr.bf16.mxu0 0
        %1049 = vmatpush1.bf16.msra.mxu0 0
        %1050 = vmatprep.subr.bf16.mxu0 0
        %1051 = vmatpush1.bf16.msra.mxu0 0
        %1052 = vmatprep.subr.bf16.mxu0 0
        %1053 = vmatpush1.bf16.msra.mxu0 0
        %1054 = vmatprep.subr.bf16.mxu0 0
        %1055 = vmatpush1.bf16.msra.mxu0 0
        %1056 = vmatprep.subr.bf16.mxu0 0
        %1057 = vmatpush1.bf16.msra.mxu0 0
        %1058 = vmatprep.subr.bf16.mxu0 0
        %1059 = vmatpush1.bf16.msra.mxu0 0
        %1060 = vmatprep.subr.bf16.mxu0 0
        %1061 = vmatpush1.bf16.msra.mxu0 0
        %1062 = vmatprep.subr.bf16.mxu0 0
        %1063 = vmatpush1.bf16.msra.mxu0 0
        %1064 = vmatprep.subr.bf16.mxu0 0
        %1065 = vmatpush1.bf16.msra.mxu0 0
        %1066 = vmatprep.subr.bf16.mxu0 0
        %1067 = vmatpush1.bf16.msra.mxu0 0
        %1068 = vmatprep.subr.bf16.mxu0 0
        %1069 = vmatpush1.bf16.msra.mxu0 0
        %1070 = vmatprep.subr.bf16.mxu0 0
        %1071 = vmatpush1.bf16.msra.mxu0 0
        %1072 = vmatprep.mubr.bf16.mxu0 0
        %1073 = vmatmul.mubr.bf16.gmra.mrb[0].mxu0 %v1029
        %v1074 = vpop.f32.mrb[0].mxu0
        %v1075 = vadd.f32 0.0, %v1074
        %v1076 = vpop.f32.mrb[0].mxu0
        %v1077 = vpop.f32.mrb[0].mxu0
        %v1078 = vadd.f32 0.0, %v1077
        %v1079 = vpop.f32.mrb[0].mxu0
        %1080 = vmatprep.mubr.bf16.mxu0 0
        %1081 = vmatmul.mubr.bf16.gmra.mrb[0].mxu0 %v1032
        %v1082 = vpop.f32.mrb[0].mxu0
        %v1083 = vadd.f32 0.0, %v1082
        %v1084 = vpop.f32.mrb[0].mxu0
        %v1085 = vpop.f32.mrb[0].mxu0
        %v1086 = vadd.f32 0.0, %v1085
        %v1087 = vpop.f32.mrb[0].mxu0
        %1088 = vmatprep.mubr.bf16.mxu0 0
        %1089 = vmatmul.mubr.bf16.gmra.mrb[0].mxu0 %v1035
        %v1090 = vpop.f32.mrb[0].mxu0
        %v1091 = vadd.f32 0.0, %v1090
        %v1092 = vpop.f32.mrb[0].mxu0
        %v1093 = vpop.f32.mrb[0].mxu0
        %v1094 = vadd.f32 0.0, %v1093
        %v1095 = vpop.f32.mrb[0].mxu0
        %1096 = vmatprep.mubr.bf16.mxu0 0
        %1097 = vmatmul.mubr.bf16.gmra.mrb[0].mxu0 %v1038
        %v1098 = vpop.f32.mrb[0].mxu0
        %v1099 = vadd.f32 0.0, %v1098
        %v1100 = vpop.f32.mrb[0].mxu0
        %v1101 = vpop.f32.mrb[0].mxu0
        %v1102 = vadd.f32 0.0, %v1101
        %v1103 = vpop.f32.mrb[0].mxu0
        %1104 = vdwg.mxu0
        %v1105 = vadd.f32 %v991, %v1075
        %v1106 = vadd.f32 %v992, %v1078
        %v1107 = vadd.f32 %v993, %v1083
        %v1108 = vadd.f32 %v994, %v1086
        %v1109 = vadd.f32 %v995, %v1091
        %v1110 = vadd.f32 %v996, %v1094
        %v1111 = vadd.f32 %v997, %v1099
        %v1112 = vadd.f32 %v998, %v1102
        %v1113 = vld [vmem:[%s884 + $0x2] sm:$0xff]
        %v1114 = vld [vmem:[%s884 + $0x12] sm:$0xff]
        %v1115 = vld [vmem:[%s884 + $0x22] sm:$0xff]
        %v1116 = vld [vmem:[%s884 + $0x32] sm:$0xff]
        %v1117 = vld [vmem:[%s884 + $0x42] sm:$0xff]
        %v1118 = vld [vmem:[%s884 + $0x52] sm:$0xff]
        %v1119 = vld [vmem:[%s884 + $0x62] sm:$0xff]
        %v1120 = vld [vmem:[%s884 + $0x72] sm:$0xff]
        %v1121 = vpack.c.bf16 %v1114, %v1113
        %v1122 = vpack.c.bf16 %v1116, %v1115
        %v1123 = vpack.c.bf16 %v1118, %v1117
        %v1124 = vpack.c.bf16 %v1120, %v1119
        %s1125 = scalar_lea.vmem [#allocation6], 128
        %v1126 = vld [vmem:[%s1125] sm:$0xf]
        %v1127 = vld [vmem:[%s1125 + $0x4] sm:$0xf]
        %v1128 = vld [vmem:[%s1125 + $0x8] sm:$0xf]
        %v1129 = vld [vmem:[%s1125 + $0xc] sm:$0xf]
        %v1134 = vunpack.c.l.b16 %v1126
        %v1135 = vunpack.c.l.b16 %v1127
        %v1136 = vunpack.c.l.b16 %v1128
        %v1137 = vunpack.c.l.b16 %v1129
        %v1138 = vpack.c.b16 %v1135, %v1134
        %v1139 = vpack.c.b16 %v1137, %v1136
        %v1143 = vsel %vm178, %v1121, 0
        %v1146 = vsel %vm178, %v1122, 0
        %v1149 = vsel %vm178, %v1123, 0
        %v1152 = vsel %vm178, %v1124, 0
        %1154 = vmatprep.subr.bf16.mxu0 0
        %1155 = vmatpush1.bf16.msra.mxu0 %v1138
        %1156 = vmatprep.subr.bf16.mxu0 0
        %1157 = vmatpush1.bf16.msra.mxu0 %v1139
        %1158 = vmatprep.subr.bf16.mxu0 0
        %1159 = vmatpush1.bf16.msra.mxu0 0
        %1160 = vmatprep.subr.bf16.mxu0 0
        %1161 = vmatpush1.bf16.msra.mxu0 0
        %1162 = vmatprep.subr.bf16.mxu0 0
        %1163 = vmatpush1.bf16.msra.mxu0 0
        %1164 = vmatprep.subr.bf16.mxu0 0
        %1165 = vmatpush1.bf16.msra.mxu0 0
        %1166 = vmatprep.subr.bf16.mxu0 0
        %1167 = vmatpush1.bf16.msra.mxu0 0
        %1168 = vmatprep.subr.bf16.mxu0 0
        %1169 = vmatpush1.bf16.msra.mxu0 0
        %1170 = vmatprep.subr.bf16.mxu0 0
        %1171 = vmatpush1.bf16.msra.mxu0 0
        %1172 = vmatprep.subr.bf16.mxu0 0
        %1173 = vmatpush1.bf16.msra.mxu0 0
        %1174 = vmatprep.subr.bf16.mxu0 0
        %1175 = vmatpush1.bf16.msra.mxu0 0
        %1176 = vmatprep.subr.bf16.mxu0 0
        %1177 = vmatpush1.bf16.msra.mxu0 0
        %1178 = vmatprep.subr.bf16.mxu0 0
        %1179 = vmatpush1.bf16.msra.mxu0 0
        %1180 = vmatprep.subr.bf16.mxu0 0
        %1181 = vmatpush1.bf16.msra.mxu0 0
        %1182 = vmatprep.subr.bf16.mxu0 0
        %1183 = vmatpush1.bf16.msra.mxu0 0
        %1184 = vmatprep.subr.bf16.mxu0 0
        %1185 = vmatpush1.bf16.msra.mxu0 0
        %1186 = vmatprep.mubr.bf16.mxu0 0
        %1187 = vmatmul.mubr.bf16.gmra.mrb[0].mxu0 %v1143
        %v1188 = vpop.f32.mrb[0].mxu0
        %v1189 = vadd.f32 0.0, %v1188
        %v1190 = vpop.f32.mrb[0].mxu0
        %v1191 = vpop.f32.mrb[0].mxu0
        %v1192 = vadd.f32 0.0, %v1191
        %v1193 = vpop.f32.mrb[0].mxu0
        %1194 = vmatprep.mubr.bf16.mxu0 0
        %1195 = vmatmul.mubr.bf16.gmra.mrb[0].mxu0 %v1146
        %v1196 = vpop.f32.mrb[0].mxu0
        %v1197 = vadd.f32 0.0, %v1196
        %v1198 = vpop.f32.mrb[0].mxu0
        %v1199 = vpop.f32.mrb[0].mxu0
        %v1200 = vadd.f32 0.0, %v1199
        %v1201 = vpop.f32.mrb[0].mxu0
        %1202 = vmatprep.mubr.bf16.mxu0 0
        %1203 = vmatmul.mubr.bf16.gmra.mrb[0].mxu0 %v1149
        %v1204 = vpop.f32.mrb[0].mxu0
        %v1205 = vadd.f32 0.0, %v1204
        %v1206 = vpop.f32.mrb[0].mxu0
        %v1207 = vpop.f32.mrb[0].mxu0
        %v1208 = vadd.f32 0.0, %v1207
        %v1209 = vpop.f32.mrb[0].mxu0
        %1210 = vmatprep.mubr.bf16.mxu0 0
        %1211 = vmatmul.mubr.bf16.gmra.mrb[0].mxu0 %v1152
        %v1212 = vpop.f32.mrb[0].mxu0
        %v1213 = vadd.f32 0.0, %v1212
        %v1214 = vpop.f32.mrb[0].mxu0
        %v1215 = vpop.f32.mrb[0].mxu0
        %v1216 = vadd.f32 0.0, %v1215
        %v1217 = vpop.f32.mrb[0].mxu0
        %1218 = vdwg.mxu0
        %v1219 = vadd.f32 %v1105, %v1189
        %v1220 = vadd.f32 %v1106, %v1192
        %v1221 = vadd.f32 %v1107, %v1197
        %v1222 = vadd.f32 %v1108, %v1200
        %v1223 = vadd.f32 %v1109, %v1205
        %v1224 = vadd.f32 %v1110, %v1208
        %v1225 = vadd.f32 %v1111, %v1213
        %v1226 = vadd.f32 %v1112, %v1216
        %v1227 = vsel %vm178, %v1219, 0.0
        %v1228 = vsel %vm178, %v1220, 0.0
        %v1229 = vadd.f32 %v1227, %v1228
        %v1230 = vsel %vm178, %v1221, 0.0
        %v1231 = vadd.f32 %v1229, %v1230
        %v1232 = vsel %vm178, %v1222, 0.0
        %v1233 = vadd.f32 %v1231, %v1232
        %v1234 = vsel %vm178, %v1223, 0.0
        %v1235 = vadd.f32 %v1233, %v1234
        %v1236 = vsel %vm178, %v1224, 0.0
        %v1237 = vadd.f32 %v1235, %v1236
        %v1238 = vsel %vm178, %v1225, 0.0
        %v1239 = vadd.f32 %v1237, %v1238
        %v1240 = vsel %vm178, %v1226, 0.0
        %v1241 = vadd.f32 %v1239, %v1240
        %v1242 = vrot.slane %v1241, 4
        %v1243 = vadd.f32 %v1241, %v1242
        %v1244 = vrot.slane %v1243, 2
        %v1245 = vadd.f32 %v1243, %v1244
        %v1246 = vrot.slane %v1245, 1
        %v1247 = vadd.f32 %v1245, %v1246
        %v1248 = vmul.f32 %v1247, 0.015625
        %v1249 = vmul.f32 %v1219, %v1219
        %v1250 = vmul.f32 %v1220, %v1220
        %v1251 = vmul.f32 %v1221, %v1221
        %v1252 = vmul.f32 %v1222, %v1222
        %v1253 = vmul.f32 %v1223, %v1223
        %v1254 = vmul.f32 %v1224, %v1224
        %v1255 = vmul.f32 %v1225, %v1225
        %v1256 = vmul.f32 %v1226, %v1226
        %v1257 = vsel %vm178, %v1249, 0.0
        %v1258 = vsel %vm178, %v1250, 0.0
        %v1259 = vadd.f32 %v1257, %v1258
        %v1260 = vsel %vm178, %v1251, 0.0
        %v1261 = vadd.f32 %v1259, %v1260
        %v1262 = vsel %vm178, %v1252, 0.0
        %v1263 = vadd.f32 %v1261, %v1262
        %v1264 = vsel %vm178, %v1253, 0.0
        %v1265 = vadd.f32 %v1263, %v1264
        %v1266 = vsel %vm178, %v1254, 0.0
        %v1267 = vadd.f32 %v1265, %v1266
        %v1268 = vsel %vm178, %v1255, 0.0
        %v1269 = vadd.f32 %v1267, %v1268
        %v1270 = vsel %vm178, %v1256, 0.0
        %v1271 = vadd.f32 %v1269, %v1270
        %v1272 = vrot.slane %v1271, 4
        %v1273 = vadd.f32 %v1271, %v1272
        %v1274 = vrot.slane %v1273, 2
        %v1275 = vadd.f32 %v1273, %v1274
        %v1276 = vrot.slane %v1275, 1
        %v1277 = vadd.f32 %v1275, %v1276
        %v1278 = vmul.f32 %v1277, 0.015625
        %v1279 = vmul.f32 %v1248, %v1248
        %v1280 = vsub.f32 %v1278, %v1279
        %v1281 = vmax.f32 %v1280, 0.0
        %v1282 = vsub.f32 %v1219, %v1248
        %v1283 = vsub.f32 %v1220, %v1248
        %v1284 = vsub.f32 %v1221, %v1248
        %v1285 = vsub.f32 %v1222, %v1248
        %v1286 = vsub.f32 %v1223, %v1248
        %v1287 = vsub.f32 %v1224, %v1248
        %v1288 = vsub.f32 %v1225, %v1248
        %v1289 = vsub.f32 %v1226, %v1248
        %v1290 = vadd.f32 %v1281, 1e-05
        %v1291 = vrsqrt.pop %v1290
        %v1292 = vmul.f32 %v1282, %v1291
        %v1293 = vmul.f32 %v1283, %v1291
        %v1294 = vmul.f32 %v1284, %v1291
        %v1295 = vmul.f32 %v1285, %v1291
        %v1296 = vmul.f32 %v1286, %v1291
        %v1297 = vmul.f32 %v1287, %v1291
        %v1298 = vmul.f32 %v1288, %v1291
        %v1299 = vmul.f32 %v1289, %v1291
        %v1300 = vmax.f32 %v1292, 0.0
        %v1301 = vmax.f32 %v1293, 0.0
        %v1302 = vmax.f32 %v1294, 0.0
        %v1303 = vmax.f32 %v1295, 0.0
        %v1304 = vmax.f32 %v1296, 0.0
        %v1305 = vmax.f32 %v1297, 0.0
        %v1306 = vmax.f32 %v1298, 0.0
        %v1307 = vmax.f32 %v1299, 0.0
        %1308 = vst.msk [vmem:[%s208 + $0x1] sm:$0xff] %vm178, %v1300
        %1309 = vst.msk [vmem:[%s208 + $0x11] sm:$0xff] %vm178, %v1301
        %1310 = vst.msk [vmem:[%s208 + $0x21] sm:$0xff] %vm178, %v1302
        %1311 = vst.msk [vmem:[%s208 + $0x31] sm:$0xff] %vm178, %v1303
        %1312 = vst.msk [vmem:[%s208 + $0x41] sm:$0xff] %vm178, %v1304
        %1313 = vst.msk [vmem:[%s208 + $0x51] sm:$0xff] %vm178, %v1305
        %1314 = vst.msk [vmem:[%s208 + $0x61] sm:$0xff] %vm178, %v1306
        %1315 = vst.msk [vmem:[%s208 + $0x71] sm:$0xff] %vm178, %v1307
        %v1316 = vld [vmem:[#allocation2] sm:$0xff]
        %v1317 = vld [vmem:[#allocation2 + $0x10] sm:$0xff]
        %v1318 = vld [vmem:[#allocation2 + $0x20] sm:$0xff]
        %v1319 = vld [vmem:[#allocation2 + $0x30] sm:$0xff]
        %v1320 = vld [vmem:[#allocation2 + $0x40] sm:$0xff]
        %v1321 = vld [vmem:[#allocation2 + $0x50] sm:$0xff]
        %v1322 = vld [vmem:[#allocation2 + $0x60] sm:$0xff]
        %v1323 = vld [vmem:[#allocation2 + $0x70] sm:$0xff]
        %v1324 = vpack.c.bf16 %v1317, %v1316
        %v1325 = vpack.c.bf16 %v1319, %v1318
        %v1326 = vpack.c.bf16 %v1321, %v1320
        %v1327 = vpack.c.bf16 %v1323, %v1322
        %s1328 = scalar_lea.vmem [#allocation6], 144
        %v1329 = vld [vmem:[%s1328] sm:$0xf]
        %v1330 = vld [vmem:[%s1328 + $0x4] sm:$0xf]
        %v1331 = vld [vmem:[%s1328 + $0x8] sm:$0xf]
        %v1332 = vld [vmem:[%s1328 + $0xc] sm:$0xf]
        %v1333 = vld [vmem:[#allocation2 + $0x1] sm:$0xff]
        %v1334 = vld [vmem:[#allocation2 + $0x11] sm:$0xff]
        %v1335 = vld [vmem:[#allocation2 + $0x21] sm:$0xff]
        %v1336 = vld [vmem:[#allocation2 + $0x31] sm:$0xff]
        %v1337 = vld [vmem:[#allocation2 + $0x41] sm:$0xff]
        %v1338 = vld [vmem:[#allocation2 + $0x51] sm:$0xff]
        %v1339 = vld [vmem:[#allocation2 + $0x61] sm:$0xff]
        %v1340 = vld [vmem:[#allocation2 + $0x71] sm:$0xff]
        %v1341 = vpack.c.bf16 %v1334, %v1333
        %v1342 = vpack.c.bf16 %v1336, %v1335
        %v1343 = vpack.c.bf16 %v1338, %v1337
        %v1344 = vpack.c.bf16 %v1340, %v1339
        %s1345 = scalar_lea.vmem [#allocation6], 160
        %v1346 = vld [vmem:[%s1345] sm:$0xf]
        %v1347 = vld [vmem:[%s1345 + $0x4] sm:$0xf]
        %v1348 = vld [vmem:[%s1345 + $0x8] sm:$0xf]
        %v1349 = vld [vmem:[%s1345 + $0xc] sm:$0xf]
        %v1354 = vunpack.c.l.b16 %v1346
        %v1355 = vunpack.c.l.b16 %v1347
        %v1356 = vunpack.c.l.b16 %v1348
        %v1357 = vunpack.c.l.b16 %v1349
        %v1358 = vpack.c.b16 %v1355, %v1354
        %v1359 = vpack.c.b16 %v1357, %v1356
        %v1363 = vsel %vm178, %v1341, 0
        %v1366 = vsel %vm178, %v1342, 0
        %v1369 = vsel %vm178, %v1343, 0
        %v1372 = vsel %vm178, %v1344, 0
        %1374 = vmatprep.subr.bf16.mxu0 0
        %1375 = vmatpush1.bf16.msra.mxu0 %v1358
        %1376 = vmatprep.subr.bf16.mxu0 0
        %1377 = vmatpush1.bf16.msra.mxu0 %v1359
        %1378 = vmatprep.subr.bf16.mxu0 0
        %1379 = vmatpush1.bf16.msra.mxu0 0
        %1380 = vmatprep.subr.bf16.mxu0 0
        %1381 = vmatpush1.bf16.msra.mxu0 0
        %1382 = vmatprep.subr.bf16.mxu0 0
        %1383 = vmatpush1.bf16.msra.mxu0 0
        %1384 = vmatprep.subr.bf16.mxu0 0
        %1385 = vmatpush1.bf16.msra.mxu0 0
        %1386 = vmatprep.subr.bf16.mxu0 0
        %1387 = vmatpush1.bf16.msra.mxu0 0
        %1388 = vmatprep.subr.bf16.mxu0 0
        %1389 = vmatpush1.bf16.msra.mxu0 0
        %1390 = vmatprep.subr.bf16.mxu0 0
        %1391 = vmatpush1.bf16.msra.mxu0 0
        %1392 = vmatprep.subr.bf16.mxu0 0
        %1393 = vmatpush1.bf16.msra.mxu0 0
        %1394 = vmatprep.subr.bf16.mxu0 0
        %1395 = vmatpush1.bf16.msra.mxu0 0
        %1396 = vmatprep.subr.bf16.mxu0 0
        %1397 = vmatpush1.bf16.msra.mxu0 0
        %1398 = vmatprep.subr.bf16.mxu0 0
        %1399 = vmatpush1.bf16.msra.mxu0 0
        %1400 = vmatprep.subr.bf16.mxu0 0
        %1401 = vmatpush1.bf16.msra.mxu0 0
        %1402 = vmatprep.subr.bf16.mxu0 0
        %1403 = vmatpush1.bf16.msra.mxu0 0
        %1404 = vmatprep.subr.bf16.mxu0 0
        %1405 = vmatpush1.bf16.msra.mxu0 0
        %1406 = vmatprep.mubr.bf16.mxu0 0
        %1407 = vmatmul.mubr.bf16.gmra.mrb[0].mxu0 %v1363
        %v1408 = vpop.f32.mrb[0].mxu0
        %v1409 = vadd.f32 0.0, %v1408
        %v1410 = vpop.f32.mrb[0].mxu0
        %v1411 = vpop.f32.mrb[0].mxu0
        %v1412 = vadd.f32 0.0, %v1411
        %v1413 = vpop.f32.mrb[0].mxu0
        %1414 = vmatprep.mubr.bf16.mxu0 0
        %1415 = vmatmul.mubr.bf16.gmra.mrb[0].mxu0 %v1366
        %v1416 = vpop.f32.mrb[0].mxu0
        %v1417 = vadd.f32 0.0, %v1416
        %v1418 = vpop.f32.mrb[0].mxu0
        %v1419 = vpop.f32.mrb[0].mxu0
        %v1420 = vadd.f32 0.0, %v1419
        %v1421 = vpop.f32.mrb[0].mxu0
        %1422 = vmatprep.mubr.bf16.mxu0 0
        %1423 = vmatmul.mubr.bf16.gmra.mrb[0].mxu0 %v1369
        %v1424 = vpop.f32.mrb[0].mxu0
        %v1425 = vadd.f32 0.0, %v1424
        %v1426 = vpop.f32.mrb[0].mxu0
        %v1427 = vpop.f32.mrb[0].mxu0
        %v1428 = vadd.f32 0.0, %v1427
        %v1429 = vpop.f32.mrb[0].mxu0
        %1430 = vmatprep.mubr.bf16.mxu0 0
        %1431 = vmatmul.mubr.bf16.gmra.mrb[0].mxu0 %v1372
        %v1432 = vpop.f32.mrb[0].mxu0
        %v1433 = vadd.f32 0.0, %v1432
        %v1434 = vpop.f32.mrb[0].mxu0
        %v1435 = vpop.f32.mrb[0].mxu0
        %v1436 = vadd.f32 0.0, %v1435
        %v1437 = vpop.f32.mrb[0].mxu0
        %1438 = vdwg.mxu0
        %v1443 = vunpack.c.l.b16 %v1329
        %v1444 = vunpack.c.l.b16 %v1330
        %v1445 = vunpack.c.l.b16 %v1331
        %v1446 = vunpack.c.l.b16 %v1332
        %v1447 = vpack.c.b16 %v1444, %v1443
        %v1448 = vpack.c.b16 %v1446, %v1445
        %v1452 = vsel %vm178, %v1324, 0
        %v1455 = vsel %vm178, %v1325, 0
        %v1458 = vsel %vm178, %v1326, 0
        %v1461 = vsel %vm178, %v1327, 0
        %1463 = vmatprep.subr.bf16.mxu0 0
        %1464 = vmatpush1.bf16.msra.mxu0 %v1447
        %1465 = vmatprep.subr.bf16.mxu0 0
        %1466 = vmatpush1.bf16.msra.mxu0 %v1448
        %1467 = vmatprep.subr.bf16.mxu0 0
        %1468 = vmatpush1.bf16.msra.mxu0 0
        %1469 = vmatprep.subr.bf16.mxu0 0
        %1470 = vmatpush1.bf16.msra.mxu0 0
        %1471 = vmatprep.subr.bf16.mxu0 0
        %1472 = vmatpush1.bf16.msra.mxu0 0
        %1473 = vmatprep.subr.bf16.mxu0 0
        %1474 = vmatpush1.bf16.msra.mxu0 0
        %1475 = vmatprep.subr.bf16.mxu0 0
        %1476 = vmatpush1.bf16.msra.mxu0 0
        %1477 = vmatprep.subr.bf16.mxu0 0
        %1478 = vmatpush1.bf16.msra.mxu0 0
        %1479 = vmatprep.subr.bf16.mxu0 0
        %1480 = vmatpush1.bf16.msra.mxu0 0
        %1481 = vmatprep.subr.bf16.mxu0 0
        %1482 = vmatpush1.bf16.msra.mxu0 0
        %1483 = vmatprep.subr.bf16.mxu0 0
        %1484 = vmatpush1.bf16.msra.mxu0 0
        %1485 = vmatprep.subr.bf16.mxu0 0
        %1486 = vmatpush1.bf16.msra.mxu0 0
        %1487 = vmatprep.subr.bf16.mxu0 0
        %1488 = vmatpush1.bf16.msra.mxu0 0
        %1489 = vmatprep.subr.bf16.mxu0 0
        %1490 = vmatpush1.bf16.msra.mxu0 0
        %1491 = vmatprep.subr.bf16.mxu0 0
        %1492 = vmatpush1.bf16.msra.mxu0 0
        %1493 = vmatprep.subr.bf16.mxu0 0
        %1494 = vmatpush1.bf16.msra.mxu0 0
        %1495 = vmatprep.mubr.bf16.mxu0 0
        %1496 = vmatmul.mubr.bf16.gmra.mrb[0].mxu0 %v1452
        %v1497 = vpop.f32.mrb[0].mxu0
        %v1498 = vadd.f32 %v1409, %v1497
        %v1499 = vpop.f32.mrb[0].mxu0
        %v1500 = vpop.f32.mrb[0].mxu0
        %v1501 = vadd.f32 %v1412, %v1500
        %v1502 = vpop.f32.mrb[0].mxu0
        %1503 = vmatprep.mubr.bf16.mxu0 0
        %1504 = vmatmul.mubr.bf16.gmra.mrb[0].mxu0 %v1455
        %v1505 = vpop.f32.mrb[0].mxu0
        %v1506 = vadd.f32 %v1417, %v1505
        %v1507 = vpop.f32.mrb[0].mxu0
        %v1508 = vpop.f32.mrb[0].mxu0
        %v1509 = vadd.f32 %v1420, %v1508
        %v1510 = vpop.f32.mrb[0].mxu0
        %1511 = vmatprep.mubr.bf16.mxu0 0
        %1512 = vmatmul.mubr.bf16.gmra.mrb[0].mxu0 %v1458
        %v1513 = vpop.f32.mrb[0].mxu0
        %v1514 = vadd.f32 %v1425, %v1513
        %v1515 = vpop.f32.mrb[0].mxu0
        %v1516 = vpop.f32.mrb[0].mxu0
        %v1517 = vadd.f32 %v1428, %v1516
        %v1518 = vpop.f32.mrb[0].mxu0
        %1519 = vmatprep.mubr.bf16.mxu0 0
        %1520 = vmatmul.mubr.bf16.gmra.mrb[0].mxu0 %v1461
        %v1521 = vpop.f32.mrb[0].mxu0
        %v1522 = vadd.f32 %v1433, %v1521
        %v1523 = vpop.f32.mrb[0].mxu0
        %v1524 = vpop.f32.mrb[0].mxu0
        %v1525 = vadd.f32 %v1436, %v1524
        %v1526 = vpop.f32.mrb[0].mxu0
        %1527 = vdwg.mxu0
        %v1528 = vld [vmem:[#allocation2 + $0x2] sm:$0xff]
        %v1529 = vld [vmem:[#allocation2 + $0x12] sm:$0xff]
        %v1530 = vld [vmem:[#allocation2 + $0x22] sm:$0xff]
        %v1531 = vld [vmem:[#allocation2 + $0x32] sm:$0xff]
        %v1532 = vld [vmem:[#allocation2 + $0x42] sm:$0xff]
        %v1533 = vld [vmem:[#allocation2 + $0x52] sm:$0xff]
        %v1534 = vld [vmem:[#allocation2 + $0x62] sm:$0xff]
        %v1535 = vld [vmem:[#allocation2 + $0x72] sm:$0xff]
        %v1536 = vpack.c.bf16 %v1529, %v1528
        %v1537 = vpack.c.bf16 %v1531, %v1530
        %v1538 = vpack.c.bf16 %v1533, %v1532
        %v1539 = vpack.c.bf16 %v1535, %v1534
        %s1540 = scalar_lea.vmem [#allocation6], 176
        %v1541 = vld [vmem:[%s1540] sm:$0xf]
        %v1542 = vld [vmem:[%s1540 + $0x4] sm:$0xf]
        %v1543 = vld [vmem:[%s1540 + $0x8] sm:$0xf]
        %v1544 = vld [vmem:[%s1540 + $0xc] sm:$0xf]
        %v1549 = vunpack.c.l.b16 %v1541
        %v1550 = vunpack.c.l.b16 %v1542
        %v1551 = vunpack.c.l.b16 %v1543
        %v1552 = vunpack.c.l.b16 %v1544
        %v1553 = vpack.c.b16 %v1550, %v1549
        %v1554 = vpack.c.b16 %v1552, %v1551
        %v1558 = vsel %vm178, %v1536, 0
        %v1561 = vsel %vm178, %v1537, 0
        %v1564 = vsel %vm178, %v1538, 0
        %v1567 = vsel %vm178, %v1539, 0
        %1569 = vmatprep.subr.bf16.mxu0 0
        %1570 = vmatpush1.bf16.msra.mxu0 %v1553
        %1571 = vmatprep.subr.bf16.mxu0 0
        %1572 = vmatpush1.bf16.msra.mxu0 %v1554
        %1573 = vmatprep.subr.bf16.mxu0 0
        %1574 = vmatpush1.bf16.msra.mxu0 0
        %1575 = vmatprep.subr.bf16.mxu0 0
        %1576 = vmatpush1.bf16.msra.mxu0 0
        %1577 = vmatprep.subr.bf16.mxu0 0
        %1578 = vmatpush1.bf16.msra.mxu0 0
        %1579 = vmatprep.subr.bf16.mxu0 0
        %1580 = vmatpush1.bf16.msra.mxu0 0
        %1581 = vmatprep.subr.bf16.mxu0 0
        %1582 = vmatpush1.bf16.msra.mxu0 0
        %1583 = vmatprep.subr.bf16.mxu0 0
        %1584 = vmatpush1.bf16.msra.mxu0 0
        %1585 = vmatprep.subr.bf16.mxu0 0
        %1586 = vmatpush1.bf16.msra.mxu0 0
        %1587 = vmatprep.subr.bf16.mxu0 0
        %1588 = vmatpush1.bf16.msra.mxu0 0
        %1589 = vmatprep.subr.bf16.mxu0 0
        %1590 = vmatpush1.bf16.msra.mxu0 0
        %1591 = vmatprep.subr.bf16.mxu0 0
        %1592 = vmatpush1.bf16.msra.mxu0 0
        %1593 = vmatprep.subr.bf16.mxu0 0
        %1594 = vmatpush1.bf16.msra.mxu0 0
        %1595 = vmatprep.subr.bf16.mxu0 0
        %1596 = vmatpush1.bf16.msra.mxu0 0
        %1597 = vmatprep.subr.bf16.mxu0 0
        %1598 = vmatpush1.bf16.msra.mxu0 0
        %1599 = vmatprep.subr.bf16.mxu0 0
        %1600 = vmatpush1.bf16.msra.mxu0 0
        %1601 = vmatprep.mubr.bf16.mxu0 0
        %1602 = vmatmul.mubr.bf16.gmra.mrb[0].mxu0 %v1558
        %v1603 = vpop.f32.mrb[0].mxu0
        %v1604 = vadd.f32 0.0, %v1603
        %v1605 = vpop.f32.mrb[0].mxu0
        %v1606 = vpop.f32.mrb[0].mxu0
        %v1607 = vadd.f32 0.0, %v1606
        %v1608 = vpop.f32.mrb[0].mxu0
        %1609 = vmatprep.mubr.bf16.mxu0 0
        %1610 = vmatmul.mubr.bf16.gmra.mrb[0].mxu0 %v1561
        %v1611 = vpop.f32.mrb[0].mxu0
        %v1612 = vadd.f32 0.0, %v1611
        %v1613 = vpop.f32.mrb[0].mxu0
        %v1614 = vpop.f32.mrb[0].mxu0
        %v1615 = vadd.f32 0.0, %v1614
        %v1616 = vpop.f32.mrb[0].mxu0
        %1617 = vmatprep.mubr.bf16.mxu0 0
        %1618 = vmatmul.mubr.bf16.gmra.mrb[0].mxu0 %v1564
        %v1619 = vpop.f32.mrb[0].mxu0
        %v1620 = vadd.f32 0.0, %v1619
        %v1621 = vpop.f32.mrb[0].mxu0
        %v1622 = vpop.f32.mrb[0].mxu0
        %v1623 = vadd.f32 0.0, %v1622
        %v1624 = vpop.f32.mrb[0].mxu0
        %1625 = vmatprep.mubr.bf16.mxu0 0
        %1626 = vmatmul.mubr.bf16.gmra.mrb[0].mxu0 %v1567
        %v1627 = vpop.f32.mrb[0].mxu0
        %v1628 = vadd.f32 0.0, %v1627
        %v1629 = vpop.f32.mrb[0].mxu0
        %v1630 = vpop.f32.mrb[0].mxu0
        %v1631 = vadd.f32 0.0, %v1630
        %v1632 = vpop.f32.mrb[0].mxu0
        %1633 = vdwg.mxu0
        %v1634 = vadd.f32 %v1498, %v1604
        %v1635 = vadd.f32 %v1501, %v1607
        %v1636 = vadd.f32 %v1506, %v1612
        %v1637 = vadd.f32 %v1509, %v1615
        %v1638 = vadd.f32 %v1514, %v1620
        %v1639 = vadd.f32 %v1517, %v1623
        %v1640 = vadd.f32 %v1522, %v1628
        %v1641 = vadd.f32 %v1525, %v1631
        %v1642 = vld [vmem:[%s208] sm:$0xff]
        %v1643 = vld [vmem:[%s208 + $0x10] sm:$0xff]
        %v1644 = vld [vmem:[%s208 + $0x20] sm:$0xff]
        %v1645 = vld [vmem:[%s208 + $0x30] sm:$0xff]
        %v1646 = vld [vmem:[%s208 + $0x40] sm:$0xff]
        %v1647 = vld [vmem:[%s208 + $0x50] sm:$0xff]
        %v1648 = vld [vmem:[%s208 + $0x60] sm:$0xff]
        %v1649 = vld [vmem:[%s208 + $0x70] sm:$0xff]
        %v1650 = vpack.c.bf16 %v1643, %v1642
        %v1651 = vpack.c.bf16 %v1645, %v1644
        %v1652 = vpack.c.bf16 %v1647, %v1646
        %v1653 = vpack.c.bf16 %v1649, %v1648
        %s1654 = scalar_lea.vmem [#allocation6], 192
        %v1655 = vld [vmem:[%s1654] sm:$0xf]
        %v1656 = vld [vmem:[%s1654 + $0x4] sm:$0xf]
        %v1657 = vld [vmem:[%s1654 + $0x8] sm:$0xf]
        %v1658 = vld [vmem:[%s1654 + $0xc] sm:$0xf]
        %v1663 = vunpack.c.l.b16 %v1655
        %v1664 = vunpack.c.l.b16 %v1656
        %v1665 = vunpack.c.l.b16 %v1657
        %v1666 = vunpack.c.l.b16 %v1658
        %v1667 = vpack.c.b16 %v1664, %v1663
        %v1668 = vpack.c.b16 %v1666, %v1665
        %v1672 = vsel %vm178, %v1650, 0
        %v1675 = vsel %vm178, %v1651, 0
        %v1678 = vsel %vm178, %v1652, 0
        %v1681 = vsel %vm178, %v1653, 0
        %1683 = vmatprep.subr.bf16.mxu0 0
        %1684 = vmatpush1.bf16.msra.mxu0 %v1667
        %1685 = vmatprep.subr.bf16.mxu0 0
        %1686 = vmatpush1.bf16.msra.mxu0 %v1668
        %1687 = vmatprep.subr.bf16.mxu0 0
        %1688 = vmatpush1.bf16.msra.mxu0 0
        %1689 = vmatprep.subr.bf16.mxu0 0
        %1690 = vmatpush1.bf16.msra.mxu0 0
        %1691 = vmatprep.subr.bf16.mxu0 0
        %1692 = vmatpush1.bf16.msra.mxu0 0
        %1693 = vmatprep.subr.bf16.mxu0 0
        %1694 = vmatpush1.bf16.msra.mxu0 0
        %1695 = vmatprep.subr.bf16.mxu0 0
        %1696 = vmatpush1.bf16.msra.mxu0 0
        %1697 = vmatprep.subr.bf16.mxu0 0
        %1698 = vmatpush1.bf16.msra.mxu0 0
        %1699 = vmatprep.subr.bf16.mxu0 0
        %1700 = vmatpush1.bf16.msra.mxu0 0
        %1701 = vmatprep.subr.bf16.mxu0 0
        %1702 = vmatpush1.bf16.msra.mxu0 0
        %1703 = vmatprep.subr.bf16.mxu0 0
        %1704 = vmatpush1.bf16.msra.mxu0 0
        %1705 = vmatprep.subr.bf16.mxu0 0
        %1706 = vmatpush1.bf16.msra.mxu0 0
        %1707 = vmatprep.subr.bf16.mxu0 0
        %1708 = vmatpush1.bf16.msra.mxu0 0
        %1709 = vmatprep.subr.bf16.mxu0 0
        %1710 = vmatpush1.bf16.msra.mxu0 0
        %1711 = vmatprep.subr.bf16.mxu0 0
        %1712 = vmatpush1.bf16.msra.mxu0 0
        %1713 = vmatprep.subr.bf16.mxu0 0
        %1714 = vmatpush1.bf16.msra.mxu0 0
        %1715 = vmatprep.mubr.bf16.mxu0 0
        %1716 = vmatmul.mubr.bf16.gmra.mrb[0].mxu0 %v1672
        %v1717 = vpop.f32.mrb[0].mxu0
        %v1718 = vadd.f32 0.0, %v1717
        %v1719 = vpop.f32.mrb[0].mxu0
        %v1720 = vpop.f32.mrb[0].mxu0
        %v1721 = vadd.f32 0.0, %v1720
        %v1722 = vpop.f32.mrb[0].mxu0
        %1723 = vmatprep.mubr.bf16.mxu0 0
        %1724 = vmatmul.mubr.bf16.gmra.mrb[0].mxu0 %v1675
        %v1725 = vpop.f32.mrb[0].mxu0
        %v1726 = vadd.f32 0.0, %v1725
        %v1727 = vpop.f32.mrb[0].mxu0
        %v1728 = vpop.f32.mrb[0].mxu0
        %v1729 = vadd.f32 0.0, %v1728
        %v1730 = vpop.f32.mrb[0].mxu0
        %1731 = vmatprep.mubr.bf16.mxu0 0
        %1732 = vmatmul.mubr.bf16.gmra.mrb[0].mxu0 %v1678
        %v1733 = vpop.f32.mrb[0].mxu0
        %v1734 = vadd.f32 0.0, %v1733
        %v1735 = vpop.f32.mrb[0].mxu0
        %v1736 = vpop.f32.mrb[0].mxu0
        %v1737 = vadd.f32 0.0, %v1736
        %v1738 = vpop.f32.mrb[0].mxu0
        %1739 = vmatprep.mubr.bf16.mxu0 0
        %1740 = vmatmul.mubr.bf16.gmra.mrb[0].mxu0 %v1681
        %v1741 = vpop.f32.mrb[0].mxu0
        %v1742 = vadd.f32 0.0, %v1741
        %v1743 = vpop.f32.mrb[0].mxu0
        %v1744 = vpop.f32.mrb[0].mxu0
        %v1745 = vadd.f32 0.0, %v1744
        %v1746 = vpop.f32.mrb[0].mxu0
        %1747 = vdwg.mxu0
        %v1748 = vadd.f32 %v1634, %v1718
        %v1749 = vadd.f32 %v1635, %v1721
        %v1750 = vadd.f32 %v1636, %v1726
        %v1751 = vadd.f32 %v1637, %v1729
        %v1752 = vadd.f32 %v1638, %v1734
        %v1753 = vadd.f32 %v1639, %v1737
        %v1754 = vadd.f32 %v1640, %v1742
        %v1755 = vadd.f32 %v1641, %v1745
        %v1756 = vld [vmem:[%s208 + $0x1] sm:$0xff]
        %v1757 = vld [vmem:[%s208 + $0x11] sm:$0xff]
        %v1758 = vld [vmem:[%s208 + $0x21] sm:$0xff]
        %v1759 = vld [vmem:[%s208 + $0x31] sm:$0xff]
        %v1760 = vld [vmem:[%s208 + $0x41] sm:$0xff]
        %v1761 = vld [vmem:[%s208 + $0x51] sm:$0xff]
        %v1762 = vld [vmem:[%s208 + $0x61] sm:$0xff]
        %v1763 = vld [vmem:[%s208 + $0x71] sm:$0xff]
        %v1764 = vpack.c.bf16 %v1757, %v1756
        %v1765 = vpack.c.bf16 %v1759, %v1758
        %v1766 = vpack.c.bf16 %v1761, %v1760
        %v1767 = vpack.c.bf16 %v1763, %v1762
        %s1768 = scalar_lea.vmem [#allocation6], 208
        %v1769 = vld [vmem:[%s1768] sm:$0xf]
        %v1770 = vld [vmem:[%s1768 + $0x4] sm:$0xf]
        %v1771 = vld [vmem:[%s1768 + $0x8] sm:$0xf]
        %v1772 = vld [vmem:[%s1768 + $0xc] sm:$0xf]
        %v1777 = vunpack.c.l.b16 %v1769
        %v1778 = vunpack.c.l.b16 %v1770
        %v1779 = vunpack.c.l.b16 %v1771
        %v1780 = vunpack.c.l.b16 %v1772
        %v1781 = vpack.c.b16 %v1778, %v1777
        %v1782 = vpack.c.b16 %v1780, %v1779
        %v1786 = vsel %vm178, %v1764, 0
        %v1789 = vsel %vm178, %v1765, 0
        %v1792 = vsel %vm178, %v1766, 0
        %v1795 = vsel %vm178, %v1767, 0
        %1797 = vmatprep.subr.bf16.mxu0 0
        %1798 = vmatpush1.bf16.msra.mxu0 %v1781
        %1799 = vmatprep.subr.bf16.mxu0 0
        %1800 = vmatpush1.bf16.msra.mxu0 %v1782
        %1801 = vmatprep.subr.bf16.mxu0 0
        %1802 = vmatpush1.bf16.msra.mxu0 0
        %1803 = vmatprep.subr.bf16.mxu0 0
        %1804 = vmatpush1.bf16.msra.mxu0 0
        %1805 = vmatprep.subr.bf16.mxu0 0
        %1806 = vmatpush1.bf16.msra.mxu0 0
        %1807 = vmatprep.subr.bf16.mxu0 0
        %1808 = vmatpush1.bf16.msra.mxu0 0
        %1809 = vmatprep.subr.bf16.mxu0 0
        %1810 = vmatpush1.bf16.msra.mxu0 0
        %1811 = vmatprep.subr.bf16.mxu0 0
        %1812 = vmatpush1.bf16.msra.mxu0 0
        %1813 = vmatprep.subr.bf16.mxu0 0
        %1814 = vmatpush1.bf16.msra.mxu0 0
        %1815 = vmatprep.subr.bf16.mxu0 0
        %1816 = vmatpush1.bf16.msra.mxu0 0
        %1817 = vmatprep.subr.bf16.mxu0 0
        %1818 = vmatpush1.bf16.msra.mxu0 0
        %1819 = vmatprep.subr.bf16.mxu0 0
        %1820 = vmatpush1.bf16.msra.mxu0 0
        %1821 = vmatprep.subr.bf16.mxu0 0
        %1822 = vmatpush1.bf16.msra.mxu0 0
        %1823 = vmatprep.subr.bf16.mxu0 0
        %1824 = vmatpush1.bf16.msra.mxu0 0
        %1825 = vmatprep.subr.bf16.mxu0 0
        %1826 = vmatpush1.bf16.msra.mxu0 0
        %1827 = vmatprep.subr.bf16.mxu0 0
        %1828 = vmatpush1.bf16.msra.mxu0 0
        %1829 = vmatprep.mubr.bf16.mxu0 0
        %1830 = vmatmul.mubr.bf16.gmra.mrb[0].mxu0 %v1786
        %v1831 = vpop.f32.mrb[0].mxu0
        %v1832 = vadd.f32 0.0, %v1831
        %v1833 = vpop.f32.mrb[0].mxu0
        %v1834 = vpop.f32.mrb[0].mxu0
        %v1835 = vadd.f32 0.0, %v1834
        %v1836 = vpop.f32.mrb[0].mxu0
        %1837 = vmatprep.mubr.bf16.mxu0 0
        %1838 = vmatmul.mubr.bf16.gmra.mrb[0].mxu0 %v1789
        %v1839 = vpop.f32.mrb[0].mxu0
        %v1840 = vadd.f32 0.0, %v1839
        %v1841 = vpop.f32.mrb[0].mxu0
        %v1842 = vpop.f32.mrb[0].mxu0
        %v1843 = vadd.f32 0.0, %v1842
        %v1844 = vpop.f32.mrb[0].mxu0
        %1845 = vmatprep.mubr.bf16.mxu0 0
        %1846 = vmatmul.mubr.bf16.gmra.mrb[0].mxu0 %v1792
        %v1847 = vpop.f32.mrb[0].mxu0
        %v1848 = vadd.f32 0.0, %v1847
        %v1849 = vpop.f32.mrb[0].mxu0
        %v1850 = vpop.f32.mrb[0].mxu0
        %v1851 = vadd.f32 0.0, %v1850
        %v1852 = vpop.f32.mrb[0].mxu0
        %1853 = vmatprep.mubr.bf16.mxu0 0
        %1854 = vmatmul.mubr.bf16.gmra.mrb[0].mxu0 %v1795
        %v1855 = vpop.f32.mrb[0].mxu0
        %v1856 = vadd.f32 0.0, %v1855
        %v1857 = vpop.f32.mrb[0].mxu0
        %v1858 = vpop.f32.mrb[0].mxu0
        %v1859 = vadd.f32 0.0, %v1858
        %v1860 = vpop.f32.mrb[0].mxu0
        %1861 = vdwg.mxu0
        %v1862 = vadd.f32 %v1748, %v1832
        %v1863 = vadd.f32 %v1749, %v1835
        %v1864 = vadd.f32 %v1750, %v1840
        %v1865 = vadd.f32 %v1751, %v1843
        %v1866 = vadd.f32 %v1752, %v1848
        %v1867 = vadd.f32 %v1753, %v1851
        %v1868 = vadd.f32 %v1754, %v1856
        %v1869 = vadd.f32 %v1755, %v1859
        %v1870 = vld [vmem:[%s208 + $0x2] sm:$0xff]
        %v1871 = vld [vmem:[%s208 + $0x12] sm:$0xff]
        %v1872 = vld [vmem:[%s208 + $0x22] sm:$0xff]
        %v1873 = vld [vmem:[%s208 + $0x32] sm:$0xff]
        %v1874 = vld [vmem:[%s208 + $0x42] sm:$0xff]
        %v1875 = vld [vmem:[%s208 + $0x52] sm:$0xff]
        %v1876 = vld [vmem:[%s208 + $0x62] sm:$0xff]
        %v1877 = vld [vmem:[%s208 + $0x72] sm:$0xff]
        %v1878 = vpack.c.bf16 %v1871, %v1870
        %v1879 = vpack.c.bf16 %v1873, %v1872
        %v1880 = vpack.c.bf16 %v1875, %v1874
        %v1881 = vpack.c.bf16 %v1877, %v1876
        %s1882 = scalar_lea.vmem [#allocation6], 224
        %v1883 = vld [vmem:[%s1882] sm:$0xf]
        %v1884 = vld [vmem:[%s1882 + $0x4] sm:$0xf]
        %v1885 = vld [vmem:[%s1882 + $0x8] sm:$0xf]
        %v1886 = vld [vmem:[%s1882 + $0xc] sm:$0xf]
        %v1891 = vunpack.c.l.b16 %v1883
        %v1892 = vunpack.c.l.b16 %v1884
        %v1893 = vunpack.c.l.b16 %v1885
        %v1894 = vunpack.c.l.b16 %v1886
        %v1895 = vpack.c.b16 %v1892, %v1891
        %v1896 = vpack.c.b16 %v1894, %v1893
        %v1900 = vsel %vm178, %v1878, 0
        %v1903 = vsel %vm178, %v1879, 0
        %v1906 = vsel %vm178, %v1880, 0
        %v1909 = vsel %vm178, %v1881, 0
        %1911 = vmatprep.subr.bf16.mxu0 0
        %1912 = vmatpush1.bf16.msra.mxu0 %v1895
        %1913 = vmatprep.subr.bf16.mxu0 0
        %1914 = vmatpush1.bf16.msra.mxu0 %v1896
        %1915 = vmatprep.subr.bf16.mxu0 0
        %1916 = vmatpush1.bf16.msra.mxu0 0
        %1917 = vmatprep.subr.bf16.mxu0 0
        %1918 = vmatpush1.bf16.msra.mxu0 0
        %1919 = vmatprep.subr.bf16.mxu0 0
        %1920 = vmatpush1.bf16.msra.mxu0 0
        %1921 = vmatprep.subr.bf16.mxu0 0
        %1922 = vmatpush1.bf16.msra.mxu0 0
        %1923 = vmatprep.subr.bf16.mxu0 0
        %1924 = vmatpush1.bf16.msra.mxu0 0
        %1925 = vmatprep.subr.bf16.mxu0 0
        %1926 = vmatpush1.bf16.msra.mxu0 0
        %1927 = vmatprep.subr.bf16.mxu0 0
        %1928 = vmatpush1.bf16.msra.mxu0 0
        %1929 = vmatprep.subr.bf16.mxu0 0
        %1930 = vmatpush1.bf16.msra.mxu0 0
        %1931 = vmatprep.subr.bf16.mxu0 0
        %1932 = vmatpush1.bf16.msra.mxu0 0
        %1933 = vmatprep.subr.bf16.mxu0 0
        %1934 = vmatpush1.bf16.msra.mxu0 0
        %1935 = vmatprep.subr.bf16.mxu0 0
        %1936 = vmatpush1.bf16.msra.mxu0 0
        %1937 = vmatprep.subr.bf16.mxu0 0
        %1938 = vmatpush1.bf16.msra.mxu0 0
        %1939 = vmatprep.subr.bf16.mxu0 0
        %1940 = vmatpush1.bf16.msra.mxu0 0
        %1941 = vmatprep.subr.bf16.mxu0 0
        %1942 = vmatpush1.bf16.msra.mxu0 0
        %1943 = vmatprep.mubr.bf16.mxu0 0
        %1944 = vmatmul.mubr.bf16.gmra.mrb[0].mxu0 %v1900
        %v1945 = vpop.f32.mrb[0].mxu0
        %v1946 = vadd.f32 0.0, %v1945
        %v1947 = vpop.f32.mrb[0].mxu0
        %v1948 = vpop.f32.mrb[0].mxu0
        %v1949 = vadd.f32 0.0, %v1948
        %v1950 = vpop.f32.mrb[0].mxu0
        %1951 = vmatprep.mubr.bf16.mxu0 0
        %1952 = vmatmul.mubr.bf16.gmra.mrb[0].mxu0 %v1903
        %v1953 = vpop.f32.mrb[0].mxu0
        %v1954 = vadd.f32 0.0, %v1953
        %v1955 = vpop.f32.mrb[0].mxu0
        %v1956 = vpop.f32.mrb[0].mxu0
        %v1957 = vadd.f32 0.0, %v1956
        %v1958 = vpop.f32.mrb[0].mxu0
        %1959 = vmatprep.mubr.bf16.mxu0 0
        %1960 = vmatmul.mubr.bf16.gmra.mrb[0].mxu0 %v1906
        %v1961 = vpop.f32.mrb[0].mxu0
        %v1962 = vadd.f32 0.0, %v1961
        %v1963 = vpop.f32.mrb[0].mxu0
        %v1964 = vpop.f32.mrb[0].mxu0
        %v1965 = vadd.f32 0.0, %v1964
        %v1966 = vpop.f32.mrb[0].mxu0
        %1967 = vmatprep.mubr.bf16.mxu0 0
        %1968 = vmatmul.mubr.bf16.gmra.mrb[0].mxu0 %v1909
        %v1969 = vpop.f32.mrb[0].mxu0
        %v1970 = vadd.f32 0.0, %v1969
        %v1971 = vpop.f32.mrb[0].mxu0
        %v1972 = vpop.f32.mrb[0].mxu0
        %v1973 = vadd.f32 0.0, %v1972
        %v1974 = vpop.f32.mrb[0].mxu0
        %1975 = vdwg.mxu0
        %v1976 = vadd.f32 %v1862, %v1946
        %v1977 = vadd.f32 %v1863, %v1949
        %v1978 = vadd.f32 %v1864, %v1954
        %v1979 = vadd.f32 %v1865, %v1957
        %v1980 = vadd.f32 %v1866, %v1962
        %v1981 = vadd.f32 %v1867, %v1965
        %v1982 = vadd.f32 %v1868, %v1970
        %v1983 = vadd.f32 %v1869, %v1973
        %v1984 = vld [vmem:[%s884] sm:$0xff]
        %v1985 = vld [vmem:[%s884 + $0x10] sm:$0xff]
        %v1986 = vld [vmem:[%s884 + $0x20] sm:$0xff]
        %v1987 = vld [vmem:[%s884 + $0x30] sm:$0xff]
        %v1988 = vld [vmem:[%s884 + $0x40] sm:$0xff]
        %v1989 = vld [vmem:[%s884 + $0x50] sm:$0xff]
        %v1990 = vld [vmem:[%s884 + $0x60] sm:$0xff]
        %v1991 = vld [vmem:[%s884 + $0x70] sm:$0xff]
        %v1992 = vpack.c.bf16 %v1985, %v1984
        %v1993 = vpack.c.bf16 %v1987, %v1986
        %v1994 = vpack.c.bf16 %v1989, %v1988
        %v1995 = vpack.c.bf16 %v1991, %v1990
        %s1996 = scalar_lea.vmem [#allocation6], 240
        %v1997 = vld [vmem:[%s1996] sm:$0xf]
        %v1998 = vld [vmem:[%s1996 + $0x4] sm:$0xf]
        %v1999 = vld [vmem:[%s1996 + $0x8] sm:$0xf]
        %v2000 = vld [vmem:[%s1996 + $0xc] sm:$0xf]
        %v2005 = vunpack.c.l.b16 %v1997
        %v2006 = vunpack.c.l.b16 %v1998
        %v2007 = vunpack.c.l.b16 %v1999
        %v2008 = vunpack.c.l.b16 %v2000
        %v2009 = vpack.c.b16 %v2006, %v2005
        %v2010 = vpack.c.b16 %v2008, %v2007
        %v2014 = vsel %vm178, %v1992, 0
        %v2017 = vsel %vm178, %v1993, 0
        %v2020 = vsel %vm178, %v1994, 0
        %v2023 = vsel %vm178, %v1995, 0
        %2025 = vmatprep.subr.bf16.mxu0 0
        %2026 = vmatpush1.bf16.msra.mxu0 %v2009
        %2027 = vmatprep.subr.bf16.mxu0 0
        %2028 = vmatpush1.bf16.msra.mxu0 %v2010
        %2029 = vmatprep.subr.bf16.mxu0 0
        %2030 = vmatpush1.bf16.msra.mxu0 0
        %2031 = vmatprep.subr.bf16.mxu0 0
        %2032 = vmatpush1.bf16.msra.mxu0 0
        %2033 = vmatprep.subr.bf16.mxu0 0
        %2034 = vmatpush1.bf16.msra.mxu0 0
        %2035 = vmatprep.subr.bf16.mxu0 0
        %2036 = vmatpush1.bf16.msra.mxu0 0
        %2037 = vmatprep.subr.bf16.mxu0 0
        %2038 = vmatpush1.bf16.msra.mxu0 0
        %2039 = vmatprep.subr.bf16.mxu0 0
        %2040 = vmatpush1.bf16.msra.mxu0 0
        %2041 = vmatprep.subr.bf16.mxu0 0
        %2042 = vmatpush1.bf16.msra.mxu0 0
        %2043 = vmatprep.subr.bf16.mxu0 0
        %2044 = vmatpush1.bf16.msra.mxu0 0
        %2045 = vmatprep.subr.bf16.mxu0 0
        %2046 = vmatpush1.bf16.msra.mxu0 0
        %2047 = vmatprep.subr.bf16.mxu0 0
        %2048 = vmatpush1.bf16.msra.mxu0 0
        %2049 = vmatprep.subr.bf16.mxu0 0
        %2050 = vmatpush1.bf16.msra.mxu0 0
        %2051 = vmatprep.subr.bf16.mxu0 0
        %2052 = vmatpush1.bf16.msra.mxu0 0
        %2053 = vmatprep.subr.bf16.mxu0 0
        %2054 = vmatpush1.bf16.msra.mxu0 0
        %2055 = vmatprep.subr.bf16.mxu0 0
        %2056 = vmatpush1.bf16.msra.mxu0 0
        %2057 = vmatprep.mubr.bf16.mxu0 0
        %2058 = vmatmul.mubr.bf16.gmra.mrb[0].mxu0 %v2014
        %v2059 = vpop.f32.mrb[0].mxu0
        %v2060 = vadd.f32 0.0, %v2059
        %v2061 = vpop.f32.mrb[0].mxu0
        %v2062 = vpop.f32.mrb[0].mxu0
        %v2063 = vadd.f32 0.0, %v2062
        %v2064 = vpop.f32.mrb[0].mxu0
        %2065 = vmatprep.mubr.bf16.mxu0 0
        %2066 = vmatmul.mubr.bf16.gmra.mrb[0].mxu0 %v2017
        %v2067 = vpop.f32.mrb[0].mxu0
        %v2068 = vadd.f32 0.0, %v2067
        %v2069 = vpop.f32.mrb[0].mxu0
        %v2070 = vpop.f32.mrb[0].mxu0
        %v2071 = vadd.f32 0.0, %v2070
        %v2072 = vpop.f32.mrb[0].mxu0
        %2073 = vmatprep.mubr.bf16.mxu0 0
        %2074 = vmatmul.mubr.bf16.gmra.mrb[0].mxu0 %v2020
        %v2075 = vpop.f32.mrb[0].mxu0
        %v2076 = vadd.f32 0.0, %v2075
        %v2077 = vpop.f32.mrb[0].mxu0
        %v2078 = vpop.f32.mrb[0].mxu0
        %v2079 = vadd.f32 0.0, %v2078
        %v2080 = vpop.f32.mrb[0].mxu0
        %2081 = vmatprep.mubr.bf16.mxu0 0
        %2082 = vmatmul.mubr.bf16.gmra.mrb[0].mxu0 %v2023
        %v2083 = vpop.f32.mrb[0].mxu0
        %v2084 = vadd.f32 0.0, %v2083
        %v2085 = vpop.f32.mrb[0].mxu0
        %v2086 = vpop.f32.mrb[0].mxu0
        %v2087 = vadd.f32 0.0, %v2086
        %v2088 = vpop.f32.mrb[0].mxu0
        %2089 = vdwg.mxu0
        %v2090 = vadd.f32 %v1976, %v2060
        %v2091 = vadd.f32 %v1977, %v2063
        %v2092 = vadd.f32 %v1978, %v2068
        %v2093 = vadd.f32 %v1979, %v2071
        %v2094 = vadd.f32 %v1980, %v2076
        %v2095 = vadd.f32 %v1981, %v2079
        %v2096 = vadd.f32 %v1982, %v2084
        %v2097 = vadd.f32 %v1983, %v2087
        %v2098 = vld [vmem:[%s884 + $0x1] sm:$0xff]
        %v2099 = vld [vmem:[%s884 + $0x11] sm:$0xff]
        %v2100 = vld [vmem:[%s884 + $0x21] sm:$0xff]
        %v2101 = vld [vmem:[%s884 + $0x31] sm:$0xff]
        %v2102 = vld [vmem:[%s884 + $0x41] sm:$0xff]
        %v2103 = vld [vmem:[%s884 + $0x51] sm:$0xff]
        %v2104 = vld [vmem:[%s884 + $0x61] sm:$0xff]
        %v2105 = vld [vmem:[%s884 + $0x71] sm:$0xff]
        %v2106 = vpack.c.bf16 %v2099, %v2098
        %v2107 = vpack.c.bf16 %v2101, %v2100
        %v2108 = vpack.c.bf16 %v2103, %v2102
        %v2109 = vpack.c.bf16 %v2105, %v2104
        %s2110 = scalar_lea.vmem [#allocation6], 256
        %v2111 = vld [vmem:[%s2110] sm:$0xf]
        %v2112 = vld [vmem:[%s2110 + $0x4] sm:$0xf]
        %v2113 = vld [vmem:[%s2110 + $0x8] sm:$0xf]
        %v2114 = vld [vmem:[%s2110 + $0xc] sm:$0xf]
        %v2119 = vunpack.c.l.b16 %v2111
        %v2120 = vunpack.c.l.b16 %v2112
        %v2121 = vunpack.c.l.b16 %v2113
        %v2122 = vunpack.c.l.b16 %v2114
        %v2123 = vpack.c.b16 %v2120, %v2119
        %v2124 = vpack.c.b16 %v2122, %v2121
        %v2128 = vsel %vm178, %v2106, 0
        %v2131 = vsel %vm178, %v2107, 0
        %v2134 = vsel %vm178, %v2108, 0
        %v2137 = vsel %vm178, %v2109, 0
        %2139 = vmatprep.subr.bf16.mxu0 0
        %2140 = vmatpush1.bf16.msra.mxu0 %v2123
        %2141 = vmatprep.subr.bf16.mxu0 0
        %2142 = vmatpush1.bf16.msra.mxu0 %v2124
        %2143 = vmatprep.subr.bf16.mxu0 0
        %2144 = vmatpush1.bf16.msra.mxu0 0
        %2145 = vmatprep.subr.bf16.mxu0 0
        %2146 = vmatpush1.bf16.msra.mxu0 0
        %2147 = vmatprep.subr.bf16.mxu0 0
        %2148 = vmatpush1.bf16.msra.mxu0 0
        %2149 = vmatprep.subr.bf16.mxu0 0
        %2150 = vmatpush1.bf16.msra.mxu0 0
        %2151 = vmatprep.subr.bf16.mxu0 0
        %2152 = vmatpush1.bf16.msra.mxu0 0
        %2153 = vmatprep.subr.bf16.mxu0 0
        %2154 = vmatpush1.bf16.msra.mxu0 0
        %2155 = vmatprep.subr.bf16.mxu0 0
        %2156 = vmatpush1.bf16.msra.mxu0 0
        %2157 = vmatprep.subr.bf16.mxu0 0
        %2158 = vmatpush1.bf16.msra.mxu0 0
        %2159 = vmatprep.subr.bf16.mxu0 0
        %2160 = vmatpush1.bf16.msra.mxu0 0
        %2161 = vmatprep.subr.bf16.mxu0 0
        %2162 = vmatpush1.bf16.msra.mxu0 0
        %2163 = vmatprep.subr.bf16.mxu0 0
        %2164 = vmatpush1.bf16.msra.mxu0 0
        %2165 = vmatprep.subr.bf16.mxu0 0
        %2166 = vmatpush1.bf16.msra.mxu0 0
        %2167 = vmatprep.subr.bf16.mxu0 0
        %2168 = vmatpush1.bf16.msra.mxu0 0
        %2169 = vmatprep.subr.bf16.mxu0 0
        %2170 = vmatpush1.bf16.msra.mxu0 0
        %2171 = vmatprep.mubr.bf16.mxu0 0
        %2172 = vmatmul.mubr.bf16.gmra.mrb[0].mxu0 %v2128
        %v2173 = vpop.f32.mrb[0].mxu0
        %v2174 = vadd.f32 0.0, %v2173
        %v2175 = vpop.f32.mrb[0].mxu0
        %v2176 = vpop.f32.mrb[0].mxu0
        %v2177 = vadd.f32 0.0, %v2176
        %v2178 = vpop.f32.mrb[0].mxu0
        %2179 = vmatprep.mubr.bf16.mxu0 0
        %2180 = vmatmul.mubr.bf16.gmra.mrb[0].mxu0 %v2131
        %v2181 = vpop.f32.mrb[0].mxu0
        %v2182 = vadd.f32 0.0, %v2181
        %v2183 = vpop.f32.mrb[0].mxu0
        %v2184 = vpop.f32.mrb[0].mxu0
        %v2185 = vadd.f32 0.0, %v2184
        %v2186 = vpop.f32.mrb[0].mxu0
        %2187 = vmatprep.mubr.bf16.mxu0 0
        %2188 = vmatmul.mubr.bf16.gmra.mrb[0].mxu0 %v2134
        %v2189 = vpop.f32.mrb[0].mxu0
        %v2190 = vadd.f32 0.0, %v2189
        %v2191 = vpop.f32.mrb[0].mxu0
        %v2192 = vpop.f32.mrb[0].mxu0
        %v2193 = vadd.f32 0.0, %v2192
        %v2194 = vpop.f32.mrb[0].mxu0
        %2195 = vmatprep.mubr.bf16.mxu0 0
        %2196 = vmatmul.mubr.bf16.gmra.mrb[0].mxu0 %v2137
        %v2197 = vpop.f32.mrb[0].mxu0
        %v2198 = vadd.f32 0.0, %v2197
        %v2199 = vpop.f32.mrb[0].mxu0
        %v2200 = vpop.f32.mrb[0].mxu0
        %v2201 = vadd.f32 0.0, %v2200
        %v2202 = vpop.f32.mrb[0].mxu0
        %2203 = vdwg.mxu0
        %v2204 = vadd.f32 %v2090, %v2174
        %v2205 = vadd.f32 %v2091, %v2177
        %v2206 = vadd.f32 %v2092, %v2182
        %v2207 = vadd.f32 %v2093, %v2185
        %v2208 = vadd.f32 %v2094, %v2190
        %v2209 = vadd.f32 %v2095, %v2193
        %v2210 = vadd.f32 %v2096, %v2198
        %v2211 = vadd.f32 %v2097, %v2201
        %v2212 = vld [vmem:[%s884 + $0x2] sm:$0xff]
        %v2213 = vld [vmem:[%s884 + $0x12] sm:$0xff]
        %v2214 = vld [vmem:[%s884 + $0x22] sm:$0xff]
        %v2215 = vld [vmem:[%s884 + $0x32] sm:$0xff]
        %v2216 = vld [vmem:[%s884 + $0x42] sm:$0xff]
        %v2217 = vld [vmem:[%s884 + $0x52] sm:$0xff]
        %v2218 = vld [vmem:[%s884 + $0x62] sm:$0xff]
        %v2219 = vld [vmem:[%s884 + $0x72] sm:$0xff]
        %v2220 = vpack.c.bf16 %v2213, %v2212
        %v2221 = vpack.c.bf16 %v2215, %v2214
        %v2222 = vpack.c.bf16 %v2217, %v2216
        %v2223 = vpack.c.bf16 %v2219, %v2218
        %s2224 = scalar_lea.vmem [#allocation6], 272
        %v2225 = vld [vmem:[%s2224] sm:$0xf]
        %v2226 = vld [vmem:[%s2224 + $0x4] sm:$0xf]
        %v2227 = vld [vmem:[%s2224 + $0x8] sm:$0xf]
        %v2228 = vld [vmem:[%s2224 + $0xc] sm:$0xf]
        %v2233 = vunpack.c.l.b16 %v2225
        %v2234 = vunpack.c.l.b16 %v2226
        %v2235 = vunpack.c.l.b16 %v2227
        %v2236 = vunpack.c.l.b16 %v2228
        %v2237 = vpack.c.b16 %v2234, %v2233
        %v2238 = vpack.c.b16 %v2236, %v2235
        %v2242 = vsel %vm178, %v2220, 0
        %v2245 = vsel %vm178, %v2221, 0
        %v2248 = vsel %vm178, %v2222, 0
        %v2251 = vsel %vm178, %v2223, 0
        %2253 = vmatprep.subr.bf16.mxu0 0
        %2254 = vmatpush1.bf16.msra.mxu0 %v2237
        %2255 = vmatprep.subr.bf16.mxu0 0
        %2256 = vmatpush1.bf16.msra.mxu0 %v2238
        %2257 = vmatprep.subr.bf16.mxu0 0
        %2258 = vmatpush1.bf16.msra.mxu0 0
        %2259 = vmatprep.subr.bf16.mxu0 0
        %2260 = vmatpush1.bf16.msra.mxu0 0
        %2261 = vmatprep.subr.bf16.mxu0 0
        %2262 = vmatpush1.bf16.msra.mxu0 0
        %2263 = vmatprep.subr.bf16.mxu0 0
        %2264 = vmatpush1.bf16.msra.mxu0 0
        %2265 = vmatprep.subr.bf16.mxu0 0
        %2266 = vmatpush1.bf16.msra.mxu0 0
        %2267 = vmatprep.subr.bf16.mxu0 0
        %2268 = vmatpush1.bf16.msra.mxu0 0
        %2269 = vmatprep.subr.bf16.mxu0 0
        %2270 = vmatpush1.bf16.msra.mxu0 0
        %2271 = vmatprep.subr.bf16.mxu0 0
        %2272 = vmatpush1.bf16.msra.mxu0 0
        %2273 = vmatprep.subr.bf16.mxu0 0
        %2274 = vmatpush1.bf16.msra.mxu0 0
        %2275 = vmatprep.subr.bf16.mxu0 0
        %2276 = vmatpush1.bf16.msra.mxu0 0
        %2277 = vmatprep.subr.bf16.mxu0 0
        %2278 = vmatpush1.bf16.msra.mxu0 0
        %2279 = vmatprep.subr.bf16.mxu0 0
        %2280 = vmatpush1.bf16.msra.mxu0 0
        %2281 = vmatprep.subr.bf16.mxu0 0
        %2282 = vmatpush1.bf16.msra.mxu0 0
        %2283 = vmatprep.subr.bf16.mxu0 0
        %2284 = vmatpush1.bf16.msra.mxu0 0
        %2285 = vmatprep.mubr.bf16.mxu0 0
        %2286 = vmatmul.mubr.bf16.gmra.mrb[0].mxu0 %v2242
        %v2287 = vpop.f32.mrb[0].mxu0
        %v2288 = vadd.f32 0.0, %v2287
        %v2289 = vpop.f32.mrb[0].mxu0
        %v2290 = vpop.f32.mrb[0].mxu0
        %v2291 = vadd.f32 0.0, %v2290
        %v2292 = vpop.f32.mrb[0].mxu0
        %2293 = vmatprep.mubr.bf16.mxu0 0
        %2294 = vmatmul.mubr.bf16.gmra.mrb[0].mxu0 %v2245
        %v2295 = vpop.f32.mrb[0].mxu0
        %v2296 = vadd.f32 0.0, %v2295
        %v2297 = vpop.f32.mrb[0].mxu0
        %v2298 = vpop.f32.mrb[0].mxu0
        %v2299 = vadd.f32 0.0, %v2298
        %v2300 = vpop.f32.mrb[0].mxu0
        %2301 = vmatprep.mubr.bf16.mxu0 0
        %2302 = vmatmul.mubr.bf16.gmra.mrb[0].mxu0 %v2248
        %v2303 = vpop.f32.mrb[0].mxu0
        %v2304 = vadd.f32 0.0, %v2303
        %v2305 = vpop.f32.mrb[0].mxu0
        %v2306 = vpop.f32.mrb[0].mxu0
        %v2307 = vadd.f32 0.0, %v2306
        %v2308 = vpop.f32.mrb[0].mxu0
        %2309 = vmatprep.mubr.bf16.mxu0 0
        %2310 = vmatmul.mubr.bf16.gmra.mrb[0].mxu0 %v2251
        %v2311 = vpop.f32.mrb[0].mxu0
        %v2312 = vadd.f32 0.0, %v2311
        %v2313 = vpop.f32.mrb[0].mxu0
        %v2314 = vpop.f32.mrb[0].mxu0
        %v2315 = vadd.f32 0.0, %v2314
        %v2316 = vpop.f32.mrb[0].mxu0
        %2317 = vdwg.mxu0
        %v2318 = vadd.f32 %v2204, %v2288
        %v2319 = vadd.f32 %v2205, %v2291
        %v2320 = vadd.f32 %v2206, %v2296
        %v2321 = vadd.f32 %v2207, %v2299
        %v2322 = vadd.f32 %v2208, %v2304
        %v2323 = vadd.f32 %v2209, %v2307
        %v2324 = vadd.f32 %v2210, %v2312
        %v2325 = vadd.f32 %v2211, %v2315
        %v2326 = vsel %vm178, %v2318, 0.0
        %v2327 = vsel %vm178, %v2319, 0.0
        %v2328 = vadd.f32 %v2326, %v2327
        %v2329 = vsel %vm178, %v2320, 0.0
        %v2330 = vadd.f32 %v2328, %v2329
        %v2331 = vsel %vm178, %v2321, 0.0
        %v2332 = vadd.f32 %v2330, %v2331
        %v2333 = vsel %vm178, %v2322, 0.0
        %v2334 = vadd.f32 %v2332, %v2333
        %v2335 = vsel %vm178, %v2323, 0.0
        %v2336 = vadd.f32 %v2334, %v2335
        %v2337 = vsel %vm178, %v2324, 0.0
        %v2338 = vadd.f32 %v2336, %v2337
        %v2339 = vsel %vm178, %v2325, 0.0
        %v2340 = vadd.f32 %v2338, %v2339
        %v2341 = vrot.slane %v2340, 4
        %v2342 = vadd.f32 %v2340, %v2341
        %v2343 = vrot.slane %v2342, 2
        %v2344 = vadd.f32 %v2342, %v2343
        %v2345 = vrot.slane %v2344, 1
        %v2346 = vadd.f32 %v2344, %v2345
        %v2347 = vmul.f32 %v2346, 0.015625
        %v2348 = vmul.f32 %v2318, %v2318
        %v2349 = vmul.f32 %v2319, %v2319
        %v2350 = vmul.f32 %v2320, %v2320
        %v2351 = vmul.f32 %v2321, %v2321
        %v2352 = vmul.f32 %v2322, %v2322
        %v2353 = vmul.f32 %v2323, %v2323
        %v2354 = vmul.f32 %v2324, %v2324
        %v2355 = vmul.f32 %v2325, %v2325
        %v2356 = vsel %vm178, %v2348, 0.0
        %v2357 = vsel %vm178, %v2349, 0.0
        %v2358 = vadd.f32 %v2356, %v2357
        %v2359 = vsel %vm178, %v2350, 0.0
        %v2360 = vadd.f32 %v2358, %v2359
        %v2361 = vsel %vm178, %v2351, 0.0
        %v2362 = vadd.f32 %v2360, %v2361
        %v2363 = vsel %vm178, %v2352, 0.0
        %v2364 = vadd.f32 %v2362, %v2363
        %v2365 = vsel %vm178, %v2353, 0.0
        %v2366 = vadd.f32 %v2364, %v2365
        %v2367 = vsel %vm178, %v2354, 0.0
        %v2368 = vadd.f32 %v2366, %v2367
        %v2369 = vsel %vm178, %v2355, 0.0
        %v2370 = vadd.f32 %v2368, %v2369
        %v2371 = vrot.slane %v2370, 4
        %v2372 = vadd.f32 %v2370, %v2371
        %v2373 = vrot.slane %v2372, 2
        %v2374 = vadd.f32 %v2372, %v2373
        %v2375 = vrot.slane %v2374, 1
        %v2376 = vadd.f32 %v2374, %v2375
        %v2377 = vmul.f32 %v2376, 0.015625
        %v2378 = vmul.f32 %v2347, %v2347
        %v2379 = vsub.f32 %v2377, %v2378
        %v2380 = vmax.f32 %v2379, 0.0
        %v2381 = vsub.f32 %v2318, %v2347
        %v2382 = vsub.f32 %v2319, %v2347
        %v2383 = vsub.f32 %v2320, %v2347
        %v2384 = vsub.f32 %v2321, %v2347
        %v2385 = vsub.f32 %v2322, %v2347
        %v2386 = vsub.f32 %v2323, %v2347
        %v2387 = vsub.f32 %v2324, %v2347
        %v2388 = vsub.f32 %v2325, %v2347
        %v2389 = vadd.f32 %v2380, 1e-05
        %v2390 = vrsqrt.pop %v2389
        %v2391 = vmul.f32 %v2381, %v2390
        %v2392 = vmul.f32 %v2382, %v2390
        %v2393 = vmul.f32 %v2383, %v2390
        %v2394 = vmul.f32 %v2384, %v2390
        %v2395 = vmul.f32 %v2385, %v2390
        %v2396 = vmul.f32 %v2386, %v2390
        %v2397 = vmul.f32 %v2387, %v2390
        %v2398 = vmul.f32 %v2388, %v2390
        %v2399 = vadd.f32 %v2391, %v200
        %v2400 = vadd.f32 %v2392, %v201
        %v2401 = vadd.f32 %v2393, %v202
        %v2402 = vadd.f32 %v2394, %v203
        %v2403 = vadd.f32 %v2395, %v204
        %v2404 = vadd.f32 %v2396, %v205
        %v2405 = vadd.f32 %v2397, %v206
        %v2406 = vadd.f32 %v2398, %v207
        %v2407 = vmax.f32 %v2399, 0.0
        %v2408 = vmax.f32 %v2400, 0.0
        %v2409 = vmax.f32 %v2401, 0.0
        %v2410 = vmax.f32 %v2402, 0.0
        %v2411 = vmax.f32 %v2403, 0.0
        %v2412 = vmax.f32 %v2404, 0.0
        %v2413 = vmax.f32 %v2405, 0.0
        %v2414 = vmax.f32 %v2406, 0.0
        %2415 = vst.msk [vmem:[%s208 + $0x1] sm:$0xff] %vm178, %v2407
        %2416 = vst.msk [vmem:[%s208 + $0x11] sm:$0xff] %vm178, %v2408
        %2417 = vst.msk [vmem:[%s208 + $0x21] sm:$0xff] %vm178, %v2409
        %2418 = vst.msk [vmem:[%s208 + $0x31] sm:$0xff] %vm178, %v2410
        %2419 = vst.msk [vmem:[%s208 + $0x41] sm:$0xff] %vm178, %v2411
        %2420 = vst.msk [vmem:[%s208 + $0x51] sm:$0xff] %vm178, %v2412
        %2421 = vst.msk [vmem:[%s208 + $0x61] sm:$0xff] %vm178, %v2413
        %2422 = vst.msk [vmem:[%s208 + $0x71] sm:$0xff] %vm178, %v2414
        %v2423 = vld [vmem:[#allocation2] sm:$0xff]
        %v2424 = vld [vmem:[#allocation2 + $0x10] sm:$0xff]
        %v2425 = vld [vmem:[#allocation2 + $0x20] sm:$0xff]
        %v2426 = vld [vmem:[#allocation2 + $0x30] sm:$0xff]
        %v2427 = vld [vmem:[#allocation2 + $0x40] sm:$0xff]
        %v2428 = vld [vmem:[#allocation2 + $0x50] sm:$0xff]
        %v2429 = vld [vmem:[#allocation2 + $0x60] sm:$0xff]
        %v2430 = vld [vmem:[#allocation2 + $0x70] sm:$0xff]
        %v2431 = vpack.c.bf16 %v2424, %v2423
        %v2432 = vpack.c.bf16 %v2426, %v2425
        %v2433 = vpack.c.bf16 %v2428, %v2427
        %v2434 = vpack.c.bf16 %v2430, %v2429
        %s2435 = scalar_lea.vmem [#allocation6], 288
        %v2436 = vld [vmem:[%s2435] sm:$0xf]
        %v2437 = vld [vmem:[%s2435 + $0x4] sm:$0xf]
        %v2438 = vld [vmem:[%s2435 + $0x8] sm:$0xf]
        %v2439 = vld [vmem:[%s2435 + $0xc] sm:$0xf]
        %v2440 = vld [vmem:[#allocation2 + $0x1] sm:$0xff]
        %v2441 = vld [vmem:[#allocation2 + $0x11] sm:$0xff]
        %v2442 = vld [vmem:[#allocation2 + $0x21] sm:$0xff]
        %v2443 = vld [vmem:[#allocation2 + $0x31] sm:$0xff]
        %v2444 = vld [vmem:[#allocation2 + $0x41] sm:$0xff]
        %v2445 = vld [vmem:[#allocation2 + $0x51] sm:$0xff]
        %v2446 = vld [vmem:[#allocation2 + $0x61] sm:$0xff]
        %v2447 = vld [vmem:[#allocation2 + $0x71] sm:$0xff]
        %v2448 = vpack.c.bf16 %v2441, %v2440
        %v2449 = vpack.c.bf16 %v2443, %v2442
        %v2450 = vpack.c.bf16 %v2445, %v2444
        %v2451 = vpack.c.bf16 %v2447, %v2446
        %s2452 = scalar_lea.vmem [#allocation6], 304
        %v2453 = vld [vmem:[%s2452] sm:$0xf]
        %v2454 = vld [vmem:[%s2452 + $0x4] sm:$0xf]
        %v2455 = vld [vmem:[%s2452 + $0x8] sm:$0xf]
        %v2456 = vld [vmem:[%s2452 + $0xc] sm:$0xf]
        %v2461 = vunpack.c.l.b16 %v2453
        %v2462 = vunpack.c.l.b16 %v2454
        %v2463 = vunpack.c.l.b16 %v2455
        %v2464 = vunpack.c.l.b16 %v2456
        %v2465 = vpack.c.b16 %v2462, %v2461
        %v2466 = vpack.c.b16 %v2464, %v2463
        %v2470 = vsel %vm178, %v2448, 0
        %v2473 = vsel %vm178, %v2449, 0
        %v2476 = vsel %vm178, %v2450, 0
        %v2479 = vsel %vm178, %v2451, 0
        %2481 = vmatprep.subr.bf16.mxu0 0
        %2482 = vmatpush1.bf16.msra.mxu0 %v2465
        %2483 = vmatprep.subr.bf16.mxu0 0
        %2484 = vmatpush1.bf16.msra.mxu0 %v2466
        %2485 = vmatprep.subr.bf16.mxu0 0
        %2486 = vmatpush1.bf16.msra.mxu0 0
        %2487 = vmatprep.subr.bf16.mxu0 0
        %2488 = vmatpush1.bf16.msra.mxu0 0
        %2489 = vmatprep.subr.bf16.mxu0 0
        %2490 = vmatpush1.bf16.msra.mxu0 0
        %2491 = vmatprep.subr.bf16.mxu0 0
        %2492 = vmatpush1.bf16.msra.mxu0 0
        %2493 = vmatprep.subr.bf16.mxu0 0
        %2494 = vmatpush1.bf16.msra.mxu0 0
        %2495 = vmatprep.subr.bf16.mxu0 0
        %2496 = vmatpush1.bf16.msra.mxu0 0
        %2497 = vmatprep.subr.bf16.mxu0 0
        %2498 = vmatpush1.bf16.msra.mxu0 0
        %2499 = vmatprep.subr.bf16.mxu0 0
        %2500 = vmatpush1.bf16.msra.mxu0 0
        %2501 = vmatprep.subr.bf16.mxu0 0
        %2502 = vmatpush1.bf16.msra.mxu0 0
        %2503 = vmatprep.subr.bf16.mxu0 0
        %2504 = vmatpush1.bf16.msra.mxu0 0
        %2505 = vmatprep.subr.bf16.mxu0 0
        %2506 = vmatpush1.bf16.msra.mxu0 0
        %2507 = vmatprep.subr.bf16.mxu0 0
        %2508 = vmatpush1.bf16.msra.mxu0 0
        %2509 = vmatprep.subr.bf16.mxu0 0
        %2510 = vmatpush1.bf16.msra.mxu0 0
        %2511 = vmatprep.subr.bf16.mxu0 0
        %2512 = vmatpush1.bf16.msra.mxu0 0
        %2513 = vmatprep.mubr.bf16.mxu0 0
        %2514 = vmatmul.mubr.bf16.gmra.mrb[0].mxu0 %v2470
        %v2515 = vpop.f32.mrb[0].mxu0
        %v2516 = vadd.f32 0.0, %v2515
        %v2517 = vpop.f32.mrb[0].mxu0
        %v2518 = vpop.f32.mrb[0].mxu0
        %v2519 = vadd.f32 0.0, %v2518
        %v2520 = vpop.f32.mrb[0].mxu0
        %2521 = vmatprep.mubr.bf16.mxu0 0
        %2522 = vmatmul.mubr.bf16.gmra.mrb[0].mxu0 %v2473
        %v2523 = vpop.f32.mrb[0].mxu0
        %v2524 = vadd.f32 0.0, %v2523
        %v2525 = vpop.f32.mrb[0].mxu0
        %v2526 = vpop.f32.mrb[0].mxu0
        %v2527 = vadd.f32 0.0, %v2526
        %v2528 = vpop.f32.mrb[0].mxu0
        %2529 = vmatprep.mubr.bf16.mxu0 0
        %2530 = vmatmul.mubr.bf16.gmra.mrb[0].mxu0 %v2476
        %v2531 = vpop.f32.mrb[0].mxu0
        %v2532 = vadd.f32 0.0, %v2531
        %v2533 = vpop.f32.mrb[0].mxu0
        %v2534 = vpop.f32.mrb[0].mxu0
        %v2535 = vadd.f32 0.0, %v2534
        %v2536 = vpop.f32.mrb[0].mxu0
        %2537 = vmatprep.mubr.bf16.mxu0 0
        %2538 = vmatmul.mubr.bf16.gmra.mrb[0].mxu0 %v2479
        %v2539 = vpop.f32.mrb[0].mxu0
        %v2540 = vadd.f32 0.0, %v2539
        %v2541 = vpop.f32.mrb[0].mxu0
        %v2542 = vpop.f32.mrb[0].mxu0
        %v2543 = vadd.f32 0.0, %v2542
        %v2544 = vpop.f32.mrb[0].mxu0
        %2545 = vdwg.mxu0
        %v2550 = vunpack.c.l.b16 %v2436
        %v2551 = vunpack.c.l.b16 %v2437
        %v2552 = vunpack.c.l.b16 %v2438
        %v2553 = vunpack.c.l.b16 %v2439
        %v2554 = vpack.c.b16 %v2551, %v2550
        %v2555 = vpack.c.b16 %v2553, %v2552
        %v2559 = vsel %vm178, %v2431, 0
        %v2562 = vsel %vm178, %v2432, 0
        %v2565 = vsel %vm178, %v2433, 0
        %v2568 = vsel %vm178, %v2434, 0
        %2570 = vmatprep.subr.bf16.mxu0 0
        %2571 = vmatpush1.bf16.msra.mxu0 %v2554
        %2572 = vmatprep.subr.bf16.mxu0 0
        %2573 = vmatpush1.bf16.msra.mxu0 %v2555
        %2574 = vmatprep.subr.bf16.mxu0 0
        %2575 = vmatpush1.bf16.msra.mxu0 0
        %2576 = vmatprep.subr.bf16.mxu0 0
        %2577 = vmatpush1.bf16.msra.mxu0 0
        %2578 = vmatprep.subr.bf16.mxu0 0
        %2579 = vmatpush1.bf16.msra.mxu0 0
        %2580 = vmatprep.subr.bf16.mxu0 0
        %2581 = vmatpush1.bf16.msra.mxu0 0
        %2582 = vmatprep.subr.bf16.mxu0 0
        %2583 = vmatpush1.bf16.msra.mxu0 0
        %2584 = vmatprep.subr.bf16.mxu0 0
        %2585 = vmatpush1.bf16.msra.mxu0 0
        %2586 = vmatprep.subr.bf16.mxu0 0
        %2587 = vmatpush1.bf16.msra.mxu0 0
        %2588 = vmatprep.subr.bf16.mxu0 0
        %2589 = vmatpush1.bf16.msra.mxu0 0
        %2590 = vmatprep.subr.bf16.mxu0 0
        %2591 = vmatpush1.bf16.msra.mxu0 0
        %2592 = vmatprep.subr.bf16.mxu0 0
        %2593 = vmatpush1.bf16.msra.mxu0 0
        %2594 = vmatprep.subr.bf16.mxu0 0
        %2595 = vmatpush1.bf16.msra.mxu0 0
        %2596 = vmatprep.subr.bf16.mxu0 0
        %2597 = vmatpush1.bf16.msra.mxu0 0
        %2598 = vmatprep.subr.bf16.mxu0 0
        %2599 = vmatpush1.bf16.msra.mxu0 0
        %2600 = vmatprep.subr.bf16.mxu0 0
        %2601 = vmatpush1.bf16.msra.mxu0 0
        %2602 = vmatprep.mubr.bf16.mxu0 0
        %2603 = vmatmul.mubr.bf16.gmra.mrb[0].mxu0 %v2559
        %v2604 = vpop.f32.mrb[0].mxu0
        %v2605 = vadd.f32 %v2516, %v2604
        %v2606 = vpop.f32.mrb[0].mxu0
        %v2607 = vpop.f32.mrb[0].mxu0
        %v2608 = vadd.f32 %v2519, %v2607
        %v2609 = vpop.f32.mrb[0].mxu0
        %2610 = vmatprep.mubr.bf16.mxu0 0
        %2611 = vmatmul.mubr.bf16.gmra.mrb[0].mxu0 %v2562
        %v2612 = vpop.f32.mrb[0].mxu0
        %v2613 = vadd.f32 %v2524, %v2612
        %v2614 = vpop.f32.mrb[0].mxu0
        %v2615 = vpop.f32.mrb[0].mxu0
        %v2616 = vadd.f32 %v2527, %v2615
        %v2617 = vpop.f32.mrb[0].mxu0
        %2618 = vmatprep.mubr.bf16.mxu0 0
        %2619 = vmatmul.mubr.bf16.gmra.mrb[0].mxu0 %v2565
        %v2620 = vpop.f32.mrb[0].mxu0
        %v2621 = vadd.f32 %v2532, %v2620
        %v2622 = vpop.f32.mrb[0].mxu0
        %v2623 = vpop.f32.mrb[0].mxu0
        %v2624 = vadd.f32 %v2535, %v2623
        %v2625 = vpop.f32.mrb[0].mxu0
        %2626 = vmatprep.mubr.bf16.mxu0 0
        %2627 = vmatmul.mubr.bf16.gmra.mrb[0].mxu0 %v2568
        %v2628 = vpop.f32.mrb[0].mxu0
        %v2629 = vadd.f32 %v2540, %v2628
        %v2630 = vpop.f32.mrb[0].mxu0
        %v2631 = vpop.f32.mrb[0].mxu0
        %v2632 = vadd.f32 %v2543, %v2631
        %v2633 = vpop.f32.mrb[0].mxu0
        %2634 = vdwg.mxu0
        %v2635 = vld [vmem:[#allocation2 + $0x2] sm:$0xff]
        %v2636 = vld [vmem:[#allocation2 + $0x12] sm:$0xff]
        %v2637 = vld [vmem:[#allocation2 + $0x22] sm:$0xff]
        %v2638 = vld [vmem:[#allocation2 + $0x32] sm:$0xff]
        %v2639 = vld [vmem:[#allocation2 + $0x42] sm:$0xff]
        %v2640 = vld [vmem:[#allocation2 + $0x52] sm:$0xff]
        %v2641 = vld [vmem:[#allocation2 + $0x62] sm:$0xff]
        %v2642 = vld [vmem:[#allocation2 + $0x72] sm:$0xff]
        %v2643 = vpack.c.bf16 %v2636, %v2635
        %v2644 = vpack.c.bf16 %v2638, %v2637
        %v2645 = vpack.c.bf16 %v2640, %v2639
        %v2646 = vpack.c.bf16 %v2642, %v2641
        %s2647 = scalar_lea.vmem [#allocation6], 320
        %v2648 = vld [vmem:[%s2647] sm:$0xf]
        %v2649 = vld [vmem:[%s2647 + $0x4] sm:$0xf]
        %v2650 = vld [vmem:[%s2647 + $0x8] sm:$0xf]
        %v2651 = vld [vmem:[%s2647 + $0xc] sm:$0xf]
        %v2656 = vunpack.c.l.b16 %v2648
        %v2657 = vunpack.c.l.b16 %v2649
        %v2658 = vunpack.c.l.b16 %v2650
        %v2659 = vunpack.c.l.b16 %v2651
        %v2660 = vpack.c.b16 %v2657, %v2656
        %v2661 = vpack.c.b16 %v2659, %v2658
        %v2665 = vsel %vm178, %v2643, 0
        %v2668 = vsel %vm178, %v2644, 0
        %v2671 = vsel %vm178, %v2645, 0
        %v2674 = vsel %vm178, %v2646, 0
        %2676 = vmatprep.subr.bf16.mxu0 0
        %2677 = vmatpush1.bf16.msra.mxu0 %v2660
        %2678 = vmatprep.subr.bf16.mxu0 0
        %2679 = vmatpush1.bf16.msra.mxu0 %v2661
        %2680 = vmatprep.subr.bf16.mxu0 0
        %2681 = vmatpush1.bf16.msra.mxu0 0
        %2682 = vmatprep.subr.bf16.mxu0 0
        %2683 = vmatpush1.bf16.msra.mxu0 0
        %2684 = vmatprep.subr.bf16.mxu0 0
        %2685 = vmatpush1.bf16.msra.mxu0 0
        %2686 = vmatprep.subr.bf16.mxu0 0
        %2687 = vmatpush1.bf16.msra.mxu0 0
        %2688 = vmatprep.subr.bf16.mxu0 0
        %2689 = vmatpush1.bf16.msra.mxu0 0
        %2690 = vmatprep.subr.bf16.mxu0 0
        %2691 = vmatpush1.bf16.msra.mxu0 0
        %2692 = vmatprep.subr.bf16.mxu0 0
        %2693 = vmatpush1.bf16.msra.mxu0 0
        %2694 = vmatprep.subr.bf16.mxu0 0
        %2695 = vmatpush1.bf16.msra.mxu0 0
        %2696 = vmatprep.subr.bf16.mxu0 0
        %2697 = vmatpush1.bf16.msra.mxu0 0
        %2698 = vmatprep.subr.bf16.mxu0 0
        %2699 = vmatpush1.bf16.msra.mxu0 0
        %2700 = vmatprep.subr.bf16.mxu0 0
        %2701 = vmatpush1.bf16.msra.mxu0 0
        %2702 = vmatprep.subr.bf16.mxu0 0
        %2703 = vmatpush1.bf16.msra.mxu0 0
        %2704 = vmatprep.subr.bf16.mxu0 0
        %2705 = vmatpush1.bf16.msra.mxu0 0
        %2706 = vmatprep.subr.bf16.mxu0 0
        %2707 = vmatpush1.bf16.msra.mxu0 0
        %2708 = vmatprep.mubr.bf16.mxu0 0
        %2709 = vmatmul.mubr.bf16.gmra.mrb[0].mxu0 %v2665
        %v2710 = vpop.f32.mrb[0].mxu0
        %v2711 = vadd.f32 0.0, %v2710
        %v2712 = vpop.f32.mrb[0].mxu0
        %v2713 = vpop.f32.mrb[0].mxu0
        %v2714 = vadd.f32 0.0, %v2713
        %v2715 = vpop.f32.mrb[0].mxu0
        %2716 = vmatprep.mubr.bf16.mxu0 0
        %2717 = vmatmul.mubr.bf16.gmra.mrb[0].mxu0 %v2668
        %v2718 = vpop.f32.mrb[0].mxu0
        %v2719 = vadd.f32 0.0, %v2718
        %v2720 = vpop.f32.mrb[0].mxu0
        %v2721 = vpop.f32.mrb[0].mxu0
        %v2722 = vadd.f32 0.0, %v2721
        %v2723 = vpop.f32.mrb[0].mxu0
        %2724 = vmatprep.mubr.bf16.mxu0 0
        %2725 = vmatmul.mubr.bf16.gmra.mrb[0].mxu0 %v2671
        %v2726 = vpop.f32.mrb[0].mxu0
        %v2727 = vadd.f32 0.0, %v2726
        %v2728 = vpop.f32.mrb[0].mxu0
        %v2729 = vpop.f32.mrb[0].mxu0
        %v2730 = vadd.f32 0.0, %v2729
        %v2731 = vpop.f32.mrb[0].mxu0
        %2732 = vmatprep.mubr.bf16.mxu0 0
        %2733 = vmatmul.mubr.bf16.gmra.mrb[0].mxu0 %v2674
        %v2734 = vpop.f32.mrb[0].mxu0
        %v2735 = vadd.f32 0.0, %v2734
        %v2736 = vpop.f32.mrb[0].mxu0
        %v2737 = vpop.f32.mrb[0].mxu0
        %v2738 = vadd.f32 0.0, %v2737
        %v2739 = vpop.f32.mrb[0].mxu0
        %2740 = vdwg.mxu0
        %v2741 = vadd.f32 %v2605, %v2711
        %v2742 = vadd.f32 %v2608, %v2714
        %v2743 = vadd.f32 %v2613, %v2719
        %v2744 = vadd.f32 %v2616, %v2722
        %v2745 = vadd.f32 %v2621, %v2727
        %v2746 = vadd.f32 %v2624, %v2730
        %v2747 = vadd.f32 %v2629, %v2735
        %v2748 = vadd.f32 %v2632, %v2738
        %v2749 = vld [vmem:[%s208] sm:$0xff]
        %v2750 = vld [vmem:[%s208 + $0x10] sm:$0xff]
        %v2751 = vld [vmem:[%s208 + $0x20] sm:$0xff]
        %v2752 = vld [vmem:[%s208 + $0x30] sm:$0xff]
        %v2753 = vld [vmem:[%s208 + $0x40] sm:$0xff]
        %v2754 = vld [vmem:[%s208 + $0x50] sm:$0xff]
        %v2755 = vld [vmem:[%s208 + $0x60] sm:$0xff]
        %v2756 = vld [vmem:[%s208 + $0x70] sm:$0xff]
        %v2757 = vpack.c.bf16 %v2750, %v2749
        %v2758 = vpack.c.bf16 %v2752, %v2751
        %v2759 = vpack.c.bf16 %v2754, %v2753
        %v2760 = vpack.c.bf16 %v2756, %v2755
        %s2761 = scalar_lea.vmem [#allocation6], 336
        %v2762 = vld [vmem:[%s2761] sm:$0xf]
        %v2763 = vld [vmem:[%s2761 + $0x4] sm:$0xf]
        %v2764 = vld [vmem:[%s2761 + $0x8] sm:$0xf]
        %v2765 = vld [vmem:[%s2761 + $0xc] sm:$0xf]
        %v2770 = vunpack.c.l.b16 %v2762
        %v2771 = vunpack.c.l.b16 %v2763
        %v2772 = vunpack.c.l.b16 %v2764
        %v2773 = vunpack.c.l.b16 %v2765
        %v2774 = vpack.c.b16 %v2771, %v2770
        %v2775 = vpack.c.b16 %v2773, %v2772
        %v2779 = vsel %vm178, %v2757, 0
        %v2782 = vsel %vm178, %v2758, 0
        %v2785 = vsel %vm178, %v2759, 0
        %v2788 = vsel %vm178, %v2760, 0
        %2790 = vmatprep.subr.bf16.mxu0 0
        %2791 = vmatpush1.bf16.msra.mxu0 %v2774
        %2792 = vmatprep.subr.bf16.mxu0 0
        %2793 = vmatpush1.bf16.msra.mxu0 %v2775
        %2794 = vmatprep.subr.bf16.mxu0 0
        %2795 = vmatpush1.bf16.msra.mxu0 0
        %2796 = vmatprep.subr.bf16.mxu0 0
        %2797 = vmatpush1.bf16.msra.mxu0 0
        %2798 = vmatprep.subr.bf16.mxu0 0
        %2799 = vmatpush1.bf16.msra.mxu0 0
        %2800 = vmatprep.subr.bf16.mxu0 0
        %2801 = vmatpush1.bf16.msra.mxu0 0
        %2802 = vmatprep.subr.bf16.mxu0 0
        %2803 = vmatpush1.bf16.msra.mxu0 0
        %2804 = vmatprep.subr.bf16.mxu0 0
        %2805 = vmatpush1.bf16.msra.mxu0 0
        %2806 = vmatprep.subr.bf16.mxu0 0
        %2807 = vmatpush1.bf16.msra.mxu0 0
        %2808 = vmatprep.subr.bf16.mxu0 0
        %2809 = vmatpush1.bf16.msra.mxu0 0
        %2810 = vmatprep.subr.bf16.mxu0 0
        %2811 = vmatpush1.bf16.msra.mxu0 0
        %2812 = vmatprep.subr.bf16.mxu0 0
        %2813 = vmatpush1.bf16.msra.mxu0 0
        %2814 = vmatprep.subr.bf16.mxu0 0
        %2815 = vmatpush1.bf16.msra.mxu0 0
        %2816 = vmatprep.subr.bf16.mxu0 0
        %2817 = vmatpush1.bf16.msra.mxu0 0
        %2818 = vmatprep.subr.bf16.mxu0 0
        %2819 = vmatpush1.bf16.msra.mxu0 0
        %2820 = vmatprep.subr.bf16.mxu0 0
        %2821 = vmatpush1.bf16.msra.mxu0 0
        %2822 = vmatprep.mubr.bf16.mxu0 0
        %2823 = vmatmul.mubr.bf16.gmra.mrb[0].mxu0 %v2779
        %v2824 = vpop.f32.mrb[0].mxu0
        %v2825 = vadd.f32 0.0, %v2824
        %v2826 = vpop.f32.mrb[0].mxu0
        %v2827 = vpop.f32.mrb[0].mxu0
        %v2828 = vadd.f32 0.0, %v2827
        %v2829 = vpop.f32.mrb[0].mxu0
        %2830 = vmatprep.mubr.bf16.mxu0 0
        %2831 = vmatmul.mubr.bf16.gmra.mrb[0].mxu0 %v2782
        %v2832 = vpop.f32.mrb[0].mxu0
        %v2833 = vadd.f32 0.0, %v2832
        %v2834 = vpop.f32.mrb[0].mxu0
        %v2835 = vpop.f32.mrb[0].mxu0
        %v2836 = vadd.f32 0.0, %v2835
        %v2837 = vpop.f32.mrb[0].mxu0
        %2838 = vmatprep.mubr.bf16.mxu0 0
        %2839 = vmatmul.mubr.bf16.gmra.mrb[0].mxu0 %v2785
        %v2840 = vpop.f32.mrb[0].mxu0
        %v2841 = vadd.f32 0.0, %v2840
        %v2842 = vpop.f32.mrb[0].mxu0
        %v2843 = vpop.f32.mrb[0].mxu0
        %v2844 = vadd.f32 0.0, %v2843
        %v2845 = vpop.f32.mrb[0].mxu0
        %2846 = vmatprep.mubr.bf16.mxu0 0
        %2847 = vmatmul.mubr.bf16.gmra.mrb[0].mxu0 %v2788
        %v2848 = vpop.f32.mrb[0].mxu0
        %v2849 = vadd.f32 0.0, %v2848
        %v2850 = vpop.f32.mrb[0].mxu0
        %v2851 = vpop.f32.mrb[0].mxu0
        %v2852 = vadd.f32 0.0, %v2851
        %v2853 = vpop.f32.mrb[0].mxu0
        %2854 = vdwg.mxu0
        %v2855 = vadd.f32 %v2741, %v2825
        %v2856 = vadd.f32 %v2742, %v2828
        %v2857 = vadd.f32 %v2743, %v2833
        %v2858 = vadd.f32 %v2744, %v2836
        %v2859 = vadd.f32 %v2745, %v2841
        %v2860 = vadd.f32 %v2746, %v2844
        %v2861 = vadd.f32 %v2747, %v2849
        %v2862 = vadd.f32 %v2748, %v2852
        %v2863 = vld [vmem:[%s208 + $0x1] sm:$0xff]
        %v2864 = vld [vmem:[%s208 + $0x11] sm:$0xff]
        %v2865 = vld [vmem:[%s208 + $0x21] sm:$0xff]
        %v2866 = vld [vmem:[%s208 + $0x31] sm:$0xff]
        %v2867 = vld [vmem:[%s208 + $0x41] sm:$0xff]
        %v2868 = vld [vmem:[%s208 + $0x51] sm:$0xff]
        %v2869 = vld [vmem:[%s208 + $0x61] sm:$0xff]
        %v2870 = vld [vmem:[%s208 + $0x71] sm:$0xff]
        %v2871 = vpack.c.bf16 %v2864, %v2863
        %v2872 = vpack.c.bf16 %v2866, %v2865
        %v2873 = vpack.c.bf16 %v2868, %v2867
        %v2874 = vpack.c.bf16 %v2870, %v2869
        %s2875 = scalar_lea.vmem [#allocation6], 352
        %v2876 = vld [vmem:[%s2875] sm:$0xf]
        %v2877 = vld [vmem:[%s2875 + $0x4] sm:$0xf]
        %v2878 = vld [vmem:[%s2875 + $0x8] sm:$0xf]
        %v2879 = vld [vmem:[%s2875 + $0xc] sm:$0xf]
        %v2884 = vunpack.c.l.b16 %v2876
        %v2885 = vunpack.c.l.b16 %v2877
        %v2886 = vunpack.c.l.b16 %v2878
        %v2887 = vunpack.c.l.b16 %v2879
        %v2888 = vpack.c.b16 %v2885, %v2884
        %v2889 = vpack.c.b16 %v2887, %v2886
        %v2893 = vsel %vm178, %v2871, 0
        %v2896 = vsel %vm178, %v2872, 0
        %v2899 = vsel %vm178, %v2873, 0
        %v2902 = vsel %vm178, %v2874, 0
        %2904 = vmatprep.subr.bf16.mxu0 0
        %2905 = vmatpush1.bf16.msra.mxu0 %v2888
        %2906 = vmatprep.subr.bf16.mxu0 0
        %2907 = vmatpush1.bf16.msra.mxu0 %v2889
        %2908 = vmatprep.subr.bf16.mxu0 0
        %2909 = vmatpush1.bf16.msra.mxu0 0
        %2910 = vmatprep.subr.bf16.mxu0 0
        %2911 = vmatpush1.bf16.msra.mxu0 0
        %2912 = vmatprep.subr.bf16.mxu0 0
        %2913 = vmatpush1.bf16.msra.mxu0 0
        %2914 = vmatprep.subr.bf16.mxu0 0
        %2915 = vmatpush1.bf16.msra.mxu0 0
        %2916 = vmatprep.subr.bf16.mxu0 0
        %2917 = vmatpush1.bf16.msra.mxu0 0
        %2918 = vmatprep.subr.bf16.mxu0 0
        %2919 = vmatpush1.bf16.msra.mxu0 0
        %2920 = vmatprep.subr.bf16.mxu0 0
        %2921 = vmatpush1.bf16.msra.mxu0 0
        %2922 = vmatprep.subr.bf16.mxu0 0
        %2923 = vmatpush1.bf16.msra.mxu0 0
        %2924 = vmatprep.subr.bf16.mxu0 0
        %2925 = vmatpush1.bf16.msra.mxu0 0
        %2926 = vmatprep.subr.bf16.mxu0 0
        %2927 = vmatpush1.bf16.msra.mxu0 0
        %2928 = vmatprep.subr.bf16.mxu0 0
        %2929 = vmatpush1.bf16.msra.mxu0 0
        %2930 = vmatprep.subr.bf16.mxu0 0
        %2931 = vmatpush1.bf16.msra.mxu0 0
        %2932 = vmatprep.subr.bf16.mxu0 0
        %2933 = vmatpush1.bf16.msra.mxu0 0
        %2934 = vmatprep.subr.bf16.mxu0 0
        %2935 = vmatpush1.bf16.msra.mxu0 0
        %2936 = vmatprep.mubr.bf16.mxu0 0
        %2937 = vmatmul.mubr.bf16.gmra.mrb[0].mxu0 %v2893
        %v2938 = vpop.f32.mrb[0].mxu0
        %v2939 = vadd.f32 0.0, %v2938
        %v2940 = vpop.f32.mrb[0].mxu0
        %v2941 = vpop.f32.mrb[0].mxu0
        %v2942 = vadd.f32 0.0, %v2941
        %v2943 = vpop.f32.mrb[0].mxu0
        %2944 = vmatprep.mubr.bf16.mxu0 0
        %2945 = vmatmul.mubr.bf16.gmra.mrb[0].mxu0 %v2896
        %v2946 = vpop.f32.mrb[0].mxu0
        %v2947 = vadd.f32 0.0, %v2946
        %v2948 = vpop.f32.mrb[0].mxu0
        %v2949 = vpop.f32.mrb[0].mxu0
        %v2950 = vadd.f32 0.0, %v2949
        %v2951 = vpop.f32.mrb[0].mxu0
        %2952 = vmatprep.mubr.bf16.mxu0 0
        %2953 = vmatmul.mubr.bf16.gmra.mrb[0].mxu0 %v2899
        %v2954 = vpop.f32.mrb[0].mxu0
        %v2955 = vadd.f32 0.0, %v2954
        %v2956 = vpop.f32.mrb[0].mxu0
        %v2957 = vpop.f32.mrb[0].mxu0
        %v2958 = vadd.f32 0.0, %v2957
        %v2959 = vpop.f32.mrb[0].mxu0
        %2960 = vmatprep.mubr.bf16.mxu0 0
        %2961 = vmatmul.mubr.bf16.gmra.mrb[0].mxu0 %v2902
        %v2962 = vpop.f32.mrb[0].mxu0
        %v2963 = vadd.f32 0.0, %v2962
        %v2964 = vpop.f32.mrb[0].mxu0
        %v2965 = vpop.f32.mrb[0].mxu0
        %v2966 = vadd.f32 0.0, %v2965
        %v2967 = vpop.f32.mrb[0].mxu0
        %2968 = vdwg.mxu0
        %v2969 = vadd.f32 %v2855, %v2939
        %v2970 = vadd.f32 %v2856, %v2942
        %v2971 = vadd.f32 %v2857, %v2947
        %v2972 = vadd.f32 %v2858, %v2950
        %v2973 = vadd.f32 %v2859, %v2955
        %v2974 = vadd.f32 %v2860, %v2958
        %v2975 = vadd.f32 %v2861, %v2963
        %v2976 = vadd.f32 %v2862, %v2966
        %v2977 = vld [vmem:[%s208 + $0x2] sm:$0xff]
        %v2978 = vld [vmem:[%s208 + $0x12] sm:$0xff]
        %v2979 = vld [vmem:[%s208 + $0x22] sm:$0xff]
        %v2980 = vld [vmem:[%s208 + $0x32] sm:$0xff]
        %v2981 = vld [vmem:[%s208 + $0x42] sm:$0xff]
        %v2982 = vld [vmem:[%s208 + $0x52] sm:$0xff]
        %v2983 = vld [vmem:[%s208 + $0x62] sm:$0xff]
        %v2984 = vld [vmem:[%s208 + $0x72] sm:$0xff]
        %v2985 = vpack.c.bf16 %v2978, %v2977
        %v2986 = vpack.c.bf16 %v2980, %v2979
        %v2987 = vpack.c.bf16 %v2982, %v2981
        %v2988 = vpack.c.bf16 %v2984, %v2983
        %s2989 = scalar_lea.vmem [#allocation6], 368
        %v2990 = vld [vmem:[%s2989] sm:$0xf]
        %v2991 = vld [vmem:[%s2989 + $0x4] sm:$0xf]
        %v2992 = vld [vmem:[%s2989 + $0x8] sm:$0xf]
        %v2993 = vld [vmem:[%s2989 + $0xc] sm:$0xf]
        %v2998 = vunpack.c.l.b16 %v2990
        %v2999 = vunpack.c.l.b16 %v2991
        %v3000 = vunpack.c.l.b16 %v2992
        %v3001 = vunpack.c.l.b16 %v2993
        %v3002 = vpack.c.b16 %v2999, %v2998
        %v3003 = vpack.c.b16 %v3001, %v3000
        %v3007 = vsel %vm178, %v2985, 0
        %v3010 = vsel %vm178, %v2986, 0
        %v3013 = vsel %vm178, %v2987, 0
        %v3016 = vsel %vm178, %v2988, 0
        %3018 = vmatprep.subr.bf16.mxu0 0
        %3019 = vmatpush1.bf16.msra.mxu0 %v3002
        %3020 = vmatprep.subr.bf16.mxu0 0
        %3021 = vmatpush1.bf16.msra.mxu0 %v3003
        %3022 = vmatprep.subr.bf16.mxu0 0
        %3023 = vmatpush1.bf16.msra.mxu0 0
        %3024 = vmatprep.subr.bf16.mxu0 0
        %3025 = vmatpush1.bf16.msra.mxu0 0
        %3026 = vmatprep.subr.bf16.mxu0 0
        %3027 = vmatpush1.bf16.msra.mxu0 0
        %3028 = vmatprep.subr.bf16.mxu0 0
        %3029 = vmatpush1.bf16.msra.mxu0 0
        %3030 = vmatprep.subr.bf16.mxu0 0
        %3031 = vmatpush1.bf16.msra.mxu0 0
        %3032 = vmatprep.subr.bf16.mxu0 0
        %3033 = vmatpush1.bf16.msra.mxu0 0
        %3034 = vmatprep.subr.bf16.mxu0 0
        %3035 = vmatpush1.bf16.msra.mxu0 0
        %3036 = vmatprep.subr.bf16.mxu0 0
        %3037 = vmatpush1.bf16.msra.mxu0 0
        %3038 = vmatprep.subr.bf16.mxu0 0
        %3039 = vmatpush1.bf16.msra.mxu0 0
        %3040 = vmatprep.subr.bf16.mxu0 0
        %3041 = vmatpush1.bf16.msra.mxu0 0
        %3042 = vmatprep.subr.bf16.mxu0 0
        %3043 = vmatpush1.bf16.msra.mxu0 0
        %3044 = vmatprep.subr.bf16.mxu0 0
        %3045 = vmatpush1.bf16.msra.mxu0 0
        %3046 = vmatprep.subr.bf16.mxu0 0
        %3047 = vmatpush1.bf16.msra.mxu0 0
        %3048 = vmatprep.subr.bf16.mxu0 0
        %3049 = vmatpush1.bf16.msra.mxu0 0
        %3050 = vmatprep.mubr.bf16.mxu0 0
        %3051 = vmatmul.mubr.bf16.gmra.mrb[0].mxu0 %v3007
        %v3052 = vpop.f32.mrb[0].mxu0
        %v3053 = vadd.f32 0.0, %v3052
        %v3054 = vpop.f32.mrb[0].mxu0
        %v3055 = vpop.f32.mrb[0].mxu0
        %v3056 = vadd.f32 0.0, %v3055
        %v3057 = vpop.f32.mrb[0].mxu0
        %3058 = vmatprep.mubr.bf16.mxu0 0
        %3059 = vmatmul.mubr.bf16.gmra.mrb[0].mxu0 %v3010
        %v3060 = vpop.f32.mrb[0].mxu0
        %v3061 = vadd.f32 0.0, %v3060
        %v3062 = vpop.f32.mrb[0].mxu0
        %v3063 = vpop.f32.mrb[0].mxu0
        %v3064 = vadd.f32 0.0, %v3063
        %v3065 = vpop.f32.mrb[0].mxu0
        %3066 = vmatprep.mubr.bf16.mxu0 0
        %3067 = vmatmul.mubr.bf16.gmra.mrb[0].mxu0 %v3013
        %v3068 = vpop.f32.mrb[0].mxu0
        %v3069 = vadd.f32 0.0, %v3068
        %v3070 = vpop.f32.mrb[0].mxu0
        %v3071 = vpop.f32.mrb[0].mxu0
        %v3072 = vadd.f32 0.0, %v3071
        %v3073 = vpop.f32.mrb[0].mxu0
        %3074 = vmatprep.mubr.bf16.mxu0 0
        %3075 = vmatmul.mubr.bf16.gmra.mrb[0].mxu0 %v3016
        %v3076 = vpop.f32.mrb[0].mxu0
        %v3077 = vadd.f32 0.0, %v3076
        %v3078 = vpop.f32.mrb[0].mxu0
        %v3079 = vpop.f32.mrb[0].mxu0
        %v3080 = vadd.f32 0.0, %v3079
        %v3081 = vpop.f32.mrb[0].mxu0
        %3082 = vdwg.mxu0
        %v3083 = vadd.f32 %v2969, %v3053
        %v3084 = vadd.f32 %v2970, %v3056
        %v3085 = vadd.f32 %v2971, %v3061
        %v3086 = vadd.f32 %v2972, %v3064
        %v3087 = vadd.f32 %v2973, %v3069
        %v3088 = vadd.f32 %v2974, %v3072
        %v3089 = vadd.f32 %v2975, %v3077
        %v3090 = vadd.f32 %v2976, %v3080
        %v3091 = vld [vmem:[%s884] sm:$0xff]
        %v3092 = vld [vmem:[%s884 + $0x10] sm:$0xff]
        %v3093 = vld [vmem:[%s884 + $0x20] sm:$0xff]
        %v3094 = vld [vmem:[%s884 + $0x30] sm:$0xff]
        %v3095 = vld [vmem:[%s884 + $0x40] sm:$0xff]
        %v3096 = vld [vmem:[%s884 + $0x50] sm:$0xff]
        %v3097 = vld [vmem:[%s884 + $0x60] sm:$0xff]
        %v3098 = vld [vmem:[%s884 + $0x70] sm:$0xff]
        %v3099 = vpack.c.bf16 %v3092, %v3091
        %v3100 = vpack.c.bf16 %v3094, %v3093
        %v3101 = vpack.c.bf16 %v3096, %v3095
        %v3102 = vpack.c.bf16 %v3098, %v3097
        %s3103 = scalar_lea.vmem [#allocation6], 384
        %v3104 = vld [vmem:[%s3103] sm:$0xf]
        %v3105 = vld [vmem:[%s3103 + $0x4] sm:$0xf]
        %v3106 = vld [vmem:[%s3103 + $0x8] sm:$0xf]
        %v3107 = vld [vmem:[%s3103 + $0xc] sm:$0xf]
        %v3112 = vunpack.c.l.b16 %v3104
        %v3113 = vunpack.c.l.b16 %v3105
        %v3114 = vunpack.c.l.b16 %v3106
        %v3115 = vunpack.c.l.b16 %v3107
        %v3116 = vpack.c.b16 %v3113, %v3112
        %v3117 = vpack.c.b16 %v3115, %v3114
        %v3121 = vsel %vm178, %v3099, 0
        %v3124 = vsel %vm178, %v3100, 0
        %v3127 = vsel %vm178, %v3101, 0
        %v3130 = vsel %vm178, %v3102, 0
        %3132 = vmatprep.subr.bf16.mxu0 0
        %3133 = vmatpush1.bf16.msra.mxu0 %v3116
        %3134 = vmatprep.subr.bf16.mxu0 0
        %3135 = vmatpush1.bf16.msra.mxu0 %v3117
        %3136 = vmatprep.subr.bf16.mxu0 0
        %3137 = vmatpush1.bf16.msra.mxu0 0
        %3138 = vmatprep.subr.bf16.mxu0 0
        %3139 = vmatpush1.bf16.msra.mxu0 0
        %3140 = vmatprep.subr.bf16.mxu0 0
        %3141 = vmatpush1.bf16.msra.mxu0 0
        %3142 = vmatprep.subr.bf16.mxu0 0
        %3143 = vmatpush1.bf16.msra.mxu0 0
        %3144 = vmatprep.subr.bf16.mxu0 0
        %3145 = vmatpush1.bf16.msra.mxu0 0
        %3146 = vmatprep.subr.bf16.mxu0 0
        %3147 = vmatpush1.bf16.msra.mxu0 0
        %3148 = vmatprep.subr.bf16.mxu0 0
        %3149 = vmatpush1.bf16.msra.mxu0 0
        %3150 = vmatprep.subr.bf16.mxu0 0
        %3151 = vmatpush1.bf16.msra.mxu0 0
        %3152 = vmatprep.subr.bf16.mxu0 0
        %3153 = vmatpush1.bf16.msra.mxu0 0
        %3154 = vmatprep.subr.bf16.mxu0 0
        %3155 = vmatpush1.bf16.msra.mxu0 0
        %3156 = vmatprep.subr.bf16.mxu0 0
        %3157 = vmatpush1.bf16.msra.mxu0 0
        %3158 = vmatprep.subr.bf16.mxu0 0
        %3159 = vmatpush1.bf16.msra.mxu0 0
        %3160 = vmatprep.subr.bf16.mxu0 0
        %3161 = vmatpush1.bf16.msra.mxu0 0
        %3162 = vmatprep.subr.bf16.mxu0 0
        %3163 = vmatpush1.bf16.msra.mxu0 0
        %3164 = vmatprep.mubr.bf16.mxu0 0
        %3165 = vmatmul.mubr.bf16.gmra.mrb[0].mxu0 %v3121
        %v3166 = vpop.f32.mrb[0].mxu0
        %v3167 = vadd.f32 0.0, %v3166
        %v3168 = vpop.f32.mrb[0].mxu0
        %v3169 = vpop.f32.mrb[0].mxu0
        %v3170 = vadd.f32 0.0, %v3169
        %v3171 = vpop.f32.mrb[0].mxu0
        %3172 = vmatprep.mubr.bf16.mxu0 0
        %3173 = vmatmul.mubr.bf16.gmra.mrb[0].mxu0 %v3124
        %v3174 = vpop.f32.mrb[0].mxu0
        %v3175 = vadd.f32 0.0, %v3174
        %v3176 = vpop.f32.mrb[0].mxu0
        %v3177 = vpop.f32.mrb[0].mxu0
        %v3178 = vadd.f32 0.0, %v3177
        %v3179 = vpop.f32.mrb[0].mxu0
        %3180 = vmatprep.mubr.bf16.mxu0 0
        %3181 = vmatmul.mubr.bf16.gmra.mrb[0].mxu0 %v3127
        %v3182 = vpop.f32.mrb[0].mxu0
        %v3183 = vadd.f32 0.0, %v3182
        %v3184 = vpop.f32.mrb[0].mxu0
        %v3185 = vpop.f32.mrb[0].mxu0
        %v3186 = vadd.f32 0.0, %v3185
        %v3187 = vpop.f32.mrb[0].mxu0
        %3188 = vmatprep.mubr.bf16.mxu0 0
        %3189 = vmatmul.mubr.bf16.gmra.mrb[0].mxu0 %v3130
        %v3190 = vpop.f32.mrb[0].mxu0
        %v3191 = vadd.f32 0.0, %v3190
        %v3192 = vpop.f32.mrb[0].mxu0
        %v3193 = vpop.f32.mrb[0].mxu0
        %v3194 = vadd.f32 0.0, %v3193
        %v3195 = vpop.f32.mrb[0].mxu0
        %3196 = vdwg.mxu0
        %v3197 = vadd.f32 %v3083, %v3167
        %v3198 = vadd.f32 %v3084, %v3170
        %v3199 = vadd.f32 %v3085, %v3175
        %v3200 = vadd.f32 %v3086, %v3178
        %v3201 = vadd.f32 %v3087, %v3183
        %v3202 = vadd.f32 %v3088, %v3186
        %v3203 = vadd.f32 %v3089, %v3191
        %v3204 = vadd.f32 %v3090, %v3194
        %v3205 = vld [vmem:[%s884 + $0x1] sm:$0xff]
        %v3206 = vld [vmem:[%s884 + $0x11] sm:$0xff]
        %v3207 = vld [vmem:[%s884 + $0x21] sm:$0xff]
        %v3208 = vld [vmem:[%s884 + $0x31] sm:$0xff]
        %v3209 = vld [vmem:[%s884 + $0x41] sm:$0xff]
        %v3210 = vld [vmem:[%s884 + $0x51] sm:$0xff]
        %v3211 = vld [vmem:[%s884 + $0x61] sm:$0xff]
        %v3212 = vld [vmem:[%s884 + $0x71] sm:$0xff]
        %v3213 = vpack.c.bf16 %v3206, %v3205
        %v3214 = vpack.c.bf16 %v3208, %v3207
        %v3215 = vpack.c.bf16 %v3210, %v3209
        %v3216 = vpack.c.bf16 %v3212, %v3211
        %s3217 = scalar_lea.vmem [#allocation6], 400
        %v3218 = vld [vmem:[%s3217] sm:$0xf]
        %v3219 = vld [vmem:[%s3217 + $0x4] sm:$0xf]
        %v3220 = vld [vmem:[%s3217 + $0x8] sm:$0xf]
        %v3221 = vld [vmem:[%s3217 + $0xc] sm:$0xf]
        %v3226 = vunpack.c.l.b16 %v3218
        %v3227 = vunpack.c.l.b16 %v3219
        %v3228 = vunpack.c.l.b16 %v3220
        %v3229 = vunpack.c.l.b16 %v3221
        %v3230 = vpack.c.b16 %v3227, %v3226
        %v3231 = vpack.c.b16 %v3229, %v3228
        %v3235 = vsel %vm178, %v3213, 0
        %v3238 = vsel %vm178, %v3214, 0
        %v3241 = vsel %vm178, %v3215, 0
        %v3244 = vsel %vm178, %v3216, 0
        %3246 = vmatprep.subr.bf16.mxu0 0
        %3247 = vmatpush1.bf16.msra.mxu0 %v3230
        %3248 = vmatprep.subr.bf16.mxu0 0
        %3249 = vmatpush1.bf16.msra.mxu0 %v3231
        %3250 = vmatprep.subr.bf16.mxu0 0
        %3251 = vmatpush1.bf16.msra.mxu0 0
        %3252 = vmatprep.subr.bf16.mxu0 0
        %3253 = vmatpush1.bf16.msra.mxu0 0
        %3254 = vmatprep.subr.bf16.mxu0 0
        %3255 = vmatpush1.bf16.msra.mxu0 0
        %3256 = vmatprep.subr.bf16.mxu0 0
        %3257 = vmatpush1.bf16.msra.mxu0 0
        %3258 = vmatprep.subr.bf16.mxu0 0
        %3259 = vmatpush1.bf16.msra.mxu0 0
        %3260 = vmatprep.subr.bf16.mxu0 0
        %3261 = vmatpush1.bf16.msra.mxu0 0
        %3262 = vmatprep.subr.bf16.mxu0 0
        %3263 = vmatpush1.bf16.msra.mxu0 0
        %3264 = vmatprep.subr.bf16.mxu0 0
        %3265 = vmatpush1.bf16.msra.mxu0 0
        %3266 = vmatprep.subr.bf16.mxu0 0
        %3267 = vmatpush1.bf16.msra.mxu0 0
        %3268 = vmatprep.subr.bf16.mxu0 0
        %3269 = vmatpush1.bf16.msra.mxu0 0
        %3270 = vmatprep.subr.bf16.mxu0 0
        %3271 = vmatpush1.bf16.msra.mxu0 0
        %3272 = vmatprep.subr.bf16.mxu0 0
        %3273 = vmatpush1.bf16.msra.mxu0 0
        %3274 = vmatprep.subr.bf16.mxu0 0
        %3275 = vmatpush1.bf16.msra.mxu0 0
        %3276 = vmatprep.subr.bf16.mxu0 0
        %3277 = vmatpush1.bf16.msra.mxu0 0
        %3278 = vmatprep.mubr.bf16.mxu0 0
        %3279 = vmatmul.mubr.bf16.gmra.mrb[0].mxu0 %v3235
        %v3280 = vpop.f32.mrb[0].mxu0
        %v3281 = vadd.f32 0.0, %v3280
        %v3282 = vpop.f32.mrb[0].mxu0
        %v3283 = vpop.f32.mrb[0].mxu0
        %v3284 = vadd.f32 0.0, %v3283
        %v3285 = vpop.f32.mrb[0].mxu0
        %3286 = vmatprep.mubr.bf16.mxu0 0
        %3287 = vmatmul.mubr.bf16.gmra.mrb[0].mxu0 %v3238
        %v3288 = vpop.f32.mrb[0].mxu0
        %v3289 = vadd.f32 0.0, %v3288
        %v3290 = vpop.f32.mrb[0].mxu0
        %v3291 = vpop.f32.mrb[0].mxu0
        %v3292 = vadd.f32 0.0, %v3291
        %v3293 = vpop.f32.mrb[0].mxu0
        %3294 = vmatprep.mubr.bf16.mxu0 0
        %3295 = vmatmul.mubr.bf16.gmra.mrb[0].mxu0 %v3241
        %v3296 = vpop.f32.mrb[0].mxu0
        %v3297 = vadd.f32 0.0, %v3296
        %v3298 = vpop.f32.mrb[0].mxu0
        %v3299 = vpop.f32.mrb[0].mxu0
        %v3300 = vadd.f32 0.0, %v3299
        %v3301 = vpop.f32.mrb[0].mxu0
        %3302 = vmatprep.mubr.bf16.mxu0 0
        %3303 = vmatmul.mubr.bf16.gmra.mrb[0].mxu0 %v3244
        %v3304 = vpop.f32.mrb[0].mxu0
        %v3305 = vadd.f32 0.0, %v3304
        %v3306 = vpop.f32.mrb[0].mxu0
        %v3307 = vpop.f32.mrb[0].mxu0
        %v3308 = vadd.f32 0.0, %v3307
        %v3309 = vpop.f32.mrb[0].mxu0
        %3310 = vdwg.mxu0
        %v3311 = vadd.f32 %v3197, %v3281
        %v3312 = vadd.f32 %v3198, %v3284
        %v3313 = vadd.f32 %v3199, %v3289
        %v3314 = vadd.f32 %v3200, %v3292
        %v3315 = vadd.f32 %v3201, %v3297
        %v3316 = vadd.f32 %v3202, %v3300
        %v3317 = vadd.f32 %v3203, %v3305
        %v3318 = vadd.f32 %v3204, %v3308
        %v3319 = vld [vmem:[%s884 + $0x2] sm:$0xff]
        %v3320 = vld [vmem:[%s884 + $0x12] sm:$0xff]
        %v3321 = vld [vmem:[%s884 + $0x22] sm:$0xff]
        %v3322 = vld [vmem:[%s884 + $0x32] sm:$0xff]
        %v3323 = vld [vmem:[%s884 + $0x42] sm:$0xff]
        %v3324 = vld [vmem:[%s884 + $0x52] sm:$0xff]
        %v3325 = vld [vmem:[%s884 + $0x62] sm:$0xff]
        %v3326 = vld [vmem:[%s884 + $0x72] sm:$0xff]
        %v3327 = vpack.c.bf16 %v3320, %v3319
        %v3328 = vpack.c.bf16 %v3322, %v3321
        %v3329 = vpack.c.bf16 %v3324, %v3323
        %v3330 = vpack.c.bf16 %v3326, %v3325
        %s3331 = scalar_lea.vmem [#allocation6], 416
        %v3332 = vld [vmem:[%s3331] sm:$0xf]
        %v3333 = vld [vmem:[%s3331 + $0x4] sm:$0xf]
        %v3334 = vld [vmem:[%s3331 + $0x8] sm:$0xf]
        %v3335 = vld [vmem:[%s3331 + $0xc] sm:$0xf]
        %v3340 = vunpack.c.l.b16 %v3332
        %v3341 = vunpack.c.l.b16 %v3333
        %v3342 = vunpack.c.l.b16 %v3334
        %v3343 = vunpack.c.l.b16 %v3335
        %v3344 = vpack.c.b16 %v3341, %v3340
        %v3345 = vpack.c.b16 %v3343, %v3342
        %v3349 = vsel %vm178, %v3327, 0
        %v3352 = vsel %vm178, %v3328, 0
        %v3355 = vsel %vm178, %v3329, 0
        %v3358 = vsel %vm178, %v3330, 0
        %3360 = vmatprep.subr.bf16.mxu0 0
        %3361 = vmatpush1.bf16.msra.mxu0 %v3344
        %3362 = vmatprep.subr.bf16.mxu0 0
        %3363 = vmatpush1.bf16.msra.mxu0 %v3345
        %3364 = vmatprep.subr.bf16.mxu0 0
        %3365 = vmatpush1.bf16.msra.mxu0 0
        %3366 = vmatprep.subr.bf16.mxu0 0
        %3367 = vmatpush1.bf16.msra.mxu0 0
        %3368 = vmatprep.subr.bf16.mxu0 0
        %3369 = vmatpush1.bf16.msra.mxu0 0
        %3370 = vmatprep.subr.bf16.mxu0 0
        %3371 = vmatpush1.bf16.msra.mxu0 0
        %3372 = vmatprep.subr.bf16.mxu0 0
        %3373 = vmatpush1.bf16.msra.mxu0 0
        %3374 = vmatprep.subr.bf16.mxu0 0
        %3375 = vmatpush1.bf16.msra.mxu0 0
        %3376 = vmatprep.subr.bf16.mxu0 0
        %3377 = vmatpush1.bf16.msra.mxu0 0
        %3378 = vmatprep.subr.bf16.mxu0 0
        %3379 = vmatpush1.bf16.msra.mxu0 0
        %3380 = vmatprep.subr.bf16.mxu0 0
        %3381 = vmatpush1.bf16.msra.mxu0 0
        %3382 = vmatprep.subr.bf16.mxu0 0
        %3383 = vmatpush1.bf16.msra.mxu0 0
        %3384 = vmatprep.subr.bf16.mxu0 0
        %3385 = vmatpush1.bf16.msra.mxu0 0
        %3386 = vmatprep.subr.bf16.mxu0 0
        %3387 = vmatpush1.bf16.msra.mxu0 0
        %3388 = vmatprep.subr.bf16.mxu0 0
        %3389 = vmatpush1.bf16.msra.mxu0 0
        %3390 = vmatprep.subr.bf16.mxu0 0
        %3391 = vmatpush1.bf16.msra.mxu0 0
        %3392 = vmatprep.mubr.bf16.mxu0 0
        %3393 = vmatmul.mubr.bf16.gmra.mrb[0].mxu0 %v3349
        %v3394 = vpop.f32.mrb[0].mxu0
        %v3395 = vadd.f32 0.0, %v3394
        %v3396 = vpop.f32.mrb[0].mxu0
        %v3397 = vpop.f32.mrb[0].mxu0
        %v3398 = vadd.f32 0.0, %v3397
        %v3399 = vpop.f32.mrb[0].mxu0
        %3400 = vmatprep.mubr.bf16.mxu0 0
        %3401 = vmatmul.mubr.bf16.gmra.mrb[0].mxu0 %v3352
        %v3402 = vpop.f32.mrb[0].mxu0
        %v3403 = vadd.f32 0.0, %v3402
        %v3404 = vpop.f32.mrb[0].mxu0
        %v3405 = vpop.f32.mrb[0].mxu0
        %v3406 = vadd.f32 0.0, %v3405
        %v3407 = vpop.f32.mrb[0].mxu0
        %3408 = vmatprep.mubr.bf16.mxu0 0
        %3409 = vmatmul.mubr.bf16.gmra.mrb[0].mxu0 %v3355
        %v3410 = vpop.f32.mrb[0].mxu0
        %v3411 = vadd.f32 0.0, %v3410
        %v3412 = vpop.f32.mrb[0].mxu0
        %v3413 = vpop.f32.mrb[0].mxu0
        %v3414 = vadd.f32 0.0, %v3413
        %v3415 = vpop.f32.mrb[0].mxu0
        %3416 = vmatprep.mubr.bf16.mxu0 0
        %3417 = vmatmul.mubr.bf16.gmra.mrb[0].mxu0 %v3358
        %v3418 = vpop.f32.mrb[0].mxu0
        %v3419 = vadd.f32 0.0, %v3418
        %v3420 = vpop.f32.mrb[0].mxu0
        %v3421 = vpop.f32.mrb[0].mxu0
        %v3422 = vadd.f32 0.0, %v3421
        %v3423 = vpop.f32.mrb[0].mxu0
        %3424 = vdwg.mxu0
        %v3425 = vadd.f32 %v3311, %v3395
        %v3426 = vadd.f32 %v3312, %v3398
        %v3427 = vadd.f32 %v3313, %v3403
        %v3428 = vadd.f32 %v3314, %v3406
        %v3429 = vadd.f32 %v3315, %v3411
        %v3430 = vadd.f32 %v3316, %v3414
        %v3431 = vadd.f32 %v3317, %v3419
        %v3432 = vadd.f32 %v3318, %v3422
        %v3433 = vsel %vm178, %v3425, 0.0
        %v3434 = vsel %vm178, %v3426, 0.0
        %v3435 = vadd.f32 %v3433, %v3434
        %v3436 = vsel %vm178, %v3427, 0.0
        %v3437 = vadd.f32 %v3435, %v3436
        %v3438 = vsel %vm178, %v3428, 0.0
        %v3439 = vadd.f32 %v3437, %v3438
        %v3440 = vsel %vm178, %v3429, 0.0
        %v3441 = vadd.f32 %v3439, %v3440
        %v3442 = vsel %vm178, %v3430, 0.0
        %v3443 = vadd.f32 %v3441, %v3442
        %v3444 = vsel %vm178, %v3431, 0.0
        %v3445 = vadd.f32 %v3443, %v3444
        %v3446 = vsel %vm178, %v3432, 0.0
        %v3447 = vadd.f32 %v3445, %v3446
        %v3448 = vrot.slane %v3447, 4
        %v3449 = vadd.f32 %v3447, %v3448
        %v3450 = vrot.slane %v3449, 2
        %v3451 = vadd.f32 %v3449, %v3450
        %v3452 = vrot.slane %v3451, 1
        %v3453 = vadd.f32 %v3451, %v3452
        %v3454 = vmul.f32 %v3453, 0.015625
        %v3455 = vmul.f32 %v3425, %v3425
        %v3456 = vmul.f32 %v3426, %v3426
        %v3457 = vmul.f32 %v3427, %v3427
        %v3458 = vmul.f32 %v3428, %v3428
        %v3459 = vmul.f32 %v3429, %v3429
        %v3460 = vmul.f32 %v3430, %v3430
        %v3461 = vmul.f32 %v3431, %v3431
        %v3462 = vmul.f32 %v3432, %v3432
        %v3463 = vsel %vm178, %v3455, 0.0
        %v3464 = vsel %vm178, %v3456, 0.0
        %v3465 = vadd.f32 %v3463, %v3464
        %v3466 = vsel %vm178, %v3457, 0.0
        %v3467 = vadd.f32 %v3465, %v3466
        %v3468 = vsel %vm178, %v3458, 0.0
        %v3469 = vadd.f32 %v3467, %v3468
        %v3470 = vsel %vm178, %v3459, 0.0
        %v3471 = vadd.f32 %v3469, %v3470
        %v3472 = vsel %vm178, %v3460, 0.0
        %v3473 = vadd.f32 %v3471, %v3472
        %v3474 = vsel %vm178, %v3461, 0.0
        %v3475 = vadd.f32 %v3473, %v3474
        %v3476 = vsel %vm178, %v3462, 0.0
        %v3477 = vadd.f32 %v3475, %v3476
        %v3478 = vrot.slane %v3477, 4
        %v3479 = vadd.f32 %v3477, %v3478
        %v3480 = vrot.slane %v3479, 2
        %v3481 = vadd.f32 %v3479, %v3480
        %v3482 = vrot.slane %v3481, 1
        %v3483 = vadd.f32 %v3481, %v3482
        %v3484 = vmul.f32 %v3483, 0.015625
        %v3485 = vmul.f32 %v3454, %v3454
        %v3486 = vsub.f32 %v3484, %v3485
        %v3487 = vmax.f32 %v3486, 0.0
        %v3488 = vsub.f32 %v3425, %v3454
        %v3489 = vsub.f32 %v3426, %v3454
        %v3490 = vsub.f32 %v3427, %v3454
        %v3491 = vsub.f32 %v3428, %v3454
        %v3492 = vsub.f32 %v3429, %v3454
        %v3493 = vsub.f32 %v3430, %v3454
        %v3494 = vsub.f32 %v3431, %v3454
        %v3495 = vsub.f32 %v3432, %v3454
        %v3496 = vadd.f32 %v3487, 1e-05
        %v3497 = vrsqrt.pop %v3496
        %v3498 = vmul.f32 %v3488, %v3497
        %v3499 = vmul.f32 %v3489, %v3497
        %v3500 = vmul.f32 %v3490, %v3497
        %v3501 = vmul.f32 %v3491, %v3497
        %v3502 = vmul.f32 %v3492, %v3497
        %v3503 = vmul.f32 %v3493, %v3497
        %v3504 = vmul.f32 %v3494, %v3497
        %v3505 = vmul.f32 %v3495, %v3497
        %v3506 = vmax.f32 %v3498, 0.0
        %v3507 = vmax.f32 %v3499, 0.0
        %v3508 = vmax.f32 %v3500, 0.0
        %v3509 = vmax.f32 %v3501, 0.0
        %v3510 = vmax.f32 %v3502, 0.0
        %v3511 = vmax.f32 %v3503, 0.0
        %v3512 = vmax.f32 %v3504, 0.0
        %v3513 = vmax.f32 %v3505, 0.0
        %3514 = vst.msk [vmem:[%s208 + $0x1] sm:$0xff] %vm178, %v3506
        %3515 = vst.msk [vmem:[%s208 + $0x11] sm:$0xff] %vm178, %v3507
        %3516 = vst.msk [vmem:[%s208 + $0x21] sm:$0xff] %vm178, %v3508
        %3517 = vst.msk [vmem:[%s208 + $0x31] sm:$0xff] %vm178, %v3509
        %3518 = vst.msk [vmem:[%s208 + $0x41] sm:$0xff] %vm178, %v3510
        %3519 = vst.msk [vmem:[%s208 + $0x51] sm:$0xff] %vm178, %v3511
        %3520 = vst.msk [vmem:[%s208 + $0x61] sm:$0xff] %vm178, %v3512
        %3521 = vst.msk [vmem:[%s208 + $0x71] sm:$0xff] %vm178, %v3513
        %v3522 = vld [vmem:[#allocation2] sm:$0xff]
        %v3523 = vld [vmem:[#allocation2 + $0x10] sm:$0xff]
        %v3524 = vld [vmem:[#allocation2 + $0x20] sm:$0xff]
        %v3525 = vld [vmem:[#allocation2 + $0x30] sm:$0xff]
        %v3526 = vld [vmem:[#allocation2 + $0x40] sm:$0xff]
        %v3527 = vld [vmem:[#allocation2 + $0x50] sm:$0xff]
        %v3528 = vld [vmem:[#allocation2 + $0x60] sm:$0xff]
        %v3529 = vld [vmem:[#allocation2 + $0x70] sm:$0xff]
        %v3530 = vpack.c.bf16 %v3523, %v3522
        %v3531 = vpack.c.bf16 %v3525, %v3524
        %v3532 = vpack.c.bf16 %v3527, %v3526
        %v3533 = vpack.c.bf16 %v3529, %v3528
        %s3534 = scalar_lea.vmem [#allocation6], 432
        %v3535 = vld [vmem:[%s3534] sm:$0xf]
        %v3536 = vld [vmem:[%s3534 + $0x4] sm:$0xf]
        %v3537 = vld [vmem:[%s3534 + $0x8] sm:$0xf]
        %v3538 = vld [vmem:[%s3534 + $0xc] sm:$0xf]
        %v3539 = vld [vmem:[#allocation2 + $0x1] sm:$0xff]
        %v3540 = vld [vmem:[#allocation2 + $0x11] sm:$0xff]
        %v3541 = vld [vmem:[#allocation2 + $0x21] sm:$0xff]
        %v3542 = vld [vmem:[#allocation2 + $0x31] sm:$0xff]
        %v3543 = vld [vmem:[#allocation2 + $0x41] sm:$0xff]
        %v3544 = vld [vmem:[#allocation2 + $0x51] sm:$0xff]
        %v3545 = vld [vmem:[#allocation2 + $0x61] sm:$0xff]
        %v3546 = vld [vmem:[#allocation2 + $0x71] sm:$0xff]
        %v3547 = vpack.c.bf16 %v3540, %v3539
        %v3548 = vpack.c.bf16 %v3542, %v3541
        %v3549 = vpack.c.bf16 %v3544, %v3543
        %v3550 = vpack.c.bf16 %v3546, %v3545
        %s3551 = scalar_lea.vmem [#allocation6], 448
        %v3552 = vld [vmem:[%s3551] sm:$0xf]
        %v3553 = vld [vmem:[%s3551 + $0x4] sm:$0xf]
        %v3554 = vld [vmem:[%s3551 + $0x8] sm:$0xf]
        %v3555 = vld [vmem:[%s3551 + $0xc] sm:$0xf]
        %v3560 = vunpack.c.l.b16 %v3552
        %v3561 = vunpack.c.l.b16 %v3553
        %v3562 = vunpack.c.l.b16 %v3554
        %v3563 = vunpack.c.l.b16 %v3555
        %v3564 = vpack.c.b16 %v3561, %v3560
        %v3565 = vpack.c.b16 %v3563, %v3562
        %v3569 = vsel %vm178, %v3547, 0
        %v3572 = vsel %vm178, %v3548, 0
        %v3575 = vsel %vm178, %v3549, 0
        %v3578 = vsel %vm178, %v3550, 0
        %3580 = vmatprep.subr.bf16.mxu0 0
        %3581 = vmatpush1.bf16.msra.mxu0 %v3564
        %3582 = vmatprep.subr.bf16.mxu0 0
        %3583 = vmatpush1.bf16.msra.mxu0 %v3565
        %3584 = vmatprep.subr.bf16.mxu0 0
        %3585 = vmatpush1.bf16.msra.mxu0 0
        %3586 = vmatprep.subr.bf16.mxu0 0
        %3587 = vmatpush1.bf16.msra.mxu0 0
        %3588 = vmatprep.subr.bf16.mxu0 0
        %3589 = vmatpush1.bf16.msra.mxu0 0
        %3590 = vmatprep.subr.bf16.mxu0 0
        %3591 = vmatpush1.bf16.msra.mxu0 0
        %3592 = vmatprep.subr.bf16.mxu0 0
        %3593 = vmatpush1.bf16.msra.mxu0 0
        %3594 = vmatprep.subr.bf16.mxu0 0
        %3595 = vmatpush1.bf16.msra.mxu0 0
        %3596 = vmatprep.subr.bf16.mxu0 0
        %3597 = vmatpush1.bf16.msra.mxu0 0
        %3598 = vmatprep.subr.bf16.mxu0 0
        %3599 = vmatpush1.bf16.msra.mxu0 0
        %3600 = vmatprep.subr.bf16.mxu0 0
        %3601 = vmatpush1.bf16.msra.mxu0 0
        %3602 = vmatprep.subr.bf16.mxu0 0
        %3603 = vmatpush1.bf16.msra.mxu0 0
        %3604 = vmatprep.subr.bf16.mxu0 0
        %3605 = vmatpush1.bf16.msra.mxu0 0
        %3606 = vmatprep.subr.bf16.mxu0 0
        %3607 = vmatpush1.bf16.msra.mxu0 0
        %3608 = vmatprep.subr.bf16.mxu0 0
        %3609 = vmatpush1.bf16.msra.mxu0 0
        %3610 = vmatprep.subr.bf16.mxu0 0
        %3611 = vmatpush1.bf16.msra.mxu0 0
        %3612 = vmatprep.mubr.bf16.mxu0 0
        %3613 = vmatmul.mubr.bf16.gmra.mrb[0].mxu0 %v3569
        %v3614 = vpop.f32.mrb[0].mxu0
        %v3615 = vadd.f32 0.0, %v3614
        %v3616 = vpop.f32.mrb[0].mxu0
        %v3617 = vpop.f32.mrb[0].mxu0
        %v3618 = vadd.f32 0.0, %v3617
        %v3619 = vpop.f32.mrb[0].mxu0
        %3620 = vmatprep.mubr.bf16.mxu0 0
        %3621 = vmatmul.mubr.bf16.gmra.mrb[0].mxu0 %v3572
        %v3622 = vpop.f32.mrb[0].mxu0
        %v3623 = vadd.f32 0.0, %v3622
        %v3624 = vpop.f32.mrb[0].mxu0
        %v3625 = vpop.f32.mrb[0].mxu0
        %v3626 = vadd.f32 0.0, %v3625
        %v3627 = vpop.f32.mrb[0].mxu0
        %3628 = vmatprep.mubr.bf16.mxu0 0
        %3629 = vmatmul.mubr.bf16.gmra.mrb[0].mxu0 %v3575
        %v3630 = vpop.f32.mrb[0].mxu0
        %v3631 = vadd.f32 0.0, %v3630
        %v3632 = vpop.f32.mrb[0].mxu0
        %v3633 = vpop.f32.mrb[0].mxu0
        %v3634 = vadd.f32 0.0, %v3633
        %v3635 = vpop.f32.mrb[0].mxu0
        %3636 = vmatprep.mubr.bf16.mxu0 0
        %3637 = vmatmul.mubr.bf16.gmra.mrb[0].mxu0 %v3578
        %v3638 = vpop.f32.mrb[0].mxu0
        %v3639 = vadd.f32 0.0, %v3638
        %v3640 = vpop.f32.mrb[0].mxu0
        %v3641 = vpop.f32.mrb[0].mxu0
        %v3642 = vadd.f32 0.0, %v3641
        %v3643 = vpop.f32.mrb[0].mxu0
        %3644 = vdwg.mxu0
        %v3649 = vunpack.c.l.b16 %v3535
        %v3650 = vunpack.c.l.b16 %v3536
        %v3651 = vunpack.c.l.b16 %v3537
        %v3652 = vunpack.c.l.b16 %v3538
        %v3653 = vpack.c.b16 %v3650, %v3649
        %v3654 = vpack.c.b16 %v3652, %v3651
        %v3658 = vsel %vm178, %v3530, 0
        %v3661 = vsel %vm178, %v3531, 0
        %v3664 = vsel %vm178, %v3532, 0
        %v3667 = vsel %vm178, %v3533, 0
        %3669 = vmatprep.subr.bf16.mxu0 0
        %3670 = vmatpush1.bf16.msra.mxu0 %v3653
        %3671 = vmatprep.subr.bf16.mxu0 0
        %3672 = vmatpush1.bf16.msra.mxu0 %v3654
        %3673 = vmatprep.subr.bf16.mxu0 0
        %3674 = vmatpush1.bf16.msra.mxu0 0
        %3675 = vmatprep.subr.bf16.mxu0 0
        %3676 = vmatpush1.bf16.msra.mxu0 0
        %3677 = vmatprep.subr.bf16.mxu0 0
        %3678 = vmatpush1.bf16.msra.mxu0 0
        %3679 = vmatprep.subr.bf16.mxu0 0
        %3680 = vmatpush1.bf16.msra.mxu0 0
        %3681 = vmatprep.subr.bf16.mxu0 0
        %3682 = vmatpush1.bf16.msra.mxu0 0
        %3683 = vmatprep.subr.bf16.mxu0 0
        %3684 = vmatpush1.bf16.msra.mxu0 0
        %3685 = vmatprep.subr.bf16.mxu0 0
        %3686 = vmatpush1.bf16.msra.mxu0 0
        %3687 = vmatprep.subr.bf16.mxu0 0
        %3688 = vmatpush1.bf16.msra.mxu0 0
        %3689 = vmatprep.subr.bf16.mxu0 0
        %3690 = vmatpush1.bf16.msra.mxu0 0
        %3691 = vmatprep.subr.bf16.mxu0 0
        %3692 = vmatpush1.bf16.msra.mxu0 0
        %3693 = vmatprep.subr.bf16.mxu0 0
        %3694 = vmatpush1.bf16.msra.mxu0 0
        %3695 = vmatprep.subr.bf16.mxu0 0
        %3696 = vmatpush1.bf16.msra.mxu0 0
        %3697 = vmatprep.subr.bf16.mxu0 0
        %3698 = vmatpush1.bf16.msra.mxu0 0
        %3699 = vmatprep.subr.bf16.mxu0 0
        %3700 = vmatpush1.bf16.msra.mxu0 0
        %3701 = vmatprep.mubr.bf16.mxu0 0
        %3702 = vmatmul.mubr.bf16.gmra.mrb[0].mxu0 %v3658
        %v3703 = vpop.f32.mrb[0].mxu0
        %v3704 = vadd.f32 %v3615, %v3703
        %v3705 = vpop.f32.mrb[0].mxu0
        %v3706 = vpop.f32.mrb[0].mxu0
        %v3707 = vadd.f32 %v3618, %v3706
        %v3708 = vpop.f32.mrb[0].mxu0
        %3709 = vmatprep.mubr.bf16.mxu0 0
        %3710 = vmatmul.mubr.bf16.gmra.mrb[0].mxu0 %v3661
        %v3711 = vpop.f32.mrb[0].mxu0
        %v3712 = vadd.f32 %v3623, %v3711
        %v3713 = vpop.f32.mrb[0].mxu0
        %v3714 = vpop.f32.mrb[0].mxu0
        %v3715 = vadd.f32 %v3626, %v3714
        %v3716 = vpop.f32.mrb[0].mxu0
        %3717 = vmatprep.mubr.bf16.mxu0 0
        %3718 = vmatmul.mubr.bf16.gmra.mrb[0].mxu0 %v3664
        %v3719 = vpop.f32.mrb[0].mxu0
        %v3720 = vadd.f32 %v3631, %v3719
        %v3721 = vpop.f32.mrb[0].mxu0
        %v3722 = vpop.f32.mrb[0].mxu0
        %v3723 = vadd.f32 %v3634, %v3722
        %v3724 = vpop.f32.mrb[0].mxu0
        %3725 = vmatprep.mubr.bf16.mxu0 0
        %3726 = vmatmul.mubr.bf16.gmra.mrb[0].mxu0 %v3667
        %v3727 = vpop.f32.mrb[0].mxu0
        %v3728 = vadd.f32 %v3639, %v3727
        %v3729 = vpop.f32.mrb[0].mxu0
        %v3730 = vpop.f32.mrb[0].mxu0
        %v3731 = vadd.f32 %v3642, %v3730
        %v3732 = vpop.f32.mrb[0].mxu0
        %3733 = vdwg.mxu0
        %v3734 = vld [vmem:[#allocation2 + $0x2] sm:$0xff]
        %v3735 = vld [vmem:[#allocation2 + $0x12] sm:$0xff]
        %v3736 = vld [vmem:[#allocation2 + $0x22] sm:$0xff]
        %v3737 = vld [vmem:[#allocation2 + $0x32] sm:$0xff]
        %v3738 = vld [vmem:[#allocation2 + $0x42] sm:$0xff]
        %v3739 = vld [vmem:[#allocation2 + $0x52] sm:$0xff]
        %v3740 = vld [vmem:[#allocation2 + $0x62] sm:$0xff]
        %v3741 = vld [vmem:[#allocation2 + $0x72] sm:$0xff]
        %v3742 = vpack.c.bf16 %v3735, %v3734
        %v3743 = vpack.c.bf16 %v3737, %v3736
        %v3744 = vpack.c.bf16 %v3739, %v3738
        %v3745 = vpack.c.bf16 %v3741, %v3740
        %s3746 = scalar_lea.vmem [#allocation6], 464
        %v3747 = vld [vmem:[%s3746] sm:$0xf]
        %v3748 = vld [vmem:[%s3746 + $0x4] sm:$0xf]
        %v3749 = vld [vmem:[%s3746 + $0x8] sm:$0xf]
        %v3750 = vld [vmem:[%s3746 + $0xc] sm:$0xf]
        %v3755 = vunpack.c.l.b16 %v3747
        %v3756 = vunpack.c.l.b16 %v3748
        %v3757 = vunpack.c.l.b16 %v3749
        %v3758 = vunpack.c.l.b16 %v3750
        %v3759 = vpack.c.b16 %v3756, %v3755
        %v3760 = vpack.c.b16 %v3758, %v3757
        %v3764 = vsel %vm178, %v3742, 0
        %v3767 = vsel %vm178, %v3743, 0
        %v3770 = vsel %vm178, %v3744, 0
        %v3773 = vsel %vm178, %v3745, 0
        %3775 = vmatprep.subr.bf16.mxu0 0
        %3776 = vmatpush1.bf16.msra.mxu0 %v3759
        %3777 = vmatprep.subr.bf16.mxu0 0
        %3778 = vmatpush1.bf16.msra.mxu0 %v3760
        %3779 = vmatprep.subr.bf16.mxu0 0
        %3780 = vmatpush1.bf16.msra.mxu0 0
        %3781 = vmatprep.subr.bf16.mxu0 0
        %3782 = vmatpush1.bf16.msra.mxu0 0
        %3783 = vmatprep.subr.bf16.mxu0 0
        %3784 = vmatpush1.bf16.msra.mxu0 0
        %3785 = vmatprep.subr.bf16.mxu0 0
        %3786 = vmatpush1.bf16.msra.mxu0 0
        %3787 = vmatprep.subr.bf16.mxu0 0
        %3788 = vmatpush1.bf16.msra.mxu0 0
        %3789 = vmatprep.subr.bf16.mxu0 0
        %3790 = vmatpush1.bf16.msra.mxu0 0
        %3791 = vmatprep.subr.bf16.mxu0 0
        %3792 = vmatpush1.bf16.msra.mxu0 0
        %3793 = vmatprep.subr.bf16.mxu0 0
        %3794 = vmatpush1.bf16.msra.mxu0 0
        %3795 = vmatprep.subr.bf16.mxu0 0
        %3796 = vmatpush1.bf16.msra.mxu0 0
        %3797 = vmatprep.subr.bf16.mxu0 0
        %3798 = vmatpush1.bf16.msra.mxu0 0
        %3799 = vmatprep.subr.bf16.mxu0 0
        %3800 = vmatpush1.bf16.msra.mxu0 0
        %3801 = vmatprep.subr.bf16.mxu0 0
        %3802 = vmatpush1.bf16.msra.mxu0 0
        %3803 = vmatprep.subr.bf16.mxu0 0
        %3804 = vmatpush1.bf16.msra.mxu0 0
        %3805 = vmatprep.subr.bf16.mxu0 0
        %3806 = vmatpush1.bf16.msra.mxu0 0
        %3807 = vmatprep.mubr.bf16.mxu0 0
        %3808 = vmatmul.mubr.bf16.gmra.mrb[0].mxu0 %v3764
        %v3809 = vpop.f32.mrb[0].mxu0
        %v3810 = vadd.f32 0.0, %v3809
        %v3811 = vpop.f32.mrb[0].mxu0
        %v3812 = vpop.f32.mrb[0].mxu0
        %v3813 = vadd.f32 0.0, %v3812
        %v3814 = vpop.f32.mrb[0].mxu0
        %3815 = vmatprep.mubr.bf16.mxu0 0
        %3816 = vmatmul.mubr.bf16.gmra.mrb[0].mxu0 %v3767
        %v3817 = vpop.f32.mrb[0].mxu0
        %v3818 = vadd.f32 0.0, %v3817
        %v3819 = vpop.f32.mrb[0].mxu0
        %v3820 = vpop.f32.mrb[0].mxu0
        %v3821 = vadd.f32 0.0, %v3820
        %v3822 = vpop.f32.mrb[0].mxu0
        %3823 = vmatprep.mubr.bf16.mxu0 0
        %3824 = vmatmul.mubr.bf16.gmra.mrb[0].mxu0 %v3770
        %v3825 = vpop.f32.mrb[0].mxu0
        %v3826 = vadd.f32 0.0, %v3825
        %v3827 = vpop.f32.mrb[0].mxu0
        %v3828 = vpop.f32.mrb[0].mxu0
        %v3829 = vadd.f32 0.0, %v3828
        %v3830 = vpop.f32.mrb[0].mxu0
        %3831 = vmatprep.mubr.bf16.mxu0 0
        %3832 = vmatmul.mubr.bf16.gmra.mrb[0].mxu0 %v3773
        %v3833 = vpop.f32.mrb[0].mxu0
        %v3834 = vadd.f32 0.0, %v3833
        %v3835 = vpop.f32.mrb[0].mxu0
        %v3836 = vpop.f32.mrb[0].mxu0
        %v3837 = vadd.f32 0.0, %v3836
        %v3838 = vpop.f32.mrb[0].mxu0
        %3839 = vdwg.mxu0
        %v3840 = vadd.f32 %v3704, %v3810
        %v3841 = vadd.f32 %v3707, %v3813
        %v3842 = vadd.f32 %v3712, %v3818
        %v3843 = vadd.f32 %v3715, %v3821
        %v3844 = vadd.f32 %v3720, %v3826
        %v3845 = vadd.f32 %v3723, %v3829
        %v3846 = vadd.f32 %v3728, %v3834
        %v3847 = vadd.f32 %v3731, %v3837
        %v3848 = vld [vmem:[%s208] sm:$0xff]
        %v3849 = vld [vmem:[%s208 + $0x10] sm:$0xff]
        %v3850 = vld [vmem:[%s208 + $0x20] sm:$0xff]
        %v3851 = vld [vmem:[%s208 + $0x30] sm:$0xff]
        %v3852 = vld [vmem:[%s208 + $0x40] sm:$0xff]
        %v3853 = vld [vmem:[%s208 + $0x50] sm:$0xff]
        %v3854 = vld [vmem:[%s208 + $0x60] sm:$0xff]
        %v3855 = vld [vmem:[%s208 + $0x70] sm:$0xff]
        %v3856 = vpack.c.bf16 %v3849, %v3848
        %v3857 = vpack.c.bf16 %v3851, %v3850
        %v3858 = vpack.c.bf16 %v3853, %v3852
        %v3859 = vpack.c.bf16 %v3855, %v3854
        %s3860 = scalar_lea.vmem [#allocation6], 480
        %v3861 = vld [vmem:[%s3860] sm:$0xf]
        %v3862 = vld [vmem:[%s3860 + $0x4] sm:$0xf]
        %v3863 = vld [vmem:[%s3860 + $0x8] sm:$0xf]
        %v3864 = vld [vmem:[%s3860 + $0xc] sm:$0xf]
        %v3869 = vunpack.c.l.b16 %v3861
        %v3870 = vunpack.c.l.b16 %v3862
        %v3871 = vunpack.c.l.b16 %v3863
        %v3872 = vunpack.c.l.b16 %v3864
        %v3873 = vpack.c.b16 %v3870, %v3869
        %v3874 = vpack.c.b16 %v3872, %v3871
        %v3878 = vsel %vm178, %v3856, 0
        %v3881 = vsel %vm178, %v3857, 0
        %v3884 = vsel %vm178, %v3858, 0
        %v3887 = vsel %vm178, %v3859, 0
        %3889 = vmatprep.subr.bf16.mxu0 0
        %3890 = vmatpush1.bf16.msra.mxu0 %v3873
        %3891 = vmatprep.subr.bf16.mxu0 0
        %3892 = vmatpush1.bf16.msra.mxu0 %v3874
        %3893 = vmatprep.subr.bf16.mxu0 0
        %3894 = vmatpush1.bf16.msra.mxu0 0
        %3895 = vmatprep.subr.bf16.mxu0 0
        %3896 = vmatpush1.bf16.msra.mxu0 0
        %3897 = vmatprep.subr.bf16.mxu0 0
        %3898 = vmatpush1.bf16.msra.mxu0 0
        %3899 = vmatprep.subr.bf16.mxu0 0
        %3900 = vmatpush1.bf16.msra.mxu0 0
        %3901 = vmatprep.subr.bf16.mxu0 0
        %3902 = vmatpush1.bf16.msra.mxu0 0
        %3903 = vmatprep.subr.bf16.mxu0 0
        %3904 = vmatpush1.bf16.msra.mxu0 0
        %3905 = vmatprep.subr.bf16.mxu0 0
        %3906 = vmatpush1.bf16.msra.mxu0 0
        %3907 = vmatprep.subr.bf16.mxu0 0
        %3908 = vmatpush1.bf16.msra.mxu0 0
        %3909 = vmatprep.subr.bf16.mxu0 0
        %3910 = vmatpush1.bf16.msra.mxu0 0
        %3911 = vmatprep.subr.bf16.mxu0 0
        %3912 = vmatpush1.bf16.msra.mxu0 0
        %3913 = vmatprep.subr.bf16.mxu0 0
        %3914 = vmatpush1.bf16.msra.mxu0 0
        %3915 = vmatprep.subr.bf16.mxu0 0
        %3916 = vmatpush1.bf16.msra.mxu0 0
        %3917 = vmatprep.subr.bf16.mxu0 0
        %3918 = vmatpush1.bf16.msra.mxu0 0
        %3919 = vmatprep.subr.bf16.mxu0 0
        %3920 = vmatpush1.bf16.msra.mxu0 0
        %3921 = vmatprep.mubr.bf16.mxu0 0
        %3922 = vmatmul.mubr.bf16.gmra.mrb[0].mxu0 %v3878
        %v3923 = vpop.f32.mrb[0].mxu0
        %v3924 = vadd.f32 0.0, %v3923
        %v3925 = vpop.f32.mrb[0].mxu0
        %v3926 = vpop.f32.mrb[0].mxu0
        %v3927 = vadd.f32 0.0, %v3926
        %v3928 = vpop.f32.mrb[0].mxu0
        %3929 = vmatprep.mubr.bf16.mxu0 0
        %3930 = vmatmul.mubr.bf16.gmra.mrb[0].mxu0 %v3881
        %v3931 = vpop.f32.mrb[0].mxu0
        %v3932 = vadd.f32 0.0, %v3931
        %v3933 = vpop.f32.mrb[0].mxu0
        %v3934 = vpop.f32.mrb[0].mxu0
        %v3935 = vadd.f32 0.0, %v3934
        %v3936 = vpop.f32.mrb[0].mxu0
        %3937 = vmatprep.mubr.bf16.mxu0 0
        %3938 = vmatmul.mubr.bf16.gmra.mrb[0].mxu0 %v3884
        %v3939 = vpop.f32.mrb[0].mxu0
        %v3940 = vadd.f32 0.0, %v3939
        %v3941 = vpop.f32.mrb[0].mxu0
        %v3942 = vpop.f32.mrb[0].mxu0
        %v3943 = vadd.f32 0.0, %v3942
        %v3944 = vpop.f32.mrb[0].mxu0
        %3945 = vmatprep.mubr.bf16.mxu0 0
        %3946 = vmatmul.mubr.bf16.gmra.mrb[0].mxu0 %v3887
        %v3947 = vpop.f32.mrb[0].mxu0
        %v3948 = vadd.f32 0.0, %v3947
        %v3949 = vpop.f32.mrb[0].mxu0
        %v3950 = vpop.f32.mrb[0].mxu0
        %v3951 = vadd.f32 0.0, %v3950
        %v3952 = vpop.f32.mrb[0].mxu0
        %3953 = vdwg.mxu0
        %v3954 = vadd.f32 %v3840, %v3924
        %v3955 = vadd.f32 %v3841, %v3927
        %v3956 = vadd.f32 %v3842, %v3932
        %v3957 = vadd.f32 %v3843, %v3935
        %v3958 = vadd.f32 %v3844, %v3940
        %v3959 = vadd.f32 %v3845, %v3943
        %v3960 = vadd.f32 %v3846, %v3948
        %v3961 = vadd.f32 %v3847, %v3951
        %v3962 = vld [vmem:[%s208 + $0x1] sm:$0xff]
        %v3963 = vld [vmem:[%s208 + $0x11] sm:$0xff]
        %v3964 = vld [vmem:[%s208 + $0x21] sm:$0xff]
        %v3965 = vld [vmem:[%s208 + $0x31] sm:$0xff]
        %v3966 = vld [vmem:[%s208 + $0x41] sm:$0xff]
        %v3967 = vld [vmem:[%s208 + $0x51] sm:$0xff]
        %v3968 = vld [vmem:[%s208 + $0x61] sm:$0xff]
        %v3969 = vld [vmem:[%s208 + $0x71] sm:$0xff]
        %v3970 = vpack.c.bf16 %v3963, %v3962
        %v3971 = vpack.c.bf16 %v3965, %v3964
        %v3972 = vpack.c.bf16 %v3967, %v3966
        %v3973 = vpack.c.bf16 %v3969, %v3968
        %s3974 = scalar_lea.vmem [#allocation6], 496
        %v3975 = vld [vmem:[%s3974] sm:$0xf]
        %v3976 = vld [vmem:[%s3974 + $0x4] sm:$0xf]
        %v3977 = vld [vmem:[%s3974 + $0x8] sm:$0xf]
        %v3978 = vld [vmem:[%s3974 + $0xc] sm:$0xf]
        %v3983 = vunpack.c.l.b16 %v3975
        %v3984 = vunpack.c.l.b16 %v3976
        %v3985 = vunpack.c.l.b16 %v3977
        %v3986 = vunpack.c.l.b16 %v3978
        %v3987 = vpack.c.b16 %v3984, %v3983
        %v3988 = vpack.c.b16 %v3986, %v3985
        %v3992 = vsel %vm178, %v3970, 0
        %v3995 = vsel %vm178, %v3971, 0
        %v3998 = vsel %vm178, %v3972, 0
        %v4001 = vsel %vm178, %v3973, 0
        %4003 = vmatprep.subr.bf16.mxu0 0
        %4004 = vmatpush1.bf16.msra.mxu0 %v3987
        %4005 = vmatprep.subr.bf16.mxu0 0
        %4006 = vmatpush1.bf16.msra.mxu0 %v3988
        %4007 = vmatprep.subr.bf16.mxu0 0
        %4008 = vmatpush1.bf16.msra.mxu0 0
        %4009 = vmatprep.subr.bf16.mxu0 0
        %4010 = vmatpush1.bf16.msra.mxu0 0
        %4011 = vmatprep.subr.bf16.mxu0 0
        %4012 = vmatpush1.bf16.msra.mxu0 0
        %4013 = vmatprep.subr.bf16.mxu0 0
        %4014 = vmatpush1.bf16.msra.mxu0 0
        %4015 = vmatprep.subr.bf16.mxu0 0
        %4016 = vmatpush1.bf16.msra.mxu0 0
        %4017 = vmatprep.subr.bf16.mxu0 0
        %4018 = vmatpush1.bf16.msra.mxu0 0
        %4019 = vmatprep.subr.bf16.mxu0 0
        %4020 = vmatpush1.bf16.msra.mxu0 0
        %4021 = vmatprep.subr.bf16.mxu0 0
        %4022 = vmatpush1.bf16.msra.mxu0 0
        %4023 = vmatprep.subr.bf16.mxu0 0
        %4024 = vmatpush1.bf16.msra.mxu0 0
        %4025 = vmatprep.subr.bf16.mxu0 0
        %4026 = vmatpush1.bf16.msra.mxu0 0
        %4027 = vmatprep.subr.bf16.mxu0 0
        %4028 = vmatpush1.bf16.msra.mxu0 0
        %4029 = vmatprep.subr.bf16.mxu0 0
        %4030 = vmatpush1.bf16.msra.mxu0 0
        %4031 = vmatprep.subr.bf16.mxu0 0
        %4032 = vmatpush1.bf16.msra.mxu0 0
        %4033 = vmatprep.subr.bf16.mxu0 0
        %4034 = vmatpush1.bf16.msra.mxu0 0
        %4035 = vmatprep.mubr.bf16.mxu0 0
        %4036 = vmatmul.mubr.bf16.gmra.mrb[0].mxu0 %v3992
        %v4037 = vpop.f32.mrb[0].mxu0
        %v4038 = vadd.f32 0.0, %v4037
        %v4039 = vpop.f32.mrb[0].mxu0
        %v4040 = vpop.f32.mrb[0].mxu0
        %v4041 = vadd.f32 0.0, %v4040
        %v4042 = vpop.f32.mrb[0].mxu0
        %4043 = vmatprep.mubr.bf16.mxu0 0
        %4044 = vmatmul.mubr.bf16.gmra.mrb[0].mxu0 %v3995
        %v4045 = vpop.f32.mrb[0].mxu0
        %v4046 = vadd.f32 0.0, %v4045
        %v4047 = vpop.f32.mrb[0].mxu0
        %v4048 = vpop.f32.mrb[0].mxu0
        %v4049 = vadd.f32 0.0, %v4048
        %v4050 = vpop.f32.mrb[0].mxu0
        %4051 = vmatprep.mubr.bf16.mxu0 0
        %4052 = vmatmul.mubr.bf16.gmra.mrb[0].mxu0 %v3998
        %v4053 = vpop.f32.mrb[0].mxu0
        %v4054 = vadd.f32 0.0, %v4053
        %v4055 = vpop.f32.mrb[0].mxu0
        %v4056 = vpop.f32.mrb[0].mxu0
        %v4057 = vadd.f32 0.0, %v4056
        %v4058 = vpop.f32.mrb[0].mxu0
        %4059 = vmatprep.mubr.bf16.mxu0 0
        %4060 = vmatmul.mubr.bf16.gmra.mrb[0].mxu0 %v4001
        %v4061 = vpop.f32.mrb[0].mxu0
        %v4062 = vadd.f32 0.0, %v4061
        %v4063 = vpop.f32.mrb[0].mxu0
        %v4064 = vpop.f32.mrb[0].mxu0
        %v4065 = vadd.f32 0.0, %v4064
        %v4066 = vpop.f32.mrb[0].mxu0
        %4067 = vdwg.mxu0
        %v4068 = vadd.f32 %v3954, %v4038
        %v4069 = vadd.f32 %v3955, %v4041
        %v4070 = vadd.f32 %v3956, %v4046
        %v4071 = vadd.f32 %v3957, %v4049
        %v4072 = vadd.f32 %v3958, %v4054
        %v4073 = vadd.f32 %v3959, %v4057
        %v4074 = vadd.f32 %v3960, %v4062
        %v4075 = vadd.f32 %v3961, %v4065
        %v4076 = vld [vmem:[%s208 + $0x2] sm:$0xff]
        %v4077 = vld [vmem:[%s208 + $0x12] sm:$0xff]
        %v4078 = vld [vmem:[%s208 + $0x22] sm:$0xff]
        %v4079 = vld [vmem:[%s208 + $0x32] sm:$0xff]
        %v4080 = vld [vmem:[%s208 + $0x42] sm:$0xff]
        %v4081 = vld [vmem:[%s208 + $0x52] sm:$0xff]
        %v4082 = vld [vmem:[%s208 + $0x62] sm:$0xff]
        %v4083 = vld [vmem:[%s208 + $0x72] sm:$0xff]
        %v4084 = vpack.c.bf16 %v4077, %v4076
        %v4085 = vpack.c.bf16 %v4079, %v4078
        %v4086 = vpack.c.bf16 %v4081, %v4080
        %v4087 = vpack.c.bf16 %v4083, %v4082
        %s4088 = scalar_lea.vmem [#allocation6], 512
        %v4089 = vld [vmem:[%s4088] sm:$0xf]
        %v4090 = vld [vmem:[%s4088 + $0x4] sm:$0xf]
        %v4091 = vld [vmem:[%s4088 + $0x8] sm:$0xf]
        %v4092 = vld [vmem:[%s4088 + $0xc] sm:$0xf]
        %v4097 = vunpack.c.l.b16 %v4089
        %v4098 = vunpack.c.l.b16 %v4090
        %v4099 = vunpack.c.l.b16 %v4091
        %v4100 = vunpack.c.l.b16 %v4092
        %v4101 = vpack.c.b16 %v4098, %v4097
        %v4102 = vpack.c.b16 %v4100, %v4099
        %v4106 = vsel %vm178, %v4084, 0
        %v4109 = vsel %vm178, %v4085, 0
        %v4112 = vsel %vm178, %v4086, 0
        %v4115 = vsel %vm178, %v4087, 0
        %4117 = vmatprep.subr.bf16.mxu0 0
        %4118 = vmatpush1.bf16.msra.mxu0 %v4101
        %4119 = vmatprep.subr.bf16.mxu0 0
        %4120 = vmatpush1.bf16.msra.mxu0 %v4102
        %4121 = vmatprep.subr.bf16.mxu0 0
        %4122 = vmatpush1.bf16.msra.mxu0 0
        %4123 = vmatprep.subr.bf16.mxu0 0
        %4124 = vmatpush1.bf16.msra.mxu0 0
        %4125 = vmatprep.subr.bf16.mxu0 0
        %4126 = vmatpush1.bf16.msra.mxu0 0
        %4127 = vmatprep.subr.bf16.mxu0 0
        %4128 = vmatpush1.bf16.msra.mxu0 0
        %4129 = vmatprep.subr.bf16.mxu0 0
        %4130 = vmatpush1.bf16.msra.mxu0 0
        %4131 = vmatprep.subr.bf16.mxu0 0
        %4132 = vmatpush1.bf16.msra.mxu0 0
        %4133 = vmatprep.subr.bf16.mxu0 0
        %4134 = vmatpush1.bf16.msra.mxu0 0
        %4135 = vmatprep.subr.bf16.mxu0 0
        %4136 = vmatpush1.bf16.msra.mxu0 0
        %4137 = vmatprep.subr.bf16.mxu0 0
        %4138 = vmatpush1.bf16.msra.mxu0 0
        %4139 = vmatprep.subr.bf16.mxu0 0
        %4140 = vmatpush1.bf16.msra.mxu0 0
        %4141 = vmatprep.subr.bf16.mxu0 0
        %4142 = vmatpush1.bf16.msra.mxu0 0
        %4143 = vmatprep.subr.bf16.mxu0 0
        %4144 = vmatpush1.bf16.msra.mxu0 0
        %4145 = vmatprep.subr.bf16.mxu0 0
        %4146 = vmatpush1.bf16.msra.mxu0 0
        %4147 = vmatprep.subr.bf16.mxu0 0
        %4148 = vmatpush1.bf16.msra.mxu0 0
        %4149 = vmatprep.mubr.bf16.mxu0 0
        %4150 = vmatmul.mubr.bf16.gmra.mrb[0].mxu0 %v4106
        %v4151 = vpop.f32.mrb[0].mxu0
        %v4152 = vadd.f32 0.0, %v4151
        %v4153 = vpop.f32.mrb[0].mxu0
        %v4154 = vpop.f32.mrb[0].mxu0
        %v4155 = vadd.f32 0.0, %v4154
        %v4156 = vpop.f32.mrb[0].mxu0
        %4157 = vmatprep.mubr.bf16.mxu0 0
        %4158 = vmatmul.mubr.bf16.gmra.mrb[0].mxu0 %v4109
        %v4159 = vpop.f32.mrb[0].mxu0
        %v4160 = vadd.f32 0.0, %v4159
        %v4161 = vpop.f32.mrb[0].mxu0
        %v4162 = vpop.f32.mrb[0].mxu0
        %v4163 = vadd.f32 0.0, %v4162
        %v4164 = vpop.f32.mrb[0].mxu0
        %4165 = vmatprep.mubr.bf16.mxu0 0
        %4166 = vmatmul.mubr.bf16.gmra.mrb[0].mxu0 %v4112
        %v4167 = vpop.f32.mrb[0].mxu0
        %v4168 = vadd.f32 0.0, %v4167
        %v4169 = vpop.f32.mrb[0].mxu0
        %v4170 = vpop.f32.mrb[0].mxu0
        %v4171 = vadd.f32 0.0, %v4170
        %v4172 = vpop.f32.mrb[0].mxu0
        %4173 = vmatprep.mubr.bf16.mxu0 0
        %4174 = vmatmul.mubr.bf16.gmra.mrb[0].mxu0 %v4115
        %v4175 = vpop.f32.mrb[0].mxu0
        %v4176 = vadd.f32 0.0, %v4175
        %v4177 = vpop.f32.mrb[0].mxu0
        %v4178 = vpop.f32.mrb[0].mxu0
        %v4179 = vadd.f32 0.0, %v4178
        %v4180 = vpop.f32.mrb[0].mxu0
        %4181 = vdwg.mxu0
        %v4182 = vadd.f32 %v4068, %v4152
        %v4183 = vadd.f32 %v4069, %v4155
        %v4184 = vadd.f32 %v4070, %v4160
        %v4185 = vadd.f32 %v4071, %v4163
        %v4186 = vadd.f32 %v4072, %v4168
        %v4187 = vadd.f32 %v4073, %v4171
        %v4188 = vadd.f32 %v4074, %v4176
        %v4189 = vadd.f32 %v4075, %v4179
        %v4190 = vld [vmem:[%s884] sm:$0xff]
        %v4191 = vld [vmem:[%s884 + $0x10] sm:$0xff]
        %v4192 = vld [vmem:[%s884 + $0x20] sm:$0xff]
        %v4193 = vld [vmem:[%s884 + $0x30] sm:$0xff]
        %v4194 = vld [vmem:[%s884 + $0x40] sm:$0xff]
        %v4195 = vld [vmem:[%s884 + $0x50] sm:$0xff]
        %v4196 = vld [vmem:[%s884 + $0x60] sm:$0xff]
        %v4197 = vld [vmem:[%s884 + $0x70] sm:$0xff]
        %v4198 = vpack.c.bf16 %v4191, %v4190
        %v4199 = vpack.c.bf16 %v4193, %v4192
        %v4200 = vpack.c.bf16 %v4195, %v4194
        %v4201 = vpack.c.bf16 %v4197, %v4196
        %s4202 = scalar_lea.vmem [#allocation6], 528
        %v4203 = vld [vmem:[%s4202] sm:$0xf]
        %v4204 = vld [vmem:[%s4202 + $0x4] sm:$0xf]
        %v4205 = vld [vmem:[%s4202 + $0x8] sm:$0xf]
        %v4206 = vld [vmem:[%s4202 + $0xc] sm:$0xf]
        %v4211 = vunpack.c.l.b16 %v4203
        %v4212 = vunpack.c.l.b16 %v4204
        %v4213 = vunpack.c.l.b16 %v4205
        %v4214 = vunpack.c.l.b16 %v4206
        %v4215 = vpack.c.b16 %v4212, %v4211
        %v4216 = vpack.c.b16 %v4214, %v4213
        %v4220 = vsel %vm178, %v4198, 0
        %v4223 = vsel %vm178, %v4199, 0
        %v4226 = vsel %vm178, %v4200, 0
        %v4229 = vsel %vm178, %v4201, 0
        %4231 = vmatprep.subr.bf16.mxu0 0
        %4232 = vmatpush1.bf16.msra.mxu0 %v4215
        %4233 = vmatprep.subr.bf16.mxu0 0
        %4234 = vmatpush1.bf16.msra.mxu0 %v4216
        %4235 = vmatprep.subr.bf16.mxu0 0
        %4236 = vmatpush1.bf16.msra.mxu0 0
        %4237 = vmatprep.subr.bf16.mxu0 0
        %4238 = vmatpush1.bf16.msra.mxu0 0
        %4239 = vmatprep.subr.bf16.mxu0 0
        %4240 = vmatpush1.bf16.msra.mxu0 0
        %4241 = vmatprep.subr.bf16.mxu0 0
        %4242 = vmatpush1.bf16.msra.mxu0 0
        %4243 = vmatprep.subr.bf16.mxu0 0
        %4244 = vmatpush1.bf16.msra.mxu0 0
        %4245 = vmatprep.subr.bf16.mxu0 0
        %4246 = vmatpush1.bf16.msra.mxu0 0
        %4247 = vmatprep.subr.bf16.mxu0 0
        %4248 = vmatpush1.bf16.msra.mxu0 0
        %4249 = vmatprep.subr.bf16.mxu0 0
        %4250 = vmatpush1.bf16.msra.mxu0 0
        %4251 = vmatprep.subr.bf16.mxu0 0
        %4252 = vmatpush1.bf16.msra.mxu0 0
        %4253 = vmatprep.subr.bf16.mxu0 0
        %4254 = vmatpush1.bf16.msra.mxu0 0
        %4255 = vmatprep.subr.bf16.mxu0 0
        %4256 = vmatpush1.bf16.msra.mxu0 0
        %4257 = vmatprep.subr.bf16.mxu0 0
        %4258 = vmatpush1.bf16.msra.mxu0 0
        %4259 = vmatprep.subr.bf16.mxu0 0
        %4260 = vmatpush1.bf16.msra.mxu0 0
        %4261 = vmatprep.subr.bf16.mxu0 0
        %4262 = vmatpush1.bf16.msra.mxu0 0
        %4263 = vmatprep.mubr.bf16.mxu0 0
        %4264 = vmatmul.mubr.bf16.gmra.mrb[0].mxu0 %v4220
        %v4265 = vpop.f32.mrb[0].mxu0
        %v4266 = vadd.f32 0.0, %v4265
        %v4267 = vpop.f32.mrb[0].mxu0
        %v4268 = vpop.f32.mrb[0].mxu0
        %v4269 = vadd.f32 0.0, %v4268
        %v4270 = vpop.f32.mrb[0].mxu0
        %4271 = vmatprep.mubr.bf16.mxu0 0
        %4272 = vmatmul.mubr.bf16.gmra.mrb[0].mxu0 %v4223
        %v4273 = vpop.f32.mrb[0].mxu0
        %v4274 = vadd.f32 0.0, %v4273
        %v4275 = vpop.f32.mrb[0].mxu0
        %v4276 = vpop.f32.mrb[0].mxu0
        %v4277 = vadd.f32 0.0, %v4276
        %v4278 = vpop.f32.mrb[0].mxu0
        %4279 = vmatprep.mubr.bf16.mxu0 0
        %4280 = vmatmul.mubr.bf16.gmra.mrb[0].mxu0 %v4226
        %v4281 = vpop.f32.mrb[0].mxu0
        %v4282 = vadd.f32 0.0, %v4281
        %v4283 = vpop.f32.mrb[0].mxu0
        %v4284 = vpop.f32.mrb[0].mxu0
        %v4285 = vadd.f32 0.0, %v4284
        %v4286 = vpop.f32.mrb[0].mxu0
        %4287 = vmatprep.mubr.bf16.mxu0 0
        %4288 = vmatmul.mubr.bf16.gmra.mrb[0].mxu0 %v4229
        %v4289 = vpop.f32.mrb[0].mxu0
        %v4290 = vadd.f32 0.0, %v4289
        %v4291 = vpop.f32.mrb[0].mxu0
        %v4292 = vpop.f32.mrb[0].mxu0
        %v4293 = vadd.f32 0.0, %v4292
        %v4294 = vpop.f32.mrb[0].mxu0
        %4295 = vdwg.mxu0
        %v4296 = vadd.f32 %v4182, %v4266
        %v4297 = vadd.f32 %v4183, %v4269
        %v4298 = vadd.f32 %v4184, %v4274
        %v4299 = vadd.f32 %v4185, %v4277
        %v4300 = vadd.f32 %v4186, %v4282
        %v4301 = vadd.f32 %v4187, %v4285
        %v4302 = vadd.f32 %v4188, %v4290
        %v4303 = vadd.f32 %v4189, %v4293
        %v4304 = vld [vmem:[%s884 + $0x1] sm:$0xff]
        %v4305 = vld [vmem:[%s884 + $0x11] sm:$0xff]
        %v4306 = vld [vmem:[%s884 + $0x21] sm:$0xff]
        %v4307 = vld [vmem:[%s884 + $0x31] sm:$0xff]
        %v4308 = vld [vmem:[%s884 + $0x41] sm:$0xff]
        %v4309 = vld [vmem:[%s884 + $0x51] sm:$0xff]
        %v4310 = vld [vmem:[%s884 + $0x61] sm:$0xff]
        %v4311 = vld [vmem:[%s884 + $0x71] sm:$0xff]
        %v4312 = vpack.c.bf16 %v4305, %v4304
        %v4313 = vpack.c.bf16 %v4307, %v4306
        %v4314 = vpack.c.bf16 %v4309, %v4308
        %v4315 = vpack.c.bf16 %v4311, %v4310
        %s4316 = scalar_lea.vmem [#allocation6], 544
        %v4317 = vld [vmem:[%s4316] sm:$0xf]
        %v4318 = vld [vmem:[%s4316 + $0x4] sm:$0xf]
        %v4319 = vld [vmem:[%s4316 + $0x8] sm:$0xf]
        %v4320 = vld [vmem:[%s4316 + $0xc] sm:$0xf]
        %v4325 = vunpack.c.l.b16 %v4317
        %v4326 = vunpack.c.l.b16 %v4318
        %v4327 = vunpack.c.l.b16 %v4319
        %v4328 = vunpack.c.l.b16 %v4320
        %v4329 = vpack.c.b16 %v4326, %v4325
        %v4330 = vpack.c.b16 %v4328, %v4327
        %v4334 = vsel %vm178, %v4312, 0
        %v4337 = vsel %vm178, %v4313, 0
        %v4340 = vsel %vm178, %v4314, 0
        %v4343 = vsel %vm178, %v4315, 0
        %4345 = vmatprep.subr.bf16.mxu0 0
        %4346 = vmatpush1.bf16.msra.mxu0 %v4329
        %4347 = vmatprep.subr.bf16.mxu0 0
        %4348 = vmatpush1.bf16.msra.mxu0 %v4330
        %4349 = vmatprep.subr.bf16.mxu0 0
        %4350 = vmatpush1.bf16.msra.mxu0 0
        %4351 = vmatprep.subr.bf16.mxu0 0
        %4352 = vmatpush1.bf16.msra.mxu0 0
        %4353 = vmatprep.subr.bf16.mxu0 0
        %4354 = vmatpush1.bf16.msra.mxu0 0
        %4355 = vmatprep.subr.bf16.mxu0 0
        %4356 = vmatpush1.bf16.msra.mxu0 0
        %4357 = vmatprep.subr.bf16.mxu0 0
        %4358 = vmatpush1.bf16.msra.mxu0 0
        %4359 = vmatprep.subr.bf16.mxu0 0
        %4360 = vmatpush1.bf16.msra.mxu0 0
        %4361 = vmatprep.subr.bf16.mxu0 0
        %4362 = vmatpush1.bf16.msra.mxu0 0
        %4363 = vmatprep.subr.bf16.mxu0 0
        %4364 = vmatpush1.bf16.msra.mxu0 0
        %4365 = vmatprep.subr.bf16.mxu0 0
        %4366 = vmatpush1.bf16.msra.mxu0 0
        %4367 = vmatprep.subr.bf16.mxu0 0
        %4368 = vmatpush1.bf16.msra.mxu0 0
        %4369 = vmatprep.subr.bf16.mxu0 0
        %4370 = vmatpush1.bf16.msra.mxu0 0
        %4371 = vmatprep.subr.bf16.mxu0 0
        %4372 = vmatpush1.bf16.msra.mxu0 0
        %4373 = vmatprep.subr.bf16.mxu0 0
        %4374 = vmatpush1.bf16.msra.mxu0 0
        %4375 = vmatprep.subr.bf16.mxu0 0
        %4376 = vmatpush1.bf16.msra.mxu0 0
        %4377 = vmatprep.mubr.bf16.mxu0 0
        %4378 = vmatmul.mubr.bf16.gmra.mrb[0].mxu0 %v4334
        %v4379 = vpop.f32.mrb[0].mxu0
        %v4380 = vadd.f32 0.0, %v4379
        %v4381 = vpop.f32.mrb[0].mxu0
        %v4382 = vpop.f32.mrb[0].mxu0
        %v4383 = vadd.f32 0.0, %v4382
        %v4384 = vpop.f32.mrb[0].mxu0
        %4385 = vmatprep.mubr.bf16.mxu0 0
        %4386 = vmatmul.mubr.bf16.gmra.mrb[0].mxu0 %v4337
        %v4387 = vpop.f32.mrb[0].mxu0
        %v4388 = vadd.f32 0.0, %v4387
        %v4389 = vpop.f32.mrb[0].mxu0
        %v4390 = vpop.f32.mrb[0].mxu0
        %v4391 = vadd.f32 0.0, %v4390
        %v4392 = vpop.f32.mrb[0].mxu0
        %4393 = vmatprep.mubr.bf16.mxu0 0
        %4394 = vmatmul.mubr.bf16.gmra.mrb[0].mxu0 %v4340
        %v4395 = vpop.f32.mrb[0].mxu0
        %v4396 = vadd.f32 0.0, %v4395
        %v4397 = vpop.f32.mrb[0].mxu0
        %v4398 = vpop.f32.mrb[0].mxu0
        %v4399 = vadd.f32 0.0, %v4398
        %v4400 = vpop.f32.mrb[0].mxu0
        %4401 = vmatprep.mubr.bf16.mxu0 0
        %4402 = vmatmul.mubr.bf16.gmra.mrb[0].mxu0 %v4343
        %v4403 = vpop.f32.mrb[0].mxu0
        %v4404 = vadd.f32 0.0, %v4403
        %v4405 = vpop.f32.mrb[0].mxu0
        %v4406 = vpop.f32.mrb[0].mxu0
        %v4407 = vadd.f32 0.0, %v4406
        %v4408 = vpop.f32.mrb[0].mxu0
        %4409 = vdwg.mxu0
        %v4410 = vadd.f32 %v4296, %v4380
        %v4411 = vadd.f32 %v4297, %v4383
        %v4412 = vadd.f32 %v4298, %v4388
        %v4413 = vadd.f32 %v4299, %v4391
        %v4414 = vadd.f32 %v4300, %v4396
        %v4415 = vadd.f32 %v4301, %v4399
        %v4416 = vadd.f32 %v4302, %v4404
        %v4417 = vadd.f32 %v4303, %v4407
        %v4418 = vld [vmem:[%s884 + $0x2] sm:$0xff]
        %v4419 = vld [vmem:[%s884 + $0x12] sm:$0xff]
        %v4420 = vld [vmem:[%s884 + $0x22] sm:$0xff]
        %v4421 = vld [vmem:[%s884 + $0x32] sm:$0xff]
        %v4422 = vld [vmem:[%s884 + $0x42] sm:$0xff]
        %v4423 = vld [vmem:[%s884 + $0x52] sm:$0xff]
        %v4424 = vld [vmem:[%s884 + $0x62] sm:$0xff]
        %v4425 = vld [vmem:[%s884 + $0x72] sm:$0xff]
        %v4426 = vpack.c.bf16 %v4419, %v4418
        %v4427 = vpack.c.bf16 %v4421, %v4420
        %v4428 = vpack.c.bf16 %v4423, %v4422
        %v4429 = vpack.c.bf16 %v4425, %v4424
        %s4430 = scalar_lea.vmem [#allocation6], 560
        %v4431 = vld [vmem:[%s4430] sm:$0xf]
        %v4432 = vld [vmem:[%s4430 + $0x4] sm:$0xf]
        %v4433 = vld [vmem:[%s4430 + $0x8] sm:$0xf]
        %v4434 = vld [vmem:[%s4430 + $0xc] sm:$0xf]
        %v4439 = vunpack.c.l.b16 %v4431
        %v4440 = vunpack.c.l.b16 %v4432
        %v4441 = vunpack.c.l.b16 %v4433
        %v4442 = vunpack.c.l.b16 %v4434
        %v4443 = vpack.c.b16 %v4440, %v4439
        %v4444 = vpack.c.b16 %v4442, %v4441
        %v4448 = vsel %vm178, %v4426, 0
        %v4451 = vsel %vm178, %v4427, 0
        %v4454 = vsel %vm178, %v4428, 0
        %v4457 = vsel %vm178, %v4429, 0
        %4459 = vmatprep.subr.bf16.mxu0 0
        %4460 = vmatpush1.bf16.msra.mxu0 %v4443
        %4461 = vmatprep.subr.bf16.mxu0 0
        %4462 = vmatpush1.bf16.msra.mxu0 %v4444
        %4463 = vmatprep.subr.bf16.mxu0 0
        %4464 = vmatpush1.bf16.msra.mxu0 0
        %4465 = vmatprep.subr.bf16.mxu0 0
        %4466 = vmatpush1.bf16.msra.mxu0 0
        %4467 = vmatprep.subr.bf16.mxu0 0
        %4468 = vmatpush1.bf16.msra.mxu0 0
        %4469 = vmatprep.subr.bf16.mxu0 0
        %4470 = vmatpush1.bf16.msra.mxu0 0
        %4471 = vmatprep.subr.bf16.mxu0 0
        %4472 = vmatpush1.bf16.msra.mxu0 0
        %4473 = vmatprep.subr.bf16.mxu0 0
        %4474 = vmatpush1.bf16.msra.mxu0 0
        %4475 = vmatprep.subr.bf16.mxu0 0
        %4476 = vmatpush1.bf16.msra.mxu0 0
        %4477 = vmatprep.subr.bf16.mxu0 0
        %4478 = vmatpush1.bf16.msra.mxu0 0
        %4479 = vmatprep.subr.bf16.mxu0 0
        %4480 = vmatpush1.bf16.msra.mxu0 0
        %4481 = vmatprep.subr.bf16.mxu0 0
        %4482 = vmatpush1.bf16.msra.mxu0 0
        %4483 = vmatprep.subr.bf16.mxu0 0
        %4484 = vmatpush1.bf16.msra.mxu0 0
        %4485 = vmatprep.subr.bf16.mxu0 0
        %4486 = vmatpush1.bf16.msra.mxu0 0
        %4487 = vmatprep.subr.bf16.mxu0 0
        %4488 = vmatpush1.bf16.msra.mxu0 0
        %4489 = vmatprep.subr.bf16.mxu0 0
        %4490 = vmatpush1.bf16.msra.mxu0 0
        %4491 = vmatprep.mubr.bf16.mxu0 0
        %4492 = vmatmul.mubr.bf16.gmra.mrb[0].mxu0 %v4448
        %v4493 = vpop.f32.mrb[0].mxu0
        %v4494 = vadd.f32 0.0, %v4493
        %v4495 = vpop.f32.mrb[0].mxu0
        %v4496 = vpop.f32.mrb[0].mxu0
        %v4497 = vadd.f32 0.0, %v4496
        %v4498 = vpop.f32.mrb[0].mxu0
        %4499 = vmatprep.mubr.bf16.mxu0 0
        %4500 = vmatmul.mubr.bf16.gmra.mrb[0].mxu0 %v4451
        %v4501 = vpop.f32.mrb[0].mxu0
        %v4502 = vadd.f32 0.0, %v4501
        %v4503 = vpop.f32.mrb[0].mxu0
        %v4504 = vpop.f32.mrb[0].mxu0
        %v4505 = vadd.f32 0.0, %v4504
        %v4506 = vpop.f32.mrb[0].mxu0
        %4507 = vmatprep.mubr.bf16.mxu0 0
        %4508 = vmatmul.mubr.bf16.gmra.mrb[0].mxu0 %v4454
        %v4509 = vpop.f32.mrb[0].mxu0
        %v4510 = vadd.f32 0.0, %v4509
        %v4511 = vpop.f32.mrb[0].mxu0
        %v4512 = vpop.f32.mrb[0].mxu0
        %v4513 = vadd.f32 0.0, %v4512
        %v4514 = vpop.f32.mrb[0].mxu0
        %4515 = vmatprep.mubr.bf16.mxu0 0
        %4516 = vmatmul.mubr.bf16.gmra.mrb[0].mxu0 %v4457
        %v4517 = vpop.f32.mrb[0].mxu0
        %v4518 = vadd.f32 0.0, %v4517
        %v4519 = vpop.f32.mrb[0].mxu0
        %v4520 = vpop.f32.mrb[0].mxu0
        %v4521 = vadd.f32 0.0, %v4520
        %v4522 = vpop.f32.mrb[0].mxu0
        %4523 = vdwg.mxu0
        %v4524 = vadd.f32 %v4410, %v4494
        %v4525 = vadd.f32 %v4411, %v4497
        %v4526 = vadd.f32 %v4412, %v4502
        %v4527 = vadd.f32 %v4413, %v4505
        %v4528 = vadd.f32 %v4414, %v4510
        %v4529 = vadd.f32 %v4415, %v4513
        %v4530 = vadd.f32 %v4416, %v4518
        %v4531 = vadd.f32 %v4417, %v4521
        %v4532 = vsel %vm178, %v4524, 0.0
        %v4533 = vsel %vm178, %v4525, 0.0
        %v4534 = vadd.f32 %v4532, %v4533
        %v4535 = vsel %vm178, %v4526, 0.0
        %v4536 = vadd.f32 %v4534, %v4535
        %v4537 = vsel %vm178, %v4527, 0.0
        %v4538 = vadd.f32 %v4536, %v4537
        %v4539 = vsel %vm178, %v4528, 0.0
        %v4540 = vadd.f32 %v4538, %v4539
        %v4541 = vsel %vm178, %v4529, 0.0
        %v4542 = vadd.f32 %v4540, %v4541
        %v4543 = vsel %vm178, %v4530, 0.0
        %v4544 = vadd.f32 %v4542, %v4543
        %v4545 = vsel %vm178, %v4531, 0.0
        %v4546 = vadd.f32 %v4544, %v4545
        %v4547 = vrot.slane %v4546, 4
        %v4548 = vadd.f32 %v4546, %v4547
        %v4549 = vrot.slane %v4548, 2
        %v4550 = vadd.f32 %v4548, %v4549
        %v4551 = vrot.slane %v4550, 1
        %v4552 = vadd.f32 %v4550, %v4551
        %v4553 = vmul.f32 %v4552, 0.015625
        %v4554 = vmul.f32 %v4524, %v4524
        %v4555 = vmul.f32 %v4525, %v4525
        %v4556 = vmul.f32 %v4526, %v4526
        %v4557 = vmul.f32 %v4527, %v4527
        %v4558 = vmul.f32 %v4528, %v4528
        %v4559 = vmul.f32 %v4529, %v4529
        %v4560 = vmul.f32 %v4530, %v4530
        %v4561 = vmul.f32 %v4531, %v4531
        %v4562 = vsel %vm178, %v4554, 0.0
        %v4563 = vsel %vm178, %v4555, 0.0
        %v4564 = vadd.f32 %v4562, %v4563
        %v4565 = vsel %vm178, %v4556, 0.0
        %v4566 = vadd.f32 %v4564, %v4565
        %v4567 = vsel %vm178, %v4557, 0.0
        %v4568 = vadd.f32 %v4566, %v4567
        %v4569 = vsel %vm178, %v4558, 0.0
        %v4570 = vadd.f32 %v4568, %v4569
        %v4571 = vsel %vm178, %v4559, 0.0
        %v4572 = vadd.f32 %v4570, %v4571
        %v4573 = vsel %vm178, %v4560, 0.0
        %v4574 = vadd.f32 %v4572, %v4573
        %v4575 = vsel %vm178, %v4561, 0.0
        %v4576 = vadd.f32 %v4574, %v4575
        %v4577 = vrot.slane %v4576, 4
        %v4578 = vadd.f32 %v4576, %v4577
        %v4579 = vrot.slane %v4578, 2
        %v4580 = vadd.f32 %v4578, %v4579
        %v4581 = vrot.slane %v4580, 1
        %v4582 = vadd.f32 %v4580, %v4581
        %v4583 = vmul.f32 %v4582, 0.015625
        %v4584 = vmul.f32 %v4553, %v4553
        %v4585 = vsub.f32 %v4583, %v4584
        %v4586 = vmax.f32 %v4585, 0.0
        %v4587 = vsub.f32 %v4524, %v4553
        %v4588 = vsub.f32 %v4525, %v4553
        %v4589 = vsub.f32 %v4526, %v4553
        %v4590 = vsub.f32 %v4527, %v4553
        %v4591 = vsub.f32 %v4528, %v4553
        %v4592 = vsub.f32 %v4529, %v4553
        %v4593 = vsub.f32 %v4530, %v4553
        %v4594 = vsub.f32 %v4531, %v4553
        %v4595 = vadd.f32 %v4586, 1e-05
        %v4596 = vrsqrt.pop %v4595
        %v4597 = vmul.f32 %v4587, %v4596
        %v4598 = vmul.f32 %v4588, %v4596
        %v4599 = vmul.f32 %v4589, %v4596
        %v4600 = vmul.f32 %v4590, %v4596
        %v4601 = vmul.f32 %v4591, %v4596
        %v4602 = vmul.f32 %v4592, %v4596
        %v4603 = vmul.f32 %v4593, %v4596
        %v4604 = vmul.f32 %v4594, %v4596
        %v4605 = vadd.f32 %v4597, %v2407
        %v4606 = vadd.f32 %v4598, %v2408
        %v4607 = vadd.f32 %v4599, %v2409
        %v4608 = vadd.f32 %v4600, %v2410
        %v4609 = vadd.f32 %v4601, %v2411
        %v4610 = vadd.f32 %v4602, %v2412
        %v4611 = vadd.f32 %v4603, %v2413
        %v4612 = vadd.f32 %v4604, %v2414
        %v4613 = vmax.f32 %v4605, 0.0
        %v4614 = vmax.f32 %v4606, 0.0
        %v4615 = vmax.f32 %v4607, 0.0
        %v4616 = vmax.f32 %v4608, 0.0
        %v4617 = vmax.f32 %v4609, 0.0
        %v4618 = vmax.f32 %v4610, 0.0
        %v4619 = vmax.f32 %v4611, 0.0
        %v4620 = vmax.f32 %v4612, 0.0
        %4621 = vst.msk [vmem:[%s208 + $0x1] sm:$0xff] %vm178, %v4613
        %4622 = vst.msk [vmem:[%s208 + $0x11] sm:$0xff] %vm178, %v4614
        %4623 = vst.msk [vmem:[%s208 + $0x21] sm:$0xff] %vm178, %v4615
        %4624 = vst.msk [vmem:[%s208 + $0x31] sm:$0xff] %vm178, %v4616
        %4625 = vst.msk [vmem:[%s208 + $0x41] sm:$0xff] %vm178, %v4617
        %4626 = vst.msk [vmem:[%s208 + $0x51] sm:$0xff] %vm178, %v4618
        %4627 = vst.msk [vmem:[%s208 + $0x61] sm:$0xff] %vm178, %v4619
        %4628 = vst.msk [vmem:[%s208 + $0x71] sm:$0xff] %vm178, %v4620
        %v4629 = vld [vmem:[#allocation2] sm:$0xff]
        %v4630 = vld [vmem:[#allocation2 + $0x10] sm:$0xff]
        %v4631 = vld [vmem:[#allocation2 + $0x20] sm:$0xff]
        %v4632 = vld [vmem:[#allocation2 + $0x30] sm:$0xff]
        %v4633 = vld [vmem:[#allocation2 + $0x40] sm:$0xff]
        %v4634 = vld [vmem:[#allocation2 + $0x50] sm:$0xff]
        %v4635 = vld [vmem:[#allocation2 + $0x60] sm:$0xff]
        %v4636 = vld [vmem:[#allocation2 + $0x70] sm:$0xff]
        %v4637 = vpack.c.bf16 %v4630, %v4629
        %v4638 = vpack.c.bf16 %v4632, %v4631
        %v4639 = vpack.c.bf16 %v4634, %v4633
        %v4640 = vpack.c.bf16 %v4636, %v4635
        %s4641 = scalar_lea.vmem [#allocation6], 576
        %v4642 = vld [vmem:[%s4641] sm:$0xf]
        %v4643 = vld [vmem:[%s4641 + $0x4] sm:$0xf]
        %v4644 = vld [vmem:[%s4641 + $0x8] sm:$0xf]
        %v4645 = vld [vmem:[%s4641 + $0xc] sm:$0xf]
        %v4646 = vld [vmem:[#allocation2 + $0x1] sm:$0xff]
        %v4647 = vld [vmem:[#allocation2 + $0x11] sm:$0xff]
        %v4648 = vld [vmem:[#allocation2 + $0x21] sm:$0xff]
        %v4649 = vld [vmem:[#allocation2 + $0x31] sm:$0xff]
        %v4650 = vld [vmem:[#allocation2 + $0x41] sm:$0xff]
        %v4651 = vld [vmem:[#allocation2 + $0x51] sm:$0xff]
        %v4652 = vld [vmem:[#allocation2 + $0x61] sm:$0xff]
        %v4653 = vld [vmem:[#allocation2 + $0x71] sm:$0xff]
        %v4654 = vpack.c.bf16 %v4647, %v4646
        %v4655 = vpack.c.bf16 %v4649, %v4648
        %v4656 = vpack.c.bf16 %v4651, %v4650
        %v4657 = vpack.c.bf16 %v4653, %v4652
        %s4658 = scalar_lea.vmem [#allocation6], 592
        %v4659 = vld [vmem:[%s4658] sm:$0xf]
        %v4660 = vld [vmem:[%s4658 + $0x4] sm:$0xf]
        %v4661 = vld [vmem:[%s4658 + $0x8] sm:$0xf]
        %v4662 = vld [vmem:[%s4658 + $0xc] sm:$0xf]
        %v4667 = vunpack.c.l.b16 %v4659
        %v4668 = vunpack.c.l.b16 %v4660
        %v4669 = vunpack.c.l.b16 %v4661
        %v4670 = vunpack.c.l.b16 %v4662
        %v4671 = vpack.c.b16 %v4668, %v4667
        %v4672 = vpack.c.b16 %v4670, %v4669
        %v4676 = vsel %vm178, %v4654, 0
        %v4679 = vsel %vm178, %v4655, 0
        %v4682 = vsel %vm178, %v4656, 0
        %v4685 = vsel %vm178, %v4657, 0
        %4687 = vmatprep.subr.bf16.mxu0 0
        %4688 = vmatpush1.bf16.msra.mxu0 %v4671
        %4689 = vmatprep.subr.bf16.mxu0 0
        %4690 = vmatpush1.bf16.msra.mxu0 %v4672
        %4691 = vmatprep.subr.bf16.mxu0 0
        %4692 = vmatpush1.bf16.msra.mxu0 0
        %4693 = vmatprep.subr.bf16.mxu0 0
        %4694 = vmatpush1.bf16.msra.mxu0 0
        %4695 = vmatprep.subr.bf16.mxu0 0
        %4696 = vmatpush1.bf16.msra.mxu0 0
        %4697 = vmatprep.subr.bf16.mxu0 0
        %4698 = vmatpush1.bf16.msra.mxu0 0
        %4699 = vmatprep.subr.bf16.mxu0 0
        %4700 = vmatpush1.bf16.msra.mxu0 0
        %4701 = vmatprep.subr.bf16.mxu0 0
        %4702 = vmatpush1.bf16.msra.mxu0 0
        %4703 = vmatprep.subr.bf16.mxu0 0
        %4704 = vmatpush1.bf16.msra.mxu0 0
        %4705 = vmatprep.subr.bf16.mxu0 0
        %4706 = vmatpush1.bf16.msra.mxu0 0
        %4707 = vmatprep.subr.bf16.mxu0 0
        %4708 = vmatpush1.bf16.msra.mxu0 0
        %4709 = vmatprep.subr.bf16.mxu0 0
        %4710 = vmatpush1.bf16.msra.mxu0 0
        %4711 = vmatprep.subr.bf16.mxu0 0
        %4712 = vmatpush1.bf16.msra.mxu0 0
        %4713 = vmatprep.subr.bf16.mxu0 0
        %4714 = vmatpush1.bf16.msra.mxu0 0
        %4715 = vmatprep.subr.bf16.mxu0 0
        %4716 = vmatpush1.bf16.msra.mxu0 0
        %4717 = vmatprep.subr.bf16.mxu0 0
        %4718 = vmatpush1.bf16.msra.mxu0 0
        %4719 = vmatprep.mubr.bf16.mxu0 0
        %4720 = vmatmul.mubr.bf16.gmra.mrb[0].mxu0 %v4676
        %v4721 = vpop.f32.mrb[0].mxu0
        %v4722 = vadd.f32 0.0, %v4721
        %v4723 = vpop.f32.mrb[0].mxu0
        %v4724 = vpop.f32.mrb[0].mxu0
        %v4725 = vadd.f32 0.0, %v4724
        %v4726 = vpop.f32.mrb[0].mxu0
        %4727 = vmatprep.mubr.bf16.mxu0 0
        %4728 = vmatmul.mubr.bf16.gmra.mrb[0].mxu0 %v4679
        %v4729 = vpop.f32.mrb[0].mxu0
        %v4730 = vadd.f32 0.0, %v4729
        %v4731 = vpop.f32.mrb[0].mxu0
        %v4732 = vpop.f32.mrb[0].mxu0
        %v4733 = vadd.f32 0.0, %v4732
        %v4734 = vpop.f32.mrb[0].mxu0
        %4735 = vmatprep.mubr.bf16.mxu0 0
        %4736 = vmatmul.mubr.bf16.gmra.mrb[0].mxu0 %v4682
        %v4737 = vpop.f32.mrb[0].mxu0
        %v4738 = vadd.f32 0.0, %v4737
        %v4739 = vpop.f32.mrb[0].mxu0
        %v4740 = vpop.f32.mrb[0].mxu0
        %v4741 = vadd.f32 0.0, %v4740
        %v4742 = vpop.f32.mrb[0].mxu0
        %4743 = vmatprep.mubr.bf16.mxu0 0
        %4744 = vmatmul.mubr.bf16.gmra.mrb[0].mxu0 %v4685
        %v4745 = vpop.f32.mrb[0].mxu0
        %v4746 = vadd.f32 0.0, %v4745
        %v4747 = vpop.f32.mrb[0].mxu0
        %v4748 = vpop.f32.mrb[0].mxu0
        %v4749 = vadd.f32 0.0, %v4748
        %v4750 = vpop.f32.mrb[0].mxu0
        %4751 = vdwg.mxu0
        %v4756 = vunpack.c.l.b16 %v4642
        %v4757 = vunpack.c.l.b16 %v4643
        %v4758 = vunpack.c.l.b16 %v4644
        %v4759 = vunpack.c.l.b16 %v4645
        %v4760 = vpack.c.b16 %v4757, %v4756
        %v4761 = vpack.c.b16 %v4759, %v4758
        %v4765 = vsel %vm178, %v4637, 0
        %v4768 = vsel %vm178, %v4638, 0
        %v4771 = vsel %vm178, %v4639, 0
        %v4774 = vsel %vm178, %v4640, 0
        %4776 = vmatprep.subr.bf16.mxu0 0
        %4777 = vmatpush1.bf16.msra.mxu0 %v4760
        %4778 = vmatprep.subr.bf16.mxu0 0
        %4779 = vmatpush1.bf16.msra.mxu0 %v4761
        %4780 = vmatprep.subr.bf16.mxu0 0
        %4781 = vmatpush1.bf16.msra.mxu0 0
        %4782 = vmatprep.subr.bf16.mxu0 0
        %4783 = vmatpush1.bf16.msra.mxu0 0
        %4784 = vmatprep.subr.bf16.mxu0 0
        %4785 = vmatpush1.bf16.msra.mxu0 0
        %4786 = vmatprep.subr.bf16.mxu0 0
        %4787 = vmatpush1.bf16.msra.mxu0 0
        %4788 = vmatprep.subr.bf16.mxu0 0
        %4789 = vmatpush1.bf16.msra.mxu0 0
        %4790 = vmatprep.subr.bf16.mxu0 0
        %4791 = vmatpush1.bf16.msra.mxu0 0
        %4792 = vmatprep.subr.bf16.mxu0 0
        %4793 = vmatpush1.bf16.msra.mxu0 0
        %4794 = vmatprep.subr.bf16.mxu0 0
        %4795 = vmatpush1.bf16.msra.mxu0 0
        %4796 = vmatprep.subr.bf16.mxu0 0
        %4797 = vmatpush1.bf16.msra.mxu0 0
        %4798 = vmatprep.subr.bf16.mxu0 0
        %4799 = vmatpush1.bf16.msra.mxu0 0
        %4800 = vmatprep.subr.bf16.mxu0 0
        %4801 = vmatpush1.bf16.msra.mxu0 0
        %4802 = vmatprep.subr.bf16.mxu0 0
        %4803 = vmatpush1.bf16.msra.mxu0 0
        %4804 = vmatprep.subr.bf16.mxu0 0
        %4805 = vmatpush1.bf16.msra.mxu0 0
        %4806 = vmatprep.subr.bf16.mxu0 0
        %4807 = vmatpush1.bf16.msra.mxu0 0
        %4808 = vmatprep.mubr.bf16.mxu0 0
        %4809 = vmatmul.mubr.bf16.gmra.mrb[0].mxu0 %v4765
        %v4810 = vpop.f32.mrb[0].mxu0
        %v4811 = vadd.f32 %v4722, %v4810
        %v4812 = vpop.f32.mrb[0].mxu0
        %v4813 = vpop.f32.mrb[0].mxu0
        %v4814 = vadd.f32 %v4725, %v4813
        %v4815 = vpop.f32.mrb[0].mxu0
        %4816 = vmatprep.mubr.bf16.mxu0 0
        %4817 = vmatmul.mubr.bf16.gmra.mrb[0].mxu0 %v4768
        %v4818 = vpop.f32.mrb[0].mxu0
        %v4819 = vadd.f32 %v4730, %v4818
        %v4820 = vpop.f32.mrb[0].mxu0
        %v4821 = vpop.f32.mrb[0].mxu0
        %v4822 = vadd.f32 %v4733, %v4821
        %v4823 = vpop.f32.mrb[0].mxu0
        %4824 = vmatprep.mubr.bf16.mxu0 0
        %4825 = vmatmul.mubr.bf16.gmra.mrb[0].mxu0 %v4771
        %v4826 = vpop.f32.mrb[0].mxu0
        %v4827 = vadd.f32 %v4738, %v4826
        %v4828 = vpop.f32.mrb[0].mxu0
        %v4829 = vpop.f32.mrb[0].mxu0
        %v4830 = vadd.f32 %v4741, %v4829
        %v4831 = vpop.f32.mrb[0].mxu0
        %4832 = vmatprep.mubr.bf16.mxu0 0
        %4833 = vmatmul.mubr.bf16.gmra.mrb[0].mxu0 %v4774
        %v4834 = vpop.f32.mrb[0].mxu0
        %v4835 = vadd.f32 %v4746, %v4834
        %v4836 = vpop.f32.mrb[0].mxu0
        %v4837 = vpop.f32.mrb[0].mxu0
        %v4838 = vadd.f32 %v4749, %v4837
        %v4839 = vpop.f32.mrb[0].mxu0
        %4840 = vdwg.mxu0
        %v4841 = vld [vmem:[#allocation2 + $0x2] sm:$0xff]
        %v4842 = vld [vmem:[#allocation2 + $0x12] sm:$0xff]
        %v4843 = vld [vmem:[#allocation2 + $0x22] sm:$0xff]
        %v4844 = vld [vmem:[#allocation2 + $0x32] sm:$0xff]
        %v4845 = vld [vmem:[#allocation2 + $0x42] sm:$0xff]
        %v4846 = vld [vmem:[#allocation2 + $0x52] sm:$0xff]
        %v4847 = vld [vmem:[#allocation2 + $0x62] sm:$0xff]
        %v4848 = vld [vmem:[#allocation2 + $0x72] sm:$0xff]
        %v4849 = vpack.c.bf16 %v4842, %v4841
        %v4850 = vpack.c.bf16 %v4844, %v4843
        %v4851 = vpack.c.bf16 %v4846, %v4845
        %v4852 = vpack.c.bf16 %v4848, %v4847
        %s4853 = scalar_lea.vmem [#allocation6], 608
        %v4854 = vld [vmem:[%s4853] sm:$0xf]
        %v4855 = vld [vmem:[%s4853 + $0x4] sm:$0xf]
        %v4856 = vld [vmem:[%s4853 + $0x8] sm:$0xf]
        %v4857 = vld [vmem:[%s4853 + $0xc] sm:$0xf]
        %v4862 = vunpack.c.l.b16 %v4854
        %v4863 = vunpack.c.l.b16 %v4855
        %v4864 = vunpack.c.l.b16 %v4856
        %v4865 = vunpack.c.l.b16 %v4857
        %v4866 = vpack.c.b16 %v4863, %v4862
        %v4867 = vpack.c.b16 %v4865, %v4864
        %v4871 = vsel %vm178, %v4849, 0
        %v4874 = vsel %vm178, %v4850, 0
        %v4877 = vsel %vm178, %v4851, 0
        %v4880 = vsel %vm178, %v4852, 0
        %4882 = vmatprep.subr.bf16.mxu0 0
        %4883 = vmatpush1.bf16.msra.mxu0 %v4866
        %4884 = vmatprep.subr.bf16.mxu0 0
        %4885 = vmatpush1.bf16.msra.mxu0 %v4867
        %4886 = vmatprep.subr.bf16.mxu0 0
        %4887 = vmatpush1.bf16.msra.mxu0 0
        %4888 = vmatprep.subr.bf16.mxu0 0
        %4889 = vmatpush1.bf16.msra.mxu0 0
        %4890 = vmatprep.subr.bf16.mxu0 0
        %4891 = vmatpush1.bf16.msra.mxu0 0
        %4892 = vmatprep.subr.bf16.mxu0 0
        %4893 = vmatpush1.bf16.msra.mxu0 0
        %4894 = vmatprep.subr.bf16.mxu0 0
        %4895 = vmatpush1.bf16.msra.mxu0 0
        %4896 = vmatprep.subr.bf16.mxu0 0
        %4897 = vmatpush1.bf16.msra.mxu0 0
        %4898 = vmatprep.subr.bf16.mxu0 0
        %4899 = vmatpush1.bf16.msra.mxu0 0
        %4900 = vmatprep.subr.bf16.mxu0 0
        %4901 = vmatpush1.bf16.msra.mxu0 0
        %4902 = vmatprep.subr.bf16.mxu0 0
        %4903 = vmatpush1.bf16.msra.mxu0 0
        %4904 = vmatprep.subr.bf16.mxu0 0
        %4905 = vmatpush1.bf16.msra.mxu0 0
        %4906 = vmatprep.subr.bf16.mxu0 0
        %4907 = vmatpush1.bf16.msra.mxu0 0
        %4908 = vmatprep.subr.bf16.mxu0 0
        %4909 = vmatpush1.bf16.msra.mxu0 0
        %4910 = vmatprep.subr.bf16.mxu0 0
        %4911 = vmatpush1.bf16.msra.mxu0 0
        %4912 = vmatprep.subr.bf16.mxu0 0
        %4913 = vmatpush1.bf16.msra.mxu0 0
        %4914 = vmatprep.mubr.bf16.mxu0 0
        %4915 = vmatmul.mubr.bf16.gmra.mrb[0].mxu0 %v4871
        %v4916 = vpop.f32.mrb[0].mxu0
        %v4917 = vadd.f32 0.0, %v4916
        %v4918 = vpop.f32.mrb[0].mxu0
        %v4919 = vpop.f32.mrb[0].mxu0
        %v4920 = vadd.f32 0.0, %v4919
        %v4921 = vpop.f32.mrb[0].mxu0
        %4922 = vmatprep.mubr.bf16.mxu0 0
        %4923 = vmatmul.mubr.bf16.gmra.mrb[0].mxu0 %v4874
        %v4924 = vpop.f32.mrb[0].mxu0
        %v4925 = vadd.f32 0.0, %v4924
        %v4926 = vpop.f32.mrb[0].mxu0
        %v4927 = vpop.f32.mrb[0].mxu0
        %v4928 = vadd.f32 0.0, %v4927
        %v4929 = vpop.f32.mrb[0].mxu0
        %4930 = vmatprep.mubr.bf16.mxu0 0
        %4931 = vmatmul.mubr.bf16.gmra.mrb[0].mxu0 %v4877
        %v4932 = vpop.f32.mrb[0].mxu0
        %v4933 = vadd.f32 0.0, %v4932
        %v4934 = vpop.f32.mrb[0].mxu0
        %v4935 = vpop.f32.mrb[0].mxu0
        %v4936 = vadd.f32 0.0, %v4935
        %v4937 = vpop.f32.mrb[0].mxu0
        %4938 = vmatprep.mubr.bf16.mxu0 0
        %4939 = vmatmul.mubr.bf16.gmra.mrb[0].mxu0 %v4880
        %v4940 = vpop.f32.mrb[0].mxu0
        %v4941 = vadd.f32 0.0, %v4940
        %v4942 = vpop.f32.mrb[0].mxu0
        %v4943 = vpop.f32.mrb[0].mxu0
        %v4944 = vadd.f32 0.0, %v4943
        %v4945 = vpop.f32.mrb[0].mxu0
        %4946 = vdwg.mxu0
        %v4947 = vadd.f32 %v4811, %v4917
        %v4948 = vadd.f32 %v4814, %v4920
        %v4949 = vadd.f32 %v4819, %v4925
        %v4950 = vadd.f32 %v4822, %v4928
        %v4951 = vadd.f32 %v4827, %v4933
        %v4952 = vadd.f32 %v4830, %v4936
        %v4953 = vadd.f32 %v4835, %v4941
        %v4954 = vadd.f32 %v4838, %v4944
        %v4955 = vld [vmem:[%s208] sm:$0xff]
        %v4956 = vld [vmem:[%s208 + $0x10] sm:$0xff]
        %v4957 = vld [vmem:[%s208 + $0x20] sm:$0xff]
        %v4958 = vld [vmem:[%s208 + $0x30] sm:$0xff]
        %v4959 = vld [vmem:[%s208 + $0x40] sm:$0xff]
        %v4960 = vld [vmem:[%s208 + $0x50] sm:$0xff]
        %v4961 = vld [vmem:[%s208 + $0x60] sm:$0xff]
        %v4962 = vld [vmem:[%s208 + $0x70] sm:$0xff]
        %v4963 = vpack.c.bf16 %v4956, %v4955
        %v4964 = vpack.c.bf16 %v4958, %v4957
        %v4965 = vpack.c.bf16 %v4960, %v4959
        %v4966 = vpack.c.bf16 %v4962, %v4961
        %s4967 = scalar_lea.vmem [#allocation6], 624
        %v4968 = vld [vmem:[%s4967] sm:$0xf]
        %v4969 = vld [vmem:[%s4967 + $0x4] sm:$0xf]
        %v4970 = vld [vmem:[%s4967 + $0x8] sm:$0xf]
        %v4971 = vld [vmem:[%s4967 + $0xc] sm:$0xf]
        %v4976 = vunpack.c.l.b16 %v4968
        %v4977 = vunpack.c.l.b16 %v4969
        %v4978 = vunpack.c.l.b16 %v4970
        %v4979 = vunpack.c.l.b16 %v4971
        %v4980 = vpack.c.b16 %v4977, %v4976
        %v4981 = vpack.c.b16 %v4979, %v4978
        %v4985 = vsel %vm178, %v4963, 0
        %v4988 = vsel %vm178, %v4964, 0
        %v4991 = vsel %vm178, %v4965, 0
        %v4994 = vsel %vm178, %v4966, 0
        %4996 = vmatprep.subr.bf16.mxu0 0
        %4997 = vmatpush1.bf16.msra.mxu0 %v4980
        %4998 = vmatprep.subr.bf16.mxu0 0
        %4999 = vmatpush1.bf16.msra.mxu0 %v4981
        %5000 = vmatprep.subr.bf16.mxu0 0
        %5001 = vmatpush1.bf16.msra.mxu0 0
        %5002 = vmatprep.subr.bf16.mxu0 0
        %5003 = vmatpush1.bf16.msra.mxu0 0
        %5004 = vmatprep.subr.bf16.mxu0 0
        %5005 = vmatpush1.bf16.msra.mxu0 0
        %5006 = vmatprep.subr.bf16.mxu0 0
        %5007 = vmatpush1.bf16.msra.mxu0 0
        %5008 = vmatprep.subr.bf16.mxu0 0
        %5009 = vmatpush1.bf16.msra.mxu0 0
        %5010 = vmatprep.subr.bf16.mxu0 0
        %5011 = vmatpush1.bf16.msra.mxu0 0
        %5012 = vmatprep.subr.bf16.mxu0 0
        %5013 = vmatpush1.bf16.msra.mxu0 0
        %5014 = vmatprep.subr.bf16.mxu0 0
        %5015 = vmatpush1.bf16.msra.mxu0 0
        %5016 = vmatprep.subr.bf16.mxu0 0
        %5017 = vmatpush1.bf16.msra.mxu0 0
        %5018 = vmatprep.subr.bf16.mxu0 0
        %5019 = vmatpush1.bf16.msra.mxu0 0
        %5020 = vmatprep.subr.bf16.mxu0 0
        %5021 = vmatpush1.bf16.msra.mxu0 0
        %5022 = vmatprep.subr.bf16.mxu0 0
        %5023 = vmatpush1.bf16.msra.mxu0 0
        %5024 = vmatprep.subr.bf16.mxu0 0
        %5025 = vmatpush1.bf16.msra.mxu0 0
        %5026 = vmatprep.subr.bf16.mxu0 0
        %5027 = vmatpush1.bf16.msra.mxu0 0
        %5028 = vmatprep.mubr.bf16.mxu0 0
        %5029 = vmatmul.mubr.bf16.gmra.mrb[0].mxu0 %v4985
        %v5030 = vpop.f32.mrb[0].mxu0
        %v5031 = vadd.f32 0.0, %v5030
        %v5032 = vpop.f32.mrb[0].mxu0
        %v5033 = vpop.f32.mrb[0].mxu0
        %v5034 = vadd.f32 0.0, %v5033
        %v5035 = vpop.f32.mrb[0].mxu0
        %5036 = vmatprep.mubr.bf16.mxu0 0
        %5037 = vmatmul.mubr.bf16.gmra.mrb[0].mxu0 %v4988
        %v5038 = vpop.f32.mrb[0].mxu0
        %v5039 = vadd.f32 0.0, %v5038
        %v5040 = vpop.f32.mrb[0].mxu0
        %v5041 = vpop.f32.mrb[0].mxu0
        %v5042 = vadd.f32 0.0, %v5041
        %v5043 = vpop.f32.mrb[0].mxu0
        %5044 = vmatprep.mubr.bf16.mxu0 0
        %5045 = vmatmul.mubr.bf16.gmra.mrb[0].mxu0 %v4991
        %v5046 = vpop.f32.mrb[0].mxu0
        %v5047 = vadd.f32 0.0, %v5046
        %v5048 = vpop.f32.mrb[0].mxu0
        %v5049 = vpop.f32.mrb[0].mxu0
        %v5050 = vadd.f32 0.0, %v5049
        %v5051 = vpop.f32.mrb[0].mxu0
        %5052 = vmatprep.mubr.bf16.mxu0 0
        %5053 = vmatmul.mubr.bf16.gmra.mrb[0].mxu0 %v4994
        %v5054 = vpop.f32.mrb[0].mxu0
        %v5055 = vadd.f32 0.0, %v5054
        %v5056 = vpop.f32.mrb[0].mxu0
        %v5057 = vpop.f32.mrb[0].mxu0
        %v5058 = vadd.f32 0.0, %v5057
        %v5059 = vpop.f32.mrb[0].mxu0
        %5060 = vdwg.mxu0
        %v5061 = vadd.f32 %v4947, %v5031
        %v5062 = vadd.f32 %v4948, %v5034
        %v5063 = vadd.f32 %v4949, %v5039
        %v5064 = vadd.f32 %v4950, %v5042
        %v5065 = vadd.f32 %v4951, %v5047
        %v5066 = vadd.f32 %v4952, %v5050
        %v5067 = vadd.f32 %v4953, %v5055
        %v5068 = vadd.f32 %v4954, %v5058
        %v5069 = vld [vmem:[%s208 + $0x1] sm:$0xff]
        %v5070 = vld [vmem:[%s208 + $0x11] sm:$0xff]
        %v5071 = vld [vmem:[%s208 + $0x21] sm:$0xff]
        %v5072 = vld [vmem:[%s208 + $0x31] sm:$0xff]
        %v5073 = vld [vmem:[%s208 + $0x41] sm:$0xff]
        %v5074 = vld [vmem:[%s208 + $0x51] sm:$0xff]
        %v5075 = vld [vmem:[%s208 + $0x61] sm:$0xff]
        %v5076 = vld [vmem:[%s208 + $0x71] sm:$0xff]
        %v5077 = vpack.c.bf16 %v5070, %v5069
        %v5078 = vpack.c.bf16 %v5072, %v5071
        %v5079 = vpack.c.bf16 %v5074, %v5073
        %v5080 = vpack.c.bf16 %v5076, %v5075
        %s5081 = scalar_lea.vmem [#allocation6], 640
        %v5082 = vld [vmem:[%s5081] sm:$0xf]
        %v5083 = vld [vmem:[%s5081 + $0x4] sm:$0xf]
        %v5084 = vld [vmem:[%s5081 + $0x8] sm:$0xf]
        %v5085 = vld [vmem:[%s5081 + $0xc] sm:$0xf]
        %v5090 = vunpack.c.l.b16 %v5082
        %v5091 = vunpack.c.l.b16 %v5083
        %v5092 = vunpack.c.l.b16 %v5084
        %v5093 = vunpack.c.l.b16 %v5085
        %v5094 = vpack.c.b16 %v5091, %v5090
        %v5095 = vpack.c.b16 %v5093, %v5092
        %v5099 = vsel %vm178, %v5077, 0
        %v5102 = vsel %vm178, %v5078, 0
        %v5105 = vsel %vm178, %v5079, 0
        %v5108 = vsel %vm178, %v5080, 0
        %5110 = vmatprep.subr.bf16.mxu0 0
        %5111 = vmatpush1.bf16.msra.mxu0 %v5094
        %5112 = vmatprep.subr.bf16.mxu0 0
        %5113 = vmatpush1.bf16.msra.mxu0 %v5095
        %5114 = vmatprep.subr.bf16.mxu0 0
        %5115 = vmatpush1.bf16.msra.mxu0 0
        %5116 = vmatprep.subr.bf16.mxu0 0
        %5117 = vmatpush1.bf16.msra.mxu0 0
        %5118 = vmatprep.subr.bf16.mxu0 0
        %5119 = vmatpush1.bf16.msra.mxu0 0
        %5120 = vmatprep.subr.bf16.mxu0 0
        %5121 = vmatpush1.bf16.msra.mxu0 0
        %5122 = vmatprep.subr.bf16.mxu0 0
        %5123 = vmatpush1.bf16.msra.mxu0 0
        %5124 = vmatprep.subr.bf16.mxu0 0
        %5125 = vmatpush1.bf16.msra.mxu0 0
        %5126 = vmatprep.subr.bf16.mxu0 0
        %5127 = vmatpush1.bf16.msra.mxu0 0
        %5128 = vmatprep.subr.bf16.mxu0 0
        %5129 = vmatpush1.bf16.msra.mxu0 0
        %5130 = vmatprep.subr.bf16.mxu0 0
        %5131 = vmatpush1.bf16.msra.mxu0 0
        %5132 = vmatprep.subr.bf16.mxu0 0
        %5133 = vmatpush1.bf16.msra.mxu0 0
        %5134 = vmatprep.subr.bf16.mxu0 0
        %5135 = vmatpush1.bf16.msra.mxu0 0
        %5136 = vmatprep.subr.bf16.mxu0 0
        %5137 = vmatpush1.bf16.msra.mxu0 0
        %5138 = vmatprep.subr.bf16.mxu0 0
        %5139 = vmatpush1.bf16.msra.mxu0 0
        %5140 = vmatprep.subr.bf16.mxu0 0
        %5141 = vmatpush1.bf16.msra.mxu0 0
        %5142 = vmatprep.mubr.bf16.mxu0 0
        %5143 = vmatmul.mubr.bf16.gmra.mrb[0].mxu0 %v5099
        %v5144 = vpop.f32.mrb[0].mxu0
        %v5145 = vadd.f32 0.0, %v5144
        %v5146 = vpop.f32.mrb[0].mxu0
        %v5147 = vpop.f32.mrb[0].mxu0
        %v5148 = vadd.f32 0.0, %v5147
        %v5149 = vpop.f32.mrb[0].mxu0
        %5150 = vmatprep.mubr.bf16.mxu0 0
        %5151 = vmatmul.mubr.bf16.gmra.mrb[0].mxu0 %v5102
        %v5152 = vpop.f32.mrb[0].mxu0
        %v5153 = vadd.f32 0.0, %v5152
        %v5154 = vpop.f32.mrb[0].mxu0
        %v5155 = vpop.f32.mrb[0].mxu0
        %v5156 = vadd.f32 0.0, %v5155
        %v5157 = vpop.f32.mrb[0].mxu0
        %5158 = vmatprep.mubr.bf16.mxu0 0
        %5159 = vmatmul.mubr.bf16.gmra.mrb[0].mxu0 %v5105
        %v5160 = vpop.f32.mrb[0].mxu0
        %v5161 = vadd.f32 0.0, %v5160
        %v5162 = vpop.f32.mrb[0].mxu0
        %v5163 = vpop.f32.mrb[0].mxu0
        %v5164 = vadd.f32 0.0, %v5163
        %v5165 = vpop.f32.mrb[0].mxu0
        %5166 = vmatprep.mubr.bf16.mxu0 0
        %5167 = vmatmul.mubr.bf16.gmra.mrb[0].mxu0 %v5108
        %v5168 = vpop.f32.mrb[0].mxu0
        %v5169 = vadd.f32 0.0, %v5168
        %v5170 = vpop.f32.mrb[0].mxu0
        %v5171 = vpop.f32.mrb[0].mxu0
        %v5172 = vadd.f32 0.0, %v5171
        %v5173 = vpop.f32.mrb[0].mxu0
        %5174 = vdwg.mxu0
        %v5175 = vadd.f32 %v5061, %v5145
        %v5176 = vadd.f32 %v5062, %v5148
        %v5177 = vadd.f32 %v5063, %v5153
        %v5178 = vadd.f32 %v5064, %v5156
        %v5179 = vadd.f32 %v5065, %v5161
        %v5180 = vadd.f32 %v5066, %v5164
        %v5181 = vadd.f32 %v5067, %v5169
        %v5182 = vadd.f32 %v5068, %v5172
        %v5183 = vld [vmem:[%s208 + $0x2] sm:$0xff]
        %v5184 = vld [vmem:[%s208 + $0x12] sm:$0xff]
        %v5185 = vld [vmem:[%s208 + $0x22] sm:$0xff]
        %v5186 = vld [vmem:[%s208 + $0x32] sm:$0xff]
        %v5187 = vld [vmem:[%s208 + $0x42] sm:$0xff]
        %v5188 = vld [vmem:[%s208 + $0x52] sm:$0xff]
        %v5189 = vld [vmem:[%s208 + $0x62] sm:$0xff]
        %v5190 = vld [vmem:[%s208 + $0x72] sm:$0xff]
        %v5191 = vpack.c.bf16 %v5184, %v5183
        %v5192 = vpack.c.bf16 %v5186, %v5185
        %v5193 = vpack.c.bf16 %v5188, %v5187
        %v5194 = vpack.c.bf16 %v5190, %v5189
        %s5195 = scalar_lea.vmem [#allocation6], 656
        %v5196 = vld [vmem:[%s5195] sm:$0xf]
        %v5197 = vld [vmem:[%s5195 + $0x4] sm:$0xf]
        %v5198 = vld [vmem:[%s5195 + $0x8] sm:$0xf]
        %v5199 = vld [vmem:[%s5195 + $0xc] sm:$0xf]
        %v5204 = vunpack.c.l.b16 %v5196
        %v5205 = vunpack.c.l.b16 %v5197
        %v5206 = vunpack.c.l.b16 %v5198
        %v5207 = vunpack.c.l.b16 %v5199
        %v5208 = vpack.c.b16 %v5205, %v5204
        %v5209 = vpack.c.b16 %v5207, %v5206
        %v5213 = vsel %vm178, %v5191, 0
        %v5216 = vsel %vm178, %v5192, 0
        %v5219 = vsel %vm178, %v5193, 0
        %v5222 = vsel %vm178, %v5194, 0
        %5224 = vmatprep.subr.bf16.mxu0 0
        %5225 = vmatpush1.bf16.msra.mxu0 %v5208
        %5226 = vmatprep.subr.bf16.mxu0 0
        %5227 = vmatpush1.bf16.msra.mxu0 %v5209
        %5228 = vmatprep.subr.bf16.mxu0 0
        %5229 = vmatpush1.bf16.msra.mxu0 0
        %5230 = vmatprep.subr.bf16.mxu0 0
        %5231 = vmatpush1.bf16.msra.mxu0 0
        %5232 = vmatprep.subr.bf16.mxu0 0
        %5233 = vmatpush1.bf16.msra.mxu0 0
        %5234 = vmatprep.subr.bf16.mxu0 0
        %5235 = vmatpush1.bf16.msra.mxu0 0
        %5236 = vmatprep.subr.bf16.mxu0 0
        %5237 = vmatpush1.bf16.msra.mxu0 0
        %5238 = vmatprep.subr.bf16.mxu0 0
        %5239 = vmatpush1.bf16.msra.mxu0 0
        %5240 = vmatprep.subr.bf16.mxu0 0
        %5241 = vmatpush1.bf16.msra.mxu0 0
        %5242 = vmatprep.subr.bf16.mxu0 0
        %5243 = vmatpush1.bf16.msra.mxu0 0
        %5244 = vmatprep.subr.bf16.mxu0 0
        %5245 = vmatpush1.bf16.msra.mxu0 0
        %5246 = vmatprep.subr.bf16.mxu0 0
        %5247 = vmatpush1.bf16.msra.mxu0 0
        %5248 = vmatprep.subr.bf16.mxu0 0
        %5249 = vmatpush1.bf16.msra.mxu0 0
        %5250 = vmatprep.subr.bf16.mxu0 0
        %5251 = vmatpush1.bf16.msra.mxu0 0
        %5252 = vmatprep.subr.bf16.mxu0 0
        %5253 = vmatpush1.bf16.msra.mxu0 0
        %5254 = vmatprep.subr.bf16.mxu0 0
        %5255 = vmatpush1.bf16.msra.mxu0 0
        %5256 = vmatprep.mubr.bf16.mxu0 0
        %5257 = vmatmul.mubr.bf16.gmra.mrb[0].mxu0 %v5213
        %v5258 = vpop.f32.mrb[0].mxu0
        %v5259 = vadd.f32 0.0, %v5258
        %v5260 = vpop.f32.mrb[0].mxu0
        %v5261 = vpop.f32.mrb[0].mxu0
        %v5262 = vadd.f32 0.0, %v5261
        %v5263 = vpop.f32.mrb[0].mxu0
        %5264 = vmatprep.mubr.bf16.mxu0 0
        %5265 = vmatmul.mubr.bf16.gmra.mrb[0].mxu0 %v5216
        %v5266 = vpop.f32.mrb[0].mxu0
        %v5267 = vadd.f32 0.0, %v5266
        %v5268 = vpop.f32.mrb[0].mxu0
        %v5269 = vpop.f32.mrb[0].mxu0
        %v5270 = vadd.f32 0.0, %v5269
        %v5271 = vpop.f32.mrb[0].mxu0
        %5272 = vmatprep.mubr.bf16.mxu0 0
        %5273 = vmatmul.mubr.bf16.gmra.mrb[0].mxu0 %v5219
        %v5274 = vpop.f32.mrb[0].mxu0
        %v5275 = vadd.f32 0.0, %v5274
        %v5276 = vpop.f32.mrb[0].mxu0
        %v5277 = vpop.f32.mrb[0].mxu0
        %v5278 = vadd.f32 0.0, %v5277
        %v5279 = vpop.f32.mrb[0].mxu0
        %5280 = vmatprep.mubr.bf16.mxu0 0
        %5281 = vmatmul.mubr.bf16.gmra.mrb[0].mxu0 %v5222
        %v5282 = vpop.f32.mrb[0].mxu0
        %v5283 = vadd.f32 0.0, %v5282
        %v5284 = vpop.f32.mrb[0].mxu0
        %v5285 = vpop.f32.mrb[0].mxu0
        %v5286 = vadd.f32 0.0, %v5285
        %v5287 = vpop.f32.mrb[0].mxu0
        %5288 = vdwg.mxu0
        %v5289 = vadd.f32 %v5175, %v5259
        %v5290 = vadd.f32 %v5176, %v5262
        %v5291 = vadd.f32 %v5177, %v5267
        %v5292 = vadd.f32 %v5178, %v5270
        %v5293 = vadd.f32 %v5179, %v5275
        %v5294 = vadd.f32 %v5180, %v5278
        %v5295 = vadd.f32 %v5181, %v5283
        %v5296 = vadd.f32 %v5182, %v5286
        %v5297 = vld [vmem:[%s884] sm:$0xff]
        %v5298 = vld [vmem:[%s884 + $0x10] sm:$0xff]
        %v5299 = vld [vmem:[%s884 + $0x20] sm:$0xff]
        %v5300 = vld [vmem:[%s884 + $0x30] sm:$0xff]
        %v5301 = vld [vmem:[%s884 + $0x40] sm:$0xff]
        %v5302 = vld [vmem:[%s884 + $0x50] sm:$0xff]
        %v5303 = vld [vmem:[%s884 + $0x60] sm:$0xff]
        %v5304 = vld [vmem:[%s884 + $0x70] sm:$0xff]
        %v5305 = vpack.c.bf16 %v5298, %v5297
        %v5306 = vpack.c.bf16 %v5300, %v5299
        %v5307 = vpack.c.bf16 %v5302, %v5301
        %v5308 = vpack.c.bf16 %v5304, %v5303
        %s5309 = scalar_lea.vmem [#allocation6], 672
        %v5310 = vld [vmem:[%s5309] sm:$0xf]
        %v5311 = vld [vmem:[%s5309 + $0x4] sm:$0xf]
        %v5312 = vld [vmem:[%s5309 + $0x8] sm:$0xf]
        %v5313 = vld [vmem:[%s5309 + $0xc] sm:$0xf]
        %v5318 = vunpack.c.l.b16 %v5310
        %v5319 = vunpack.c.l.b16 %v5311
        %v5320 = vunpack.c.l.b16 %v5312
        %v5321 = vunpack.c.l.b16 %v5313
        %v5322 = vpack.c.b16 %v5319, %v5318
        %v5323 = vpack.c.b16 %v5321, %v5320
        %v5327 = vsel %vm178, %v5305, 0
        %v5330 = vsel %vm178, %v5306, 0
        %v5333 = vsel %vm178, %v5307, 0
        %v5336 = vsel %vm178, %v5308, 0
        %5338 = vmatprep.subr.bf16.mxu0 0
        %5339 = vmatpush1.bf16.msra.mxu0 %v5322
        %5340 = vmatprep.subr.bf16.mxu0 0
        %5341 = vmatpush1.bf16.msra.mxu0 %v5323
        %5342 = vmatprep.subr.bf16.mxu0 0
        %5343 = vmatpush1.bf16.msra.mxu0 0
        %5344 = vmatprep.subr.bf16.mxu0 0
        %5345 = vmatpush1.bf16.msra.mxu0 0
        %5346 = vmatprep.subr.bf16.mxu0 0
        %5347 = vmatpush1.bf16.msra.mxu0 0
        %5348 = vmatprep.subr.bf16.mxu0 0
        %5349 = vmatpush1.bf16.msra.mxu0 0
        %5350 = vmatprep.subr.bf16.mxu0 0
        %5351 = vmatpush1.bf16.msra.mxu0 0
        %5352 = vmatprep.subr.bf16.mxu0 0
        %5353 = vmatpush1.bf16.msra.mxu0 0
        %5354 = vmatprep.subr.bf16.mxu0 0
        %5355 = vmatpush1.bf16.msra.mxu0 0
        %5356 = vmatprep.subr.bf16.mxu0 0
        %5357 = vmatpush1.bf16.msra.mxu0 0
        %5358 = vmatprep.subr.bf16.mxu0 0
        %5359 = vmatpush1.bf16.msra.mxu0 0
        %5360 = vmatprep.subr.bf16.mxu0 0
        %5361 = vmatpush1.bf16.msra.mxu0 0
        %5362 = vmatprep.subr.bf16.mxu0 0
        %5363 = vmatpush1.bf16.msra.mxu0 0
        %5364 = vmatprep.subr.bf16.mxu0 0
        %5365 = vmatpush1.bf16.msra.mxu0 0
        %5366 = vmatprep.subr.bf16.mxu0 0
        %5367 = vmatpush1.bf16.msra.mxu0 0
        %5368 = vmatprep.subr.bf16.mxu0 0
        %5369 = vmatpush1.bf16.msra.mxu0 0
        %5370 = vmatprep.mubr.bf16.mxu0 0
        %5371 = vmatmul.mubr.bf16.gmra.mrb[0].mxu0 %v5327
        %v5372 = vpop.f32.mrb[0].mxu0
        %v5373 = vadd.f32 0.0, %v5372
        %v5374 = vpop.f32.mrb[0].mxu0
        %v5375 = vpop.f32.mrb[0].mxu0
        %v5376 = vadd.f32 0.0, %v5375
        %v5377 = vpop.f32.mrb[0].mxu0
        %5378 = vmatprep.mubr.bf16.mxu0 0
        %5379 = vmatmul.mubr.bf16.gmra.mrb[0].mxu0 %v5330
        %v5380 = vpop.f32.mrb[0].mxu0
        %v5381 = vadd.f32 0.0, %v5380
        %v5382 = vpop.f32.mrb[0].mxu0
        %v5383 = vpop.f32.mrb[0].mxu0
        %v5384 = vadd.f32 0.0, %v5383
        %v5385 = vpop.f32.mrb[0].mxu0
        %5386 = vmatprep.mubr.bf16.mxu0 0
        %5387 = vmatmul.mubr.bf16.gmra.mrb[0].mxu0 %v5333
        %v5388 = vpop.f32.mrb[0].mxu0
        %v5389 = vadd.f32 0.0, %v5388
        %v5390 = vpop.f32.mrb[0].mxu0
        %v5391 = vpop.f32.mrb[0].mxu0
        %v5392 = vadd.f32 0.0, %v5391
        %v5393 = vpop.f32.mrb[0].mxu0
        %5394 = vmatprep.mubr.bf16.mxu0 0
        %5395 = vmatmul.mubr.bf16.gmra.mrb[0].mxu0 %v5336
        %v5396 = vpop.f32.mrb[0].mxu0
        %v5397 = vadd.f32 0.0, %v5396
        %v5398 = vpop.f32.mrb[0].mxu0
        %v5399 = vpop.f32.mrb[0].mxu0
        %v5400 = vadd.f32 0.0, %v5399
        %v5401 = vpop.f32.mrb[0].mxu0
        %5402 = vdwg.mxu0
        %v5403 = vadd.f32 %v5289, %v5373
        %v5404 = vadd.f32 %v5290, %v5376
        %v5405 = vadd.f32 %v5291, %v5381
        %v5406 = vadd.f32 %v5292, %v5384
        %v5407 = vadd.f32 %v5293, %v5389
        %v5408 = vadd.f32 %v5294, %v5392
        %v5409 = vadd.f32 %v5295, %v5397
        %v5410 = vadd.f32 %v5296, %v5400
        %v5411 = vld [vmem:[%s884 + $0x1] sm:$0xff]
        %v5412 = vld [vmem:[%s884 + $0x11] sm:$0xff]
        %v5413 = vld [vmem:[%s884 + $0x21] sm:$0xff]
        %v5414 = vld [vmem:[%s884 + $0x31] sm:$0xff]
        %v5415 = vld [vmem:[%s884 + $0x41] sm:$0xff]
        %v5416 = vld [vmem:[%s884 + $0x51] sm:$0xff]
        %v5417 = vld [vmem:[%s884 + $0x61] sm:$0xff]
        %v5418 = vld [vmem:[%s884 + $0x71] sm:$0xff]
        %v5419 = vpack.c.bf16 %v5412, %v5411
        %v5420 = vpack.c.bf16 %v5414, %v5413
        %v5421 = vpack.c.bf16 %v5416, %v5415
        %v5422 = vpack.c.bf16 %v5418, %v5417
        %s5423 = scalar_lea.vmem [#allocation6], 688
        %v5424 = vld [vmem:[%s5423] sm:$0xf]
        %v5425 = vld [vmem:[%s5423 + $0x4] sm:$0xf]
        %v5426 = vld [vmem:[%s5423 + $0x8] sm:$0xf]
        %v5427 = vld [vmem:[%s5423 + $0xc] sm:$0xf]
        %v5432 = vunpack.c.l.b16 %v5424
        %v5433 = vunpack.c.l.b16 %v5425
        %v5434 = vunpack.c.l.b16 %v5426
        %v5435 = vunpack.c.l.b16 %v5427
        %v5436 = vpack.c.b16 %v5433, %v5432
        %v5437 = vpack.c.b16 %v5435, %v5434
        %v5441 = vsel %vm178, %v5419, 0
        %v5444 = vsel %vm178, %v5420, 0
        %v5447 = vsel %vm178, %v5421, 0
        %v5450 = vsel %vm178, %v5422, 0
        %5452 = vmatprep.subr.bf16.mxu0 0
        %5453 = vmatpush1.bf16.msra.mxu0 %v5436
        %5454 = vmatprep.subr.bf16.mxu0 0
        %5455 = vmatpush1.bf16.msra.mxu0 %v5437
        %5456 = vmatprep.subr.bf16.mxu0 0
        %5457 = vmatpush1.bf16.msra.mxu0 0
        %5458 = vmatprep.subr.bf16.mxu0 0
        %5459 = vmatpush1.bf16.msra.mxu0 0
        %5460 = vmatprep.subr.bf16.mxu0 0
        %5461 = vmatpush1.bf16.msra.mxu0 0
        %5462 = vmatprep.subr.bf16.mxu0 0
        %5463 = vmatpush1.bf16.msra.mxu0 0
        %5464 = vmatprep.subr.bf16.mxu0 0
        %5465 = vmatpush1.bf16.msra.mxu0 0
        %5466 = vmatprep.subr.bf16.mxu0 0
        %5467 = vmatpush1.bf16.msra.mxu0 0
        %5468 = vmatprep.subr.bf16.mxu0 0
        %5469 = vmatpush1.bf16.msra.mxu0 0
        %5470 = vmatprep.subr.bf16.mxu0 0
        %5471 = vmatpush1.bf16.msra.mxu0 0
        %5472 = vmatprep.subr.bf16.mxu0 0
        %5473 = vmatpush1.bf16.msra.mxu0 0
        %5474 = vmatprep.subr.bf16.mxu0 0
        %5475 = vmatpush1.bf16.msra.mxu0 0
        %5476 = vmatprep.subr.bf16.mxu0 0
        %5477 = vmatpush1.bf16.msra.mxu0 0
        %5478 = vmatprep.subr.bf16.mxu0 0
        %5479 = vmatpush1.bf16.msra.mxu0 0
        %5480 = vmatprep.subr.bf16.mxu0 0
        %5481 = vmatpush1.bf16.msra.mxu0 0
        %5482 = vmatprep.subr.bf16.mxu0 0
        %5483 = vmatpush1.bf16.msra.mxu0 0
        %5484 = vmatprep.mubr.bf16.mxu0 0
        %5485 = vmatmul.mubr.bf16.gmra.mrb[0].mxu0 %v5441
        %v5486 = vpop.f32.mrb[0].mxu0
        %v5487 = vadd.f32 0.0, %v5486
        %v5488 = vpop.f32.mrb[0].mxu0
        %v5489 = vpop.f32.mrb[0].mxu0
        %v5490 = vadd.f32 0.0, %v5489
        %v5491 = vpop.f32.mrb[0].mxu0
        %5492 = vmatprep.mubr.bf16.mxu0 0
        %5493 = vmatmul.mubr.bf16.gmra.mrb[0].mxu0 %v5444
        %v5494 = vpop.f32.mrb[0].mxu0
        %v5495 = vadd.f32 0.0, %v5494
        %v5496 = vpop.f32.mrb[0].mxu0
        %v5497 = vpop.f32.mrb[0].mxu0
        %v5498 = vadd.f32 0.0, %v5497
        %v5499 = vpop.f32.mrb[0].mxu0
        %5500 = vmatprep.mubr.bf16.mxu0 0
        %5501 = vmatmul.mubr.bf16.gmra.mrb[0].mxu0 %v5447
        %v5502 = vpop.f32.mrb[0].mxu0
        %v5503 = vadd.f32 0.0, %v5502
        %v5504 = vpop.f32.mrb[0].mxu0
        %v5505 = vpop.f32.mrb[0].mxu0
        %v5506 = vadd.f32 0.0, %v5505
        %v5507 = vpop.f32.mrb[0].mxu0
        %5508 = vmatprep.mubr.bf16.mxu0 0
        %5509 = vmatmul.mubr.bf16.gmra.mrb[0].mxu0 %v5450
        %v5510 = vpop.f32.mrb[0].mxu0
        %v5511 = vadd.f32 0.0, %v5510
        %v5512 = vpop.f32.mrb[0].mxu0
        %v5513 = vpop.f32.mrb[0].mxu0
        %v5514 = vadd.f32 0.0, %v5513
        %v5515 = vpop.f32.mrb[0].mxu0
        %5516 = vdwg.mxu0
        %v5517 = vadd.f32 %v5403, %v5487
        %v5518 = vadd.f32 %v5404, %v5490
        %v5519 = vadd.f32 %v5405, %v5495
        %v5520 = vadd.f32 %v5406, %v5498
        %v5521 = vadd.f32 %v5407, %v5503
        %v5522 = vadd.f32 %v5408, %v5506
        %v5523 = vadd.f32 %v5409, %v5511
        %v5524 = vadd.f32 %v5410, %v5514
        %v5525 = vld [vmem:[%s884 + $0x2] sm:$0xff]
        %v5526 = vld [vmem:[%s884 + $0x12] sm:$0xff]
        %v5527 = vld [vmem:[%s884 + $0x22] sm:$0xff]
        %v5528 = vld [vmem:[%s884 + $0x32] sm:$0xff]
        %v5529 = vld [vmem:[%s884 + $0x42] sm:$0xff]
        %v5530 = vld [vmem:[%s884 + $0x52] sm:$0xff]
        %v5531 = vld [vmem:[%s884 + $0x62] sm:$0xff]
        %v5532 = vld [vmem:[%s884 + $0x72] sm:$0xff]
        %v5533 = vpack.c.bf16 %v5526, %v5525
        %v5534 = vpack.c.bf16 %v5528, %v5527
        %v5535 = vpack.c.bf16 %v5530, %v5529
        %v5536 = vpack.c.bf16 %v5532, %v5531
        %s5537 = scalar_lea.vmem [#allocation6], 704
        %v5538 = vld [vmem:[%s5537] sm:$0xf]
        %v5539 = vld [vmem:[%s5537 + $0x4] sm:$0xf]
        %v5540 = vld [vmem:[%s5537 + $0x8] sm:$0xf]
        %v5541 = vld [vmem:[%s5537 + $0xc] sm:$0xf]
        %v5546 = vunpack.c.l.b16 %v5538
        %v5547 = vunpack.c.l.b16 %v5539
        %v5548 = vunpack.c.l.b16 %v5540
        %v5549 = vunpack.c.l.b16 %v5541
        %v5550 = vpack.c.b16 %v5547, %v5546
        %v5551 = vpack.c.b16 %v5549, %v5548
        %v5555 = vsel %vm178, %v5533, 0
        %v5558 = vsel %vm178, %v5534, 0
        %v5561 = vsel %vm178, %v5535, 0
        %v5564 = vsel %vm178, %v5536, 0
        %5566 = vmatprep.subr.bf16.mxu0 0
        %5567 = vmatpush1.bf16.msra.mxu0 %v5550
        %5568 = vmatprep.subr.bf16.mxu0 0
        %5569 = vmatpush1.bf16.msra.mxu0 %v5551
        %5570 = vmatprep.subr.bf16.mxu0 0
        %5571 = vmatpush1.bf16.msra.mxu0 0
        %5572 = vmatprep.subr.bf16.mxu0 0
        %5573 = vmatpush1.bf16.msra.mxu0 0
        %5574 = vmatprep.subr.bf16.mxu0 0
        %5575 = vmatpush1.bf16.msra.mxu0 0
        %5576 = vmatprep.subr.bf16.mxu0 0
        %5577 = vmatpush1.bf16.msra.mxu0 0
        %5578 = vmatprep.subr.bf16.mxu0 0
        %5579 = vmatpush1.bf16.msra.mxu0 0
        %5580 = vmatprep.subr.bf16.mxu0 0
        %5581 = vmatpush1.bf16.msra.mxu0 0
        %5582 = vmatprep.subr.bf16.mxu0 0
        %5583 = vmatpush1.bf16.msra.mxu0 0
        %5584 = vmatprep.subr.bf16.mxu0 0
        %5585 = vmatpush1.bf16.msra.mxu0 0
        %5586 = vmatprep.subr.bf16.mxu0 0
        %5587 = vmatpush1.bf16.msra.mxu0 0
        %5588 = vmatprep.subr.bf16.mxu0 0
        %5589 = vmatpush1.bf16.msra.mxu0 0
        %5590 = vmatprep.subr.bf16.mxu0 0
        %5591 = vmatpush1.bf16.msra.mxu0 0
        %5592 = vmatprep.subr.bf16.mxu0 0
        %5593 = vmatpush1.bf16.msra.mxu0 0
        %5594 = vmatprep.subr.bf16.mxu0 0
        %5595 = vmatpush1.bf16.msra.mxu0 0
        %5596 = vmatprep.subr.bf16.mxu0 0
        %5597 = vmatpush1.bf16.msra.mxu0 0
        %5598 = vmatprep.mubr.bf16.mxu0 0
        %5599 = vmatmul.mubr.bf16.gmra.mrb[0].mxu0 %v5555
        %v5600 = vpop.f32.mrb[0].mxu0
        %v5601 = vadd.f32 0.0, %v5600
        %v5602 = vpop.f32.mrb[0].mxu0
        %v5603 = vpop.f32.mrb[0].mxu0
        %v5604 = vadd.f32 0.0, %v5603
        %v5605 = vpop.f32.mrb[0].mxu0
        %5606 = vmatprep.mubr.bf16.mxu0 0
        %5607 = vmatmul.mubr.bf16.gmra.mrb[0].mxu0 %v5558
        %v5608 = vpop.f32.mrb[0].mxu0
        %v5609 = vadd.f32 0.0, %v5608
        %v5610 = vpop.f32.mrb[0].mxu0
        %v5611 = vpop.f32.mrb[0].mxu0
        %v5612 = vadd.f32 0.0, %v5611
        %v5613 = vpop.f32.mrb[0].mxu0
        %5614 = vmatprep.mubr.bf16.mxu0 0
        %5615 = vmatmul.mubr.bf16.gmra.mrb[0].mxu0 %v5561
        %v5616 = vpop.f32.mrb[0].mxu0
        %v5617 = vadd.f32 0.0, %v5616
        %v5618 = vpop.f32.mrb[0].mxu0
        %v5619 = vpop.f32.mrb[0].mxu0
        %v5620 = vadd.f32 0.0, %v5619
        %v5621 = vpop.f32.mrb[0].mxu0
        %5622 = vmatprep.mubr.bf16.mxu0 0
        %5623 = vmatmul.mubr.bf16.gmra.mrb[0].mxu0 %v5564
        %v5624 = vpop.f32.mrb[0].mxu0
        %v5625 = vadd.f32 0.0, %v5624
        %v5626 = vpop.f32.mrb[0].mxu0
        %v5627 = vpop.f32.mrb[0].mxu0
        %v5628 = vadd.f32 0.0, %v5627
        %v5629 = vpop.f32.mrb[0].mxu0
        %5630 = vdwg.mxu0
        %v5631 = vadd.f32 %v5517, %v5601
        %v5632 = vadd.f32 %v5518, %v5604
        %v5633 = vadd.f32 %v5519, %v5609
        %v5634 = vadd.f32 %v5520, %v5612
        %v5635 = vadd.f32 %v5521, %v5617
        %v5636 = vadd.f32 %v5522, %v5620
        %v5637 = vadd.f32 %v5523, %v5625
        %v5638 = vadd.f32 %v5524, %v5628
        %v5639 = vsel %vm178, %v5631, 0.0
        %v5640 = vsel %vm178, %v5632, 0.0
        %v5641 = vadd.f32 %v5639, %v5640
        %v5642 = vsel %vm178, %v5633, 0.0
        %v5643 = vadd.f32 %v5641, %v5642
        %v5644 = vsel %vm178, %v5634, 0.0
        %v5645 = vadd.f32 %v5643, %v5644
        %v5646 = vsel %vm178, %v5635, 0.0
        %v5647 = vadd.f32 %v5645, %v5646
        %v5648 = vsel %vm178, %v5636, 0.0
        %v5649 = vadd.f32 %v5647, %v5648
        %v5650 = vsel %vm178, %v5637, 0.0
        %v5651 = vadd.f32 %v5649, %v5650
        %v5652 = vsel %vm178, %v5638, 0.0
        %v5653 = vadd.f32 %v5651, %v5652
        %v5654 = vrot.slane %v5653, 4
        %v5655 = vadd.f32 %v5653, %v5654
        %v5656 = vrot.slane %v5655, 2
        %v5657 = vadd.f32 %v5655, %v5656
        %v5658 = vrot.slane %v5657, 1
        %v5659 = vadd.f32 %v5657, %v5658
        %v5660 = vmul.f32 %v5659, 0.015625
        %v5661 = vmul.f32 %v5631, %v5631
        %v5662 = vmul.f32 %v5632, %v5632
        %v5663 = vmul.f32 %v5633, %v5633
        %v5664 = vmul.f32 %v5634, %v5634
        %v5665 = vmul.f32 %v5635, %v5635
        %v5666 = vmul.f32 %v5636, %v5636
        %v5667 = vmul.f32 %v5637, %v5637
        %v5668 = vmul.f32 %v5638, %v5638
        %v5669 = vsel %vm178, %v5661, 0.0
        %v5670 = vsel %vm178, %v5662, 0.0
        %v5671 = vadd.f32 %v5669, %v5670
        %v5672 = vsel %vm178, %v5663, 0.0
        %v5673 = vadd.f32 %v5671, %v5672
        %v5674 = vsel %vm178, %v5664, 0.0
        %v5675 = vadd.f32 %v5673, %v5674
        %v5676 = vsel %vm178, %v5665, 0.0
        %v5677 = vadd.f32 %v5675, %v5676
        %v5678 = vsel %vm178, %v5666, 0.0
        %v5679 = vadd.f32 %v5677, %v5678
        %v5680 = vsel %vm178, %v5667, 0.0
        %v5681 = vadd.f32 %v5679, %v5680
        %v5682 = vsel %vm178, %v5668, 0.0
        %v5683 = vadd.f32 %v5681, %v5682
        %v5684 = vrot.slane %v5683, 4
        %v5685 = vadd.f32 %v5683, %v5684
        %v5686 = vrot.slane %v5685, 2
        %v5687 = vadd.f32 %v5685, %v5686
        %v5688 = vrot.slane %v5687, 1
        %v5689 = vadd.f32 %v5687, %v5688
        %v5690 = vmul.f32 %v5689, 0.015625
        %v5691 = vmul.f32 %v5660, %v5660
        %v5692 = vsub.f32 %v5690, %v5691
        %v5693 = vmax.f32 %v5692, 0.0
        %v5694 = vsub.f32 %v5631, %v5660
        %v5695 = vsub.f32 %v5632, %v5660
        %v5696 = vsub.f32 %v5633, %v5660
        %v5697 = vsub.f32 %v5634, %v5660
        %v5698 = vsub.f32 %v5635, %v5660
        %v5699 = vsub.f32 %v5636, %v5660
        %v5700 = vsub.f32 %v5637, %v5660
        %v5701 = vsub.f32 %v5638, %v5660
        %v5702 = vadd.f32 %v5693, 1e-05
        %v5703 = vrsqrt.pop %v5702
        %v5704 = vmul.f32 %v5694, %v5703
        %v5705 = vmul.f32 %v5695, %v5703
        %v5706 = vmul.f32 %v5696, %v5703
        %v5707 = vmul.f32 %v5697, %v5703
        %v5708 = vmul.f32 %v5698, %v5703
        %v5709 = vmul.f32 %v5699, %v5703
        %v5710 = vmul.f32 %v5700, %v5703
        %v5711 = vmul.f32 %v5701, %v5703
        %v5712 = vmax.f32 %v5704, 0.0
        %v5713 = vmax.f32 %v5705, 0.0
        %v5714 = vmax.f32 %v5706, 0.0
        %v5715 = vmax.f32 %v5707, 0.0
        %v5716 = vmax.f32 %v5708, 0.0
        %v5717 = vmax.f32 %v5709, 0.0
        %v5718 = vmax.f32 %v5710, 0.0
        %v5719 = vmax.f32 %v5711, 0.0
        %5720 = vst.msk [vmem:[%s208 + $0x1] sm:$0xff] %vm178, %v5712
        %5721 = vst.msk [vmem:[%s208 + $0x11] sm:$0xff] %vm178, %v5713
        %5722 = vst.msk [vmem:[%s208 + $0x21] sm:$0xff] %vm178, %v5714
        %5723 = vst.msk [vmem:[%s208 + $0x31] sm:$0xff] %vm178, %v5715
        %5724 = vst.msk [vmem:[%s208 + $0x41] sm:$0xff] %vm178, %v5716
        %5725 = vst.msk [vmem:[%s208 + $0x51] sm:$0xff] %vm178, %v5717
        %5726 = vst.msk [vmem:[%s208 + $0x61] sm:$0xff] %vm178, %v5718
        %5727 = vst.msk [vmem:[%s208 + $0x71] sm:$0xff] %vm178, %v5719
        %v5728 = vld [vmem:[#allocation2] sm:$0xff]
        %v5729 = vld [vmem:[#allocation2 + $0x10] sm:$0xff]
        %v5730 = vld [vmem:[#allocation2 + $0x20] sm:$0xff]
        %v5731 = vld [vmem:[#allocation2 + $0x30] sm:$0xff]
        %v5732 = vld [vmem:[#allocation2 + $0x40] sm:$0xff]
        %v5733 = vld [vmem:[#allocation2 + $0x50] sm:$0xff]
        %v5734 = vld [vmem:[#allocation2 + $0x60] sm:$0xff]
        %v5735 = vld [vmem:[#allocation2 + $0x70] sm:$0xff]
        %v5736 = vpack.c.bf16 %v5729, %v5728
        %v5737 = vpack.c.bf16 %v5731, %v5730
        %v5738 = vpack.c.bf16 %v5733, %v5732
        %v5739 = vpack.c.bf16 %v5735, %v5734
        %s5740 = scalar_lea.vmem [#allocation6], 720
        %v5741 = vld [vmem:[%s5740] sm:$0xf]
        %v5742 = vld [vmem:[%s5740 + $0x4] sm:$0xf]
        %v5743 = vld [vmem:[%s5740 + $0x8] sm:$0xf]
        %v5744 = vld [vmem:[%s5740 + $0xc] sm:$0xf]
        %v5745 = vld [vmem:[#allocation2 + $0x1] sm:$0xff]
        %v5746 = vld [vmem:[#allocation2 + $0x11] sm:$0xff]
        %v5747 = vld [vmem:[#allocation2 + $0x21] sm:$0xff]
        %v5748 = vld [vmem:[#allocation2 + $0x31] sm:$0xff]
        %v5749 = vld [vmem:[#allocation2 + $0x41] sm:$0xff]
        %v5750 = vld [vmem:[#allocation2 + $0x51] sm:$0xff]
        %v5751 = vld [vmem:[#allocation2 + $0x61] sm:$0xff]
        %v5752 = vld [vmem:[#allocation2 + $0x71] sm:$0xff]
        %v5753 = vpack.c.bf16 %v5746, %v5745
        %v5754 = vpack.c.bf16 %v5748, %v5747
        %v5755 = vpack.c.bf16 %v5750, %v5749
        %v5756 = vpack.c.bf16 %v5752, %v5751
        %s5757 = scalar_lea.vmem [#allocation6], 736
        %v5758 = vld [vmem:[%s5757] sm:$0xf]
        %v5759 = vld [vmem:[%s5757 + $0x4] sm:$0xf]
        %v5760 = vld [vmem:[%s5757 + $0x8] sm:$0xf]
        %v5761 = vld [vmem:[%s5757 + $0xc] sm:$0xf]
        %v5766 = vunpack.c.l.b16 %v5758
        %v5767 = vunpack.c.l.b16 %v5759
        %v5768 = vunpack.c.l.b16 %v5760
        %v5769 = vunpack.c.l.b16 %v5761
        %v5770 = vpack.c.b16 %v5767, %v5766
        %v5771 = vpack.c.b16 %v5769, %v5768
        %v5775 = vsel %vm178, %v5753, 0
        %v5778 = vsel %vm178, %v5754, 0
        %v5781 = vsel %vm178, %v5755, 0
        %v5784 = vsel %vm178, %v5756, 0
        %5786 = vmatprep.subr.bf16.mxu0 0
        %5787 = vmatpush1.bf16.msra.mxu0 %v5770
        %5788 = vmatprep.subr.bf16.mxu0 0
        %5789 = vmatpush1.bf16.msra.mxu0 %v5771
        %5790 = vmatprep.subr.bf16.mxu0 0
        %5791 = vmatpush1.bf16.msra.mxu0 0
        %5792 = vmatprep.subr.bf16.mxu0 0
        %5793 = vmatpush1.bf16.msra.mxu0 0
        %5794 = vmatprep.subr.bf16.mxu0 0
        %5795 = vmatpush1.bf16.msra.mxu0 0
        %5796 = vmatprep.subr.bf16.mxu0 0
        %5797 = vmatpush1.bf16.msra.mxu0 0
        %5798 = vmatprep.subr.bf16.mxu0 0
        %5799 = vmatpush1.bf16.msra.mxu0 0
        %5800 = vmatprep.subr.bf16.mxu0 0
        %5801 = vmatpush1.bf16.msra.mxu0 0
        %5802 = vmatprep.subr.bf16.mxu0 0
        %5803 = vmatpush1.bf16.msra.mxu0 0
        %5804 = vmatprep.subr.bf16.mxu0 0
        %5805 = vmatpush1.bf16.msra.mxu0 0
        %5806 = vmatprep.subr.bf16.mxu0 0
        %5807 = vmatpush1.bf16.msra.mxu0 0
        %5808 = vmatprep.subr.bf16.mxu0 0
        %5809 = vmatpush1.bf16.msra.mxu0 0
        %5810 = vmatprep.subr.bf16.mxu0 0
        %5811 = vmatpush1.bf16.msra.mxu0 0
        %5812 = vmatprep.subr.bf16.mxu0 0
        %5813 = vmatpush1.bf16.msra.mxu0 0
        %5814 = vmatprep.subr.bf16.mxu0 0
        %5815 = vmatpush1.bf16.msra.mxu0 0
        %5816 = vmatprep.subr.bf16.mxu0 0
        %5817 = vmatpush1.bf16.msra.mxu0 0
        %5818 = vmatprep.mubr.bf16.mxu0 0
        %5819 = vmatmul.mubr.bf16.gmra.mrb[0].mxu0 %v5775
        %v5820 = vpop.f32.mrb[0].mxu0
        %v5821 = vadd.f32 0.0, %v5820
        %v5822 = vpop.f32.mrb[0].mxu0
        %v5823 = vpop.f32.mrb[0].mxu0
        %v5824 = vadd.f32 0.0, %v5823
        %v5825 = vpop.f32.mrb[0].mxu0
        %5826 = vmatprep.mubr.bf16.mxu0 0
        %5827 = vmatmul.mubr.bf16.gmra.mrb[0].mxu0 %v5778
        %v5828 = vpop.f32.mrb[0].mxu0
        %v5829 = vadd.f32 0.0, %v5828
        %v5830 = vpop.f32.mrb[0].mxu0
        %v5831 = vpop.f32.mrb[0].mxu0
        %v5832 = vadd.f32 0.0, %v5831
        %v5833 = vpop.f32.mrb[0].mxu0
        %5834 = vmatprep.mubr.bf16.mxu0 0
        %5835 = vmatmul.mubr.bf16.gmra.mrb[0].mxu0 %v5781
        %v5836 = vpop.f32.mrb[0].mxu0
        %v5837 = vadd.f32 0.0, %v5836
        %v5838 = vpop.f32.mrb[0].mxu0
        %v5839 = vpop.f32.mrb[0].mxu0
        %v5840 = vadd.f32 0.0, %v5839
        %v5841 = vpop.f32.mrb[0].mxu0
        %5842 = vmatprep.mubr.bf16.mxu0 0
        %5843 = vmatmul.mubr.bf16.gmra.mrb[0].mxu0 %v5784
        %v5844 = vpop.f32.mrb[0].mxu0
        %v5845 = vadd.f32 0.0, %v5844
        %v5846 = vpop.f32.mrb[0].mxu0
        %v5847 = vpop.f32.mrb[0].mxu0
        %v5848 = vadd.f32 0.0, %v5847
        %v5849 = vpop.f32.mrb[0].mxu0
        %5850 = vdwg.mxu0
        %v5855 = vunpack.c.l.b16 %v5741
        %v5856 = vunpack.c.l.b16 %v5742
        %v5857 = vunpack.c.l.b16 %v5743
        %v5858 = vunpack.c.l.b16 %v5744
        %v5859 = vpack.c.b16 %v5856, %v5855
        %v5860 = vpack.c.b16 %v5858, %v5857
        %v5864 = vsel %vm178, %v5736, 0
        %v5867 = vsel %vm178, %v5737, 0
        %v5870 = vsel %vm178, %v5738, 0
        %v5873 = vsel %vm178, %v5739, 0
        %5875 = vmatprep.subr.bf16.mxu0 0
        %5876 = vmatpush1.bf16.msra.mxu0 %v5859
        %5877 = vmatprep.subr.bf16.mxu0 0
        %5878 = vmatpush1.bf16.msra.mxu0 %v5860
        %5879 = vmatprep.subr.bf16.mxu0 0
        %5880 = vmatpush1.bf16.msra.mxu0 0
        %5881 = vmatprep.subr.bf16.mxu0 0
        %5882 = vmatpush1.bf16.msra.mxu0 0
        %5883 = vmatprep.subr.bf16.mxu0 0
        %5884 = vmatpush1.bf16.msra.mxu0 0
        %5885 = vmatprep.subr.bf16.mxu0 0
        %5886 = vmatpush1.bf16.msra.mxu0 0
        %5887 = vmatprep.subr.bf16.mxu0 0
        %5888 = vmatpush1.bf16.msra.mxu0 0
        %5889 = vmatprep.subr.bf16.mxu0 0
        %5890 = vmatpush1.bf16.msra.mxu0 0
        %5891 = vmatprep.subr.bf16.mxu0 0
        %5892 = vmatpush1.bf16.msra.mxu0 0
        %5893 = vmatprep.subr.bf16.mxu0 0
        %5894 = vmatpush1.bf16.msra.mxu0 0
        %5895 = vmatprep.subr.bf16.mxu0 0
        %5896 = vmatpush1.bf16.msra.mxu0 0
        %5897 = vmatprep.subr.bf16.mxu0 0
        %5898 = vmatpush1.bf16.msra.mxu0 0
        %5899 = vmatprep.subr.bf16.mxu0 0
        %5900 = vmatpush1.bf16.msra.mxu0 0
        %5901 = vmatprep.subr.bf16.mxu0 0
        %5902 = vmatpush1.bf16.msra.mxu0 0
        %5903 = vmatprep.subr.bf16.mxu0 0
        %5904 = vmatpush1.bf16.msra.mxu0 0
        %5905 = vmatprep.subr.bf16.mxu0 0
        %5906 = vmatpush1.bf16.msra.mxu0 0
        %5907 = vmatprep.mubr.bf16.mxu0 0
        %5908 = vmatmul.mubr.bf16.gmra.mrb[0].mxu0 %v5864
        %v5909 = vpop.f32.mrb[0].mxu0
        %v5910 = vadd.f32 %v5821, %v5909
        %v5911 = vpop.f32.mrb[0].mxu0
        %v5912 = vpop.f32.mrb[0].mxu0
        %v5913 = vadd.f32 %v5824, %v5912
        %v5914 = vpop.f32.mrb[0].mxu0
        %5915 = vmatprep.mubr.bf16.mxu0 0
        %5916 = vmatmul.mubr.bf16.gmra.mrb[0].mxu0 %v5867
        %v5917 = vpop.f32.mrb[0].mxu0
        %v5918 = vadd.f32 %v5829, %v5917
        %v5919 = vpop.f32.mrb[0].mxu0
        %v5920 = vpop.f32.mrb[0].mxu0
        %v5921 = vadd.f32 %v5832, %v5920
        %v5922 = vpop.f32.mrb[0].mxu0
        %5923 = vmatprep.mubr.bf16.mxu0 0
        %5924 = vmatmul.mubr.bf16.gmra.mrb[0].mxu0 %v5870
        %v5925 = vpop.f32.mrb[0].mxu0
        %v5926 = vadd.f32 %v5837, %v5925
        %v5927 = vpop.f32.mrb[0].mxu0
        %v5928 = vpop.f32.mrb[0].mxu0
        %v5929 = vadd.f32 %v5840, %v5928
        %v5930 = vpop.f32.mrb[0].mxu0
        %5931 = vmatprep.mubr.bf16.mxu0 0
        %5932 = vmatmul.mubr.bf16.gmra.mrb[0].mxu0 %v5873
        %v5933 = vpop.f32.mrb[0].mxu0
        %v5934 = vadd.f32 %v5845, %v5933
        %v5935 = vpop.f32.mrb[0].mxu0
        %v5936 = vpop.f32.mrb[0].mxu0
        %v5937 = vadd.f32 %v5848, %v5936
        %v5938 = vpop.f32.mrb[0].mxu0
        %5939 = vdwg.mxu0
        %v5940 = vld [vmem:[#allocation2 + $0x2] sm:$0xff]
        %v5941 = vld [vmem:[#allocation2 + $0x12] sm:$0xff]
        %v5942 = vld [vmem:[#allocation2 + $0x22] sm:$0xff]
        %v5943 = vld [vmem:[#allocation2 + $0x32] sm:$0xff]
        %v5944 = vld [vmem:[#allocation2 + $0x42] sm:$0xff]
        %v5945 = vld [vmem:[#allocation2 + $0x52] sm:$0xff]
        %v5946 = vld [vmem:[#allocation2 + $0x62] sm:$0xff]
        %v5947 = vld [vmem:[#allocation2 + $0x72] sm:$0xff]
        %v5948 = vpack.c.bf16 %v5941, %v5940
        %v5949 = vpack.c.bf16 %v5943, %v5942
        %v5950 = vpack.c.bf16 %v5945, %v5944
        %v5951 = vpack.c.bf16 %v5947, %v5946
        %s5952 = scalar_lea.vmem [#allocation6], 752
        %v5953 = vld [vmem:[%s5952] sm:$0xf]
        %v5954 = vld [vmem:[%s5952 + $0x4] sm:$0xf]
        %v5955 = vld [vmem:[%s5952 + $0x8] sm:$0xf]
        %v5956 = vld [vmem:[%s5952 + $0xc] sm:$0xf]
        %v5961 = vunpack.c.l.b16 %v5953
        %v5962 = vunpack.c.l.b16 %v5954
        %v5963 = vunpack.c.l.b16 %v5955
        %v5964 = vunpack.c.l.b16 %v5956
        %v5965 = vpack.c.b16 %v5962, %v5961
        %v5966 = vpack.c.b16 %v5964, %v5963
        %v5970 = vsel %vm178, %v5948, 0
        %v5973 = vsel %vm178, %v5949, 0
        %v5976 = vsel %vm178, %v5950, 0
        %v5979 = vsel %vm178, %v5951, 0
        %5981 = vmatprep.subr.bf16.mxu0 0
        %5982 = vmatpush1.bf16.msra.mxu0 %v5965
        %5983 = vmatprep.subr.bf16.mxu0 0
        %5984 = vmatpush1.bf16.msra.mxu0 %v5966
        %5985 = vmatprep.subr.bf16.mxu0 0
        %5986 = vmatpush1.bf16.msra.mxu0 0
        %5987 = vmatprep.subr.bf16.mxu0 0
        %5988 = vmatpush1.bf16.msra.mxu0 0
        %5989 = vmatprep.subr.bf16.mxu0 0
        %5990 = vmatpush1.bf16.msra.mxu0 0
        %5991 = vmatprep.subr.bf16.mxu0 0
        %5992 = vmatpush1.bf16.msra.mxu0 0
        %5993 = vmatprep.subr.bf16.mxu0 0
        %5994 = vmatpush1.bf16.msra.mxu0 0
        %5995 = vmatprep.subr.bf16.mxu0 0
        %5996 = vmatpush1.bf16.msra.mxu0 0
        %5997 = vmatprep.subr.bf16.mxu0 0
        %5998 = vmatpush1.bf16.msra.mxu0 0
        %5999 = vmatprep.subr.bf16.mxu0 0
        %6000 = vmatpush1.bf16.msra.mxu0 0
        %6001 = vmatprep.subr.bf16.mxu0 0
        %6002 = vmatpush1.bf16.msra.mxu0 0
        %6003 = vmatprep.subr.bf16.mxu0 0
        %6004 = vmatpush1.bf16.msra.mxu0 0
        %6005 = vmatprep.subr.bf16.mxu0 0
        %6006 = vmatpush1.bf16.msra.mxu0 0
        %6007 = vmatprep.subr.bf16.mxu0 0
        %6008 = vmatpush1.bf16.msra.mxu0 0
        %6009 = vmatprep.subr.bf16.mxu0 0
        %6010 = vmatpush1.bf16.msra.mxu0 0
        %6011 = vmatprep.subr.bf16.mxu0 0
        %6012 = vmatpush1.bf16.msra.mxu0 0
        %6013 = vmatprep.mubr.bf16.mxu0 0
        %6014 = vmatmul.mubr.bf16.gmra.mrb[0].mxu0 %v5970
        %v6015 = vpop.f32.mrb[0].mxu0
        %v6016 = vadd.f32 0.0, %v6015
        %v6017 = vpop.f32.mrb[0].mxu0
        %v6018 = vpop.f32.mrb[0].mxu0
        %v6019 = vadd.f32 0.0, %v6018
        %v6020 = vpop.f32.mrb[0].mxu0
        %6021 = vmatprep.mubr.bf16.mxu0 0
        %6022 = vmatmul.mubr.bf16.gmra.mrb[0].mxu0 %v5973
        %v6023 = vpop.f32.mrb[0].mxu0
        %v6024 = vadd.f32 0.0, %v6023
        %v6025 = vpop.f32.mrb[0].mxu0
        %v6026 = vpop.f32.mrb[0].mxu0
        %v6027 = vadd.f32 0.0, %v6026
        %v6028 = vpop.f32.mrb[0].mxu0
        %6029 = vmatprep.mubr.bf16.mxu0 0
        %6030 = vmatmul.mubr.bf16.gmra.mrb[0].mxu0 %v5976
        %v6031 = vpop.f32.mrb[0].mxu0
        %v6032 = vadd.f32 0.0, %v6031
        %v6033 = vpop.f32.mrb[0].mxu0
        %v6034 = vpop.f32.mrb[0].mxu0
        %v6035 = vadd.f32 0.0, %v6034
        %v6036 = vpop.f32.mrb[0].mxu0
        %6037 = vmatprep.mubr.bf16.mxu0 0
        %6038 = vmatmul.mubr.bf16.gmra.mrb[0].mxu0 %v5979
        %v6039 = vpop.f32.mrb[0].mxu0
        %v6040 = vadd.f32 0.0, %v6039
        %v6041 = vpop.f32.mrb[0].mxu0
        %v6042 = vpop.f32.mrb[0].mxu0
        %v6043 = vadd.f32 0.0, %v6042
        %v6044 = vpop.f32.mrb[0].mxu0
        %6045 = vdwg.mxu0
        %v6046 = vadd.f32 %v5910, %v6016
        %v6047 = vadd.f32 %v5913, %v6019
        %v6048 = vadd.f32 %v5918, %v6024
        %v6049 = vadd.f32 %v5921, %v6027
        %v6050 = vadd.f32 %v5926, %v6032
        %v6051 = vadd.f32 %v5929, %v6035
        %v6052 = vadd.f32 %v5934, %v6040
        %v6053 = vadd.f32 %v5937, %v6043
        %v6054 = vld [vmem:[%s208] sm:$0xff]
        %v6055 = vld [vmem:[%s208 + $0x10] sm:$0xff]
        %v6056 = vld [vmem:[%s208 + $0x20] sm:$0xff]
        %v6057 = vld [vmem:[%s208 + $0x30] sm:$0xff]
        %v6058 = vld [vmem:[%s208 + $0x40] sm:$0xff]
        %v6059 = vld [vmem:[%s208 + $0x50] sm:$0xff]
        %v6060 = vld [vmem:[%s208 + $0x60] sm:$0xff]
        %v6061 = vld [vmem:[%s208 + $0x70] sm:$0xff]
        %v6062 = vpack.c.bf16 %v6055, %v6054
        %v6063 = vpack.c.bf16 %v6057, %v6056
        %v6064 = vpack.c.bf16 %v6059, %v6058
        %v6065 = vpack.c.bf16 %v6061, %v6060
        %s6066 = scalar_lea.vmem [#allocation6], 768
        %v6067 = vld [vmem:[%s6066] sm:$0xf]
        %v6068 = vld [vmem:[%s6066 + $0x4] sm:$0xf]
        %v6069 = vld [vmem:[%s6066 + $0x8] sm:$0xf]
        %v6070 = vld [vmem:[%s6066 + $0xc] sm:$0xf]
        %v6075 = vunpack.c.l.b16 %v6067
        %v6076 = vunpack.c.l.b16 %v6068
        %v6077 = vunpack.c.l.b16 %v6069
        %v6078 = vunpack.c.l.b16 %v6070
        %v6079 = vpack.c.b16 %v6076, %v6075
        %v6080 = vpack.c.b16 %v6078, %v6077
        %v6084 = vsel %vm178, %v6062, 0
        %v6087 = vsel %vm178, %v6063, 0
        %v6090 = vsel %vm178, %v6064, 0
        %v6093 = vsel %vm178, %v6065, 0
        %6095 = vmatprep.subr.bf16.mxu0 0
        %6096 = vmatpush1.bf16.msra.mxu0 %v6079
        %6097 = vmatprep.subr.bf16.mxu0 0
        %6098 = vmatpush1.bf16.msra.mxu0 %v6080
        %6099 = vmatprep.subr.bf16.mxu0 0
        %6100 = vmatpush1.bf16.msra.mxu0 0
        %6101 = vmatprep.subr.bf16.mxu0 0
        %6102 = vmatpush1.bf16.msra.mxu0 0
        %6103 = vmatprep.subr.bf16.mxu0 0
        %6104 = vmatpush1.bf16.msra.mxu0 0
        %6105 = vmatprep.subr.bf16.mxu0 0
        %6106 = vmatpush1.bf16.msra.mxu0 0
        %6107 = vmatprep.subr.bf16.mxu0 0
        %6108 = vmatpush1.bf16.msra.mxu0 0
        %6109 = vmatprep.subr.bf16.mxu0 0
        %6110 = vmatpush1.bf16.msra.mxu0 0
        %6111 = vmatprep.subr.bf16.mxu0 0
        %6112 = vmatpush1.bf16.msra.mxu0 0
        %6113 = vmatprep.subr.bf16.mxu0 0
        %6114 = vmatpush1.bf16.msra.mxu0 0
        %6115 = vmatprep.subr.bf16.mxu0 0
        %6116 = vmatpush1.bf16.msra.mxu0 0
        %6117 = vmatprep.subr.bf16.mxu0 0
        %6118 = vmatpush1.bf16.msra.mxu0 0
        %6119 = vmatprep.subr.bf16.mxu0 0
        %6120 = vmatpush1.bf16.msra.mxu0 0
        %6121 = vmatprep.subr.bf16.mxu0 0
        %6122 = vmatpush1.bf16.msra.mxu0 0
        %6123 = vmatprep.subr.bf16.mxu0 0
        %6124 = vmatpush1.bf16.msra.mxu0 0
        %6125 = vmatprep.subr.bf16.mxu0 0
        %6126 = vmatpush1.bf16.msra.mxu0 0
        %6127 = vmatprep.mubr.bf16.mxu0 0
        %6128 = vmatmul.mubr.bf16.gmra.mrb[0].mxu0 %v6084
        %v6129 = vpop.f32.mrb[0].mxu0
        %v6130 = vadd.f32 0.0, %v6129
        %v6131 = vpop.f32.mrb[0].mxu0
        %v6132 = vpop.f32.mrb[0].mxu0
        %v6133 = vadd.f32 0.0, %v6132
        %v6134 = vpop.f32.mrb[0].mxu0
        %6135 = vmatprep.mubr.bf16.mxu0 0
        %6136 = vmatmul.mubr.bf16.gmra.mrb[0].mxu0 %v6087
        %v6137 = vpop.f32.mrb[0].mxu0
        %v6138 = vadd.f32 0.0, %v6137
        %v6139 = vpop.f32.mrb[0].mxu0
        %v6140 = vpop.f32.mrb[0].mxu0
        %v6141 = vadd.f32 0.0, %v6140
        %v6142 = vpop.f32.mrb[0].mxu0
        %6143 = vmatprep.mubr.bf16.mxu0 0
        %6144 = vmatmul.mubr.bf16.gmra.mrb[0].mxu0 %v6090
        %v6145 = vpop.f32.mrb[0].mxu0
        %v6146 = vadd.f32 0.0, %v6145
        %v6147 = vpop.f32.mrb[0].mxu0
        %v6148 = vpop.f32.mrb[0].mxu0
        %v6149 = vadd.f32 0.0, %v6148
        %v6150 = vpop.f32.mrb[0].mxu0
        %6151 = vmatprep.mubr.bf16.mxu0 0
        %6152 = vmatmul.mubr.bf16.gmra.mrb[0].mxu0 %v6093
        %v6153 = vpop.f32.mrb[0].mxu0
        %v6154 = vadd.f32 0.0, %v6153
        %v6155 = vpop.f32.mrb[0].mxu0
        %v6156 = vpop.f32.mrb[0].mxu0
        %v6157 = vadd.f32 0.0, %v6156
        %v6158 = vpop.f32.mrb[0].mxu0
        %6159 = vdwg.mxu0
        %v6160 = vadd.f32 %v6046, %v6130
        %v6161 = vadd.f32 %v6047, %v6133
        %v6162 = vadd.f32 %v6048, %v6138
        %v6163 = vadd.f32 %v6049, %v6141
        %v6164 = vadd.f32 %v6050, %v6146
        %v6165 = vadd.f32 %v6051, %v6149
        %v6166 = vadd.f32 %v6052, %v6154
        %v6167 = vadd.f32 %v6053, %v6157
        %v6168 = vld [vmem:[%s208 + $0x1] sm:$0xff]
        %v6169 = vld [vmem:[%s208 + $0x11] sm:$0xff]
        %v6170 = vld [vmem:[%s208 + $0x21] sm:$0xff]
        %v6171 = vld [vmem:[%s208 + $0x31] sm:$0xff]
        %v6172 = vld [vmem:[%s208 + $0x41] sm:$0xff]
        %v6173 = vld [vmem:[%s208 + $0x51] sm:$0xff]
        %v6174 = vld [vmem:[%s208 + $0x61] sm:$0xff]
        %v6175 = vld [vmem:[%s208 + $0x71] sm:$0xff]
        %v6176 = vpack.c.bf16 %v6169, %v6168
        %v6177 = vpack.c.bf16 %v6171, %v6170
        %v6178 = vpack.c.bf16 %v6173, %v6172
        %v6179 = vpack.c.bf16 %v6175, %v6174
        %s6180 = scalar_lea.vmem [#allocation6], 784
        %v6181 = vld [vmem:[%s6180] sm:$0xf]
        %v6182 = vld [vmem:[%s6180 + $0x4] sm:$0xf]
        %v6183 = vld [vmem:[%s6180 + $0x8] sm:$0xf]
        %v6184 = vld [vmem:[%s6180 + $0xc] sm:$0xf]
        %v6189 = vunpack.c.l.b16 %v6181
        %v6190 = vunpack.c.l.b16 %v6182
        %v6191 = vunpack.c.l.b16 %v6183
        %v6192 = vunpack.c.l.b16 %v6184
        %v6193 = vpack.c.b16 %v6190, %v6189
        %v6194 = vpack.c.b16 %v6192, %v6191
        %v6198 = vsel %vm178, %v6176, 0
        %v6201 = vsel %vm178, %v6177, 0
        %v6204 = vsel %vm178, %v6178, 0
        %v6207 = vsel %vm178, %v6179, 0
        %6209 = vmatprep.subr.bf16.mxu0 0
        %6210 = vmatpush1.bf16.msra.mxu0 %v6193
        %6211 = vmatprep.subr.bf16.mxu0 0
        %6212 = vmatpush1.bf16.msra.mxu0 %v6194
        %6213 = vmatprep.subr.bf16.mxu0 0
        %6214 = vmatpush1.bf16.msra.mxu0 0
        %6215 = vmatprep.subr.bf16.mxu0 0
        %6216 = vmatpush1.bf16.msra.mxu0 0
        %6217 = vmatprep.subr.bf16.mxu0 0
        %6218 = vmatpush1.bf16.msra.mxu0 0
        %6219 = vmatprep.subr.bf16.mxu0 0
        %6220 = vmatpush1.bf16.msra.mxu0 0
        %6221 = vmatprep.subr.bf16.mxu0 0
        %6222 = vmatpush1.bf16.msra.mxu0 0
        %6223 = vmatprep.subr.bf16.mxu0 0
        %6224 = vmatpush1.bf16.msra.mxu0 0
        %6225 = vmatprep.subr.bf16.mxu0 0
        %6226 = vmatpush1.bf16.msra.mxu0 0
        %6227 = vmatprep.subr.bf16.mxu0 0
        %6228 = vmatpush1.bf16.msra.mxu0 0
        %6229 = vmatprep.subr.bf16.mxu0 0
        %6230 = vmatpush1.bf16.msra.mxu0 0
        %6231 = vmatprep.subr.bf16.mxu0 0
        %6232 = vmatpush1.bf16.msra.mxu0 0
        %6233 = vmatprep.subr.bf16.mxu0 0
        %6234 = vmatpush1.bf16.msra.mxu0 0
        %6235 = vmatprep.subr.bf16.mxu0 0
        %6236 = vmatpush1.bf16.msra.mxu0 0
        %6237 = vmatprep.subr.bf16.mxu0 0
        %6238 = vmatpush1.bf16.msra.mxu0 0
        %6239 = vmatprep.subr.bf16.mxu0 0
        %6240 = vmatpush1.bf16.msra.mxu0 0
        %6241 = vmatprep.mubr.bf16.mxu0 0
        %6242 = vmatmul.mubr.bf16.gmra.mrb[0].mxu0 %v6198
        %v6243 = vpop.f32.mrb[0].mxu0
        %v6244 = vadd.f32 0.0, %v6243
        %v6245 = vpop.f32.mrb[0].mxu0
        %v6246 = vpop.f32.mrb[0].mxu0
        %v6247 = vadd.f32 0.0, %v6246
        %v6248 = vpop.f32.mrb[0].mxu0
        %6249 = vmatprep.mubr.bf16.mxu0 0
        %6250 = vmatmul.mubr.bf16.gmra.mrb[0].mxu0 %v6201
        %v6251 = vpop.f32.mrb[0].mxu0
        %v6252 = vadd.f32 0.0, %v6251
        %v6253 = vpop.f32.mrb[0].mxu0
        %v6254 = vpop.f32.mrb[0].mxu0
        %v6255 = vadd.f32 0.0, %v6254
        %v6256 = vpop.f32.mrb[0].mxu0
        %6257 = vmatprep.mubr.bf16.mxu0 0
        %6258 = vmatmul.mubr.bf16.gmra.mrb[0].mxu0 %v6204
        %v6259 = vpop.f32.mrb[0].mxu0
        %v6260 = vadd.f32 0.0, %v6259
        %v6261 = vpop.f32.mrb[0].mxu0
        %v6262 = vpop.f32.mrb[0].mxu0
        %v6263 = vadd.f32 0.0, %v6262
        %v6264 = vpop.f32.mrb[0].mxu0
        %6265 = vmatprep.mubr.bf16.mxu0 0
        %6266 = vmatmul.mubr.bf16.gmra.mrb[0].mxu0 %v6207
        %v6267 = vpop.f32.mrb[0].mxu0
        %v6268 = vadd.f32 0.0, %v6267
        %v6269 = vpop.f32.mrb[0].mxu0
        %v6270 = vpop.f32.mrb[0].mxu0
        %v6271 = vadd.f32 0.0, %v6270
        %v6272 = vpop.f32.mrb[0].mxu0
        %6273 = vdwg.mxu0
        %v6274 = vadd.f32 %v6160, %v6244
        %v6275 = vadd.f32 %v6161, %v6247
        %v6276 = vadd.f32 %v6162, %v6252
        %v6277 = vadd.f32 %v6163, %v6255
        %v6278 = vadd.f32 %v6164, %v6260
        %v6279 = vadd.f32 %v6165, %v6263
        %v6280 = vadd.f32 %v6166, %v6268
        %v6281 = vadd.f32 %v6167, %v6271
        %v6282 = vld [vmem:[%s208 + $0x2] sm:$0xff]
        %v6283 = vld [vmem:[%s208 + $0x12] sm:$0xff]
        %v6284 = vld [vmem:[%s208 + $0x22] sm:$0xff]
        %v6285 = vld [vmem:[%s208 + $0x32] sm:$0xff]
        %v6286 = vld [vmem:[%s208 + $0x42] sm:$0xff]
        %v6287 = vld [vmem:[%s208 + $0x52] sm:$0xff]
        %v6288 = vld [vmem:[%s208 + $0x62] sm:$0xff]
        %v6289 = vld [vmem:[%s208 + $0x72] sm:$0xff]
        %v6290 = vpack.c.bf16 %v6283, %v6282
        %v6291 = vpack.c.bf16 %v6285, %v6284
        %v6292 = vpack.c.bf16 %v6287, %v6286
        %v6293 = vpack.c.bf16 %v6289, %v6288
        %s6294 = scalar_lea.vmem [#allocation6], 800
        %v6295 = vld [vmem:[%s6294] sm:$0xf]
        %v6296 = vld [vmem:[%s6294 + $0x4] sm:$0xf]
        %v6297 = vld [vmem:[%s6294 + $0x8] sm:$0xf]
        %v6298 = vld [vmem:[%s6294 + $0xc] sm:$0xf]
        %v6303 = vunpack.c.l.b16 %v6295
        %v6304 = vunpack.c.l.b16 %v6296
        %v6305 = vunpack.c.l.b16 %v6297
        %v6306 = vunpack.c.l.b16 %v6298
        %v6307 = vpack.c.b16 %v6304, %v6303
        %v6308 = vpack.c.b16 %v6306, %v6305
        %v6312 = vsel %vm178, %v6290, 0
        %v6315 = vsel %vm178, %v6291, 0
        %v6318 = vsel %vm178, %v6292, 0
        %v6321 = vsel %vm178, %v6293, 0
        %6323 = vmatprep.subr.bf16.mxu0 0
        %6324 = vmatpush1.bf16.msra.mxu0 %v6307
        %6325 = vmatprep.subr.bf16.mxu0 0
        %6326 = vmatpush1.bf16.msra.mxu0 %v6308
        %6327 = vmatprep.subr.bf16.mxu0 0
        %6328 = vmatpush1.bf16.msra.mxu0 0
        %6329 = vmatprep.subr.bf16.mxu0 0
        %6330 = vmatpush1.bf16.msra.mxu0 0
        %6331 = vmatprep.subr.bf16.mxu0 0
        %6332 = vmatpush1.bf16.msra.mxu0 0
        %6333 = vmatprep.subr.bf16.mxu0 0
        %6334 = vmatpush1.bf16.msra.mxu0 0
        %6335 = vmatprep.subr.bf16.mxu0 0
        %6336 = vmatpush1.bf16.msra.mxu0 0
        %6337 = vmatprep.subr.bf16.mxu0 0
        %6338 = vmatpush1.bf16.msra.mxu0 0
        %6339 = vmatprep.subr.bf16.mxu0 0
        %6340 = vmatpush1.bf16.msra.mxu0 0
        %6341 = vmatprep.subr.bf16.mxu0 0
        %6342 = vmatpush1.bf16.msra.mxu0 0
        %6343 = vmatprep.subr.bf16.mxu0 0
        %6344 = vmatpush1.bf16.msra.mxu0 0
        %6345 = vmatprep.subr.bf16.mxu0 0
        %6346 = vmatpush1.bf16.msra.mxu0 0
        %6347 = vmatprep.subr.bf16.mxu0 0
        %6348 = vmatpush1.bf16.msra.mxu0 0
        %6349 = vmatprep.subr.bf16.mxu0 0
        %6350 = vmatpush1.bf16.msra.mxu0 0
        %6351 = vmatprep.subr.bf16.mxu0 0
        %6352 = vmatpush1.bf16.msra.mxu0 0
        %6353 = vmatprep.subr.bf16.mxu0 0
        %6354 = vmatpush1.bf16.msra.mxu0 0
        %6355 = vmatprep.mubr.bf16.mxu0 0
        %6356 = vmatmul.mubr.bf16.gmra.mrb[0].mxu0 %v6312
        %v6357 = vpop.f32.mrb[0].mxu0
        %v6358 = vadd.f32 0.0, %v6357
        %v6359 = vpop.f32.mrb[0].mxu0
        %v6360 = vpop.f32.mrb[0].mxu0
        %v6361 = vadd.f32 0.0, %v6360
        %v6362 = vpop.f32.mrb[0].mxu0
        %6363 = vmatprep.mubr.bf16.mxu0 0
        %6364 = vmatmul.mubr.bf16.gmra.mrb[0].mxu0 %v6315
        %v6365 = vpop.f32.mrb[0].mxu0
        %v6366 = vadd.f32 0.0, %v6365
        %v6367 = vpop.f32.mrb[0].mxu0
        %v6368 = vpop.f32.mrb[0].mxu0
        %v6369 = vadd.f32 0.0, %v6368
        %v6370 = vpop.f32.mrb[0].mxu0
        %6371 = vmatprep.mubr.bf16.mxu0 0
        %6372 = vmatmul.mubr.bf16.gmra.mrb[0].mxu0 %v6318
        %v6373 = vpop.f32.mrb[0].mxu0
        %v6374 = vadd.f32 0.0, %v6373
        %v6375 = vpop.f32.mrb[0].mxu0
        %v6376 = vpop.f32.mrb[0].mxu0
        %v6377 = vadd.f32 0.0, %v6376
        %v6378 = vpop.f32.mrb[0].mxu0
        %6379 = vmatprep.mubr.bf16.mxu0 0
        %6380 = vmatmul.mubr.bf16.gmra.mrb[0].mxu0 %v6321
        %v6381 = vpop.f32.mrb[0].mxu0
        %v6382 = vadd.f32 0.0, %v6381
        %v6383 = vpop.f32.mrb[0].mxu0
        %v6384 = vpop.f32.mrb[0].mxu0
        %v6385 = vadd.f32 0.0, %v6384
        %v6386 = vpop.f32.mrb[0].mxu0
        %6387 = vdwg.mxu0
        %v6388 = vadd.f32 %v6274, %v6358
        %v6389 = vadd.f32 %v6275, %v6361
        %v6390 = vadd.f32 %v6276, %v6366
        %v6391 = vadd.f32 %v6277, %v6369
        %v6392 = vadd.f32 %v6278, %v6374
        %v6393 = vadd.f32 %v6279, %v6377
        %v6394 = vadd.f32 %v6280, %v6382
        %v6395 = vadd.f32 %v6281, %v6385
        %v6396 = vld [vmem:[%s884] sm:$0xff]
        %v6397 = vld [vmem:[%s884 + $0x10] sm:$0xff]
        %v6398 = vld [vmem:[%s884 + $0x20] sm:$0xff]
        %v6399 = vld [vmem:[%s884 + $0x30] sm:$0xff]
        %v6400 = vld [vmem:[%s884 + $0x40] sm:$0xff]
        %v6401 = vld [vmem:[%s884 + $0x50] sm:$0xff]
        %v6402 = vld [vmem:[%s884 + $0x60] sm:$0xff]
        %v6403 = vld [vmem:[%s884 + $0x70] sm:$0xff]
        %v6404 = vpack.c.bf16 %v6397, %v6396
        %v6405 = vpack.c.bf16 %v6399, %v6398
        %v6406 = vpack.c.bf16 %v6401, %v6400
        %v6407 = vpack.c.bf16 %v6403, %v6402
        %s6408 = scalar_lea.vmem [#allocation6], 816
        %v6409 = vld [vmem:[%s6408] sm:$0xf]
        %v6410 = vld [vmem:[%s6408 + $0x4] sm:$0xf]
        %v6411 = vld [vmem:[%s6408 + $0x8] sm:$0xf]
        %v6412 = vld [vmem:[%s6408 + $0xc] sm:$0xf]
        %v6417 = vunpack.c.l.b16 %v6409
        %v6418 = vunpack.c.l.b16 %v6410
        %v6419 = vunpack.c.l.b16 %v6411
        %v6420 = vunpack.c.l.b16 %v6412
        %v6421 = vpack.c.b16 %v6418, %v6417
        %v6422 = vpack.c.b16 %v6420, %v6419
        %v6426 = vsel %vm178, %v6404, 0
        %v6429 = vsel %vm178, %v6405, 0
        %v6432 = vsel %vm178, %v6406, 0
        %v6435 = vsel %vm178, %v6407, 0
        %6437 = vmatprep.subr.bf16.mxu0 0
        %6438 = vmatpush1.bf16.msra.mxu0 %v6421
        %6439 = vmatprep.subr.bf16.mxu0 0
        %6440 = vmatpush1.bf16.msra.mxu0 %v6422
        %6441 = vmatprep.subr.bf16.mxu0 0
        %6442 = vmatpush1.bf16.msra.mxu0 0
        %6443 = vmatprep.subr.bf16.mxu0 0
        %6444 = vmatpush1.bf16.msra.mxu0 0
        %6445 = vmatprep.subr.bf16.mxu0 0
        %6446 = vmatpush1.bf16.msra.mxu0 0
        %6447 = vmatprep.subr.bf16.mxu0 0
        %6448 = vmatpush1.bf16.msra.mxu0 0
        %6449 = vmatprep.subr.bf16.mxu0 0
        %6450 = vmatpush1.bf16.msra.mxu0 0
        %6451 = vmatprep.subr.bf16.mxu0 0
        %6452 = vmatpush1.bf16.msra.mxu0 0
        %6453 = vmatprep.subr.bf16.mxu0 0
        %6454 = vmatpush1.bf16.msra.mxu0 0
        %6455 = vmatprep.subr.bf16.mxu0 0
        %6456 = vmatpush1.bf16.msra.mxu0 0
        %6457 = vmatprep.subr.bf16.mxu0 0
        %6458 = vmatpush1.bf16.msra.mxu0 0
        %6459 = vmatprep.subr.bf16.mxu0 0
        %6460 = vmatpush1.bf16.msra.mxu0 0
        %6461 = vmatprep.subr.bf16.mxu0 0
        %6462 = vmatpush1.bf16.msra.mxu0 0
        %6463 = vmatprep.subr.bf16.mxu0 0
        %6464 = vmatpush1.bf16.msra.mxu0 0
        %6465 = vmatprep.subr.bf16.mxu0 0
        %6466 = vmatpush1.bf16.msra.mxu0 0
        %6467 = vmatprep.subr.bf16.mxu0 0
        %6468 = vmatpush1.bf16.msra.mxu0 0
        %6469 = vmatprep.mubr.bf16.mxu0 0
        %6470 = vmatmul.mubr.bf16.gmra.mrb[0].mxu0 %v6426
        %v6471 = vpop.f32.mrb[0].mxu0
        %v6472 = vadd.f32 0.0, %v6471
        %v6473 = vpop.f32.mrb[0].mxu0
        %v6474 = vpop.f32.mrb[0].mxu0
        %v6475 = vadd.f32 0.0, %v6474
        %v6476 = vpop.f32.mrb[0].mxu0
        %6477 = vmatprep.mubr.bf16.mxu0 0
        %6478 = vmatmul.mubr.bf16.gmra.mrb[0].mxu0 %v6429
        %v6479 = vpop.f32.mrb[0].mxu0
        %v6480 = vadd.f32 0.0, %v6479
        %v6481 = vpop.f32.mrb[0].mxu0
        %v6482 = vpop.f32.mrb[0].mxu0
        %v6483 = vadd.f32 0.0, %v6482
        %v6484 = vpop.f32.mrb[0].mxu0
        %6485 = vmatprep.mubr.bf16.mxu0 0
        %6486 = vmatmul.mubr.bf16.gmra.mrb[0].mxu0 %v6432
        %v6487 = vpop.f32.mrb[0].mxu0
        %v6488 = vadd.f32 0.0, %v6487
        %v6489 = vpop.f32.mrb[0].mxu0
        %v6490 = vpop.f32.mrb[0].mxu0
        %v6491 = vadd.f32 0.0, %v6490
        %v6492 = vpop.f32.mrb[0].mxu0
        %6493 = vmatprep.mubr.bf16.mxu0 0
        %6494 = vmatmul.mubr.bf16.gmra.mrb[0].mxu0 %v6435
        %v6495 = vpop.f32.mrb[0].mxu0
        %v6496 = vadd.f32 0.0, %v6495
        %v6497 = vpop.f32.mrb[0].mxu0
        %v6498 = vpop.f32.mrb[0].mxu0
        %v6499 = vadd.f32 0.0, %v6498
        %v6500 = vpop.f32.mrb[0].mxu0
        %6501 = vdwg.mxu0
        %v6502 = vadd.f32 %v6388, %v6472
        %v6503 = vadd.f32 %v6389, %v6475
        %v6504 = vadd.f32 %v6390, %v6480
        %v6505 = vadd.f32 %v6391, %v6483
        %v6506 = vadd.f32 %v6392, %v6488
        %v6507 = vadd.f32 %v6393, %v6491
        %v6508 = vadd.f32 %v6394, %v6496
        %v6509 = vadd.f32 %v6395, %v6499
        %v6510 = vld [vmem:[%s884 + $0x1] sm:$0xff]
        %v6511 = vld [vmem:[%s884 + $0x11] sm:$0xff]
        %v6512 = vld [vmem:[%s884 + $0x21] sm:$0xff]
        %v6513 = vld [vmem:[%s884 + $0x31] sm:$0xff]
        %v6514 = vld [vmem:[%s884 + $0x41] sm:$0xff]
        %v6515 = vld [vmem:[%s884 + $0x51] sm:$0xff]
        %v6516 = vld [vmem:[%s884 + $0x61] sm:$0xff]
        %v6517 = vld [vmem:[%s884 + $0x71] sm:$0xff]
        %v6518 = vpack.c.bf16 %v6511, %v6510
        %v6519 = vpack.c.bf16 %v6513, %v6512
        %v6520 = vpack.c.bf16 %v6515, %v6514
        %v6521 = vpack.c.bf16 %v6517, %v6516
        %s6522 = scalar_lea.vmem [#allocation6], 832
        %v6523 = vld [vmem:[%s6522] sm:$0xf]
        %v6524 = vld [vmem:[%s6522 + $0x4] sm:$0xf]
        %v6525 = vld [vmem:[%s6522 + $0x8] sm:$0xf]
        %v6526 = vld [vmem:[%s6522 + $0xc] sm:$0xf]
        %v6531 = vunpack.c.l.b16 %v6523
        %v6532 = vunpack.c.l.b16 %v6524
        %v6533 = vunpack.c.l.b16 %v6525
        %v6534 = vunpack.c.l.b16 %v6526
        %v6535 = vpack.c.b16 %v6532, %v6531
        %v6536 = vpack.c.b16 %v6534, %v6533
        %v6540 = vsel %vm178, %v6518, 0
        %v6543 = vsel %vm178, %v6519, 0
        %v6546 = vsel %vm178, %v6520, 0
        %v6549 = vsel %vm178, %v6521, 0
        %6551 = vmatprep.subr.bf16.mxu0 0
        %6552 = vmatpush1.bf16.msra.mxu0 %v6535
        %6553 = vmatprep.subr.bf16.mxu0 0
        %6554 = vmatpush1.bf16.msra.mxu0 %v6536
        %6555 = vmatprep.subr.bf16.mxu0 0
        %6556 = vmatpush1.bf16.msra.mxu0 0
        %6557 = vmatprep.subr.bf16.mxu0 0
        %6558 = vmatpush1.bf16.msra.mxu0 0
        %6559 = vmatprep.subr.bf16.mxu0 0
        %6560 = vmatpush1.bf16.msra.mxu0 0
        %6561 = vmatprep.subr.bf16.mxu0 0
        %6562 = vmatpush1.bf16.msra.mxu0 0
        %6563 = vmatprep.subr.bf16.mxu0 0
        %6564 = vmatpush1.bf16.msra.mxu0 0
        %6565 = vmatprep.subr.bf16.mxu0 0
        %6566 = vmatpush1.bf16.msra.mxu0 0
        %6567 = vmatprep.subr.bf16.mxu0 0
        %6568 = vmatpush1.bf16.msra.mxu0 0
        %6569 = vmatprep.subr.bf16.mxu0 0
        %6570 = vmatpush1.bf16.msra.mxu0 0
        %6571 = vmatprep.subr.bf16.mxu0 0
        %6572 = vmatpush1.bf16.msra.mxu0 0
        %6573 = vmatprep.subr.bf16.mxu0 0
        %6574 = vmatpush1.bf16.msra.mxu0 0
        %6575 = vmatprep.subr.bf16.mxu0 0
        %6576 = vmatpush1.bf16.msra.mxu0 0
        %6577 = vmatprep.subr.bf16.mxu0 0
        %6578 = vmatpush1.bf16.msra.mxu0 0
        %6579 = vmatprep.subr.bf16.mxu0 0
        %6580 = vmatpush1.bf16.msra.mxu0 0
        %6581 = vmatprep.subr.bf16.mxu0 0
        %6582 = vmatpush1.bf16.msra.mxu0 0
        %6583 = vmatprep.mubr.bf16.mxu0 0
        %6584 = vmatmul.mubr.bf16.gmra.mrb[0].mxu0 %v6540
        %v6585 = vpop.f32.mrb[0].mxu0
        %v6586 = vadd.f32 0.0, %v6585
        %v6587 = vpop.f32.mrb[0].mxu0
        %v6588 = vpop.f32.mrb[0].mxu0
        %v6589 = vadd.f32 0.0, %v6588
        %v6590 = vpop.f32.mrb[0].mxu0
        %6591 = vmatprep.mubr.bf16.mxu0 0
        %6592 = vmatmul.mubr.bf16.gmra.mrb[0].mxu0 %v6543
        %v6593 = vpop.f32.mrb[0].mxu0
        %v6594 = vadd.f32 0.0, %v6593
        %v6595 = vpop.f32.mrb[0].mxu0
        %v6596 = vpop.f32.mrb[0].mxu0
        %v6597 = vadd.f32 0.0, %v6596
        %v6598 = vpop.f32.mrb[0].mxu0
        %6599 = vmatprep.mubr.bf16.mxu0 0
        %6600 = vmatmul.mubr.bf16.gmra.mrb[0].mxu0 %v6546
        %v6601 = vpop.f32.mrb[0].mxu0
        %v6602 = vadd.f32 0.0, %v6601
        %v6603 = vpop.f32.mrb[0].mxu0
        %v6604 = vpop.f32.mrb[0].mxu0
        %v6605 = vadd.f32 0.0, %v6604
        %v6606 = vpop.f32.mrb[0].mxu0
        %6607 = vmatprep.mubr.bf16.mxu0 0
        %6608 = vmatmul.mubr.bf16.gmra.mrb[0].mxu0 %v6549
        %v6609 = vpop.f32.mrb[0].mxu0
        %v6610 = vadd.f32 0.0, %v6609
        %v6611 = vpop.f32.mrb[0].mxu0
        %v6612 = vpop.f32.mrb[0].mxu0
        %v6613 = vadd.f32 0.0, %v6612
        %v6614 = vpop.f32.mrb[0].mxu0
        %6615 = vdwg.mxu0
        %v6616 = vadd.f32 %v6502, %v6586
        %v6617 = vadd.f32 %v6503, %v6589
        %v6618 = vadd.f32 %v6504, %v6594
        %v6619 = vadd.f32 %v6505, %v6597
        %v6620 = vadd.f32 %v6506, %v6602
        %v6621 = vadd.f32 %v6507, %v6605
        %v6622 = vadd.f32 %v6508, %v6610
        %v6623 = vadd.f32 %v6509, %v6613
        %v6624 = vld [vmem:[%s884 + $0x2] sm:$0xff]
        %v6625 = vld [vmem:[%s884 + $0x12] sm:$0xff]
        %v6626 = vld [vmem:[%s884 + $0x22] sm:$0xff]
        %v6627 = vld [vmem:[%s884 + $0x32] sm:$0xff]
        %v6628 = vld [vmem:[%s884 + $0x42] sm:$0xff]
        %v6629 = vld [vmem:[%s884 + $0x52] sm:$0xff]
        %v6630 = vld [vmem:[%s884 + $0x62] sm:$0xff]
        %v6631 = vld [vmem:[%s884 + $0x72] sm:$0xff]
        %v6632 = vpack.c.bf16 %v6625, %v6624
        %v6633 = vpack.c.bf16 %v6627, %v6626
        %v6634 = vpack.c.bf16 %v6629, %v6628
        %v6635 = vpack.c.bf16 %v6631, %v6630
        %s6636 = scalar_lea.vmem [#allocation6], 848
        %v6637 = vld [vmem:[%s6636] sm:$0xf]
        %v6638 = vld [vmem:[%s6636 + $0x4] sm:$0xf]
        %v6639 = vld [vmem:[%s6636 + $0x8] sm:$0xf]
        %v6640 = vld [vmem:[%s6636 + $0xc] sm:$0xf]
        %v6645 = vunpack.c.l.b16 %v6637
        %v6646 = vunpack.c.l.b16 %v6638
        %v6647 = vunpack.c.l.b16 %v6639
        %v6648 = vunpack.c.l.b16 %v6640
        %v6649 = vpack.c.b16 %v6646, %v6645
        %v6650 = vpack.c.b16 %v6648, %v6647
        %v6654 = vsel %vm178, %v6632, 0
        %v6657 = vsel %vm178, %v6633, 0
        %v6660 = vsel %vm178, %v6634, 0
        %v6663 = vsel %vm178, %v6635, 0
        %6665 = vmatprep.subr.bf16.mxu0 0
        %6666 = vmatpush1.bf16.msra.mxu0 %v6649
        %6667 = vmatprep.subr.bf16.mxu0 0
        %6668 = vmatpush1.bf16.msra.mxu0 %v6650
        %6669 = vmatprep.subr.bf16.mxu0 0
        %6670 = vmatpush1.bf16.msra.mxu0 0
        %6671 = vmatprep.subr.bf16.mxu0 0
        %6672 = vmatpush1.bf16.msra.mxu0 0
        %6673 = vmatprep.subr.bf16.mxu0 0
        %6674 = vmatpush1.bf16.msra.mxu0 0
        %6675 = vmatprep.subr.bf16.mxu0 0
        %6676 = vmatpush1.bf16.msra.mxu0 0
        %6677 = vmatprep.subr.bf16.mxu0 0
        %6678 = vmatpush1.bf16.msra.mxu0 0
        %6679 = vmatprep.subr.bf16.mxu0 0
        %6680 = vmatpush1.bf16.msra.mxu0 0
        %6681 = vmatprep.subr.bf16.mxu0 0
        %6682 = vmatpush1.bf16.msra.mxu0 0
        %6683 = vmatprep.subr.bf16.mxu0 0
        %6684 = vmatpush1.bf16.msra.mxu0 0
        %6685 = vmatprep.subr.bf16.mxu0 0
        %6686 = vmatpush1.bf16.msra.mxu0 0
        %6687 = vmatprep.subr.bf16.mxu0 0
        %6688 = vmatpush1.bf16.msra.mxu0 0
        %6689 = vmatprep.subr.bf16.mxu0 0
        %6690 = vmatpush1.bf16.msra.mxu0 0
        %6691 = vmatprep.subr.bf16.mxu0 0
        %6692 = vmatpush1.bf16.msra.mxu0 0
        %6693 = vmatprep.subr.bf16.mxu0 0
        %6694 = vmatpush1.bf16.msra.mxu0 0
        %6695 = vmatprep.subr.bf16.mxu0 0
        %6696 = vmatpush1.bf16.msra.mxu0 0
        %6697 = vmatprep.mubr.bf16.mxu0 0
        %6698 = vmatmul.mubr.bf16.gmra.mrb[0].mxu0 %v6654
        %v6699 = vpop.f32.mrb[0].mxu0
        %v6700 = vadd.f32 0.0, %v6699
        %v6701 = vpop.f32.mrb[0].mxu0
        %v6702 = vpop.f32.mrb[0].mxu0
        %v6703 = vadd.f32 0.0, %v6702
        %v6704 = vpop.f32.mrb[0].mxu0
        %6705 = vmatprep.mubr.bf16.mxu0 0
        %6706 = vmatmul.mubr.bf16.gmra.mrb[0].mxu0 %v6657
        %v6707 = vpop.f32.mrb[0].mxu0
        %v6708 = vadd.f32 0.0, %v6707
        %v6709 = vpop.f32.mrb[0].mxu0
        %v6710 = vpop.f32.mrb[0].mxu0
        %v6711 = vadd.f32 0.0, %v6710
        %v6712 = vpop.f32.mrb[0].mxu0
        %6713 = vmatprep.mubr.bf16.mxu0 0
        %6714 = vmatmul.mubr.bf16.gmra.mrb[0].mxu0 %v6660
        %v6715 = vpop.f32.mrb[0].mxu0
        %v6716 = vadd.f32 0.0, %v6715
        %v6717 = vpop.f32.mrb[0].mxu0
        %v6718 = vpop.f32.mrb[0].mxu0
        %v6719 = vadd.f32 0.0, %v6718
        %v6720 = vpop.f32.mrb[0].mxu0
        %6721 = vmatprep.mubr.bf16.mxu0 0
        %6722 = vmatmul.mubr.bf16.gmra.mrb[0].mxu0 %v6663
        %v6723 = vpop.f32.mrb[0].mxu0
        %v6724 = vadd.f32 0.0, %v6723
        %v6725 = vpop.f32.mrb[0].mxu0
        %v6726 = vpop.f32.mrb[0].mxu0
        %v6727 = vadd.f32 0.0, %v6726
        %v6728 = vpop.f32.mrb[0].mxu0
        %6729 = vdwg.mxu0
        %v6730 = vadd.f32 %v6616, %v6700
        %v6731 = vadd.f32 %v6617, %v6703
        %v6732 = vadd.f32 %v6618, %v6708
        %v6733 = vadd.f32 %v6619, %v6711
        %v6734 = vadd.f32 %v6620, %v6716
        %v6735 = vadd.f32 %v6621, %v6719
        %v6736 = vadd.f32 %v6622, %v6724
        %v6737 = vadd.f32 %v6623, %v6727
        %v6738 = vsel %vm178, %v6730, 0.0
        %v6739 = vsel %vm178, %v6731, 0.0
        %v6740 = vadd.f32 %v6738, %v6739
        %v6741 = vsel %vm178, %v6732, 0.0
        %v6742 = vadd.f32 %v6740, %v6741
        %v6743 = vsel %vm178, %v6733, 0.0
        %v6744 = vadd.f32 %v6742, %v6743
        %v6745 = vsel %vm178, %v6734, 0.0
        %v6746 = vadd.f32 %v6744, %v6745
        %v6747 = vsel %vm178, %v6735, 0.0
        %v6748 = vadd.f32 %v6746, %v6747
        %v6749 = vsel %vm178, %v6736, 0.0
        %v6750 = vadd.f32 %v6748, %v6749
        %v6751 = vsel %vm178, %v6737, 0.0
        %v6752 = vadd.f32 %v6750, %v6751
        %v6753 = vrot.slane %v6752, 4
        %v6754 = vadd.f32 %v6752, %v6753
        %v6755 = vrot.slane %v6754, 2
        %v6756 = vadd.f32 %v6754, %v6755
        %v6757 = vrot.slane %v6756, 1
        %v6758 = vadd.f32 %v6756, %v6757
        %v6759 = vmul.f32 %v6758, 0.015625
        %v6760 = vmul.f32 %v6730, %v6730
        %v6761 = vmul.f32 %v6731, %v6731
        %v6762 = vmul.f32 %v6732, %v6732
        %v6763 = vmul.f32 %v6733, %v6733
        %v6764 = vmul.f32 %v6734, %v6734
        %v6765 = vmul.f32 %v6735, %v6735
        %v6766 = vmul.f32 %v6736, %v6736
        %v6767 = vmul.f32 %v6737, %v6737
        %v6768 = vsel %vm178, %v6760, 0.0
        %v6769 = vsel %vm178, %v6761, 0.0
        %v6770 = vadd.f32 %v6768, %v6769
        %v6771 = vsel %vm178, %v6762, 0.0
        %v6772 = vadd.f32 %v6770, %v6771
        %v6773 = vsel %vm178, %v6763, 0.0
        %v6774 = vadd.f32 %v6772, %v6773
        %v6775 = vsel %vm178, %v6764, 0.0
        %v6776 = vadd.f32 %v6774, %v6775
        %v6777 = vsel %vm178, %v6765, 0.0
        %v6778 = vadd.f32 %v6776, %v6777
        %v6779 = vsel %vm178, %v6766, 0.0
        %v6780 = vadd.f32 %v6778, %v6779
        %v6781 = vsel %vm178, %v6767, 0.0
        %v6782 = vadd.f32 %v6780, %v6781
        %v6783 = vrot.slane %v6782, 4
        %v6784 = vadd.f32 %v6782, %v6783
        %v6785 = vrot.slane %v6784, 2
        %v6786 = vadd.f32 %v6784, %v6785
        %v6787 = vrot.slane %v6786, 1
        %v6788 = vadd.f32 %v6786, %v6787
        %v6789 = vmul.f32 %v6788, 0.015625
        %v6790 = vmul.f32 %v6759, %v6759
        %v6791 = vsub.f32 %v6789, %v6790
        %v6792 = vmax.f32 %v6791, 0.0
        %v6793 = vsub.f32 %v6730, %v6759
        %v6794 = vsub.f32 %v6731, %v6759
        %v6795 = vsub.f32 %v6732, %v6759
        %v6796 = vsub.f32 %v6733, %v6759
        %v6797 = vsub.f32 %v6734, %v6759
        %v6798 = vsub.f32 %v6735, %v6759
        %v6799 = vsub.f32 %v6736, %v6759
        %v6800 = vsub.f32 %v6737, %v6759
        %v6801 = vadd.f32 %v6792, 1e-05
        %v6802 = vrsqrt.pop %v6801
        %v6803 = vmul.f32 %v6793, %v6802
        %v6804 = vmul.f32 %v6794, %v6802
        %v6805 = vmul.f32 %v6795, %v6802
        %v6806 = vmul.f32 %v6796, %v6802
        %v6807 = vmul.f32 %v6797, %v6802
        %v6808 = vmul.f32 %v6798, %v6802
        %v6809 = vmul.f32 %v6799, %v6802
        %v6810 = vmul.f32 %v6800, %v6802
        %v6811 = vadd.f32 %v6803, %v4613
        %v6812 = vadd.f32 %v6804, %v4614
        %v6813 = vadd.f32 %v6805, %v4615
        %v6814 = vadd.f32 %v6806, %v4616
        %v6815 = vadd.f32 %v6807, %v4617
        %v6816 = vadd.f32 %v6808, %v4618
        %v6817 = vadd.f32 %v6809, %v4619
        %v6818 = vadd.f32 %v6810, %v4620
        %v6819 = vmax.f32 %v6811, 0.0
        %v6820 = vmax.f32 %v6812, 0.0
        %v6821 = vmax.f32 %v6813, 0.0
        %v6822 = vmax.f32 %v6814, 0.0
        %v6823 = vmax.f32 %v6815, 0.0
        %v6824 = vmax.f32 %v6816, 0.0
        %v6825 = vmax.f32 %v6817, 0.0
        %v6826 = vmax.f32 %v6818, 0.0
        %6827 = vst.msk [vmem:[%s208 + $0x1] sm:$0xff] %vm178, %v6819
        %6828 = vst.msk [vmem:[%s208 + $0x11] sm:$0xff] %vm178, %v6820
        %6829 = vst.msk [vmem:[%s208 + $0x21] sm:$0xff] %vm178, %v6821
        %6830 = vst.msk [vmem:[%s208 + $0x31] sm:$0xff] %vm178, %v6822
        %6831 = vst.msk [vmem:[%s208 + $0x41] sm:$0xff] %vm178, %v6823
        %6832 = vst.msk [vmem:[%s208 + $0x51] sm:$0xff] %vm178, %v6824
        %6833 = vst.msk [vmem:[%s208 + $0x61] sm:$0xff] %vm178, %v6825
        %6834 = vst.msk [vmem:[%s208 + $0x71] sm:$0xff] %vm178, %v6826
        %v6835 = vld [vmem:[#allocation2] sm:$0xff]
        %v6836 = vld [vmem:[#allocation2 + $0x10] sm:$0xff]
        %v6837 = vld [vmem:[#allocation2 + $0x20] sm:$0xff]
        %v6838 = vld [vmem:[#allocation2 + $0x30] sm:$0xff]
        %v6839 = vld [vmem:[#allocation2 + $0x40] sm:$0xff]
        %v6840 = vld [vmem:[#allocation2 + $0x50] sm:$0xff]
        %v6841 = vld [vmem:[#allocation2 + $0x60] sm:$0xff]
        %v6842 = vld [vmem:[#allocation2 + $0x70] sm:$0xff]
        %v6843 = vpack.c.bf16 %v6836, %v6835
        %v6844 = vpack.c.bf16 %v6838, %v6837
        %v6845 = vpack.c.bf16 %v6840, %v6839
        %v6846 = vpack.c.bf16 %v6842, %v6841
        %s6847 = scalar_lea.vmem [#allocation6], 864
        %v6848 = vld [vmem:[%s6847] sm:$0xf]
        %v6849 = vld [vmem:[%s6847 + $0x4] sm:$0xf]
        %v6850 = vld [vmem:[%s6847 + $0x8] sm:$0xf]
        %v6851 = vld [vmem:[%s6847 + $0xc] sm:$0xf]
        %v6852 = vld [vmem:[#allocation2 + $0x1] sm:$0xff]
        %v6853 = vld [vmem:[#allocation2 + $0x11] sm:$0xff]
        %v6854 = vld [vmem:[#allocation2 + $0x21] sm:$0xff]
        %v6855 = vld [vmem:[#allocation2 + $0x31] sm:$0xff]
        %v6856 = vld [vmem:[#allocation2 + $0x41] sm:$0xff]
        %v6857 = vld [vmem:[#allocation2 + $0x51] sm:$0xff]
        %v6858 = vld [vmem:[#allocation2 + $0x61] sm:$0xff]
        %v6859 = vld [vmem:[#allocation2 + $0x71] sm:$0xff]
        %v6860 = vpack.c.bf16 %v6853, %v6852
        %v6861 = vpack.c.bf16 %v6855, %v6854
        %v6862 = vpack.c.bf16 %v6857, %v6856
        %v6863 = vpack.c.bf16 %v6859, %v6858
        %s6864 = scalar_lea.vmem [#allocation6], 880
        %v6865 = vld [vmem:[%s6864] sm:$0xf]
        %v6866 = vld [vmem:[%s6864 + $0x4] sm:$0xf]
        %v6867 = vld [vmem:[%s6864 + $0x8] sm:$0xf]
        %v6868 = vld [vmem:[%s6864 + $0xc] sm:$0xf]
        %v6873 = vunpack.c.l.b16 %v6865
        %v6874 = vunpack.c.l.b16 %v6866
        %v6875 = vunpack.c.l.b16 %v6867
        %v6876 = vunpack.c.l.b16 %v6868
        %v6877 = vpack.c.b16 %v6874, %v6873
        %v6878 = vpack.c.b16 %v6876, %v6875
        %v6882 = vsel %vm178, %v6860, 0
        %v6885 = vsel %vm178, %v6861, 0
        %v6888 = vsel %vm178, %v6862, 0
        %v6891 = vsel %vm178, %v6863, 0
        %6893 = vmatprep.subr.bf16.mxu0 0
        %6894 = vmatpush1.bf16.msra.mxu0 %v6877
        %6895 = vmatprep.subr.bf16.mxu0 0
        %6896 = vmatpush1.bf16.msra.mxu0 %v6878
        %6897 = vmatprep.subr.bf16.mxu0 0
        %6898 = vmatpush1.bf16.msra.mxu0 0
        %6899 = vmatprep.subr.bf16.mxu0 0
        %6900 = vmatpush1.bf16.msra.mxu0 0
        %6901 = vmatprep.subr.bf16.mxu0 0
        %6902 = vmatpush1.bf16.msra.mxu0 0
        %6903 = vmatprep.subr.bf16.mxu0 0
        %6904 = vmatpush1.bf16.msra.mxu0 0
        %6905 = vmatprep.subr.bf16.mxu0 0
        %6906 = vmatpush1.bf16.msra.mxu0 0
        %6907 = vmatprep.subr.bf16.mxu0 0
        %6908 = vmatpush1.bf16.msra.mxu0 0
        %6909 = vmatprep.subr.bf16.mxu0 0
        %6910 = vmatpush1.bf16.msra.mxu0 0
        %6911 = vmatprep.subr.bf16.mxu0 0
        %6912 = vmatpush1.bf16.msra.mxu0 0
        %6913 = vmatprep.subr.bf16.mxu0 0
        %6914 = vmatpush1.bf16.msra.mxu0 0
        %6915 = vmatprep.subr.bf16.mxu0 0
        %6916 = vmatpush1.bf16.msra.mxu0 0
        %6917 = vmatprep.subr.bf16.mxu0 0
        %6918 = vmatpush1.bf16.msra.mxu0 0
        %6919 = vmatprep.subr.bf16.mxu0 0
        %6920 = vmatpush1.bf16.msra.mxu0 0
        %6921 = vmatprep.subr.bf16.mxu0 0
        %6922 = vmatpush1.bf16.msra.mxu0 0
        %6923 = vmatprep.subr.bf16.mxu0 0
        %6924 = vmatpush1.bf16.msra.mxu0 0
        %6925 = vmatprep.mubr.bf16.mxu0 0
        %6926 = vmatmul.mubr.bf16.gmra.mrb[0].mxu0 %v6882
        %v6927 = vpop.f32.mrb[0].mxu0
        %v6928 = vadd.f32 0.0, %v6927
        %v6929 = vpop.f32.mrb[0].mxu0
        %v6930 = vpop.f32.mrb[0].mxu0
        %v6931 = vadd.f32 0.0, %v6930
        %v6932 = vpop.f32.mrb[0].mxu0
        %6933 = vmatprep.mubr.bf16.mxu0 0
        %6934 = vmatmul.mubr.bf16.gmra.mrb[0].mxu0 %v6885
        %v6935 = vpop.f32.mrb[0].mxu0
        %v6936 = vadd.f32 0.0, %v6935
        %v6937 = vpop.f32.mrb[0].mxu0
        %v6938 = vpop.f32.mrb[0].mxu0
        %v6939 = vadd.f32 0.0, %v6938
        %v6940 = vpop.f32.mrb[0].mxu0
        %6941 = vmatprep.mubr.bf16.mxu0 0
        %6942 = vmatmul.mubr.bf16.gmra.mrb[0].mxu0 %v6888
        %v6943 = vpop.f32.mrb[0].mxu0
        %v6944 = vadd.f32 0.0, %v6943
        %v6945 = vpop.f32.mrb[0].mxu0
        %v6946 = vpop.f32.mrb[0].mxu0
        %v6947 = vadd.f32 0.0, %v6946
        %v6948 = vpop.f32.mrb[0].mxu0
        %6949 = vmatprep.mubr.bf16.mxu0 0
        %6950 = vmatmul.mubr.bf16.gmra.mrb[0].mxu0 %v6891
        %v6951 = vpop.f32.mrb[0].mxu0
        %v6952 = vadd.f32 0.0, %v6951
        %v6953 = vpop.f32.mrb[0].mxu0
        %v6954 = vpop.f32.mrb[0].mxu0
        %v6955 = vadd.f32 0.0, %v6954
        %v6956 = vpop.f32.mrb[0].mxu0
        %6957 = vdwg.mxu0
        %v6962 = vunpack.c.l.b16 %v6848
        %v6963 = vunpack.c.l.b16 %v6849
        %v6964 = vunpack.c.l.b16 %v6850
        %v6965 = vunpack.c.l.b16 %v6851
        %v6966 = vpack.c.b16 %v6963, %v6962
        %v6967 = vpack.c.b16 %v6965, %v6964
        %v6971 = vsel %vm178, %v6843, 0
        %v6974 = vsel %vm178, %v6844, 0
        %v6977 = vsel %vm178, %v6845, 0
        %v6980 = vsel %vm178, %v6846, 0
        %6982 = vmatprep.subr.bf16.mxu0 0
        %6983 = vmatpush1.bf16.msra.mxu0 %v6966
        %6984 = vmatprep.subr.bf16.mxu0 0
        %6985 = vmatpush1.bf16.msra.mxu0 %v6967
        %6986 = vmatprep.subr.bf16.mxu0 0
        %6987 = vmatpush1.bf16.msra.mxu0 0
        %6988 = vmatprep.subr.bf16.mxu0 0
        %6989 = vmatpush1.bf16.msra.mxu0 0
        %6990 = vmatprep.subr.bf16.mxu0 0
        %6991 = vmatpush1.bf16.msra.mxu0 0
        %6992 = vmatprep.subr.bf16.mxu0 0
        %6993 = vmatpush1.bf16.msra.mxu0 0
        %6994 = vmatprep.subr.bf16.mxu0 0
        %6995 = vmatpush1.bf16.msra.mxu0 0
        %6996 = vmatprep.subr.bf16.mxu0 0
        %6997 = vmatpush1.bf16.msra.mxu0 0
        %6998 = vmatprep.subr.bf16.mxu0 0
        %6999 = vmatpush1.bf16.msra.mxu0 0
        %7000 = vmatprep.subr.bf16.mxu0 0
        %7001 = vmatpush1.bf16.msra.mxu0 0
        %7002 = vmatprep.subr.bf16.mxu0 0
        %7003 = vmatpush1.bf16.msra.mxu0 0
        %7004 = vmatprep.subr.bf16.mxu0 0
        %7005 = vmatpush1.bf16.msra.mxu0 0
        %7006 = vmatprep.subr.bf16.mxu0 0
        %7007 = vmatpush1.bf16.msra.mxu0 0
        %7008 = vmatprep.subr.bf16.mxu0 0
        %7009 = vmatpush1.bf16.msra.mxu0 0
        %7010 = vmatprep.subr.bf16.mxu0 0
        %7011 = vmatpush1.bf16.msra.mxu0 0
        %7012 = vmatprep.subr.bf16.mxu0 0
        %7013 = vmatpush1.bf16.msra.mxu0 0
        %7014 = vmatprep.mubr.bf16.mxu0 0
        %7015 = vmatmul.mubr.bf16.gmra.mrb[0].mxu0 %v6971
        %v7016 = vpop.f32.mrb[0].mxu0
        %v7017 = vadd.f32 %v6928, %v7016
        %v7018 = vpop.f32.mrb[0].mxu0
        %v7019 = vpop.f32.mrb[0].mxu0
        %v7020 = vadd.f32 %v6931, %v7019
        %v7021 = vpop.f32.mrb[0].mxu0
        %7022 = vmatprep.mubr.bf16.mxu0 0
        %7023 = vmatmul.mubr.bf16.gmra.mrb[0].mxu0 %v6974
        %v7024 = vpop.f32.mrb[0].mxu0
        %v7025 = vadd.f32 %v6936, %v7024
        %v7026 = vpop.f32.mrb[0].mxu0
        %v7027 = vpop.f32.mrb[0].mxu0
        %v7028 = vadd.f32 %v6939, %v7027
        %v7029 = vpop.f32.mrb[0].mxu0
        %7030 = vmatprep.mubr.bf16.mxu0 0
        %7031 = vmatmul.mubr.bf16.gmra.mrb[0].mxu0 %v6977
        %v7032 = vpop.f32.mrb[0].mxu0
        %v7033 = vadd.f32 %v6944, %v7032
        %v7034 = vpop.f32.mrb[0].mxu0
        %v7035 = vpop.f32.mrb[0].mxu0
        %v7036 = vadd.f32 %v6947, %v7035
        %v7037 = vpop.f32.mrb[0].mxu0
        %7038 = vmatprep.mubr.bf16.mxu0 0
        %7039 = vmatmul.mubr.bf16.gmra.mrb[0].mxu0 %v6980
        %v7040 = vpop.f32.mrb[0].mxu0
        %v7041 = vadd.f32 %v6952, %v7040
        %v7042 = vpop.f32.mrb[0].mxu0
        %v7043 = vpop.f32.mrb[0].mxu0
        %v7044 = vadd.f32 %v6955, %v7043
        %v7045 = vpop.f32.mrb[0].mxu0
        %7046 = vdwg.mxu0
        %v7047 = vld [vmem:[#allocation2 + $0x2] sm:$0xff]
        %v7048 = vld [vmem:[#allocation2 + $0x12] sm:$0xff]
        %v7049 = vld [vmem:[#allocation2 + $0x22] sm:$0xff]
        %v7050 = vld [vmem:[#allocation2 + $0x32] sm:$0xff]
        %v7051 = vld [vmem:[#allocation2 + $0x42] sm:$0xff]
        %v7052 = vld [vmem:[#allocation2 + $0x52] sm:$0xff]
        %v7053 = vld [vmem:[#allocation2 + $0x62] sm:$0xff]
        %v7054 = vld [vmem:[#allocation2 + $0x72] sm:$0xff]
        %v7055 = vpack.c.bf16 %v7048, %v7047
        %v7056 = vpack.c.bf16 %v7050, %v7049
        %v7057 = vpack.c.bf16 %v7052, %v7051
        %v7058 = vpack.c.bf16 %v7054, %v7053
        %s7059 = scalar_lea.vmem [#allocation6], 896
        %v7060 = vld [vmem:[%s7059] sm:$0xf]
        %v7061 = vld [vmem:[%s7059 + $0x4] sm:$0xf]
        %v7062 = vld [vmem:[%s7059 + $0x8] sm:$0xf]
        %v7063 = vld [vmem:[%s7059 + $0xc] sm:$0xf]
        %v7068 = vunpack.c.l.b16 %v7060
        %v7069 = vunpack.c.l.b16 %v7061
        %v7070 = vunpack.c.l.b16 %v7062
        %v7071 = vunpack.c.l.b16 %v7063
        %v7072 = vpack.c.b16 %v7069, %v7068
        %v7073 = vpack.c.b16 %v7071, %v7070
        %v7077 = vsel %vm178, %v7055, 0
        %v7080 = vsel %vm178, %v7056, 0
        %v7083 = vsel %vm178, %v7057, 0
        %v7086 = vsel %vm178, %v7058, 0
        %7088 = vmatprep.subr.bf16.mxu0 0
        %7089 = vmatpush1.bf16.msra.mxu0 %v7072
        %7090 = vmatprep.subr.bf16.mxu0 0
        %7091 = vmatpush1.bf16.msra.mxu0 %v7073
        %7092 = vmatprep.subr.bf16.mxu0 0
        %7093 = vmatpush1.bf16.msra.mxu0 0
        %7094 = vmatprep.subr.bf16.mxu0 0
        %7095 = vmatpush1.bf16.msra.mxu0 0
        %7096 = vmatprep.subr.bf16.mxu0 0
        %7097 = vmatpush1.bf16.msra.mxu0 0
        %7098 = vmatprep.subr.bf16.mxu0 0
        %7099 = vmatpush1.bf16.msra.mxu0 0
        %7100 = vmatprep.subr.bf16.mxu0 0
        %7101 = vmatpush1.bf16.msra.mxu0 0
        %7102 = vmatprep.subr.bf16.mxu0 0
        %7103 = vmatpush1.bf16.msra.mxu0 0
        %7104 = vmatprep.subr.bf16.mxu0 0
        %7105 = vmatpush1.bf16.msra.mxu0 0
        %7106 = vmatprep.subr.bf16.mxu0 0
        %7107 = vmatpush1.bf16.msra.mxu0 0
        %7108 = vmatprep.subr.bf16.mxu0 0
        %7109 = vmatpush1.bf16.msra.mxu0 0
        %7110 = vmatprep.subr.bf16.mxu0 0
        %7111 = vmatpush1.bf16.msra.mxu0 0
        %7112 = vmatprep.subr.bf16.mxu0 0
        %7113 = vmatpush1.bf16.msra.mxu0 0
        %7114 = vmatprep.subr.bf16.mxu0 0
        %7115 = vmatpush1.bf16.msra.mxu0 0
        %7116 = vmatprep.subr.bf16.mxu0 0
        %7117 = vmatpush1.bf16.msra.mxu0 0
        %7118 = vmatprep.subr.bf16.mxu0 0
        %7119 = vmatpush1.bf16.msra.mxu0 0
        %7120 = vmatprep.mubr.bf16.mxu0 0
        %7121 = vmatmul.mubr.bf16.gmra.mrb[0].mxu0 %v7077
        %v7122 = vpop.f32.mrb[0].mxu0
        %v7123 = vadd.f32 0.0, %v7122
        %v7124 = vpop.f32.mrb[0].mxu0
        %v7125 = vpop.f32.mrb[0].mxu0
        %v7126 = vadd.f32 0.0, %v7125
        %v7127 = vpop.f32.mrb[0].mxu0
        %7128 = vmatprep.mubr.bf16.mxu0 0
        %7129 = vmatmul.mubr.bf16.gmra.mrb[0].mxu0 %v7080
        %v7130 = vpop.f32.mrb[0].mxu0
        %v7131 = vadd.f32 0.0, %v7130
        %v7132 = vpop.f32.mrb[0].mxu0
        %v7133 = vpop.f32.mrb[0].mxu0
        %v7134 = vadd.f32 0.0, %v7133
        %v7135 = vpop.f32.mrb[0].mxu0
        %7136 = vmatprep.mubr.bf16.mxu0 0
        %7137 = vmatmul.mubr.bf16.gmra.mrb[0].mxu0 %v7083
        %v7138 = vpop.f32.mrb[0].mxu0
        %v7139 = vadd.f32 0.0, %v7138
        %v7140 = vpop.f32.mrb[0].mxu0
        %v7141 = vpop.f32.mrb[0].mxu0
        %v7142 = vadd.f32 0.0, %v7141
        %v7143 = vpop.f32.mrb[0].mxu0
        %7144 = vmatprep.mubr.bf16.mxu0 0
        %7145 = vmatmul.mubr.bf16.gmra.mrb[0].mxu0 %v7086
        %v7146 = vpop.f32.mrb[0].mxu0
        %v7147 = vadd.f32 0.0, %v7146
        %v7148 = vpop.f32.mrb[0].mxu0
        %v7149 = vpop.f32.mrb[0].mxu0
        %v7150 = vadd.f32 0.0, %v7149
        %v7151 = vpop.f32.mrb[0].mxu0
        %7152 = vdwg.mxu0
        %v7153 = vadd.f32 %v7017, %v7123
        %v7154 = vadd.f32 %v7020, %v7126
        %v7155 = vadd.f32 %v7025, %v7131
        %v7156 = vadd.f32 %v7028, %v7134
        %v7157 = vadd.f32 %v7033, %v7139
        %v7158 = vadd.f32 %v7036, %v7142
        %v7159 = vadd.f32 %v7041, %v7147
        %v7160 = vadd.f32 %v7044, %v7150
        %v7161 = vld [vmem:[%s208] sm:$0xff]
        %v7162 = vld [vmem:[%s208 + $0x10] sm:$0xff]
        %v7163 = vld [vmem:[%s208 + $0x20] sm:$0xff]
        %v7164 = vld [vmem:[%s208 + $0x30] sm:$0xff]
        %v7165 = vld [vmem:[%s208 + $0x40] sm:$0xff]
        %v7166 = vld [vmem:[%s208 + $0x50] sm:$0xff]
        %v7167 = vld [vmem:[%s208 + $0x60] sm:$0xff]
        %v7168 = vld [vmem:[%s208 + $0x70] sm:$0xff]
        %v7169 = vpack.c.bf16 %v7162, %v7161
        %v7170 = vpack.c.bf16 %v7164, %v7163
        %v7171 = vpack.c.bf16 %v7166, %v7165
        %v7172 = vpack.c.bf16 %v7168, %v7167
        %s7173 = scalar_lea.vmem [#allocation6], 912
        %v7174 = vld [vmem:[%s7173] sm:$0xf]
        %v7175 = vld [vmem:[%s7173 + $0x4] sm:$0xf]
        %v7176 = vld [vmem:[%s7173 + $0x8] sm:$0xf]
        %v7177 = vld [vmem:[%s7173 + $0xc] sm:$0xf]
        %v7182 = vunpack.c.l.b16 %v7174
        %v7183 = vunpack.c.l.b16 %v7175
        %v7184 = vunpack.c.l.b16 %v7176
        %v7185 = vunpack.c.l.b16 %v7177
        %v7186 = vpack.c.b16 %v7183, %v7182
        %v7187 = vpack.c.b16 %v7185, %v7184
        %v7191 = vsel %vm178, %v7169, 0
        %v7194 = vsel %vm178, %v7170, 0
        %v7197 = vsel %vm178, %v7171, 0
        %v7200 = vsel %vm178, %v7172, 0
        %7202 = vmatprep.subr.bf16.mxu0 0
        %7203 = vmatpush1.bf16.msra.mxu0 %v7186
        %7204 = vmatprep.subr.bf16.mxu0 0
        %7205 = vmatpush1.bf16.msra.mxu0 %v7187
        %7206 = vmatprep.subr.bf16.mxu0 0
        %7207 = vmatpush1.bf16.msra.mxu0 0
        %7208 = vmatprep.subr.bf16.mxu0 0
        %7209 = vmatpush1.bf16.msra.mxu0 0
        %7210 = vmatprep.subr.bf16.mxu0 0
        %7211 = vmatpush1.bf16.msra.mxu0 0
        %7212 = vmatprep.subr.bf16.mxu0 0
        %7213 = vmatpush1.bf16.msra.mxu0 0
        %7214 = vmatprep.subr.bf16.mxu0 0
        %7215 = vmatpush1.bf16.msra.mxu0 0
        %7216 = vmatprep.subr.bf16.mxu0 0
        %7217 = vmatpush1.bf16.msra.mxu0 0
        %7218 = vmatprep.subr.bf16.mxu0 0
        %7219 = vmatpush1.bf16.msra.mxu0 0
        %7220 = vmatprep.subr.bf16.mxu0 0
        %7221 = vmatpush1.bf16.msra.mxu0 0
        %7222 = vmatprep.subr.bf16.mxu0 0
        %7223 = vmatpush1.bf16.msra.mxu0 0
        %7224 = vmatprep.subr.bf16.mxu0 0
        %7225 = vmatpush1.bf16.msra.mxu0 0
        %7226 = vmatprep.subr.bf16.mxu0 0
        %7227 = vmatpush1.bf16.msra.mxu0 0
        %7228 = vmatprep.subr.bf16.mxu0 0
        %7229 = vmatpush1.bf16.msra.mxu0 0
        %7230 = vmatprep.subr.bf16.mxu0 0
        %7231 = vmatpush1.bf16.msra.mxu0 0
        %7232 = vmatprep.subr.bf16.mxu0 0
        %7233 = vmatpush1.bf16.msra.mxu0 0
        %7234 = vmatprep.mubr.bf16.mxu0 0
        %7235 = vmatmul.mubr.bf16.gmra.mrb[0].mxu0 %v7191
        %v7236 = vpop.f32.mrb[0].mxu0
        %v7237 = vadd.f32 0.0, %v7236
        %v7238 = vpop.f32.mrb[0].mxu0
        %v7239 = vpop.f32.mrb[0].mxu0
        %v7240 = vadd.f32 0.0, %v7239
        %v7241 = vpop.f32.mrb[0].mxu0
        %7242 = vmatprep.mubr.bf16.mxu0 0
        %7243 = vmatmul.mubr.bf16.gmra.mrb[0].mxu0 %v7194
        %v7244 = vpop.f32.mrb[0].mxu0
        %v7245 = vadd.f32 0.0, %v7244
        %v7246 = vpop.f32.mrb[0].mxu0
        %v7247 = vpop.f32.mrb[0].mxu0
        %v7248 = vadd.f32 0.0, %v7247
        %v7249 = vpop.f32.mrb[0].mxu0
        %7250 = vmatprep.mubr.bf16.mxu0 0
        %7251 = vmatmul.mubr.bf16.gmra.mrb[0].mxu0 %v7197
        %v7252 = vpop.f32.mrb[0].mxu0
        %v7253 = vadd.f32 0.0, %v7252
        %v7254 = vpop.f32.mrb[0].mxu0
        %v7255 = vpop.f32.mrb[0].mxu0
        %v7256 = vadd.f32 0.0, %v7255
        %v7257 = vpop.f32.mrb[0].mxu0
        %7258 = vmatprep.mubr.bf16.mxu0 0
        %7259 = vmatmul.mubr.bf16.gmra.mrb[0].mxu0 %v7200
        %v7260 = vpop.f32.mrb[0].mxu0
        %v7261 = vadd.f32 0.0, %v7260
        %v7262 = vpop.f32.mrb[0].mxu0
        %v7263 = vpop.f32.mrb[0].mxu0
        %v7264 = vadd.f32 0.0, %v7263
        %v7265 = vpop.f32.mrb[0].mxu0
        %7266 = vdwg.mxu0
        %v7267 = vadd.f32 %v7153, %v7237
        %v7268 = vadd.f32 %v7154, %v7240
        %v7269 = vadd.f32 %v7155, %v7245
        %v7270 = vadd.f32 %v7156, %v7248
        %v7271 = vadd.f32 %v7157, %v7253
        %v7272 = vadd.f32 %v7158, %v7256
        %v7273 = vadd.f32 %v7159, %v7261
        %v7274 = vadd.f32 %v7160, %v7264
        %v7275 = vld [vmem:[%s208 + $0x1] sm:$0xff]
        %v7276 = vld [vmem:[%s208 + $0x11] sm:$0xff]
        %v7277 = vld [vmem:[%s208 + $0x21] sm:$0xff]
        %v7278 = vld [vmem:[%s208 + $0x31] sm:$0xff]
        %v7279 = vld [vmem:[%s208 + $0x41] sm:$0xff]
        %v7280 = vld [vmem:[%s208 + $0x51] sm:$0xff]
        %v7281 = vld [vmem:[%s208 + $0x61] sm:$0xff]
        %v7282 = vld [vmem:[%s208 + $0x71] sm:$0xff]
        %v7283 = vpack.c.bf16 %v7276, %v7275
        %v7284 = vpack.c.bf16 %v7278, %v7277
        %v7285 = vpack.c.bf16 %v7280, %v7279
        %v7286 = vpack.c.bf16 %v7282, %v7281
        %s7287 = scalar_lea.vmem [#allocation6], 928
        %v7288 = vld [vmem:[%s7287] sm:$0xf]
        %v7289 = vld [vmem:[%s7287 + $0x4] sm:$0xf]
        %v7290 = vld [vmem:[%s7287 + $0x8] sm:$0xf]
        %v7291 = vld [vmem:[%s7287 + $0xc] sm:$0xf]
        %v7296 = vunpack.c.l.b16 %v7288
        %v7297 = vunpack.c.l.b16 %v7289
        %v7298 = vunpack.c.l.b16 %v7290
        %v7299 = vunpack.c.l.b16 %v7291
        %v7300 = vpack.c.b16 %v7297, %v7296
        %v7301 = vpack.c.b16 %v7299, %v7298
        %v7305 = vsel %vm178, %v7283, 0
        %v7308 = vsel %vm178, %v7284, 0
        %v7311 = vsel %vm178, %v7285, 0
        %v7314 = vsel %vm178, %v7286, 0
        %7316 = vmatprep.subr.bf16.mxu0 0
        %7317 = vmatpush1.bf16.msra.mxu0 %v7300
        %7318 = vmatprep.subr.bf16.mxu0 0
        %7319 = vmatpush1.bf16.msra.mxu0 %v7301
        %7320 = vmatprep.subr.bf16.mxu0 0
        %7321 = vmatpush1.bf16.msra.mxu0 0
        %7322 = vmatprep.subr.bf16.mxu0 0
        %7323 = vmatpush1.bf16.msra.mxu0 0
        %7324 = vmatprep.subr.bf16.mxu0 0
        %7325 = vmatpush1.bf16.msra.mxu0 0
        %7326 = vmatprep.subr.bf16.mxu0 0
        %7327 = vmatpush1.bf16.msra.mxu0 0
        %7328 = vmatprep.subr.bf16.mxu0 0
        %7329 = vmatpush1.bf16.msra.mxu0 0
        %7330 = vmatprep.subr.bf16.mxu0 0
        %7331 = vmatpush1.bf16.msra.mxu0 0
        %7332 = vmatprep.subr.bf16.mxu0 0
        %7333 = vmatpush1.bf16.msra.mxu0 0
        %7334 = vmatprep.subr.bf16.mxu0 0
        %7335 = vmatpush1.bf16.msra.mxu0 0
        %7336 = vmatprep.subr.bf16.mxu0 0
        %7337 = vmatpush1.bf16.msra.mxu0 0
        %7338 = vmatprep.subr.bf16.mxu0 0
        %7339 = vmatpush1.bf16.msra.mxu0 0
        %7340 = vmatprep.subr.bf16.mxu0 0
        %7341 = vmatpush1.bf16.msra.mxu0 0
        %7342 = vmatprep.subr.bf16.mxu0 0
        %7343 = vmatpush1.bf16.msra.mxu0 0
        %7344 = vmatprep.subr.bf16.mxu0 0
        %7345 = vmatpush1.bf16.msra.mxu0 0
        %7346 = vmatprep.subr.bf16.mxu0 0
        %7347 = vmatpush1.bf16.msra.mxu0 0
        %7348 = vmatprep.mubr.bf16.mxu0 0
        %7349 = vmatmul.mubr.bf16.gmra.mrb[0].mxu0 %v7305
        %v7350 = vpop.f32.mrb[0].mxu0
        %v7351 = vadd.f32 0.0, %v7350
        %v7352 = vpop.f32.mrb[0].mxu0
        %v7353 = vpop.f32.mrb[0].mxu0
        %v7354 = vadd.f32 0.0, %v7353
        %v7355 = vpop.f32.mrb[0].mxu0
        %7356 = vmatprep.mubr.bf16.mxu0 0
        %7357 = vmatmul.mubr.bf16.gmra.mrb[0].mxu0 %v7308
        %v7358 = vpop.f32.mrb[0].mxu0
        %v7359 = vadd.f32 0.0, %v7358
        %v7360 = vpop.f32.mrb[0].mxu0
        %v7361 = vpop.f32.mrb[0].mxu0
        %v7362 = vadd.f32 0.0, %v7361
        %v7363 = vpop.f32.mrb[0].mxu0
        %7364 = vmatprep.mubr.bf16.mxu0 0
        %7365 = vmatmul.mubr.bf16.gmra.mrb[0].mxu0 %v7311
        %v7366 = vpop.f32.mrb[0].mxu0
        %v7367 = vadd.f32 0.0, %v7366
        %v7368 = vpop.f32.mrb[0].mxu0
        %v7369 = vpop.f32.mrb[0].mxu0
        %v7370 = vadd.f32 0.0, %v7369
        %v7371 = vpop.f32.mrb[0].mxu0
        %7372 = vmatprep.mubr.bf16.mxu0 0
        %7373 = vmatmul.mubr.bf16.gmra.mrb[0].mxu0 %v7314
        %v7374 = vpop.f32.mrb[0].mxu0
        %v7375 = vadd.f32 0.0, %v7374
        %v7376 = vpop.f32.mrb[0].mxu0
        %v7377 = vpop.f32.mrb[0].mxu0
        %v7378 = vadd.f32 0.0, %v7377
        %v7379 = vpop.f32.mrb[0].mxu0
        %7380 = vdwg.mxu0
        %v7381 = vadd.f32 %v7267, %v7351
        %v7382 = vadd.f32 %v7268, %v7354
        %v7383 = vadd.f32 %v7269, %v7359
        %v7384 = vadd.f32 %v7270, %v7362
        %v7385 = vadd.f32 %v7271, %v7367
        %v7386 = vadd.f32 %v7272, %v7370
        %v7387 = vadd.f32 %v7273, %v7375
        %v7388 = vadd.f32 %v7274, %v7378
        %v7389 = vld [vmem:[%s208 + $0x2] sm:$0xff]
        %v7390 = vld [vmem:[%s208 + $0x12] sm:$0xff]
        %v7391 = vld [vmem:[%s208 + $0x22] sm:$0xff]
        %v7392 = vld [vmem:[%s208 + $0x32] sm:$0xff]
        %v7393 = vld [vmem:[%s208 + $0x42] sm:$0xff]
        %v7394 = vld [vmem:[%s208 + $0x52] sm:$0xff]
        %v7395 = vld [vmem:[%s208 + $0x62] sm:$0xff]
        %v7396 = vld [vmem:[%s208 + $0x72] sm:$0xff]
        %v7397 = vpack.c.bf16 %v7390, %v7389
        %v7398 = vpack.c.bf16 %v7392, %v7391
        %v7399 = vpack.c.bf16 %v7394, %v7393
        %v7400 = vpack.c.bf16 %v7396, %v7395
        %s7401 = scalar_lea.vmem [#allocation6], 944
        %v7402 = vld [vmem:[%s7401] sm:$0xf]
        %v7403 = vld [vmem:[%s7401 + $0x4] sm:$0xf]
        %v7404 = vld [vmem:[%s7401 + $0x8] sm:$0xf]
        %v7405 = vld [vmem:[%s7401 + $0xc] sm:$0xf]
        %v7410 = vunpack.c.l.b16 %v7402
        %v7411 = vunpack.c.l.b16 %v7403
        %v7412 = vunpack.c.l.b16 %v7404
        %v7413 = vunpack.c.l.b16 %v7405
        %v7414 = vpack.c.b16 %v7411, %v7410
        %v7415 = vpack.c.b16 %v7413, %v7412
        %v7419 = vsel %vm178, %v7397, 0
        %v7422 = vsel %vm178, %v7398, 0
        %v7425 = vsel %vm178, %v7399, 0
        %v7428 = vsel %vm178, %v7400, 0
        %7430 = vmatprep.subr.bf16.mxu0 0
        %7431 = vmatpush1.bf16.msra.mxu0 %v7414
        %7432 = vmatprep.subr.bf16.mxu0 0
        %7433 = vmatpush1.bf16.msra.mxu0 %v7415
        %7434 = vmatprep.subr.bf16.mxu0 0
        %7435 = vmatpush1.bf16.msra.mxu0 0
        %7436 = vmatprep.subr.bf16.mxu0 0
        %7437 = vmatpush1.bf16.msra.mxu0 0
        %7438 = vmatprep.subr.bf16.mxu0 0
        %7439 = vmatpush1.bf16.msra.mxu0 0
        %7440 = vmatprep.subr.bf16.mxu0 0
        %7441 = vmatpush1.bf16.msra.mxu0 0
        %7442 = vmatprep.subr.bf16.mxu0 0
        %7443 = vmatpush1.bf16.msra.mxu0 0
        %7444 = vmatprep.subr.bf16.mxu0 0
        %7445 = vmatpush1.bf16.msra.mxu0 0
        %7446 = vmatprep.subr.bf16.mxu0 0
        %7447 = vmatpush1.bf16.msra.mxu0 0
        %7448 = vmatprep.subr.bf16.mxu0 0
        %7449 = vmatpush1.bf16.msra.mxu0 0
        %7450 = vmatprep.subr.bf16.mxu0 0
        %7451 = vmatpush1.bf16.msra.mxu0 0
        %7452 = vmatprep.subr.bf16.mxu0 0
        %7453 = vmatpush1.bf16.msra.mxu0 0
        %7454 = vmatprep.subr.bf16.mxu0 0
        %7455 = vmatpush1.bf16.msra.mxu0 0
        %7456 = vmatprep.subr.bf16.mxu0 0
        %7457 = vmatpush1.bf16.msra.mxu0 0
        %7458 = vmatprep.subr.bf16.mxu0 0
        %7459 = vmatpush1.bf16.msra.mxu0 0
        %7460 = vmatprep.subr.bf16.mxu0 0
        %7461 = vmatpush1.bf16.msra.mxu0 0
        %7462 = vmatprep.mubr.bf16.mxu0 0
        %7463 = vmatmul.mubr.bf16.gmra.mrb[0].mxu0 %v7419
        %v7464 = vpop.f32.mrb[0].mxu0
        %v7465 = vadd.f32 0.0, %v7464
        %v7466 = vpop.f32.mrb[0].mxu0
        %v7467 = vpop.f32.mrb[0].mxu0
        %v7468 = vadd.f32 0.0, %v7467
        %v7469 = vpop.f32.mrb[0].mxu0
        %7470 = vmatprep.mubr.bf16.mxu0 0
        %7471 = vmatmul.mubr.bf16.gmra.mrb[0].mxu0 %v7422
        %v7472 = vpop.f32.mrb[0].mxu0
        %v7473 = vadd.f32 0.0, %v7472
        %v7474 = vpop.f32.mrb[0].mxu0
        %v7475 = vpop.f32.mrb[0].mxu0
        %v7476 = vadd.f32 0.0, %v7475
        %v7477 = vpop.f32.mrb[0].mxu0
        %7478 = vmatprep.mubr.bf16.mxu0 0
        %7479 = vmatmul.mubr.bf16.gmra.mrb[0].mxu0 %v7425
        %v7480 = vpop.f32.mrb[0].mxu0
        %v7481 = vadd.f32 0.0, %v7480
        %v7482 = vpop.f32.mrb[0].mxu0
        %v7483 = vpop.f32.mrb[0].mxu0
        %v7484 = vadd.f32 0.0, %v7483
        %v7485 = vpop.f32.mrb[0].mxu0
        %7486 = vmatprep.mubr.bf16.mxu0 0
        %7487 = vmatmul.mubr.bf16.gmra.mrb[0].mxu0 %v7428
        %v7488 = vpop.f32.mrb[0].mxu0
        %v7489 = vadd.f32 0.0, %v7488
        %v7490 = vpop.f32.mrb[0].mxu0
        %v7491 = vpop.f32.mrb[0].mxu0
        %v7492 = vadd.f32 0.0, %v7491
        %v7493 = vpop.f32.mrb[0].mxu0
        %7494 = vdwg.mxu0
        %v7495 = vadd.f32 %v7381, %v7465
        %v7496 = vadd.f32 %v7382, %v7468
        %v7497 = vadd.f32 %v7383, %v7473
        %v7498 = vadd.f32 %v7384, %v7476
        %v7499 = vadd.f32 %v7385, %v7481
        %v7500 = vadd.f32 %v7386, %v7484
        %v7501 = vadd.f32 %v7387, %v7489
        %v7502 = vadd.f32 %v7388, %v7492
        %v7503 = vld [vmem:[%s884] sm:$0xff]
        %v7504 = vld [vmem:[%s884 + $0x10] sm:$0xff]
        %v7505 = vld [vmem:[%s884 + $0x20] sm:$0xff]
        %v7506 = vld [vmem:[%s884 + $0x30] sm:$0xff]
        %v7507 = vld [vmem:[%s884 + $0x40] sm:$0xff]
        %v7508 = vld [vmem:[%s884 + $0x50] sm:$0xff]
        %v7509 = vld [vmem:[%s884 + $0x60] sm:$0xff]
        %v7510 = vld [vmem:[%s884 + $0x70] sm:$0xff]
        %v7511 = vpack.c.bf16 %v7504, %v7503
        %v7512 = vpack.c.bf16 %v7506, %v7505
        %v7513 = vpack.c.bf16 %v7508, %v7507
        %v7514 = vpack.c.bf16 %v7510, %v7509
        %s7515 = scalar_lea.vmem [#allocation6], 960
        %v7516 = vld [vmem:[%s7515] sm:$0xf]
        %v7517 = vld [vmem:[%s7515 + $0x4] sm:$0xf]
        %v7518 = vld [vmem:[%s7515 + $0x8] sm:$0xf]
        %v7519 = vld [vmem:[%s7515 + $0xc] sm:$0xf]
        %v7524 = vunpack.c.l.b16 %v7516
        %v7525 = vunpack.c.l.b16 %v7517
        %v7526 = vunpack.c.l.b16 %v7518
        %v7527 = vunpack.c.l.b16 %v7519
        %v7528 = vpack.c.b16 %v7525, %v7524
        %v7529 = vpack.c.b16 %v7527, %v7526
        %v7533 = vsel %vm178, %v7511, 0
        %v7536 = vsel %vm178, %v7512, 0
        %v7539 = vsel %vm178, %v7513, 0
        %v7542 = vsel %vm178, %v7514, 0
        %7544 = vmatprep.subr.bf16.mxu0 0
        %7545 = vmatpush1.bf16.msra.mxu0 %v7528
        %7546 = vmatprep.subr.bf16.mxu0 0
        %7547 = vmatpush1.bf16.msra.mxu0 %v7529
        %7548 = vmatprep.subr.bf16.mxu0 0
        %7549 = vmatpush1.bf16.msra.mxu0 0
        %7550 = vmatprep.subr.bf16.mxu0 0
        %7551 = vmatpush1.bf16.msra.mxu0 0
        %7552 = vmatprep.subr.bf16.mxu0 0
        %7553 = vmatpush1.bf16.msra.mxu0 0
        %7554 = vmatprep.subr.bf16.mxu0 0
        %7555 = vmatpush1.bf16.msra.mxu0 0
        %7556 = vmatprep.subr.bf16.mxu0 0
        %7557 = vmatpush1.bf16.msra.mxu0 0
        %7558 = vmatprep.subr.bf16.mxu0 0
        %7559 = vmatpush1.bf16.msra.mxu0 0
        %7560 = vmatprep.subr.bf16.mxu0 0
        %7561 = vmatpush1.bf16.msra.mxu0 0
        %7562 = vmatprep.subr.bf16.mxu0 0
        %7563 = vmatpush1.bf16.msra.mxu0 0
        %7564 = vmatprep.subr.bf16.mxu0 0
        %7565 = vmatpush1.bf16.msra.mxu0 0
        %7566 = vmatprep.subr.bf16.mxu0 0
        %7567 = vmatpush1.bf16.msra.mxu0 0
        %7568 = vmatprep.subr.bf16.mxu0 0
        %7569 = vmatpush1.bf16.msra.mxu0 0
        %7570 = vmatprep.subr.bf16.mxu0 0
        %7571 = vmatpush1.bf16.msra.mxu0 0
        %7572 = vmatprep.subr.bf16.mxu0 0
        %7573 = vmatpush1.bf16.msra.mxu0 0
        %7574 = vmatprep.subr.bf16.mxu0 0
        %7575 = vmatpush1.bf16.msra.mxu0 0
        %7576 = vmatprep.mubr.bf16.mxu0 0
        %7577 = vmatmul.mubr.bf16.gmra.mrb[0].mxu0 %v7533
        %v7578 = vpop.f32.mrb[0].mxu0
        %v7579 = vadd.f32 0.0, %v7578
        %v7580 = vpop.f32.mrb[0].mxu0
        %v7581 = vpop.f32.mrb[0].mxu0
        %v7582 = vadd.f32 0.0, %v7581
        %v7583 = vpop.f32.mrb[0].mxu0
        %7584 = vmatprep.mubr.bf16.mxu0 0
        %7585 = vmatmul.mubr.bf16.gmra.mrb[0].mxu0 %v7536
        %v7586 = vpop.f32.mrb[0].mxu0
        %v7587 = vadd.f32 0.0, %v7586
        %v7588 = vpop.f32.mrb[0].mxu0
        %v7589 = vpop.f32.mrb[0].mxu0
        %v7590 = vadd.f32 0.0, %v7589
        %v7591 = vpop.f32.mrb[0].mxu0
        %7592 = vmatprep.mubr.bf16.mxu0 0
        %7593 = vmatmul.mubr.bf16.gmra.mrb[0].mxu0 %v7539
        %v7594 = vpop.f32.mrb[0].mxu0
        %v7595 = vadd.f32 0.0, %v7594
        %v7596 = vpop.f32.mrb[0].mxu0
        %v7597 = vpop.f32.mrb[0].mxu0
        %v7598 = vadd.f32 0.0, %v7597
        %v7599 = vpop.f32.mrb[0].mxu0
        %7600 = vmatprep.mubr.bf16.mxu0 0
        %7601 = vmatmul.mubr.bf16.gmra.mrb[0].mxu0 %v7542
        %v7602 = vpop.f32.mrb[0].mxu0
        %v7603 = vadd.f32 0.0, %v7602
        %v7604 = vpop.f32.mrb[0].mxu0
        %v7605 = vpop.f32.mrb[0].mxu0
        %v7606 = vadd.f32 0.0, %v7605
        %v7607 = vpop.f32.mrb[0].mxu0
        %7608 = vdwg.mxu0
        %v7609 = vadd.f32 %v7495, %v7579
        %v7610 = vadd.f32 %v7496, %v7582
        %v7611 = vadd.f32 %v7497, %v7587
        %v7612 = vadd.f32 %v7498, %v7590
        %v7613 = vadd.f32 %v7499, %v7595
        %v7614 = vadd.f32 %v7500, %v7598
        %v7615 = vadd.f32 %v7501, %v7603
        %v7616 = vadd.f32 %v7502, %v7606
        %v7617 = vld [vmem:[%s884 + $0x1] sm:$0xff]
        %v7618 = vld [vmem:[%s884 + $0x11] sm:$0xff]
        %v7619 = vld [vmem:[%s884 + $0x21] sm:$0xff]
        %v7620 = vld [vmem:[%s884 + $0x31] sm:$0xff]
        %v7621 = vld [vmem:[%s884 + $0x41] sm:$0xff]
        %v7622 = vld [vmem:[%s884 + $0x51] sm:$0xff]
        %v7623 = vld [vmem:[%s884 + $0x61] sm:$0xff]
        %v7624 = vld [vmem:[%s884 + $0x71] sm:$0xff]
        %v7625 = vpack.c.bf16 %v7618, %v7617
        %v7626 = vpack.c.bf16 %v7620, %v7619
        %v7627 = vpack.c.bf16 %v7622, %v7621
        %v7628 = vpack.c.bf16 %v7624, %v7623
        %s7629 = scalar_lea.vmem [#allocation6], 976
        %v7630 = vld [vmem:[%s7629] sm:$0xf]
        %v7631 = vld [vmem:[%s7629 + $0x4] sm:$0xf]
        %v7632 = vld [vmem:[%s7629 + $0x8] sm:$0xf]
        %v7633 = vld [vmem:[%s7629 + $0xc] sm:$0xf]
        %v7638 = vunpack.c.l.b16 %v7630
        %v7639 = vunpack.c.l.b16 %v7631
        %v7640 = vunpack.c.l.b16 %v7632
        %v7641 = vunpack.c.l.b16 %v7633
        %v7642 = vpack.c.b16 %v7639, %v7638
        %v7643 = vpack.c.b16 %v7641, %v7640
        %v7647 = vsel %vm178, %v7625, 0
        %v7650 = vsel %vm178, %v7626, 0
        %v7653 = vsel %vm178, %v7627, 0
        %v7656 = vsel %vm178, %v7628, 0
        %7658 = vmatprep.subr.bf16.mxu0 0
        %7659 = vmatpush1.bf16.msra.mxu0 %v7642
        %7660 = vmatprep.subr.bf16.mxu0 0
        %7661 = vmatpush1.bf16.msra.mxu0 %v7643
        %7662 = vmatprep.subr.bf16.mxu0 0
        %7663 = vmatpush1.bf16.msra.mxu0 0
        %7664 = vmatprep.subr.bf16.mxu0 0
        %7665 = vmatpush1.bf16.msra.mxu0 0
        %7666 = vmatprep.subr.bf16.mxu0 0
        %7667 = vmatpush1.bf16.msra.mxu0 0
        %7668 = vmatprep.subr.bf16.mxu0 0
        %7669 = vmatpush1.bf16.msra.mxu0 0
        %7670 = vmatprep.subr.bf16.mxu0 0
        %7671 = vmatpush1.bf16.msra.mxu0 0
        %7672 = vmatprep.subr.bf16.mxu0 0
        %7673 = vmatpush1.bf16.msra.mxu0 0
        %7674 = vmatprep.subr.bf16.mxu0 0
        %7675 = vmatpush1.bf16.msra.mxu0 0
        %7676 = vmatprep.subr.bf16.mxu0 0
        %7677 = vmatpush1.bf16.msra.mxu0 0
        %7678 = vmatprep.subr.bf16.mxu0 0
        %7679 = vmatpush1.bf16.msra.mxu0 0
        %7680 = vmatprep.subr.bf16.mxu0 0
        %7681 = vmatpush1.bf16.msra.mxu0 0
        %7682 = vmatprep.subr.bf16.mxu0 0
        %7683 = vmatpush1.bf16.msra.mxu0 0
        %7684 = vmatprep.subr.bf16.mxu0 0
        %7685 = vmatpush1.bf16.msra.mxu0 0
        %7686 = vmatprep.subr.bf16.mxu0 0
        %7687 = vmatpush1.bf16.msra.mxu0 0
        %7688 = vmatprep.subr.bf16.mxu0 0
        %7689 = vmatpush1.bf16.msra.mxu0 0
        %7690 = vmatprep.mubr.bf16.mxu0 0
        %7691 = vmatmul.mubr.bf16.gmra.mrb[0].mxu0 %v7647
        %v7692 = vpop.f32.mrb[0].mxu0
        %v7693 = vadd.f32 0.0, %v7692
        %v7694 = vpop.f32.mrb[0].mxu0
        %v7695 = vpop.f32.mrb[0].mxu0
        %v7696 = vadd.f32 0.0, %v7695
        %v7697 = vpop.f32.mrb[0].mxu0
        %7698 = vmatprep.mubr.bf16.mxu0 0
        %7699 = vmatmul.mubr.bf16.gmra.mrb[0].mxu0 %v7650
        %v7700 = vpop.f32.mrb[0].mxu0
        %v7701 = vadd.f32 0.0, %v7700
        %v7702 = vpop.f32.mrb[0].mxu0
        %v7703 = vpop.f32.mrb[0].mxu0
        %v7704 = vadd.f32 0.0, %v7703
        %v7705 = vpop.f32.mrb[0].mxu0
        %7706 = vmatprep.mubr.bf16.mxu0 0
        %7707 = vmatmul.mubr.bf16.gmra.mrb[0].mxu0 %v7653
        %v7708 = vpop.f32.mrb[0].mxu0
        %v7709 = vadd.f32 0.0, %v7708
        %v7710 = vpop.f32.mrb[0].mxu0
        %v7711 = vpop.f32.mrb[0].mxu0
        %v7712 = vadd.f32 0.0, %v7711
        %v7713 = vpop.f32.mrb[0].mxu0
        %7714 = vmatprep.mubr.bf16.mxu0 0
        %7715 = vmatmul.mubr.bf16.gmra.mrb[0].mxu0 %v7656
        %v7716 = vpop.f32.mrb[0].mxu0
        %v7717 = vadd.f32 0.0, %v7716
        %v7718 = vpop.f32.mrb[0].mxu0
        %v7719 = vpop.f32.mrb[0].mxu0
        %v7720 = vadd.f32 0.0, %v7719
        %v7721 = vpop.f32.mrb[0].mxu0
        %7722 = vdwg.mxu0
        %v7723 = vadd.f32 %v7609, %v7693
        %v7724 = vadd.f32 %v7610, %v7696
        %v7725 = vadd.f32 %v7611, %v7701
        %v7726 = vadd.f32 %v7612, %v7704
        %v7727 = vadd.f32 %v7613, %v7709
        %v7728 = vadd.f32 %v7614, %v7712
        %v7729 = vadd.f32 %v7615, %v7717
        %v7730 = vadd.f32 %v7616, %v7720
        %v7731 = vld [vmem:[%s884 + $0x2] sm:$0xff]
        %v7732 = vld [vmem:[%s884 + $0x12] sm:$0xff]
        %v7733 = vld [vmem:[%s884 + $0x22] sm:$0xff]
        %v7734 = vld [vmem:[%s884 + $0x32] sm:$0xff]
        %v7735 = vld [vmem:[%s884 + $0x42] sm:$0xff]
        %v7736 = vld [vmem:[%s884 + $0x52] sm:$0xff]
        %v7737 = vld [vmem:[%s884 + $0x62] sm:$0xff]
        %v7738 = vld [vmem:[%s884 + $0x72] sm:$0xff]
        %v7739 = vpack.c.bf16 %v7732, %v7731
        %v7740 = vpack.c.bf16 %v7734, %v7733
        %v7741 = vpack.c.bf16 %v7736, %v7735
        %v7742 = vpack.c.bf16 %v7738, %v7737
        %s7743 = scalar_lea.vmem [#allocation6], 992
        %v7744 = vld [vmem:[%s7743] sm:$0xf]
        %v7745 = vld [vmem:[%s7743 + $0x4] sm:$0xf]
        %v7746 = vld [vmem:[%s7743 + $0x8] sm:$0xf]
        %v7747 = vld [vmem:[%s7743 + $0xc] sm:$0xf]
        %v7752 = vunpack.c.l.b16 %v7744
        %v7753 = vunpack.c.l.b16 %v7745
        %v7754 = vunpack.c.l.b16 %v7746
        %v7755 = vunpack.c.l.b16 %v7747
        %v7756 = vpack.c.b16 %v7753, %v7752
        %v7757 = vpack.c.b16 %v7755, %v7754
        %v7761 = vsel %vm178, %v7739, 0
        %v7764 = vsel %vm178, %v7740, 0
        %v7767 = vsel %vm178, %v7741, 0
        %v7770 = vsel %vm178, %v7742, 0
        %7772 = vmatprep.subr.bf16.mxu0 0
        %7773 = vmatpush1.bf16.msra.mxu0 %v7756
        %7774 = vmatprep.subr.bf16.mxu0 0
        %7775 = vmatpush1.bf16.msra.mxu0 %v7757
        %7776 = vmatprep.subr.bf16.mxu0 0
        %7777 = vmatpush1.bf16.msra.mxu0 0
        %7778 = vmatprep.subr.bf16.mxu0 0
        %7779 = vmatpush1.bf16.msra.mxu0 0
        %7780 = vmatprep.subr.bf16.mxu0 0
        %7781 = vmatpush1.bf16.msra.mxu0 0
        %7782 = vmatprep.subr.bf16.mxu0 0
        %7783 = vmatpush1.bf16.msra.mxu0 0
        %7784 = vmatprep.subr.bf16.mxu0 0
        %7785 = vmatpush1.bf16.msra.mxu0 0
        %7786 = vmatprep.subr.bf16.mxu0 0
        %7787 = vmatpush1.bf16.msra.mxu0 0
        %7788 = vmatprep.subr.bf16.mxu0 0
        %7789 = vmatpush1.bf16.msra.mxu0 0
        %7790 = vmatprep.subr.bf16.mxu0 0
        %7791 = vmatpush1.bf16.msra.mxu0 0
        %7792 = vmatprep.subr.bf16.mxu0 0
        %7793 = vmatpush1.bf16.msra.mxu0 0
        %7794 = vmatprep.subr.bf16.mxu0 0
        %7795 = vmatpush1.bf16.msra.mxu0 0
        %7796 = vmatprep.subr.bf16.mxu0 0
        %7797 = vmatpush1.bf16.msra.mxu0 0
        %7798 = vmatprep.subr.bf16.mxu0 0
        %7799 = vmatpush1.bf16.msra.mxu0 0
        %7800 = vmatprep.subr.bf16.mxu0 0
        %7801 = vmatpush1.bf16.msra.mxu0 0
        %7802 = vmatprep.subr.bf16.mxu0 0
        %7803 = vmatpush1.bf16.msra.mxu0 0
        %7804 = vmatprep.mubr.bf16.mxu0 0
        %7805 = vmatmul.mubr.bf16.gmra.mrb[0].mxu0 %v7761
        %v7806 = vpop.f32.mrb[0].mxu0
        %v7807 = vadd.f32 0.0, %v7806
        %v7808 = vpop.f32.mrb[0].mxu0
        %v7809 = vpop.f32.mrb[0].mxu0
        %v7810 = vadd.f32 0.0, %v7809
        %v7811 = vpop.f32.mrb[0].mxu0
        %7812 = vmatprep.mubr.bf16.mxu0 0
        %7813 = vmatmul.mubr.bf16.gmra.mrb[0].mxu0 %v7764
        %v7814 = vpop.f32.mrb[0].mxu0
        %v7815 = vadd.f32 0.0, %v7814
        %v7816 = vpop.f32.mrb[0].mxu0
        %v7817 = vpop.f32.mrb[0].mxu0
        %v7818 = vadd.f32 0.0, %v7817
        %v7819 = vpop.f32.mrb[0].mxu0
        %7820 = vmatprep.mubr.bf16.mxu0 0
        %7821 = vmatmul.mubr.bf16.gmra.mrb[0].mxu0 %v7767
        %v7822 = vpop.f32.mrb[0].mxu0
        %v7823 = vadd.f32 0.0, %v7822
        %v7824 = vpop.f32.mrb[0].mxu0
        %v7825 = vpop.f32.mrb[0].mxu0
        %v7826 = vadd.f32 0.0, %v7825
        %v7827 = vpop.f32.mrb[0].mxu0
        %7828 = vmatprep.mubr.bf16.mxu0 0
        %7829 = vmatmul.mubr.bf16.gmra.mrb[0].mxu0 %v7770
        %v7830 = vpop.f32.mrb[0].mxu0
        %v7831 = vadd.f32 0.0, %v7830
        %v7832 = vpop.f32.mrb[0].mxu0
        %v7833 = vpop.f32.mrb[0].mxu0
        %v7834 = vadd.f32 0.0, %v7833
        %v7835 = vpop.f32.mrb[0].mxu0
        %7836 = vdwg.mxu0
        %v7837 = vadd.f32 %v7723, %v7807
        %v7838 = vadd.f32 %v7724, %v7810
        %v7839 = vadd.f32 %v7725, %v7815
        %v7840 = vadd.f32 %v7726, %v7818
        %v7841 = vadd.f32 %v7727, %v7823
        %v7842 = vadd.f32 %v7728, %v7826
        %v7843 = vadd.f32 %v7729, %v7831
        %v7844 = vadd.f32 %v7730, %v7834
        %v7845 = vsel %vm178, %v7837, 0.0
        %v7846 = vsel %vm178, %v7838, 0.0
        %v7847 = vadd.f32 %v7845, %v7846
        %v7848 = vsel %vm178, %v7839, 0.0
        %v7849 = vadd.f32 %v7847, %v7848
        %v7850 = vsel %vm178, %v7840, 0.0
        %v7851 = vadd.f32 %v7849, %v7850
        %v7852 = vsel %vm178, %v7841, 0.0
        %v7853 = vadd.f32 %v7851, %v7852
        %v7854 = vsel %vm178, %v7842, 0.0
        %v7855 = vadd.f32 %v7853, %v7854
        %v7856 = vsel %vm178, %v7843, 0.0
        %v7857 = vadd.f32 %v7855, %v7856
        %v7858 = vsel %vm178, %v7844, 0.0
        %v7859 = vadd.f32 %v7857, %v7858
        %v7860 = vrot.slane %v7859, 4
        %v7861 = vadd.f32 %v7859, %v7860
        %v7862 = vrot.slane %v7861, 2
        %v7863 = vadd.f32 %v7861, %v7862
        %v7864 = vrot.slane %v7863, 1
        %v7865 = vadd.f32 %v7863, %v7864
        %v7866 = vmul.f32 %v7865, 0.015625
        %v7867 = vmul.f32 %v7837, %v7837
        %v7868 = vmul.f32 %v7838, %v7838
        %v7869 = vmul.f32 %v7839, %v7839
        %v7870 = vmul.f32 %v7840, %v7840
        %v7871 = vmul.f32 %v7841, %v7841
        %v7872 = vmul.f32 %v7842, %v7842
        %v7873 = vmul.f32 %v7843, %v7843
        %v7874 = vmul.f32 %v7844, %v7844
        %v7875 = vsel %vm178, %v7867, 0.0
        %v7876 = vsel %vm178, %v7868, 0.0
        %v7877 = vadd.f32 %v7875, %v7876
        %v7878 = vsel %vm178, %v7869, 0.0
        %v7879 = vadd.f32 %v7877, %v7878
        %v7880 = vsel %vm178, %v7870, 0.0
        %v7881 = vadd.f32 %v7879, %v7880
        %v7882 = vsel %vm178, %v7871, 0.0
        %v7883 = vadd.f32 %v7881, %v7882
        %v7884 = vsel %vm178, %v7872, 0.0
        %v7885 = vadd.f32 %v7883, %v7884
        %v7886 = vsel %vm178, %v7873, 0.0
        %v7887 = vadd.f32 %v7885, %v7886
        %v7888 = vsel %vm178, %v7874, 0.0
        %v7889 = vadd.f32 %v7887, %v7888
        %v7890 = vrot.slane %v7889, 4
        %v7891 = vadd.f32 %v7889, %v7890
        %v7892 = vrot.slane %v7891, 2
        %v7893 = vadd.f32 %v7891, %v7892
        %v7894 = vrot.slane %v7893, 1
        %v7895 = vadd.f32 %v7893, %v7894
        %v7896 = vmul.f32 %v7895, 0.015625
        %v7897 = vmul.f32 %v7866, %v7866
        %v7898 = vsub.f32 %v7896, %v7897
        %v7899 = vmax.f32 %v7898, 0.0
        %v7900 = vsub.f32 %v7837, %v7866
        %v7901 = vsub.f32 %v7838, %v7866
        %v7902 = vsub.f32 %v7839, %v7866
        %v7903 = vsub.f32 %v7840, %v7866
        %v7904 = vsub.f32 %v7841, %v7866
        %v7905 = vsub.f32 %v7842, %v7866
        %v7906 = vsub.f32 %v7843, %v7866
        %v7907 = vsub.f32 %v7844, %v7866
        %v7908 = vadd.f32 %v7899, 1e-05
        %v7909 = vrsqrt.pop %v7908
        %v7910 = vmul.f32 %v7900, %v7909
        %v7911 = vmul.f32 %v7901, %v7909
        %v7912 = vmul.f32 %v7902, %v7909
        %v7913 = vmul.f32 %v7903, %v7909
        %v7914 = vmul.f32 %v7904, %v7909
        %v7915 = vmul.f32 %v7905, %v7909
        %v7916 = vmul.f32 %v7906, %v7909
        %v7917 = vmul.f32 %v7907, %v7909
        %v7918 = vmax.f32 %v7910, 0.0
        %v7919 = vmax.f32 %v7911, 0.0
        %v7920 = vmax.f32 %v7912, 0.0
        %v7921 = vmax.f32 %v7913, 0.0
        %v7922 = vmax.f32 %v7914, 0.0
        %v7923 = vmax.f32 %v7915, 0.0
        %v7924 = vmax.f32 %v7916, 0.0
        %v7925 = vmax.f32 %v7917, 0.0
        %7926 = vst.msk [vmem:[%s208 + $0x1] sm:$0xff] %vm178, %v7918
        %7927 = vst.msk [vmem:[%s208 + $0x11] sm:$0xff] %vm178, %v7919
        %7928 = vst.msk [vmem:[%s208 + $0x21] sm:$0xff] %vm178, %v7920
        %7929 = vst.msk [vmem:[%s208 + $0x31] sm:$0xff] %vm178, %v7921
        %7930 = vst.msk [vmem:[%s208 + $0x41] sm:$0xff] %vm178, %v7922
        %7931 = vst.msk [vmem:[%s208 + $0x51] sm:$0xff] %vm178, %v7923
        %7932 = vst.msk [vmem:[%s208 + $0x61] sm:$0xff] %vm178, %v7924
        %7933 = vst.msk [vmem:[%s208 + $0x71] sm:$0xff] %vm178, %v7925
        %v7934 = vld [vmem:[#allocation2] sm:$0xff]
        %v7935 = vld [vmem:[#allocation2 + $0x10] sm:$0xff]
        %v7936 = vld [vmem:[#allocation2 + $0x20] sm:$0xff]
        %v7937 = vld [vmem:[#allocation2 + $0x30] sm:$0xff]
        %v7938 = vld [vmem:[#allocation2 + $0x40] sm:$0xff]
        %v7939 = vld [vmem:[#allocation2 + $0x50] sm:$0xff]
        %v7940 = vld [vmem:[#allocation2 + $0x60] sm:$0xff]
        %v7941 = vld [vmem:[#allocation2 + $0x70] sm:$0xff]
        %v7942 = vpack.c.bf16 %v7935, %v7934
        %v7943 = vpack.c.bf16 %v7937, %v7936
        %v7944 = vpack.c.bf16 %v7939, %v7938
        %v7945 = vpack.c.bf16 %v7941, %v7940
        %s7946 = scalar_lea.vmem [#allocation6], 1008
        %v7947 = vld [vmem:[%s7946] sm:$0xf]
        %v7948 = vld [vmem:[%s7946 + $0x4] sm:$0xf]
        %v7949 = vld [vmem:[%s7946 + $0x8] sm:$0xf]
        %v7950 = vld [vmem:[%s7946 + $0xc] sm:$0xf]
        %v7951 = vld [vmem:[#allocation2 + $0x1] sm:$0xff]
        %v7952 = vld [vmem:[#allocation2 + $0x11] sm:$0xff]
        %v7953 = vld [vmem:[#allocation2 + $0x21] sm:$0xff]
        %v7954 = vld [vmem:[#allocation2 + $0x31] sm:$0xff]
        %v7955 = vld [vmem:[#allocation2 + $0x41] sm:$0xff]
        %v7956 = vld [vmem:[#allocation2 + $0x51] sm:$0xff]
        %v7957 = vld [vmem:[#allocation2 + $0x61] sm:$0xff]
        %v7958 = vld [vmem:[#allocation2 + $0x71] sm:$0xff]
        %v7959 = vpack.c.bf16 %v7952, %v7951
        %v7960 = vpack.c.bf16 %v7954, %v7953
        %v7961 = vpack.c.bf16 %v7956, %v7955
        %v7962 = vpack.c.bf16 %v7958, %v7957
        %s7963 = scalar_lea.vmem [#allocation6], 1024
        %v7964 = vld [vmem:[%s7963] sm:$0xf]
        %v7965 = vld [vmem:[%s7963 + $0x4] sm:$0xf]
        %v7966 = vld [vmem:[%s7963 + $0x8] sm:$0xf]
        %v7967 = vld [vmem:[%s7963 + $0xc] sm:$0xf]
        %v7972 = vunpack.c.l.b16 %v7964
        %v7973 = vunpack.c.l.b16 %v7965
        %v7974 = vunpack.c.l.b16 %v7966
        %v7975 = vunpack.c.l.b16 %v7967
        %v7976 = vpack.c.b16 %v7973, %v7972
        %v7977 = vpack.c.b16 %v7975, %v7974
        %v7981 = vsel %vm178, %v7959, 0
        %v7984 = vsel %vm178, %v7960, 0
        %v7987 = vsel %vm178, %v7961, 0
        %v7990 = vsel %vm178, %v7962, 0
        %7992 = vmatprep.subr.bf16.mxu0 0
        %7993 = vmatpush1.bf16.msra.mxu0 %v7976
        %7994 = vmatprep.subr.bf16.mxu0 0
        %7995 = vmatpush1.bf16.msra.mxu0 %v7977
        %7996 = vmatprep.subr.bf16.mxu0 0
        %7997 = vmatpush1.bf16.msra.mxu0 0
        %7998 = vmatprep.subr.bf16.mxu0 0
        %7999 = vmatpush1.bf16.msra.mxu0 0
        %8000 = vmatprep.subr.bf16.mxu0 0
        %8001 = vmatpush1.bf16.msra.mxu0 0
        %8002 = vmatprep.subr.bf16.mxu0 0
        %8003 = vmatpush1.bf16.msra.mxu0 0
        %8004 = vmatprep.subr.bf16.mxu0 0
        %8005 = vmatpush1.bf16.msra.mxu0 0
        %8006 = vmatprep.subr.bf16.mxu0 0
        %8007 = vmatpush1.bf16.msra.mxu0 0
        %8008 = vmatprep.subr.bf16.mxu0 0
        %8009 = vmatpush1.bf16.msra.mxu0 0
        %8010 = vmatprep.subr.bf16.mxu0 0
        %8011 = vmatpush1.bf16.msra.mxu0 0
        %8012 = vmatprep.subr.bf16.mxu0 0
        %8013 = vmatpush1.bf16.msra.mxu0 0
        %8014 = vmatprep.subr.bf16.mxu0 0
        %8015 = vmatpush1.bf16.msra.mxu0 0
        %8016 = vmatprep.subr.bf16.mxu0 0
        %8017 = vmatpush1.bf16.msra.mxu0 0
        %8018 = vmatprep.subr.bf16.mxu0 0
        %8019 = vmatpush1.bf16.msra.mxu0 0
        %8020 = vmatprep.subr.bf16.mxu0 0
        %8021 = vmatpush1.bf16.msra.mxu0 0
        %8022 = vmatprep.subr.bf16.mxu0 0
        %8023 = vmatpush1.bf16.msra.mxu0 0
        %8024 = vmatprep.mubr.bf16.mxu0 0
        %8025 = vmatmul.mubr.bf16.gmra.mrb[0].mxu0 %v7981
        %v8026 = vpop.f32.mrb[0].mxu0
        %v8027 = vadd.f32 0.0, %v8026
        %v8028 = vpop.f32.mrb[0].mxu0
        %v8029 = vpop.f32.mrb[0].mxu0
        %v8030 = vadd.f32 0.0, %v8029
        %v8031 = vpop.f32.mrb[0].mxu0
        %8032 = vmatprep.mubr.bf16.mxu0 0
        %8033 = vmatmul.mubr.bf16.gmra.mrb[0].mxu0 %v7984
        %v8034 = vpop.f32.mrb[0].mxu0
        %v8035 = vadd.f32 0.0, %v8034
        %v8036 = vpop.f32.mrb[0].mxu0
        %v8037 = vpop.f32.mrb[0].mxu0
        %v8038 = vadd.f32 0.0, %v8037
        %v8039 = vpop.f32.mrb[0].mxu0
        %8040 = vmatprep.mubr.bf16.mxu0 0
        %8041 = vmatmul.mubr.bf16.gmra.mrb[0].mxu0 %v7987
        %v8042 = vpop.f32.mrb[0].mxu0
        %v8043 = vadd.f32 0.0, %v8042
        %v8044 = vpop.f32.mrb[0].mxu0
        %v8045 = vpop.f32.mrb[0].mxu0
        %v8046 = vadd.f32 0.0, %v8045
        %v8047 = vpop.f32.mrb[0].mxu0
        %8048 = vmatprep.mubr.bf16.mxu0 0
        %8049 = vmatmul.mubr.bf16.gmra.mrb[0].mxu0 %v7990
        %v8050 = vpop.f32.mrb[0].mxu0
        %v8051 = vadd.f32 0.0, %v8050
        %v8052 = vpop.f32.mrb[0].mxu0
        %v8053 = vpop.f32.mrb[0].mxu0
        %v8054 = vadd.f32 0.0, %v8053
        %v8055 = vpop.f32.mrb[0].mxu0
        %8056 = vdwg.mxu0
        %v8061 = vunpack.c.l.b16 %v7947
        %v8062 = vunpack.c.l.b16 %v7948
        %v8063 = vunpack.c.l.b16 %v7949
        %v8064 = vunpack.c.l.b16 %v7950
        %v8065 = vpack.c.b16 %v8062, %v8061
        %v8066 = vpack.c.b16 %v8064, %v8063
        %v8070 = vsel %vm178, %v7942, 0
        %v8073 = vsel %vm178, %v7943, 0
        %v8076 = vsel %vm178, %v7944, 0
        %v8079 = vsel %vm178, %v7945, 0
        %8081 = vmatprep.subr.bf16.mxu0 0
        %8082 = vmatpush1.bf16.msra.mxu0 %v8065
        %8083 = vmatprep.subr.bf16.mxu0 0
        %8084 = vmatpush1.bf16.msra.mxu0 %v8066
        %8085 = vmatprep.subr.bf16.mxu0 0
        %8086 = vmatpush1.bf16.msra.mxu0 0
        %8087 = vmatprep.subr.bf16.mxu0 0
        %8088 = vmatpush1.bf16.msra.mxu0 0
        %8089 = vmatprep.subr.bf16.mxu0 0
        %8090 = vmatpush1.bf16.msra.mxu0 0
        %8091 = vmatprep.subr.bf16.mxu0 0
        %8092 = vmatpush1.bf16.msra.mxu0 0
        %8093 = vmatprep.subr.bf16.mxu0 0
        %8094 = vmatpush1.bf16.msra.mxu0 0
        %8095 = vmatprep.subr.bf16.mxu0 0
        %8096 = vmatpush1.bf16.msra.mxu0 0
        %8097 = vmatprep.subr.bf16.mxu0 0
        %8098 = vmatpush1.bf16.msra.mxu0 0
        %8099 = vmatprep.subr.bf16.mxu0 0
        %8100 = vmatpush1.bf16.msra.mxu0 0
        %8101 = vmatprep.subr.bf16.mxu0 0
        %8102 = vmatpush1.bf16.msra.mxu0 0
        %8103 = vmatprep.subr.bf16.mxu0 0
        %8104 = vmatpush1.bf16.msra.mxu0 0
        %8105 = vmatprep.subr.bf16.mxu0 0
        %8106 = vmatpush1.bf16.msra.mxu0 0
        %8107 = vmatprep.subr.bf16.mxu0 0
        %8108 = vmatpush1.bf16.msra.mxu0 0
        %8109 = vmatprep.subr.bf16.mxu0 0
        %8110 = vmatpush1.bf16.msra.mxu0 0
        %8111 = vmatprep.subr.bf16.mxu0 0
        %8112 = vmatpush1.bf16.msra.mxu0 0
        %8113 = vmatprep.mubr.bf16.mxu0 0
        %8114 = vmatmul.mubr.bf16.gmra.mrb[0].mxu0 %v8070
        %v8115 = vpop.f32.mrb[0].mxu0
        %v8116 = vadd.f32 %v8027, %v8115
        %v8117 = vpop.f32.mrb[0].mxu0
        %v8118 = vpop.f32.mrb[0].mxu0
        %v8119 = vadd.f32 %v8030, %v8118
        %v8120 = vpop.f32.mrb[0].mxu0
        %8121 = vmatprep.mubr.bf16.mxu0 0
        %8122 = vmatmul.mubr.bf16.gmra.mrb[0].mxu0 %v8073
        %v8123 = vpop.f32.mrb[0].mxu0
        %v8124 = vadd.f32 %v8035, %v8123
        %v8125 = vpop.f32.mrb[0].mxu0
        %v8126 = vpop.f32.mrb[0].mxu0
        %v8127 = vadd.f32 %v8038, %v8126
        %v8128 = vpop.f32.mrb[0].mxu0
        %8129 = vmatprep.mubr.bf16.mxu0 0
        %8130 = vmatmul.mubr.bf16.gmra.mrb[0].mxu0 %v8076
        %v8131 = vpop.f32.mrb[0].mxu0
        %v8132 = vadd.f32 %v8043, %v8131
        %v8133 = vpop.f32.mrb[0].mxu0
        %v8134 = vpop.f32.mrb[0].mxu0
        %v8135 = vadd.f32 %v8046, %v8134
        %v8136 = vpop.f32.mrb[0].mxu0
        %8137 = vmatprep.mubr.bf16.mxu0 0
        %8138 = vmatmul.mubr.bf16.gmra.mrb[0].mxu0 %v8079
        %v8139 = vpop.f32.mrb[0].mxu0
        %v8140 = vadd.f32 %v8051, %v8139
        %v8141 = vpop.f32.mrb[0].mxu0
        %v8142 = vpop.f32.mrb[0].mxu0
        %v8143 = vadd.f32 %v8054, %v8142
        %v8144 = vpop.f32.mrb[0].mxu0
        %8145 = vdwg.mxu0
        %v8146 = vld [vmem:[#allocation2 + $0x2] sm:$0xff]
        %v8147 = vld [vmem:[#allocation2 + $0x12] sm:$0xff]
        %v8148 = vld [vmem:[#allocation2 + $0x22] sm:$0xff]
        %v8149 = vld [vmem:[#allocation2 + $0x32] sm:$0xff]
        %v8150 = vld [vmem:[#allocation2 + $0x42] sm:$0xff]
        %v8151 = vld [vmem:[#allocation2 + $0x52] sm:$0xff]
        %v8152 = vld [vmem:[#allocation2 + $0x62] sm:$0xff]
        %v8153 = vld [vmem:[#allocation2 + $0x72] sm:$0xff]
        %v8154 = vpack.c.bf16 %v8147, %v8146
        %v8155 = vpack.c.bf16 %v8149, %v8148
        %v8156 = vpack.c.bf16 %v8151, %v8150
        %v8157 = vpack.c.bf16 %v8153, %v8152
        %s8158 = scalar_lea.vmem [#allocation6], 1040
        %v8159 = vld [vmem:[%s8158] sm:$0xf]
        %v8160 = vld [vmem:[%s8158 + $0x4] sm:$0xf]
        %v8161 = vld [vmem:[%s8158 + $0x8] sm:$0xf]
        %v8162 = vld [vmem:[%s8158 + $0xc] sm:$0xf]
        %v8167 = vunpack.c.l.b16 %v8159
        %v8168 = vunpack.c.l.b16 %v8160
        %v8169 = vunpack.c.l.b16 %v8161
        %v8170 = vunpack.c.l.b16 %v8162
        %v8171 = vpack.c.b16 %v8168, %v8167
        %v8172 = vpack.c.b16 %v8170, %v8169
        %v8176 = vsel %vm178, %v8154, 0
        %v8179 = vsel %vm178, %v8155, 0
        %v8182 = vsel %vm178, %v8156, 0
        %v8185 = vsel %vm178, %v8157, 0
        %8187 = vmatprep.subr.bf16.mxu0 0
        %8188 = vmatpush1.bf16.msra.mxu0 %v8171
        %8189 = vmatprep.subr.bf16.mxu0 0
        %8190 = vmatpush1.bf16.msra.mxu0 %v8172
        %8191 = vmatprep.subr.bf16.mxu0 0
        %8192 = vmatpush1.bf16.msra.mxu0 0
        %8193 = vmatprep.subr.bf16.mxu0 0
        %8194 = vmatpush1.bf16.msra.mxu0 0
        %8195 = vmatprep.subr.bf16.mxu0 0
        %8196 = vmatpush1.bf16.msra.mxu0 0
        %8197 = vmatprep.subr.bf16.mxu0 0
        %8198 = vmatpush1.bf16.msra.mxu0 0
        %8199 = vmatprep.subr.bf16.mxu0 0
        %8200 = vmatpush1.bf16.msra.mxu0 0
        %8201 = vmatprep.subr.bf16.mxu0 0
        %8202 = vmatpush1.bf16.msra.mxu0 0
        %8203 = vmatprep.subr.bf16.mxu0 0
        %8204 = vmatpush1.bf16.msra.mxu0 0
        %8205 = vmatprep.subr.bf16.mxu0 0
        %8206 = vmatpush1.bf16.msra.mxu0 0
        %8207 = vmatprep.subr.bf16.mxu0 0
        %8208 = vmatpush1.bf16.msra.mxu0 0
        %8209 = vmatprep.subr.bf16.mxu0 0
        %8210 = vmatpush1.bf16.msra.mxu0 0
        %8211 = vmatprep.subr.bf16.mxu0 0
        %8212 = vmatpush1.bf16.msra.mxu0 0
        %8213 = vmatprep.subr.bf16.mxu0 0
        %8214 = vmatpush1.bf16.msra.mxu0 0
        %8215 = vmatprep.subr.bf16.mxu0 0
        %8216 = vmatpush1.bf16.msra.mxu0 0
        %8217 = vmatprep.subr.bf16.mxu0 0
        %8218 = vmatpush1.bf16.msra.mxu0 0
        %8219 = vmatprep.mubr.bf16.mxu0 0
        %8220 = vmatmul.mubr.bf16.gmra.mrb[0].mxu0 %v8176
        %v8221 = vpop.f32.mrb[0].mxu0
        %v8222 = vadd.f32 0.0, %v8221
        %v8223 = vpop.f32.mrb[0].mxu0
        %v8224 = vpop.f32.mrb[0].mxu0
        %v8225 = vadd.f32 0.0, %v8224
        %v8226 = vpop.f32.mrb[0].mxu0
        %8227 = vmatprep.mubr.bf16.mxu0 0
        %8228 = vmatmul.mubr.bf16.gmra.mrb[0].mxu0 %v8179
        %v8229 = vpop.f32.mrb[0].mxu0
        %v8230 = vadd.f32 0.0, %v8229
        %v8231 = vpop.f32.mrb[0].mxu0
        %v8232 = vpop.f32.mrb[0].mxu0
        %v8233 = vadd.f32 0.0, %v8232
        %v8234 = vpop.f32.mrb[0].mxu0
        %8235 = vmatprep.mubr.bf16.mxu0 0
        %8236 = vmatmul.mubr.bf16.gmra.mrb[0].mxu0 %v8182
        %v8237 = vpop.f32.mrb[0].mxu0
        %v8238 = vadd.f32 0.0, %v8237
        %v8239 = vpop.f32.mrb[0].mxu0
        %v8240 = vpop.f32.mrb[0].mxu0
        %v8241 = vadd.f32 0.0, %v8240
        %v8242 = vpop.f32.mrb[0].mxu0
        %8243 = vmatprep.mubr.bf16.mxu0 0
        %8244 = vmatmul.mubr.bf16.gmra.mrb[0].mxu0 %v8185
        %v8245 = vpop.f32.mrb[0].mxu0
        %v8246 = vadd.f32 0.0, %v8245
        %v8247 = vpop.f32.mrb[0].mxu0
        %v8248 = vpop.f32.mrb[0].mxu0
        %v8249 = vadd.f32 0.0, %v8248
        %v8250 = vpop.f32.mrb[0].mxu0
        %8251 = vdwg.mxu0
        %v8252 = vadd.f32 %v8116, %v8222
        %v8253 = vadd.f32 %v8119, %v8225
        %v8254 = vadd.f32 %v8124, %v8230
        %v8255 = vadd.f32 %v8127, %v8233
        %v8256 = vadd.f32 %v8132, %v8238
        %v8257 = vadd.f32 %v8135, %v8241
        %v8258 = vadd.f32 %v8140, %v8246
        %v8259 = vadd.f32 %v8143, %v8249
        %v8260 = vld [vmem:[%s208] sm:$0xff]
        %v8261 = vld [vmem:[%s208 + $0x10] sm:$0xff]
        %v8262 = vld [vmem:[%s208 + $0x20] sm:$0xff]
        %v8263 = vld [vmem:[%s208 + $0x30] sm:$0xff]
        %v8264 = vld [vmem:[%s208 + $0x40] sm:$0xff]
        %v8265 = vld [vmem:[%s208 + $0x50] sm:$0xff]
        %v8266 = vld [vmem:[%s208 + $0x60] sm:$0xff]
        %v8267 = vld [vmem:[%s208 + $0x70] sm:$0xff]
        %v8268 = vpack.c.bf16 %v8261, %v8260
        %v8269 = vpack.c.bf16 %v8263, %v8262
        %v8270 = vpack.c.bf16 %v8265, %v8264
        %v8271 = vpack.c.bf16 %v8267, %v8266
        %s8272 = scalar_lea.vmem [#allocation6], 1056
        %v8273 = vld [vmem:[%s8272] sm:$0xf]
        %v8274 = vld [vmem:[%s8272 + $0x4] sm:$0xf]
        %v8275 = vld [vmem:[%s8272 + $0x8] sm:$0xf]
        %v8276 = vld [vmem:[%s8272 + $0xc] sm:$0xf]
        %v8281 = vunpack.c.l.b16 %v8273
        %v8282 = vunpack.c.l.b16 %v8274
        %v8283 = vunpack.c.l.b16 %v8275
        %v8284 = vunpack.c.l.b16 %v8276
        %v8285 = vpack.c.b16 %v8282, %v8281
        %v8286 = vpack.c.b16 %v8284, %v8283
        %v8290 = vsel %vm178, %v8268, 0
        %v8293 = vsel %vm178, %v8269, 0
        %v8296 = vsel %vm178, %v8270, 0
        %v8299 = vsel %vm178, %v8271, 0
        %8301 = vmatprep.subr.bf16.mxu0 0
        %8302 = vmatpush1.bf16.msra.mxu0 %v8285
        %8303 = vmatprep.subr.bf16.mxu0 0
        %8304 = vmatpush1.bf16.msra.mxu0 %v8286
        %8305 = vmatprep.subr.bf16.mxu0 0
        %8306 = vmatpush1.bf16.msra.mxu0 0
        %8307 = vmatprep.subr.bf16.mxu0 0
        %8308 = vmatpush1.bf16.msra.mxu0 0
        %8309 = vmatprep.subr.bf16.mxu0 0
        %8310 = vmatpush1.bf16.msra.mxu0 0
        %8311 = vmatprep.subr.bf16.mxu0 0
        %8312 = vmatpush1.bf16.msra.mxu0 0
        %8313 = vmatprep.subr.bf16.mxu0 0
        %8314 = vmatpush1.bf16.msra.mxu0 0
        %8315 = vmatprep.subr.bf16.mxu0 0
        %8316 = vmatpush1.bf16.msra.mxu0 0
        %8317 = vmatprep.subr.bf16.mxu0 0
        %8318 = vmatpush1.bf16.msra.mxu0 0
        %8319 = vmatprep.subr.bf16.mxu0 0
        %8320 = vmatpush1.bf16.msra.mxu0 0
        %8321 = vmatprep.subr.bf16.mxu0 0
        %8322 = vmatpush1.bf16.msra.mxu0 0
        %8323 = vmatprep.subr.bf16.mxu0 0
        %8324 = vmatpush1.bf16.msra.mxu0 0
        %8325 = vmatprep.subr.bf16.mxu0 0
        %8326 = vmatpush1.bf16.msra.mxu0 0
        %8327 = vmatprep.subr.bf16.mxu0 0
        %8328 = vmatpush1.bf16.msra.mxu0 0
        %8329 = vmatprep.subr.bf16.mxu0 0
        %8330 = vmatpush1.bf16.msra.mxu0 0
        %8331 = vmatprep.subr.bf16.mxu0 0
        %8332 = vmatpush1.bf16.msra.mxu0 0
        %8333 = vmatprep.mubr.bf16.mxu0 0
        %8334 = vmatmul.mubr.bf16.gmra.mrb[0].mxu0 %v8290
        %v8335 = vpop.f32.mrb[0].mxu0
        %v8336 = vadd.f32 0.0, %v8335
        %v8337 = vpop.f32.mrb[0].mxu0
        %v8338 = vpop.f32.mrb[0].mxu0
        %v8339 = vadd.f32 0.0, %v8338
        %v8340 = vpop.f32.mrb[0].mxu0
        %8341 = vmatprep.mubr.bf16.mxu0 0
        %8342 = vmatmul.mubr.bf16.gmra.mrb[0].mxu0 %v8293
        %v8343 = vpop.f32.mrb[0].mxu0
        %v8344 = vadd.f32 0.0, %v8343
        %v8345 = vpop.f32.mrb[0].mxu0
        %v8346 = vpop.f32.mrb[0].mxu0
        %v8347 = vadd.f32 0.0, %v8346
        %v8348 = vpop.f32.mrb[0].mxu0
        %8349 = vmatprep.mubr.bf16.mxu0 0
        %8350 = vmatmul.mubr.bf16.gmra.mrb[0].mxu0 %v8296
        %v8351 = vpop.f32.mrb[0].mxu0
        %v8352 = vadd.f32 0.0, %v8351
        %v8353 = vpop.f32.mrb[0].mxu0
        %v8354 = vpop.f32.mrb[0].mxu0
        %v8355 = vadd.f32 0.0, %v8354
        %v8356 = vpop.f32.mrb[0].mxu0
        %8357 = vmatprep.mubr.bf16.mxu0 0
        %8358 = vmatmul.mubr.bf16.gmra.mrb[0].mxu0 %v8299
        %v8359 = vpop.f32.mrb[0].mxu0
        %v8360 = vadd.f32 0.0, %v8359
        %v8361 = vpop.f32.mrb[0].mxu0
        %v8362 = vpop.f32.mrb[0].mxu0
        %v8363 = vadd.f32 0.0, %v8362
        %v8364 = vpop.f32.mrb[0].mxu0
        %8365 = vdwg.mxu0
        %v8366 = vadd.f32 %v8252, %v8336
        %v8367 = vadd.f32 %v8253, %v8339
        %v8368 = vadd.f32 %v8254, %v8344
        %v8369 = vadd.f32 %v8255, %v8347
        %v8370 = vadd.f32 %v8256, %v8352
        %v8371 = vadd.f32 %v8257, %v8355
        %v8372 = vadd.f32 %v8258, %v8360
        %v8373 = vadd.f32 %v8259, %v8363
        %v8374 = vld [vmem:[%s208 + $0x1] sm:$0xff]
        %v8375 = vld [vmem:[%s208 + $0x11] sm:$0xff]
        %v8376 = vld [vmem:[%s208 + $0x21] sm:$0xff]
        %v8377 = vld [vmem:[%s208 + $0x31] sm:$0xff]
        %v8378 = vld [vmem:[%s208 + $0x41] sm:$0xff]
        %v8379 = vld [vmem:[%s208 + $0x51] sm:$0xff]
        %v8380 = vld [vmem:[%s208 + $0x61] sm:$0xff]
        %v8381 = vld [vmem:[%s208 + $0x71] sm:$0xff]
        %v8382 = vpack.c.bf16 %v8375, %v8374
        %v8383 = vpack.c.bf16 %v8377, %v8376
        %v8384 = vpack.c.bf16 %v8379, %v8378
        %v8385 = vpack.c.bf16 %v8381, %v8380
        %s8386 = scalar_lea.vmem [#allocation6], 1072
        %v8387 = vld [vmem:[%s8386] sm:$0xf]
        %v8388 = vld [vmem:[%s8386 + $0x4] sm:$0xf]
        %v8389 = vld [vmem:[%s8386 + $0x8] sm:$0xf]
        %v8390 = vld [vmem:[%s8386 + $0xc] sm:$0xf]
        %v8395 = vunpack.c.l.b16 %v8387
        %v8396 = vunpack.c.l.b16 %v8388
        %v8397 = vunpack.c.l.b16 %v8389
        %v8398 = vunpack.c.l.b16 %v8390
        %v8399 = vpack.c.b16 %v8396, %v8395
        %v8400 = vpack.c.b16 %v8398, %v8397
        %v8404 = vsel %vm178, %v8382, 0
        %v8407 = vsel %vm178, %v8383, 0
        %v8410 = vsel %vm178, %v8384, 0
        %v8413 = vsel %vm178, %v8385, 0
        %8415 = vmatprep.subr.bf16.mxu0 0
        %8416 = vmatpush1.bf16.msra.mxu0 %v8399
        %8417 = vmatprep.subr.bf16.mxu0 0
        %8418 = vmatpush1.bf16.msra.mxu0 %v8400
        %8419 = vmatprep.subr.bf16.mxu0 0
        %8420 = vmatpush1.bf16.msra.mxu0 0
        %8421 = vmatprep.subr.bf16.mxu0 0
        %8422 = vmatpush1.bf16.msra.mxu0 0
        %8423 = vmatprep.subr.bf16.mxu0 0
        %8424 = vmatpush1.bf16.msra.mxu0 0
        %8425 = vmatprep.subr.bf16.mxu0 0
        %8426 = vmatpush1.bf16.msra.mxu0 0
        %8427 = vmatprep.subr.bf16.mxu0 0
        %8428 = vmatpush1.bf16.msra.mxu0 0
        %8429 = vmatprep.subr.bf16.mxu0 0
        %8430 = vmatpush1.bf16.msra.mxu0 0
        %8431 = vmatprep.subr.bf16.mxu0 0
        %8432 = vmatpush1.bf16.msra.mxu0 0
        %8433 = vmatprep.subr.bf16.mxu0 0
        %8434 = vmatpush1.bf16.msra.mxu0 0
        %8435 = vmatprep.subr.bf16.mxu0 0
        %8436 = vmatpush1.bf16.msra.mxu0 0
        %8437 = vmatprep.subr.bf16.mxu0 0
        %8438 = vmatpush1.bf16.msra.mxu0 0
        %8439 = vmatprep.subr.bf16.mxu0 0
        %8440 = vmatpush1.bf16.msra.mxu0 0
        %8441 = vmatprep.subr.bf16.mxu0 0
        %8442 = vmatpush1.bf16.msra.mxu0 0
        %8443 = vmatprep.subr.bf16.mxu0 0
        %8444 = vmatpush1.bf16.msra.mxu0 0
        %8445 = vmatprep.subr.bf16.mxu0 0
        %8446 = vmatpush1.bf16.msra.mxu0 0
        %8447 = vmatprep.mubr.bf16.mxu0 0
        %8448 = vmatmul.mubr.bf16.gmra.mrb[0].mxu0 %v8404
        %v8449 = vpop.f32.mrb[0].mxu0
        %v8450 = vadd.f32 0.0, %v8449
        %v8451 = vpop.f32.mrb[0].mxu0
        %v8452 = vpop.f32.mrb[0].mxu0
        %v8453 = vadd.f32 0.0, %v8452
        %v8454 = vpop.f32.mrb[0].mxu0
        %8455 = vmatprep.mubr.bf16.mxu0 0
        %8456 = vmatmul.mubr.bf16.gmra.mrb[0].mxu0 %v8407
        %v8457 = vpop.f32.mrb[0].mxu0
        %v8458 = vadd.f32 0.0, %v8457
        %v8459 = vpop.f32.mrb[0].mxu0
        %v8460 = vpop.f32.mrb[0].mxu0
        %v8461 = vadd.f32 0.0, %v8460
        %v8462 = vpop.f32.mrb[0].mxu0
        %8463 = vmatprep.mubr.bf16.mxu0 0
        %8464 = vmatmul.mubr.bf16.gmra.mrb[0].mxu0 %v8410
        %v8465 = vpop.f32.mrb[0].mxu0
        %v8466 = vadd.f32 0.0, %v8465
        %v8467 = vpop.f32.mrb[0].mxu0
        %v8468 = vpop.f32.mrb[0].mxu0
        %v8469 = vadd.f32 0.0, %v8468
        %v8470 = vpop.f32.mrb[0].mxu0
        %8471 = vmatprep.mubr.bf16.mxu0 0
        %8472 = vmatmul.mubr.bf16.gmra.mrb[0].mxu0 %v8413
        %v8473 = vpop.f32.mrb[0].mxu0
        %v8474 = vadd.f32 0.0, %v8473
        %v8475 = vpop.f32.mrb[0].mxu0
        %v8476 = vpop.f32.mrb[0].mxu0
        %v8477 = vadd.f32 0.0, %v8476
        %v8478 = vpop.f32.mrb[0].mxu0
        %8479 = vdwg.mxu0
        %v8480 = vadd.f32 %v8366, %v8450
        %v8481 = vadd.f32 %v8367, %v8453
        %v8482 = vadd.f32 %v8368, %v8458
        %v8483 = vadd.f32 %v8369, %v8461
        %v8484 = vadd.f32 %v8370, %v8466
        %v8485 = vadd.f32 %v8371, %v8469
        %v8486 = vadd.f32 %v8372, %v8474
        %v8487 = vadd.f32 %v8373, %v8477
        %v8488 = vld [vmem:[%s208 + $0x2] sm:$0xff]
        %v8489 = vld [vmem:[%s208 + $0x12] sm:$0xff]
        %v8490 = vld [vmem:[%s208 + $0x22] sm:$0xff]
        %v8491 = vld [vmem:[%s208 + $0x32] sm:$0xff]
        %v8492 = vld [vmem:[%s208 + $0x42] sm:$0xff]
        %v8493 = vld [vmem:[%s208 + $0x52] sm:$0xff]
        %v8494 = vld [vmem:[%s208 + $0x62] sm:$0xff]
        %v8495 = vld [vmem:[%s208 + $0x72] sm:$0xff]
        %v8496 = vpack.c.bf16 %v8489, %v8488
        %v8497 = vpack.c.bf16 %v8491, %v8490
        %v8498 = vpack.c.bf16 %v8493, %v8492
        %v8499 = vpack.c.bf16 %v8495, %v8494
        %s8500 = scalar_lea.vmem [#allocation6], 1088
        %v8501 = vld [vmem:[%s8500] sm:$0xf]
        %v8502 = vld [vmem:[%s8500 + $0x4] sm:$0xf]
        %v8503 = vld [vmem:[%s8500 + $0x8] sm:$0xf]
        %v8504 = vld [vmem:[%s8500 + $0xc] sm:$0xf]
        %v8509 = vunpack.c.l.b16 %v8501
        %v8510 = vunpack.c.l.b16 %v8502
        %v8511 = vunpack.c.l.b16 %v8503
        %v8512 = vunpack.c.l.b16 %v8504
        %v8513 = vpack.c.b16 %v8510, %v8509
        %v8514 = vpack.c.b16 %v8512, %v8511
        %v8518 = vsel %vm178, %v8496, 0
        %v8521 = vsel %vm178, %v8497, 0
        %v8524 = vsel %vm178, %v8498, 0
        %v8527 = vsel %vm178, %v8499, 0
        %8529 = vmatprep.subr.bf16.mxu0 0
        %8530 = vmatpush1.bf16.msra.mxu0 %v8513
        %8531 = vmatprep.subr.bf16.mxu0 0
        %8532 = vmatpush1.bf16.msra.mxu0 %v8514
        %8533 = vmatprep.subr.bf16.mxu0 0
        %8534 = vmatpush1.bf16.msra.mxu0 0
        %8535 = vmatprep.subr.bf16.mxu0 0
        %8536 = vmatpush1.bf16.msra.mxu0 0
        %8537 = vmatprep.subr.bf16.mxu0 0
        %8538 = vmatpush1.bf16.msra.mxu0 0
        %8539 = vmatprep.subr.bf16.mxu0 0
        %8540 = vmatpush1.bf16.msra.mxu0 0
        %8541 = vmatprep.subr.bf16.mxu0 0
        %8542 = vmatpush1.bf16.msra.mxu0 0
        %8543 = vmatprep.subr.bf16.mxu0 0
        %8544 = vmatpush1.bf16.msra.mxu0 0
        %8545 = vmatprep.subr.bf16.mxu0 0
        %8546 = vmatpush1.bf16.msra.mxu0 0
        %8547 = vmatprep.subr.bf16.mxu0 0
        %8548 = vmatpush1.bf16.msra.mxu0 0
        %8549 = vmatprep.subr.bf16.mxu0 0
        %8550 = vmatpush1.bf16.msra.mxu0 0
        %8551 = vmatprep.subr.bf16.mxu0 0
        %8552 = vmatpush1.bf16.msra.mxu0 0
        %8553 = vmatprep.subr.bf16.mxu0 0
        %8554 = vmatpush1.bf16.msra.mxu0 0
        %8555 = vmatprep.subr.bf16.mxu0 0
        %8556 = vmatpush1.bf16.msra.mxu0 0
        %8557 = vmatprep.subr.bf16.mxu0 0
        %8558 = vmatpush1.bf16.msra.mxu0 0
        %8559 = vmatprep.subr.bf16.mxu0 0
        %8560 = vmatpush1.bf16.msra.mxu0 0
        %8561 = vmatprep.mubr.bf16.mxu0 0
        %8562 = vmatmul.mubr.bf16.gmra.mrb[0].mxu0 %v8518
        %v8563 = vpop.f32.mrb[0].mxu0
        %v8564 = vadd.f32 0.0, %v8563
        %v8565 = vpop.f32.mrb[0].mxu0
        %v8566 = vpop.f32.mrb[0].mxu0
        %v8567 = vadd.f32 0.0, %v8566
        %v8568 = vpop.f32.mrb[0].mxu0
        %8569 = vmatprep.mubr.bf16.mxu0 0
        %8570 = vmatmul.mubr.bf16.gmra.mrb[0].mxu0 %v8521
        %v8571 = vpop.f32.mrb[0].mxu0
        %v8572 = vadd.f32 0.0, %v8571
        %v8573 = vpop.f32.mrb[0].mxu0
        %v8574 = vpop.f32.mrb[0].mxu0
        %v8575 = vadd.f32 0.0, %v8574
        %v8576 = vpop.f32.mrb[0].mxu0
        %8577 = vmatprep.mubr.bf16.mxu0 0
        %8578 = vmatmul.mubr.bf16.gmra.mrb[0].mxu0 %v8524
        %v8579 = vpop.f32.mrb[0].mxu0
        %v8580 = vadd.f32 0.0, %v8579
        %v8581 = vpop.f32.mrb[0].mxu0
        %v8582 = vpop.f32.mrb[0].mxu0
        %v8583 = vadd.f32 0.0, %v8582
        %v8584 = vpop.f32.mrb[0].mxu0
        %8585 = vmatprep.mubr.bf16.mxu0 0
        %8586 = vmatmul.mubr.bf16.gmra.mrb[0].mxu0 %v8527
        %v8587 = vpop.f32.mrb[0].mxu0
        %v8588 = vadd.f32 0.0, %v8587
        %v8589 = vpop.f32.mrb[0].mxu0
        %v8590 = vpop.f32.mrb[0].mxu0
        %v8591 = vadd.f32 0.0, %v8590
        %v8592 = vpop.f32.mrb[0].mxu0
        %8593 = vdwg.mxu0
        %v8594 = vadd.f32 %v8480, %v8564
        %v8595 = vadd.f32 %v8481, %v8567
        %v8596 = vadd.f32 %v8482, %v8572
        %v8597 = vadd.f32 %v8483, %v8575
        %v8598 = vadd.f32 %v8484, %v8580
        %v8599 = vadd.f32 %v8485, %v8583
        %v8600 = vadd.f32 %v8486, %v8588
        %v8601 = vadd.f32 %v8487, %v8591
        %v8602 = vld [vmem:[%s884] sm:$0xff]
        %v8603 = vld [vmem:[%s884 + $0x10] sm:$0xff]
        %v8604 = vld [vmem:[%s884 + $0x20] sm:$0xff]
        %v8605 = vld [vmem:[%s884 + $0x30] sm:$0xff]
        %v8606 = vld [vmem:[%s884 + $0x40] sm:$0xff]
        %v8607 = vld [vmem:[%s884 + $0x50] sm:$0xff]
        %v8608 = vld [vmem:[%s884 + $0x60] sm:$0xff]
        %v8609 = vld [vmem:[%s884 + $0x70] sm:$0xff]
        %v8610 = vpack.c.bf16 %v8603, %v8602
        %v8611 = vpack.c.bf16 %v8605, %v8604
        %v8612 = vpack.c.bf16 %v8607, %v8606
        %v8613 = vpack.c.bf16 %v8609, %v8608
        %s8614 = scalar_lea.vmem [#allocation6], 1104
        %v8615 = vld [vmem:[%s8614] sm:$0xf]
        %v8616 = vld [vmem:[%s8614 + $0x4] sm:$0xf]
        %v8617 = vld [vmem:[%s8614 + $0x8] sm:$0xf]
        %v8618 = vld [vmem:[%s8614 + $0xc] sm:$0xf]
        %v8623 = vunpack.c.l.b16 %v8615
        %v8624 = vunpack.c.l.b16 %v8616
        %v8625 = vunpack.c.l.b16 %v8617
        %v8626 = vunpack.c.l.b16 %v8618
        %v8627 = vpack.c.b16 %v8624, %v8623
        %v8628 = vpack.c.b16 %v8626, %v8625
        %v8632 = vsel %vm178, %v8610, 0
        %v8635 = vsel %vm178, %v8611, 0
        %v8638 = vsel %vm178, %v8612, 0
        %v8641 = vsel %vm178, %v8613, 0
        %8643 = vmatprep.subr.bf16.mxu0 0
        %8644 = vmatpush1.bf16.msra.mxu0 %v8627
        %8645 = vmatprep.subr.bf16.mxu0 0
        %8646 = vmatpush1.bf16.msra.mxu0 %v8628
        %8647 = vmatprep.subr.bf16.mxu0 0
        %8648 = vmatpush1.bf16.msra.mxu0 0
        %8649 = vmatprep.subr.bf16.mxu0 0
        %8650 = vmatpush1.bf16.msra.mxu0 0
        %8651 = vmatprep.subr.bf16.mxu0 0
        %8652 = vmatpush1.bf16.msra.mxu0 0
        %8653 = vmatprep.subr.bf16.mxu0 0
        %8654 = vmatpush1.bf16.msra.mxu0 0
        %8655 = vmatprep.subr.bf16.mxu0 0
        %8656 = vmatpush1.bf16.msra.mxu0 0
        %8657 = vmatprep.subr.bf16.mxu0 0
        %8658 = vmatpush1.bf16.msra.mxu0 0
        %8659 = vmatprep.subr.bf16.mxu0 0
        %8660 = vmatpush1.bf16.msra.mxu0 0
        %8661 = vmatprep.subr.bf16.mxu0 0
        %8662 = vmatpush1.bf16.msra.mxu0 0
        %8663 = vmatprep.subr.bf16.mxu0 0
        %8664 = vmatpush1.bf16.msra.mxu0 0
        %8665 = vmatprep.subr.bf16.mxu0 0
        %8666 = vmatpush1.bf16.msra.mxu0 0
        %8667 = vmatprep.subr.bf16.mxu0 0
        %8668 = vmatpush1.bf16.msra.mxu0 0
        %8669 = vmatprep.subr.bf16.mxu0 0
        %8670 = vmatpush1.bf16.msra.mxu0 0
        %8671 = vmatprep.subr.bf16.mxu0 0
        %8672 = vmatpush1.bf16.msra.mxu0 0
        %8673 = vmatprep.subr.bf16.mxu0 0
        %8674 = vmatpush1.bf16.msra.mxu0 0
        %8675 = vmatprep.mubr.bf16.mxu0 0
        %8676 = vmatmul.mubr.bf16.gmra.mrb[0].mxu0 %v8632
        %v8677 = vpop.f32.mrb[0].mxu0
        %v8678 = vadd.f32 0.0, %v8677
        %v8679 = vpop.f32.mrb[0].mxu0
        %v8680 = vpop.f32.mrb[0].mxu0
        %v8681 = vadd.f32 0.0, %v8680
        %v8682 = vpop.f32.mrb[0].mxu0
        %8683 = vmatprep.mubr.bf16.mxu0 0
        %8684 = vmatmul.mubr.bf16.gmra.mrb[0].mxu0 %v8635
        %v8685 = vpop.f32.mrb[0].mxu0
        %v8686 = vadd.f32 0.0, %v8685
        %v8687 = vpop.f32.mrb[0].mxu0
        %v8688 = vpop.f32.mrb[0].mxu0
        %v8689 = vadd.f32 0.0, %v8688
        %v8690 = vpop.f32.mrb[0].mxu0
        %8691 = vmatprep.mubr.bf16.mxu0 0
        %8692 = vmatmul.mubr.bf16.gmra.mrb[0].mxu0 %v8638
        %v8693 = vpop.f32.mrb[0].mxu0
        %v8694 = vadd.f32 0.0, %v8693
        %v8695 = vpop.f32.mrb[0].mxu0
        %v8696 = vpop.f32.mrb[0].mxu0
        %v8697 = vadd.f32 0.0, %v8696
        %v8698 = vpop.f32.mrb[0].mxu0
        %8699 = vmatprep.mubr.bf16.mxu0 0
        %8700 = vmatmul.mubr.bf16.gmra.mrb[0].mxu0 %v8641
        %v8701 = vpop.f32.mrb[0].mxu0
        %v8702 = vadd.f32 0.0, %v8701
        %v8703 = vpop.f32.mrb[0].mxu0
        %v8704 = vpop.f32.mrb[0].mxu0
        %v8705 = vadd.f32 0.0, %v8704
        %v8706 = vpop.f32.mrb[0].mxu0
        %8707 = vdwg.mxu0
        %v8708 = vadd.f32 %v8594, %v8678
        %v8709 = vadd.f32 %v8595, %v8681
        %v8710 = vadd.f32 %v8596, %v8686
        %v8711 = vadd.f32 %v8597, %v8689
        %v8712 = vadd.f32 %v8598, %v8694
        %v8713 = vadd.f32 %v8599, %v8697
        %v8714 = vadd.f32 %v8600, %v8702
        %v8715 = vadd.f32 %v8601, %v8705
        %v8716 = vld [vmem:[%s884 + $0x1] sm:$0xff]
        %v8717 = vld [vmem:[%s884 + $0x11] sm:$0xff]
        %v8718 = vld [vmem:[%s884 + $0x21] sm:$0xff]
        %v8719 = vld [vmem:[%s884 + $0x31] sm:$0xff]
        %v8720 = vld [vmem:[%s884 + $0x41] sm:$0xff]
        %v8721 = vld [vmem:[%s884 + $0x51] sm:$0xff]
        %v8722 = vld [vmem:[%s884 + $0x61] sm:$0xff]
        %v8723 = vld [vmem:[%s884 + $0x71] sm:$0xff]
        %v8724 = vpack.c.bf16 %v8717, %v8716
        %v8725 = vpack.c.bf16 %v8719, %v8718
        %v8726 = vpack.c.bf16 %v8721, %v8720
        %v8727 = vpack.c.bf16 %v8723, %v8722
        %s8728 = scalar_lea.vmem [#allocation6], 1120
        %v8729 = vld [vmem:[%s8728] sm:$0xf]
        %v8730 = vld [vmem:[%s8728 + $0x4] sm:$0xf]
        %v8731 = vld [vmem:[%s8728 + $0x8] sm:$0xf]
        %v8732 = vld [vmem:[%s8728 + $0xc] sm:$0xf]
        %v8737 = vunpack.c.l.b16 %v8729
        %v8738 = vunpack.c.l.b16 %v8730
        %v8739 = vunpack.c.l.b16 %v8731
        %v8740 = vunpack.c.l.b16 %v8732
        %v8741 = vpack.c.b16 %v8738, %v8737
        %v8742 = vpack.c.b16 %v8740, %v8739
        %v8746 = vsel %vm178, %v8724, 0
        %v8749 = vsel %vm178, %v8725, 0
        %v8752 = vsel %vm178, %v8726, 0
        %v8755 = vsel %vm178, %v8727, 0
        %8757 = vmatprep.subr.bf16.mxu0 0
        %8758 = vmatpush1.bf16.msra.mxu0 %v8741
        %8759 = vmatprep.subr.bf16.mxu0 0
        %8760 = vmatpush1.bf16.msra.mxu0 %v8742
        %8761 = vmatprep.subr.bf16.mxu0 0
        %8762 = vmatpush1.bf16.msra.mxu0 0
        %8763 = vmatprep.subr.bf16.mxu0 0
        %8764 = vmatpush1.bf16.msra.mxu0 0
        %8765 = vmatprep.subr.bf16.mxu0 0
        %8766 = vmatpush1.bf16.msra.mxu0 0
        %8767 = vmatprep.subr.bf16.mxu0 0
        %8768 = vmatpush1.bf16.msra.mxu0 0
        %8769 = vmatprep.subr.bf16.mxu0 0
        %8770 = vmatpush1.bf16.msra.mxu0 0
        %8771 = vmatprep.subr.bf16.mxu0 0
        %8772 = vmatpush1.bf16.msra.mxu0 0
        %8773 = vmatprep.subr.bf16.mxu0 0
        %8774 = vmatpush1.bf16.msra.mxu0 0
        %8775 = vmatprep.subr.bf16.mxu0 0
        %8776 = vmatpush1.bf16.msra.mxu0 0
        %8777 = vmatprep.subr.bf16.mxu0 0
        %8778 = vmatpush1.bf16.msra.mxu0 0
        %8779 = vmatprep.subr.bf16.mxu0 0
        %8780 = vmatpush1.bf16.msra.mxu0 0
        %8781 = vmatprep.subr.bf16.mxu0 0
        %8782 = vmatpush1.bf16.msra.mxu0 0
        %8783 = vmatprep.subr.bf16.mxu0 0
        %8784 = vmatpush1.bf16.msra.mxu0 0
        %8785 = vmatprep.subr.bf16.mxu0 0
        %8786 = vmatpush1.bf16.msra.mxu0 0
        %8787 = vmatprep.subr.bf16.mxu0 0
        %8788 = vmatpush1.bf16.msra.mxu0 0
        %8789 = vmatprep.mubr.bf16.mxu0 0
        %8790 = vmatmul.mubr.bf16.gmra.mrb[0].mxu0 %v8746
        %v8791 = vpop.f32.mrb[0].mxu0
        %v8792 = vadd.f32 0.0, %v8791
        %v8793 = vpop.f32.mrb[0].mxu0
        %v8794 = vpop.f32.mrb[0].mxu0
        %v8795 = vadd.f32 0.0, %v8794
        %v8796 = vpop.f32.mrb[0].mxu0
        %8797 = vmatprep.mubr.bf16.mxu0 0
        %8798 = vmatmul.mubr.bf16.gmra.mrb[0].mxu0 %v8749
        %v8799 = vpop.f32.mrb[0].mxu0
        %v8800 = vadd.f32 0.0, %v8799
        %v8801 = vpop.f32.mrb[0].mxu0
        %v8802 = vpop.f32.mrb[0].mxu0
        %v8803 = vadd.f32 0.0, %v8802
        %v8804 = vpop.f32.mrb[0].mxu0
        %8805 = vmatprep.mubr.bf16.mxu0 0
        %8806 = vmatmul.mubr.bf16.gmra.mrb[0].mxu0 %v8752
        %v8807 = vpop.f32.mrb[0].mxu0
        %v8808 = vadd.f32 0.0, %v8807
        %v8809 = vpop.f32.mrb[0].mxu0
        %v8810 = vpop.f32.mrb[0].mxu0
        %v8811 = vadd.f32 0.0, %v8810
        %v8812 = vpop.f32.mrb[0].mxu0
        %8813 = vmatprep.mubr.bf16.mxu0 0
        %8814 = vmatmul.mubr.bf16.gmra.mrb[0].mxu0 %v8755
        %v8815 = vpop.f32.mrb[0].mxu0
        %v8816 = vadd.f32 0.0, %v8815
        %v8817 = vpop.f32.mrb[0].mxu0
        %v8818 = vpop.f32.mrb[0].mxu0
        %v8819 = vadd.f32 0.0, %v8818
        %v8820 = vpop.f32.mrb[0].mxu0
        %8821 = vdwg.mxu0
        %v8822 = vadd.f32 %v8708, %v8792
        %v8823 = vadd.f32 %v8709, %v8795
        %v8824 = vadd.f32 %v8710, %v8800
        %v8825 = vadd.f32 %v8711, %v8803
        %v8826 = vadd.f32 %v8712, %v8808
        %v8827 = vadd.f32 %v8713, %v8811
        %v8828 = vadd.f32 %v8714, %v8816
        %v8829 = vadd.f32 %v8715, %v8819
        %v8830 = vld [vmem:[%s884 + $0x2] sm:$0xff]
        %v8831 = vld [vmem:[%s884 + $0x12] sm:$0xff]
        %v8832 = vld [vmem:[%s884 + $0x22] sm:$0xff]
        %v8833 = vld [vmem:[%s884 + $0x32] sm:$0xff]
        %v8834 = vld [vmem:[%s884 + $0x42] sm:$0xff]
        %v8835 = vld [vmem:[%s884 + $0x52] sm:$0xff]
        %v8836 = vld [vmem:[%s884 + $0x62] sm:$0xff]
        %v8837 = vld [vmem:[%s884 + $0x72] sm:$0xff]
        %v8838 = vpack.c.bf16 %v8831, %v8830
        %v8839 = vpack.c.bf16 %v8833, %v8832
        %v8840 = vpack.c.bf16 %v8835, %v8834
        %v8841 = vpack.c.bf16 %v8837, %v8836
        %s8842 = scalar_lea.vmem [#allocation6], 1136
        %v8843 = vld [vmem:[%s8842] sm:$0xf]
        %v8844 = vld [vmem:[%s8842 + $0x4] sm:$0xf]
        %v8845 = vld [vmem:[%s8842 + $0x8] sm:$0xf]
        %v8846 = vld [vmem:[%s8842 + $0xc] sm:$0xf]
        %v8851 = vunpack.c.l.b16 %v8843
        %v8852 = vunpack.c.l.b16 %v8844
        %v8853 = vunpack.c.l.b16 %v8845
        %v8854 = vunpack.c.l.b16 %v8846
        %v8855 = vpack.c.b16 %v8852, %v8851
        %v8856 = vpack.c.b16 %v8854, %v8853
        %v8860 = vsel %vm178, %v8838, 0
        %v8863 = vsel %vm178, %v8839, 0
        %v8866 = vsel %vm178, %v8840, 0
        %v8869 = vsel %vm178, %v8841, 0
        %8871 = vmatprep.subr.bf16.mxu0 0
        %8872 = vmatpush1.bf16.msra.mxu0 %v8855
        %8873 = vmatprep.subr.bf16.mxu0 0
        %8874 = vmatpush1.bf16.msra.mxu0 %v8856
        %8875 = vmatprep.subr.bf16.mxu0 0
        %8876 = vmatpush1.bf16.msra.mxu0 0
        %8877 = vmatprep.subr.bf16.mxu0 0
        %8878 = vmatpush1.bf16.msra.mxu0 0
        %8879 = vmatprep.subr.bf16.mxu0 0
        %8880 = vmatpush1.bf16.msra.mxu0 0
        %8881 = vmatprep.subr.bf16.mxu0 0
        %8882 = vmatpush1.bf16.msra.mxu0 0
        %8883 = vmatprep.subr.bf16.mxu0 0
        %8884 = vmatpush1.bf16.msra.mxu0 0
        %8885 = vmatprep.subr.bf16.mxu0 0
        %8886 = vmatpush1.bf16.msra.mxu0 0
        %8887 = vmatprep.subr.bf16.mxu0 0
        %8888 = vmatpush1.bf16.msra.mxu0 0
        %8889 = vmatprep.subr.bf16.mxu0 0
        %8890 = vmatpush1.bf16.msra.mxu0 0
        %8891 = vmatprep.subr.bf16.mxu0 0
        %8892 = vmatpush1.bf16.msra.mxu0 0
        %8893 = vmatprep.subr.bf16.mxu0 0
        %8894 = vmatpush1.bf16.msra.mxu0 0
        %8895 = vmatprep.subr.bf16.mxu0 0
        %8896 = vmatpush1.bf16.msra.mxu0 0
        %8897 = vmatprep.subr.bf16.mxu0 0
        %8898 = vmatpush1.bf16.msra.mxu0 0
        %8899 = vmatprep.subr.bf16.mxu0 0
        %8900 = vmatpush1.bf16.msra.mxu0 0
        %8901 = vmatprep.subr.bf16.mxu0 0
        %8902 = vmatpush1.bf16.msra.mxu0 0
        %8903 = vmatprep.mubr.bf16.mxu0 0
        %8904 = vmatmul.mubr.bf16.gmra.mrb[0].mxu0 %v8860
        %v8905 = vpop.f32.mrb[0].mxu0
        %v8906 = vadd.f32 0.0, %v8905
        %v8907 = vpop.f32.mrb[0].mxu0
        %v8908 = vpop.f32.mrb[0].mxu0
        %v8909 = vadd.f32 0.0, %v8908
        %v8910 = vpop.f32.mrb[0].mxu0
        %8911 = vmatprep.mubr.bf16.mxu0 0
        %8912 = vmatmul.mubr.bf16.gmra.mrb[0].mxu0 %v8863
        %v8913 = vpop.f32.mrb[0].mxu0
        %v8914 = vadd.f32 0.0, %v8913
        %v8915 = vpop.f32.mrb[0].mxu0
        %v8916 = vpop.f32.mrb[0].mxu0
        %v8917 = vadd.f32 0.0, %v8916
        %v8918 = vpop.f32.mrb[0].mxu0
        %8919 = vmatprep.mubr.bf16.mxu0 0
        %8920 = vmatmul.mubr.bf16.gmra.mrb[0].mxu0 %v8866
        %v8921 = vpop.f32.mrb[0].mxu0
        %v8922 = vadd.f32 0.0, %v8921
        %v8923 = vpop.f32.mrb[0].mxu0
        %v8924 = vpop.f32.mrb[0].mxu0
        %v8925 = vadd.f32 0.0, %v8924
        %v8926 = vpop.f32.mrb[0].mxu0
        %8927 = vmatprep.mubr.bf16.mxu0 0
        %8928 = vmatmul.mubr.bf16.gmra.mrb[0].mxu0 %v8869
        %v8929 = vpop.f32.mrb[0].mxu0
        %v8930 = vadd.f32 0.0, %v8929
        %v8931 = vpop.f32.mrb[0].mxu0
        %v8932 = vpop.f32.mrb[0].mxu0
        %v8933 = vadd.f32 0.0, %v8932
        %v8934 = vpop.f32.mrb[0].mxu0
        %8935 = vdwg.mxu0
        %v8936 = vadd.f32 %v8822, %v8906
        %v8937 = vadd.f32 %v8823, %v8909
        %v8938 = vadd.f32 %v8824, %v8914
        %v8939 = vadd.f32 %v8825, %v8917
        %v8940 = vadd.f32 %v8826, %v8922
        %v8941 = vadd.f32 %v8827, %v8925
        %v8942 = vadd.f32 %v8828, %v8930
        %v8943 = vadd.f32 %v8829, %v8933
        %v8944 = vsel %vm178, %v8936, 0.0
        %v8945 = vsel %vm178, %v8937, 0.0
        %v8946 = vadd.f32 %v8944, %v8945
        %v8947 = vsel %vm178, %v8938, 0.0
        %v8948 = vadd.f32 %v8946, %v8947
        %v8949 = vsel %vm178, %v8939, 0.0
        %v8950 = vadd.f32 %v8948, %v8949
        %v8951 = vsel %vm178, %v8940, 0.0
        %v8952 = vadd.f32 %v8950, %v8951
        %v8953 = vsel %vm178, %v8941, 0.0
        %v8954 = vadd.f32 %v8952, %v8953
        %v8955 = vsel %vm178, %v8942, 0.0
        %v8956 = vadd.f32 %v8954, %v8955
        %v8957 = vsel %vm178, %v8943, 0.0
        %v8958 = vadd.f32 %v8956, %v8957
        %v8959 = vrot.slane %v8958, 4
        %v8960 = vadd.f32 %v8958, %v8959
        %v8961 = vrot.slane %v8960, 2
        %v8962 = vadd.f32 %v8960, %v8961
        %v8963 = vrot.slane %v8962, 1
        %v8964 = vadd.f32 %v8962, %v8963
        %v8965 = vmul.f32 %v8964, 0.015625
        %v8966 = vmul.f32 %v8936, %v8936
        %v8967 = vmul.f32 %v8937, %v8937
        %v8968 = vmul.f32 %v8938, %v8938
        %v8969 = vmul.f32 %v8939, %v8939
        %v8970 = vmul.f32 %v8940, %v8940
        %v8971 = vmul.f32 %v8941, %v8941
        %v8972 = vmul.f32 %v8942, %v8942
        %v8973 = vmul.f32 %v8943, %v8943
        %v8974 = vsel %vm178, %v8966, 0.0
        %v8975 = vsel %vm178, %v8967, 0.0
        %v8976 = vadd.f32 %v8974, %v8975
        %v8977 = vsel %vm178, %v8968, 0.0
        %v8978 = vadd.f32 %v8976, %v8977
        %v8979 = vsel %vm178, %v8969, 0.0
        %v8980 = vadd.f32 %v8978, %v8979
        %v8981 = vsel %vm178, %v8970, 0.0
        %v8982 = vadd.f32 %v8980, %v8981
        %v8983 = vsel %vm178, %v8971, 0.0
        %v8984 = vadd.f32 %v8982, %v8983
        %v8985 = vsel %vm178, %v8972, 0.0
        %v8986 = vadd.f32 %v8984, %v8985
        %v8987 = vsel %vm178, %v8973, 0.0
        %v8988 = vadd.f32 %v8986, %v8987
        %v8989 = vrot.slane %v8988, 4
        %v8990 = vadd.f32 %v8988, %v8989
        %v8991 = vrot.slane %v8990, 2
        %v8992 = vadd.f32 %v8990, %v8991
        %v8993 = vrot.slane %v8992, 1
        %v8994 = vadd.f32 %v8992, %v8993
        %v8995 = vmul.f32 %v8994, 0.015625
        %v8996 = vmul.f32 %v8965, %v8965
        %v8997 = vsub.f32 %v8995, %v8996
        %v8998 = vmax.f32 %v8997, 0.0
        %v8999 = vsub.f32 %v8936, %v8965
        %v9000 = vsub.f32 %v8937, %v8965
        %v9001 = vsub.f32 %v8938, %v8965
        %v9002 = vsub.f32 %v8939, %v8965
        %v9003 = vsub.f32 %v8940, %v8965
        %v9004 = vsub.f32 %v8941, %v8965
        %v9005 = vsub.f32 %v8942, %v8965
        %v9006 = vsub.f32 %v8943, %v8965
        %v9007 = vadd.f32 %v8998, 1e-05
        %v9008 = vrsqrt.pop %v9007
        %v9009 = vmul.f32 %v8999, %v9008
        %v9010 = vmul.f32 %v9000, %v9008
        %v9011 = vmul.f32 %v9001, %v9008
        %v9012 = vmul.f32 %v9002, %v9008
        %v9013 = vmul.f32 %v9003, %v9008
        %v9014 = vmul.f32 %v9004, %v9008
        %v9015 = vmul.f32 %v9005, %v9008
        %v9016 = vmul.f32 %v9006, %v9008
        %v9017 = vadd.f32 %v9009, %v6819
        %v9018 = vadd.f32 %v9010, %v6820
        %v9019 = vadd.f32 %v9011, %v6821
        %v9020 = vadd.f32 %v9012, %v6822
        %v9021 = vadd.f32 %v9013, %v6823
        %v9022 = vadd.f32 %v9014, %v6824
        %v9023 = vadd.f32 %v9015, %v6825
        %v9024 = vadd.f32 %v9016, %v6826
        %v9025 = vmax.f32 %v9017, 0.0
        %v9026 = vmax.f32 %v9018, 0.0
        %v9027 = vmax.f32 %v9019, 0.0
        %v9028 = vmax.f32 %v9020, 0.0
        %v9029 = vmax.f32 %v9021, 0.0
        %v9030 = vmax.f32 %v9022, 0.0
        %v9031 = vmax.f32 %v9023, 0.0
        %v9032 = vmax.f32 %v9024, 0.0
        %9033 = vst.msk [vmem:[%s176] sm:$0xff] %vm178, %v9025
        %9034 = vst.msk [vmem:[%s176 + $0x8] sm:$0xff] %vm178, %v9026
        %9035 = vst.msk [vmem:[%s176 + $0x10] sm:$0xff] %vm178, %v9027
        %9036 = vst.msk [vmem:[%s176 + $0x18] sm:$0xff] %vm178, %v9028
        %9037 = vst.msk [vmem:[%s176 + $0x20] sm:$0xff] %vm178, %v9029
        %9038 = vst.msk [vmem:[%s176 + $0x28] sm:$0xff] %vm178, %v9030
        %9039 = vst.msk [vmem:[%s176 + $0x30] sm:$0xff] %vm178, %v9031
        %9040 = vst.msk [vmem:[%s176 + $0x38] sm:$0xff] %vm178, %v9032
        %s9041 = sand.u32 %s75, 1
        %s9042 = scalar_lea.sflag [#allocation5], %s9041
        %s9043 = sand.u32 %s75, 1
        %s9044 = smul.addr %s9043, 64
        %s9045 = scalar_lea.vmem [#allocation8], %s9044
        // Predicated region
        $region37: #{tpu_custom_call.1} parent=27 // pred_check
          %p9046 = pneg %p85
        $region38: #{tpu_custom_call.1} parent=27 // pred_check_branch
          %9048 = sbr.rel (%p9046) target = $region40
        $region39: #{tpu_custom_call.1} parent=27 // pred_region
          %s9050 = ssub.s32 1024, 1024
          %9051 = vsyncadd %s9042, %s9050
          %s9052 = smul.addr %s20, 8
          %s9053 = smul.addr %s9052, 128
          %s9054 = scalar_lea.hbm %s2, %s9053
          %s9055 = sshll.u32 %s9045, 4
          %s9056 = int_to_ptr.vmem [resolvable:$true] %s9055
          %9061 = dma.vmem_to_hbm [thread:$0]  %s9056, 1024, %s9054, %s9042, 128, 128, 8
        $region40: #{tpu_custom_call.1} parent=27 // pred_fallthru
          _
      $region28: #{tpu_custom_call.1} parent=5 // pred_fallthru
        _
      %p9062 = scmp.le.s32.totalorder 2, %s15
      // Predicated region
      $region41: #{tpu_custom_call.1} parent=5 // pred_check
        %p9063 = pneg %p9062
      $region42: #{tpu_custom_call.1} parent=5 // pred_check_branch
        %9065 = sbr.rel (%p9063) target = $region44
      $region43: #{tpu_custom_call.1} parent=5 // pred_region
        %s9066 = ssub.s32 %s15, 2
        // Predicated region
        $region45: #{tpu_custom_call.1} parent=43 // pred_check
          %p9067 = pneg %p91
        $region46: #{tpu_custom_call.1} parent=43 // pred_check_branch
          %9069 = sbr.rel (%p9067) target = $region48
        $region47: #{tpu_custom_call.1} parent=43 // pred_region
          %s9070 = sand.u32 %s76, 1
          %s9071 = scalar_lea.sflag [#allocation5], %s9070
          %s9072 = sand.u32 %s76, 1
          %s9073 = smul.addr %s9072, 64
          %s9074 = scalar_lea.vmem [#allocation8], %s9073
          %9075 = dma.done %s9071, 1024
        $region48: #{tpu_custom_call.1} parent=43 // pred_fallthru
          _
      $region44: #{tpu_custom_call.1} parent=5 // pred_fallthru
        _
    $region6: #{tpu_custom_call.1} parent=1 // loop_footer
      %s19 = sadd.s32 1, %s15
    $region7: #{tpu_custom_call.1} parent=1 // loop_footer_branch
      %14 = sbr.rel target = $region3
    $region8: #{tpu_custom_call.1} parent=1 // loop_exit
      _
    %9076 = vsyncpa [#allocation4], 1
    %s9077 = scalar_lea.sflag [#allocation4], 1
    %9078 = vsyncpa %s9077, 1
    %9079 = vsyncpa [#allocation7], 1
    %9080 = vsyncpa [#allocation5], 1
    %s9081 = scalar_lea.sflag [#allocation5], 1
    %9082 = vsyncpa %s9081, 1

</llo_original>
